<compile_context>
chip_gen: v6e
topology: v6e:2x2x1
jax: 0.10.0
libtpu: 0.0.40
codegen_flags: <defaults>
</compile_context>

<pallas_src>
from functools import partial

import jax
import jax.numpy as jnp
from jax.experimental import pallas as pl
from jax.experimental.pallas import tpu as pltpu


# ----------------------------------------------------------------------------
# Pallas kernel: fused (depthwise 3x3 -> pointwise 1x1 [-> LeakyReLU]) for one
# (batch element, output-row block), as 9 accumulated lane-dense MXU matmuls.
# ----------------------------------------------------------------------------
def _dwpw_kernel(x_ref, w_ref, b_ref, o_ref, *, stride, bh, wo, cin, cout,
                 neg_slope):
    # x_ref : (1, s*s, Cin, Hq, Wq)  channel-major stride-phase view (whole image)
    # w_ref : (9, Cout, Cin)         folded depthwise*pointwise weights (tap-major)
    # b_ref : (Cout, 1)              folded bias (f32)
    # o_ref : (1, Cout, bh*Wo)       lane axis = flattened spatial block
    s = stride
    j = pl.program_id(1)                       # output-row block index
    mblk = bh * wo
    acc = jnp.zeros((cout, mblk), jnp.float32)
    for di in range(3):
        for dj in range(3):
            t = di * 3 + dj
            ph = (di % s) * s + (dj % s)       # which stride phase (static)
            oi, oj = di // s, dj // s          # static offset inside the phase
            tap = x_ref[0, ph, :, pl.ds(j * bh + oi, bh), pl.ds(oj, wo)]
            tap2d = tap.reshape(cin, mblk)     # (Cin, M) — spatial on lanes
            acc = acc + jnp.dot(w_ref[t], tap2d,
                                preferred_element_type=jnp.float32)
    y = acc + b_ref[...]                       # broadcast (Cout,1) over lanes
    if neg_slope is not None:
        y = jnp.where(y > 0, y, neg_slope * y)  # LeakyReLU(0.2)
    o_ref[0] = y.astype(o_ref.dtype)


# ----------------------------------------------------------------------------
# Wrapper glue (1x data movement, fused by XLA with the zero-pad)
# ----------------------------------------------------------------------------
def _phase_view(x, stride):
    """(N,C,H,W) -> (N, s*s, C, Hq, Wq): zero-pad by 1 and split into stride
    phases so the in-kernel 3x3 tap extraction needs only unit-stride slices."""
    n, c, h, w = x.shape
    xp = jnp.pad(x, ((0, 0), (0, 0), (1, 1), (1, 1)))
    if stride == 1:
        return xp[:, None]                              # (N,1,C,H+2,W+2)
    assert h % stride == 0 and w % stride == 0, "stride-2 layers expect even H, W"
    phases = [xp[:, :, p::stride, q::stride]
              for p in range(stride) for q in range(stride)]
    return jnp.stack(phases, axis=1)                    # (N, s*s, C, Hq, Wq)


def _pick_row_block(ho, wo, target_m):
    """Largest row-block bh dividing Ho with a 128-lane-aligned output tile."""
    if ho * wo <= target_m:
        return ho
    best = ho
    for bh in range(1, ho):
        if ho % bh == 0 and (bh * wo) % 128 == 0 and bh * wo <= target_m:
            best = bh
    return best


def _run_layer(x, w_eff, b_eff, stride, leaky, *, block_m=2048,
               vmem_limit=64 * 1024 * 1024):
    """x: (N, Cin, H, W)  ->  (N, Cout, Ho, Wo)   (NCHW in / NCHW out)."""
    n, cin, h, w = x.shape
    cout = w_eff.shape[1]
    ho = (h - 1) // stride + 1                 # kernel=3, pad=1
    wo = (w - 1) // stride + 1
    xph = _phase_view(x, stride)               # (N, s*s, Cin, Hq, Wq)
    _, ss, _, hq, wq = xph.shape
    bh = _pick_row_block(ho, wo, block_m)
    grid = (n, ho // bh)

    kernel = partial(_dwpw_kernel, stride=stride, bh=bh, wo=wo, cin=cin,
                     cout=cout, neg_slope=0.2 if leaky else None)
    y = pl.pallas_call(
        kernel,
        out_shape=jax.ShapeDtypeStruct((n, cout, ho * wo), x.dtype),
        grid=grid,
        in_specs=[
            # Same block index along the row axis -> fetched once per image.
            pl.BlockSpec((1, ss, cin, hq, wq), lambda i, j: (i, 0, 0, 0, 0)),
            pl.BlockSpec((9, cout, cin), lambda i, j: (0, 0, 0)),
            pl.BlockSpec((cout, 1), lambda i, j: (0, 0)),
        ],
        out_specs=pl.BlockSpec((1, cout, bh * wo), lambda i, j: (i, 0, j)),
        compiler_params=pltpu.CompilerParams(
            dimension_semantics=("parallel", "parallel"),
            vmem_limit_bytes=vmem_limit),
    )(xph, w_eff, b_eff)
    # Free reshape: (N, Cout, Ho*Wo) and (N, Cout, Ho, Wo) share an HBM layout.
    return y.reshape(n, cout, ho, wo)


# ----------------------------------------------------------------------------
# Parameters (deterministic synthetic init), one-time weight folding, forward
# ----------------------------------------------------------------------------
def init_params(key, in_channels, num_filters):
    nf = num_filters
    specs = [  # (cin, cout, stride, leaky) — matches the PyTorch module
        (in_channels, nf, 2, True),
        (nf, nf * 2, 2, True),
        (nf * 2, nf * 4, 2, True),
        (nf * 4, nf * 8, 2, True),
        (nf * 8, 1, 1, False),
    ]
    params = []
    for cin, cout, stride, leaky in specs:
        key, k1, k2, k3, k4 = jax.random.split(key, 5)
        params.append(dict(
            dw=jax.random.normal(k1, (3, 3, cin), jnp.float32) * (1.0 / 3.0),
            db=jax.random.normal(k2, (1, cin), jnp.float32) * 0.05,
            pw=jax.random.normal(k3, (cin, cout), jnp.float32)
               * (1.0 / jnp.sqrt(float(cin))),
            pb=jax.random.normal(k4, (1, cout), jnp.float32) * 0.05,
            stride=stride, leaky=leaky,
        ))
    return params


def fuse_params(params, dtype=jnp.float32):
    """Fold depthwise into pointwise ONCE (in f32), cast once to `dtype`."""
    fused = []
    for p in params:
        cin = p["dw"].shape[-1]
        dw9 = p["dw"].reshape(9, cin)                               # tap-major
        # W_t[o, c] = dw[t, c] * pw[c, o]  ->  (9, Cout, Cin)
        w_eff = dw9[:, None, :] * jnp.transpose(p["pw"])[None, :, :]
        b_eff = (p["db"] @ p["pw"] + p["pb"]).reshape(-1, 1)        # (Cout, 1)
        fused.append((w_eff.astype(dtype), b_eff.astype(jnp.float32)))
    return tuple(fused)


def make_forward(strides, leakys, *, block_m=2048, compute_dtype=jnp.float32):
    """Jitted NCHW -> NCHW forward with the static layer config closed over."""
    def fwd(x_nchw, weights):
        x = x_nchw.astype(compute_dtype)
        for (w_eff, b_eff), s, lk in zip(weights, strides, leakys):
            x = _run_layer(x, w_eff, b_eff, s, lk, block_m=block_m)
        return x.astype(jnp.float32)                    # (N, 1, H/16, W/16)
    return jax.jit(fwd)


# Pure-JAX reference (PyTorch Conv2d semantics, un-fused weights) for validation.
def reference_forward(x_nchw, params):
    y = x_nchw.astype(jnp.float32)
    for p in params:
        cin = p["dw"].shape[-1]
        cout = p["pw"].shape[1]
        dw_oihw = jnp.transpose(p["dw"], (2, 0, 1))[:, None]          # (cin,1,3,3)
        y = jax.lax.conv_general_dilated(
            y, dw_oihw, (p["stride"], p["stride"]), ((1, 1), (1, 1)),
            feature_group_count=cin,
            dimension_numbers=("NCHW", "OIHW", "NCHW"))
        y = y + p["db"][0].reshape(1, cin, 1, 1)
        pw_oihw = jnp.transpose(p["pw"], (1, 0))[:, :, None, None]    # (cout,cin,1,1)
        y = jax.lax.conv_general_dilated(
            y, pw_oihw, (1, 1), ((0, 0), (0, 0)),
            dimension_numbers=("NCHW", "OIHW", "NCHW"))
        y = y + p["pb"][0].reshape(1, cout, 1, 1)
        if p["leaky"]:
            y = jnp.where(y > 0, y, 0.2 * y)
    return y


if __name__ == "__main__":
    in_channels, num_filters = 4, 8
    key = jax.random.PRNGKey(0)
    kx1, kx2, kp = jax.random.split(key, 3)

    params = init_params(kp, in_channels, num_filters)
    strides = tuple(p["stride"] for p in params)
    leakys = tuple(p["leaky"] for p in params)
    w_f32 = fuse_params(params, jnp.float32)

    # Case 1: small 16x16 input, f32 (single row-block per layer).
    x1 = jax.random.normal(kx1, (2, in_channels, 16, 16), jnp.float32)
    fwd_f32 = make_forward(strides, leakys, block_m=2048, compute_dtype=jnp.float32)
    out1 = jax.block_until_ready(fwd_f32(x1, w_f32))
    ref1 = jax.block_until_ready(reference_forward(x1, params))
    assert out1.shape == (2, 1, 1, 1), out1.shape
    # Folding the depthwise conv into the matmul reorders FP sums -> small diffs.
    assert jnp.allclose(out1, ref1, rtol=1e-3, atol=1e-3), \
        float(jnp.max(jnp.abs(out1 - ref1)))

    # Case 2: 64x64 input with a small row-block target so the spatial tiling
    # (multi-block grid axis + lane-aligned output tiles) is exercised.
    x2 = jax.random.normal(kx2, (2, in_channels, 64, 64), jnp.float32)
    fwd_tiled = make_forward(strides, leakys, block_m=256, compute_dtype=jnp.float32)
    out2 = jax.block_until_ready(fwd_tiled(x2, w_f32))
    ref2 = jax.block_until_ready(reference_forward(x2, params))
    assert out2.shape == (2, 1, 4, 4), out2.shape
    assert jnp.allclose(out2, ref2, rtol=1e-3, atol=1e-3), \
        float(jnp.max(jnp.abs(out2 - ref2)))

    # Case 3: bf16 activations/weights (f32 accumulation) — loose sanity check.
    w_bf16 = fuse_params(params, jnp.bfloat16)
    fwd_bf16 = make_forward(strides, leakys, block_m=256, compute_dtype=jnp.bfloat16)
    out3 = jax.block_until_ready(fwd_bf16(x2, w_bf16))
    assert out3.shape == (2, 1, 4, 4), out3.shape
    assert bool(jnp.all(jnp.isfinite(out3)))
    rel = float(jnp.max(jnp.abs(out3 - ref2)) / (jnp.max(jnp.abs(ref2)) + 1e-6))
    assert rel < 0.25, rel

    print("KERNEL_OK")
</pallas_src>

<mosaic_0001>
module attributes {stable_mosaic.version = 11 : i64} {
  func.func @_dwpw_kernel(%arg0: i32, %arg1: i32, %arg2: memref<1x4x8x5x5xf32, #tpu.memory_space<vmem>>, %arg3: memref<9x16x8xf32, #tpu.memory_space<vmem>>, %arg4: memref<16x1xf32, #tpu.memory_space<vmem>>, %arg5: memref<1x16x16xf32, #tpu.memory_space<vmem>>) attributes {dimension_semantics = [#tpu.dimension_semantics<parallel>, #tpu.dimension_semantics<parallel>], iteration_bounds = array<i64: 2, 1>, scalar_prefetch = 0 : i64, scratch_operands = 0 : i64, tpu.core_type = #tpu.core_type<tc>, window_params = [{transform_indices = @transform_0, window_bounds = array<i64: 1, 4, 8, 5, 5>}, {pipeline_mode = #tpu.pipeline_mode<synchronous>, transform_indices = @transform_1, window_bounds = array<i64: 9, 16, 8>}, {pipeline_mode = #tpu.pipeline_mode<synchronous>, transform_indices = @transform_2, window_bounds = array<i64: 16, 1>}, {transform_indices = @transform_3, window_bounds = array<i64: 1, 16, 16>}]} {
    %cst = arith.constant 0.000000e+00 : f32
    %0 = vector.broadcast %cst : f32 to vector<16x16xf32>
    %c4_i32 = arith.constant 4 : i32
    %1 = arith.muli %arg1, %c4_i32 : i32
    %c0_i32 = arith.constant 0 : i32
    %2 = arith.addi %1, %c0_i32 : i32
    %c0 = arith.constant 0 : index
    %c0_0 = arith.constant 0 : index
    %c0_1 = arith.constant 0 : index
    %3 = arith.index_cast %2 : i32 to index
    %c0_2 = arith.constant 0 : index
    %4 = vector.load %arg2[%c0, %c0_0, %c0_1, %3, %c0_2] : memref<1x4x8x5x5xf32, #tpu.memory_space<vmem>>, vector<1x1x8x4x4xf32>
    %5 = vector.shape_cast %4 : vector<1x1x8x4x4xf32> to vector<8x4x4xf32>
    %6 = vector.shape_cast %5 : vector<8x4x4xf32> to vector<8x16xf32>
    %c0_3 = arith.constant 0 : index
    %c0_4 = arith.constant 0 : index
    %c0_5 = arith.constant 0 : index
    %7 = vector.load %arg3[%c0_3, %c0_4, %c0_5] : memref<9x16x8xf32, #tpu.memory_space<vmem>>, vector<1x16x8xf32>
    %8 = vector.shape_cast %7 : vector<1x16x8xf32> to vector<16x8xf32>
    %cst_6 = arith.constant dense<0.000000e+00> : vector<16x16xf32>
    %9 = tpu.matmul %8, %6, %cst_6 {dimension_numbers = #tpu.dot_dimension_numbers<[1], [0], [0], [1], [0, 0, 1, 1], [], []>} : vector<16x8xf32>, vector<8x16xf32>, vector<16x16xf32> -> vector<16x16xf32>
    %10 = arith.addf %0, %9 : vector<16x16xf32>
    %c4_i32_7 = arith.constant 4 : i32
    %11 = arith.muli %arg1, %c4_i32_7 : i32
    %c0_i32_8 = arith.constant 0 : i32
    %12 = arith.addi %11, %c0_i32_8 : i32
    %c0_9 = arith.constant 0 : index
    %c1 = arith.constant 1 : index
    %c0_10 = arith.constant 0 : index
    %13 = arith.index_cast %12 : i32 to index
    %c0_11 = arith.constant 0 : index
    %14 = vector.load %arg2[%c0_9, %c1, %c0_10, %13, %c0_11] : memref<1x4x8x5x5xf32, #tpu.memory_space<vmem>>, vector<1x1x8x4x4xf32>
    %15 = vector.shape_cast %14 : vector<1x1x8x4x4xf32> to vector<8x4x4xf32>
    %16 = vector.shape_cast %15 : vector<8x4x4xf32> to vector<8x16xf32>
    %c1_12 = arith.constant 1 : index
    %c0_13 = arith.constant 0 : index
    %c0_14 = arith.constant 0 : index
    %17 = vector.load %arg3[%c1_12, %c0_13, %c0_14] : memref<9x16x8xf32, #tpu.memory_space<vmem>>, vector<1x16x8xf32>
    %18 = vector.shape_cast %17 : vector<1x16x8xf32> to vector<16x8xf32>
    %cst_15 = arith.constant dense<0.000000e+00> : vector<16x16xf32>
    %19 = tpu.matmul %18, %16, %cst_15 {dimension_numbers = #tpu.dot_dimension_numbers<[1], [0], [0], [1], [0, 0, 1, 1], [], []>} : vector<16x8xf32>, vector<8x16xf32>, vector<16x16xf32> -> vector<16x16xf32>
    %20 = arith.addf %10, %19 : vector<16x16xf32>
    %c4_i32_16 = arith.constant 4 : i32
    %21 = arith.muli %arg1, %c4_i32_16 : i32
    %c0_i32_17 = arith.constant 0 : i32
    %22 = arith.addi %21, %c0_i32_17 : i32
    %c0_18 = arith.constant 0 : index
    %c0_19 = arith.constant 0 : index
    %c0_20 = arith.constant 0 : index
    %23 = arith.index_cast %22 : i32 to index
    %c1_21 = arith.constant 1 : index
    %24 = vector.load %arg2[%c0_18, %c0_19, %c0_20, %23, %c1_21] : memref<1x4x8x5x5xf32, #tpu.memory_space<vmem>>, vector<1x1x8x4x4xf32>
    %25 = vector.shape_cast %24 : vector<1x1x8x4x4xf32> to vector<8x4x4xf32>
    %26 = vector.shape_cast %25 : vector<8x4x4xf32> to vector<8x16xf32>
    %c2 = arith.constant 2 : index
    %c0_22 = arith.constant 0 : index
    %c0_23 = arith.constant 0 : index
    %27 = vector.load %arg3[%c2, %c0_22, %c0_23] : memref<9x16x8xf32, #tpu.memory_space<vmem>>, vector<1x16x8xf32>
    %28 = vector.shape_cast %27 : vector<1x16x8xf32> to vector<16x8xf32>
    %cst_24 = arith.constant dense<0.000000e+00> : vector<16x16xf32>
    %29 = tpu.matmul %28, %26, %cst_24 {dimension_numbers = #tpu.dot_dimension_numbers<[1], [0], [0], [1], [0, 0, 1, 1], [], []>} : vector<16x8xf32>, vector<8x16xf32>, vector<16x16xf32> -> vector<16x16xf32>
    %30 = arith.addf %20, %29 : vector<16x16xf32>
    %c4_i32_25 = arith.constant 4 : i32
    %31 = arith.muli %arg1, %c4_i32_25 : i32
    %c0_i32_26 = arith.constant 0 : i32
    %32 = arith.addi %31, %c0_i32_26 : i32
    %c0_27 = arith.constant 0 : index
    %c2_28 = arith.constant 2 : index
    %c0_29 = arith.constant 0 : index
    %33 = arith.index_cast %32 : i32 to index
    %c0_30 = arith.constant 0 : index
    %34 = vector.load %arg2[%c0_27, %c2_28, %c0_29, %33, %c0_30] : memref<1x4x8x5x5xf32, #tpu.memory_space<vmem>>, vector<1x1x8x4x4xf32>
    %35 = vector.shape_cast %34 : vector<1x1x8x4x4xf32> to vector<8x4x4xf32>
    %36 = vector.shape_cast %35 : vector<8x4x4xf32> to vector<8x16xf32>
    %c3 = arith.constant 3 : index
    %c0_31 = arith.constant 0 : index
    %c0_32 = arith.constant 0 : index
    %37 = vector.load %arg3[%c3, %c0_31, %c0_32] : memref<9x16x8xf32, #tpu.memory_space<vmem>>, vector<1x16x8xf32>
    %38 = vector.shape_cast %37 : vector<1x16x8xf32> to vector<16x8xf32>
    %cst_33 = arith.constant dense<0.000000e+00> : vector<16x16xf32>
    %39 = tpu.matmul %38, %36, %cst_33 {dimension_numbers = #tpu.dot_dimension_numbers<[1], [0], [0], [1], [0, 0, 1, 1], [], []>} : vector<16x8xf32>, vector<8x16xf32>, vector<16x16xf32> -> vector<16x16xf32>
    %40 = arith.addf %30, %39 : vector<16x16xf32>
    %c4_i32_34 = arith.constant 4 : i32
    %41 = arith.muli %arg1, %c4_i32_34 : i32
    %c0_i32_35 = arith.constant 0 : i32
    %42 = arith.addi %41, %c0_i32_35 : i32
    %c0_36 = arith.constant 0 : index
    %c3_37 = arith.constant 3 : index
    %c0_38 = arith.constant 0 : index
    %43 = arith.index_cast %42 : i32 to index
    %c0_39 = arith.constant 0 : index
    %44 = vector.load %arg2[%c0_36, %c3_37, %c0_38, %43, %c0_39] : memref<1x4x8x5x5xf32, #tpu.memory_space<vmem>>, vector<1x1x8x4x4xf32>
    %45 = vector.shape_cast %44 : vector<1x1x8x4x4xf32> to vector<8x4x4xf32>
    %46 = vector.shape_cast %45 : vector<8x4x4xf32> to vector<8x16xf32>
    %c4 = arith.constant 4 : index
    %c0_40 = arith.constant 0 : index
    %c0_41 = arith.constant 0 : index
    %47 = vector.load %arg3[%c4, %c0_40, %c0_41] : memref<9x16x8xf32, #tpu.memory_space<vmem>>, vector<1x16x8xf32>
    %48 = vector.shape_cast %47 : vector<1x16x8xf32> to vector<16x8xf32>
    %cst_42 = arith.constant dense<0.000000e+00> : vector<16x16xf32>
    %49 = tpu.matmul %48, %46, %cst_42 {dimension_numbers = #tpu.dot_dimension_numbers<[1], [0], [0], [1], [0, 0, 1, 1], [], []>} : vector<16x8xf32>, vector<8x16xf32>, vector<16x16xf32> -> vector<16x16xf32>
    %50 = arith.addf %40, %49 : vector<16x16xf32>
    %c4_i32_43 = arith.constant 4 : i32
    %51 = arith.muli %arg1, %c4_i32_43 : i32
    %c0_i32_44 = arith.constant 0 : i32
    %52 = arith.addi %51, %c0_i32_44 : i32
    %c0_45 = arith.constant 0 : index
    %c2_46 = arith.constant 2 : index
    %c0_47 = arith.constant 0 : index
    %53 = arith.index_cast %52 : i32 to index
    %c1_48 = arith.constant 1 : index
    %54 = vector.load %arg2[%c0_45, %c2_46, %c0_47, %53, %c1_48] : memref<1x4x8x5x5xf32, #tpu.memory_space<vmem>>, vector<1x1x8x4x4xf32>
    %55 = vector.shape_cast %54 : vector<1x1x8x4x4xf32> to vector<8x4x4xf32>
    %56 = vector.shape_cast %55 : vector<8x4x4xf32> to vector<8x16xf32>
    %c5 = arith.constant 5 : index
    %c0_49 = arith.constant 0 : index
    %c0_50 = arith.constant 0 : index
    %57 = vector.load %arg3[%c5, %c0_49, %c0_50] : memref<9x16x8xf32, #tpu.memory_space<vmem>>, vector<1x16x8xf32>
    %58 = vector.shape_cast %57 : vector<1x16x8xf32> to vector<16x8xf32>
    %cst_51 = arith.constant dense<0.000000e+00> : vector<16x16xf32>
    %59 = tpu.matmul %58, %56, %cst_51 {dimension_numbers = #tpu.dot_dimension_numbers<[1], [0], [0], [1], [0, 0, 1, 1], [], []>} : vector<16x8xf32>, vector<8x16xf32>, vector<16x16xf32> -> vector<16x16xf32>
    %60 = arith.addf %50, %59 : vector<16x16xf32>
    %c4_i32_52 = arith.constant 4 : i32
    %61 = arith.muli %arg1, %c4_i32_52 : i32
    %c1_i32 = arith.constant 1 : i32
    %62 = arith.addi %61, %c1_i32 : i32
    %c0_53 = arith.constant 0 : index
    %c0_54 = arith.constant 0 : index
    %c0_55 = arith.constant 0 : index
    %63 = arith.index_cast %62 : i32 to index
    %c0_56 = arith.constant 0 : index
    %64 = vector.load %arg2[%c0_53, %c0_54, %c0_55, %63, %c0_56] : memref<1x4x8x5x5xf32, #tpu.memory_space<vmem>>, vector<1x1x8x4x4xf32>
    %65 = vector.shape_cast %64 : vector<1x1x8x4x4xf32> to vector<8x4x4xf32>
    %66 = vector.shape_cast %65 : vector<8x4x4xf32> to vector<8x16xf32>
    %c6 = arith.constant 6 : index
    %c0_57 = arith.constant 0 : index
    %c0_58 = arith.constant 0 : index
    %67 = vector.load %arg3[%c6, %c0_57, %c0_58] : memref<9x16x8xf32, #tpu.memory_space<vmem>>, vector<1x16x8xf32>
    %68 = vector.shape_cast %67 : vector<1x16x8xf32> to vector<16x8xf32>
    %cst_59 = arith.constant dense<0.000000e+00> : vector<16x16xf32>
    %69 = tpu.matmul %68, %66, %cst_59 {dimension_numbers = #tpu.dot_dimension_numbers<[1], [0], [0], [1], [0, 0, 1, 1], [], []>} : vector<16x8xf32>, vector<8x16xf32>, vector<16x16xf32> -> vector<16x16xf32>
    %70 = arith.addf %60, %69 : vector<16x16xf32>
    %c4_i32_60 = arith.constant 4 : i32
    %71 = arith.muli %arg1, %c4_i32_60 : i32
    %c1_i32_61 = arith.constant 1 : i32
    %72 = arith.addi %71, %c1_i32_61 : i32
    %c0_62 = arith.constant 0 : index
    %c1_63 = arith.constant 1 : index
    %c0_64 = arith.constant 0 : index
    %73 = arith.index_cast %72 : i32 to index
    %c0_65 = arith.constant 0 : index
    %74 = vector.load %arg2[%c0_62, %c1_63, %c0_64, %73, %c0_65] : memref<1x4x8x5x5xf32, #tpu.memory_space<vmem>>, vector<1x1x8x4x4xf32>
    %75 = vector.shape_cast %74 : vector<1x1x8x4x4xf32> to vector<8x4x4xf32>
    %76 = vector.shape_cast %75 : vector<8x4x4xf32> to vector<8x16xf32>
    %c7 = arith.constant 7 : index
    %c0_66 = arith.constant 0 : index
    %c0_67 = arith.constant 0 : index
    %77 = vector.load %arg3[%c7, %c0_66, %c0_67] : memref<9x16x8xf32, #tpu.memory_space<vmem>>, vector<1x16x8xf32>
    %78 = vector.shape_cast %77 : vector<1x16x8xf32> to vector<16x8xf32>
    %cst_68 = arith.constant dense<0.000000e+00> : vector<16x16xf32>
    %79 = tpu.matmul %78, %76, %cst_68 {dimension_numbers = #tpu.dot_dimension_numbers<[1], [0], [0], [1], [0, 0, 1, 1], [], []>} : vector<16x8xf32>, vector<8x16xf32>, vector<16x16xf32> -> vector<16x16xf32>
    %80 = arith.addf %70, %79 : vector<16x16xf32>
    %c4_i32_69 = arith.constant 4 : i32
    %81 = arith.muli %arg1, %c4_i32_69 : i32
    %c1_i32_70 = arith.constant 1 : i32
    %82 = arith.addi %81, %c1_i32_70 : i32
    %c0_71 = arith.constant 0 : index
    %c0_72 = arith.constant 0 : index
    %c0_73 = arith.constant 0 : index
    %83 = arith.index_cast %82 : i32 to index
    %c1_74 = arith.constant 1 : index
    %84 = vector.load %arg2[%c0_71, %c0_72, %c0_73, %83, %c1_74] : memref<1x4x8x5x5xf32, #tpu.memory_space<vmem>>, vector<1x1x8x4x4xf32>
    %85 = vector.shape_cast %84 : vector<1x1x8x4x4xf32> to vector<8x4x4xf32>
    %86 = vector.shape_cast %85 : vector<8x4x4xf32> to vector<8x16xf32>
    %c8 = arith.constant 8 : index
    %c0_75 = arith.constant 0 : index
    %c0_76 = arith.constant 0 : index
    %87 = vector.load %arg3[%c8, %c0_75, %c0_76] : memref<9x16x8xf32, #tpu.memory_space<vmem>>, vector<1x16x8xf32>
    %88 = vector.shape_cast %87 : vector<1x16x8xf32> to vector<16x8xf32>
    %cst_77 = arith.constant dense<0.000000e+00> : vector<16x16xf32>
    %89 = tpu.matmul %88, %86, %cst_77 {dimension_numbers = #tpu.dot_dimension_numbers<[1], [0], [0], [1], [0, 0, 1, 1], [], []>} : vector<16x8xf32>, vector<8x16xf32>, vector<16x16xf32> -> vector<16x16xf32>
    %90 = arith.addf %80, %89 : vector<16x16xf32>
    %c0_78 = arith.constant 0 : index
    %c0_79 = arith.constant 0 : index
    %91 = vector.load %arg4[%c0_78, %c0_79] : memref<16x1xf32, #tpu.memory_space<vmem>>, vector<16x1xf32>
    %92 = vector.broadcast %91 : vector<16x1xf32> to vector<16x16xf32>
    %93 = arith.addf %90, %92 : vector<16x16xf32>
    %cst_80 = arith.constant 0.000000e+00 : f32
    %94 = vector.broadcast %cst_80 : f32 to vector<16x16xf32>
    %95 = arith.cmpf ogt, %93, %94 : vector<16x16xf32>
    %cst_81 = arith.constant 2.000000e-01 : f32
    %96 = vector.broadcast %cst_81 : f32 to vector<16x16xf32>
    %97 = arith.mulf %96, %93 : vector<16x16xf32>
    %98 = arith.select %95, %93, %97 : vector<16x16xi1>, vector<16x16xf32>
    %c0_82 = arith.constant 0 : index
    %c0_83 = arith.constant 0 : index
    %c0_84 = arith.constant 0 : index
    %99 = vector.load %arg5[%c0_82, %c0_83, %c0_84] : memref<1x16x16xf32, #tpu.memory_space<vmem>>, vector<1x16x16xf32>
    %100 = vector.shape_cast %99 : vector<1x16x16xf32> to vector<16x16xf32>
    %101 = vector.shape_cast %98 : vector<16x16xf32> to vector<1x16x16xf32>
    tpu.vector_store %arg5[%c0_82, %c0_83, %c0_84], %101 {strides = array<i32>} : memref<1x16x16xf32, #tpu.memory_space<vmem>>, vector<1x16x16xf32>,
    return
  }
  func.func @transform_0(%arg0: i32, %arg1: i32) -> (i32, i32, i32, i32, i32) {
    %c0_i32 = arith.constant 0 : i32
    %c0_i32_0 = arith.constant 0 : i32
    %c0_i32_1 = arith.constant 0 : i32
    %c0_i32_2 = arith.constant 0 : i32
    %c0_i32_3 = arith.constant 0 : i32
    return %arg0, %c0_i32, %c0_i32_0, %c0_i32_1, %c0_i32_2 : i32, i32, i32, i32, i32
  }
  func.func @transform_1(%arg0: i32, %arg1: i32) -> (i32, i32, i32) {
    %c0_i32 = arith.constant 0 : i32
    %c0_i32_0 = arith.constant 0 : i32
    %c0_i32_1 = arith.constant 0 : i32
    %c0_i32_2 = arith.constant 0 : i32
    return %c0_i32, %c0_i32_0, %c0_i32_1 : i32, i32, i32
  }
  func.func @transform_2(%arg0: i32, %arg1: i32) -> (i32, i32) {
    %c0_i32 = arith.constant 0 : i32
    %c0_i32_0 = arith.constant 0 : i32
    %c0_i32_1 = arith.constant 0 : i32
    return %c0_i32, %c0_i32_0 : i32, i32
  }
  func.func @transform_3(%arg0: i32, %arg1: i32) -> (i32, i32, i32) {
    %c0_i32 = arith.constant 0 : i32
    %c0_i32_0 = arith.constant 0 : i32
    return %arg0, %c0_i32, %arg1 : i32, i32, i32
  }
}

module attributes {stable_mosaic.version = 11 : i64} {
  func.func @_dwpw_kernel(%arg0: i32, %arg1: i32, %arg2: memref<1x4x4x9x9xf32, #tpu.memory_space<vmem>>, %arg3: memref<9x8x4xf32, #tpu.memory_space<vmem>>, %arg4: memref<8x1xf32, #tpu.memory_space<vmem>>, %arg5: memref<1x8x64xf32, #tpu.memory_space<vmem>>) attributes {dimension_semantics = [#tpu.dimension_semantics<parallel>, #tpu.dimension_semantics<parallel>], iteration_bounds = array<i64: 2, 1>, scalar_prefetch = 0 : i64, scratch_operands = 0 : i64, tpu.core_type = #tpu.core_type<tc>, window_params = [{transform_indices = @transform_0, window_bounds = array<i64: 1, 4, 4, 9, 9>}, {pipeline_mode = #tpu.pipeline_mode<synchronous>, transform_indices = @transform_1, window_bounds = array<i64: 9, 8, 4>}, {pipeline_mode = #tpu.pipeline_mode<synchronous>, transform_indices = @transform_2, window_bounds = array<i64: 8, 1>}, {transform_indices = @transform_3, window_bounds = array<i64: 1, 8, 64>}]} {
    %cst = arith.constant 0.000000e+00 : f32
    %0 = vector.broadcast %cst : f32 to vector<8x64xf32>
    %c8_i32 = arith.constant 8 : i32
    %1 = arith.muli %arg1, %c8_i32 : i32
    %c0_i32 = arith.constant 0 : i32
    %2 = arith.addi %1, %c0_i32 : i32
    %c0 = arith.constant 0 : index
    %c0_0 = arith.constant 0 : index
    %c0_1 = arith.constant 0 : index
    %3 = arith.index_cast %2 : i32 to index
    %c0_2 = arith.constant 0 : index
    %4 = vector.load %arg2[%c0, %c0_0, %c0_1, %3, %c0_2] : memref<1x4x4x9x9xf32, #tpu.memory_space<vmem>>, vector<1x1x4x8x8xf32>
    %5 = vector.shape_cast %4 : vector<1x1x4x8x8xf32> to vector<4x8x8xf32>
    %6 = vector.shape_cast %5 : vector<4x8x8xf32> to vector<4x64xf32>
    %c0_3 = arith.constant 0 : index
    %c0_4 = arith.constant 0 : index
    %c0_5 = arith.constant 0 : index
    %7 = vector.load %arg3[%c0_3, %c0_4, %c0_5] : memref<9x8x4xf32, #tpu.memory_space<vmem>>, vector<1x8x4xf32>
    %8 = vector.shape_cast %7 : vector<1x8x4xf32> to vector<8x4xf32>
    %cst_6 = arith.constant dense<0.000000e+00> : vector<8x64xf32>
    %9 = tpu.matmul %8, %6, %cst_6 {dimension_numbers = #tpu.dot_dimension_numbers<[1], [0], [0], [1], [0, 0, 1, 1], [], []>} : vector<8x4xf32>, vector<4x64xf32>, vector<8x64xf32> -> vector<8x64xf32>
    %10 = arith.addf %0, %9 : vector<8x64xf32>
    %c8_i32_7 = arith.constant 8 : i32
    %11 = arith.muli %arg1, %c8_i32_7 : i32
    %c0_i32_8 = arith.constant 0 : i32
    %12 = arith.addi %11, %c0_i32_8 : i32
    %c0_9 = arith.constant 0 : index
    %c1 = arith.constant 1 : index
    %c0_10 = arith.constant 0 : index
    %13 = arith.index_cast %12 : i32 to index
    %c0_11 = arith.constant 0 : index
    %14 = vector.load %arg2[%c0_9, %c1, %c0_10, %13, %c0_11] : memref<1x4x4x9x9xf32, #tpu.memory_space<vmem>>, vector<1x1x4x8x8xf32>
    %15 = vector.shape_cast %14 : vector<1x1x4x8x8xf32> to vector<4x8x8xf32>
    %16 = vector.shape_cast %15 : vector<4x8x8xf32> to vector<4x64xf32>
    %c1_12 = arith.constant 1 : index
    %c0_13 = arith.constant 0 : index
    %c0_14 = arith.constant 0 : index
    %17 = vector.load %arg3[%c1_12, %c0_13, %c0_14] : memref<9x8x4xf32, #tpu.memory_space<vmem>>, vector<1x8x4xf32>
    %18 = vector.shape_cast %17 : vector<1x8x4xf32> to vector<8x4xf32>
    %cst_15 = arith.constant dense<0.000000e+00> : vector<8x64xf32>
    %19 = tpu.matmul %18, %16, %cst_15 {dimension_numbers = #tpu.dot_dimension_numbers<[1], [0], [0], [1], [0, 0, 1, 1], [], []>} : vector<8x4xf32>, vector<4x64xf32>, vector<8x64xf32> -> vector<8x64xf32>
    %20 = arith.addf %10, %19 : vector<8x64xf32>
    %c8_i32_16 = arith.constant 8 : i32
    %21 = arith.muli %arg1, %c8_i32_16 : i32
    %c0_i32_17 = arith.constant 0 : i32
    %22 = arith.addi %21, %c0_i32_17 : i32
    %c0_18 = arith.constant 0 : index
    %c0_19 = arith.constant 0 : index
    %c0_20 = arith.constant 0 : index
    %23 = arith.index_cast %22 : i32 to index
    %c1_21 = arith.constant 1 : index
    %24 = vector.load %arg2[%c0_18, %c0_19, %c0_20, %23, %c1_21] : memref<1x4x4x9x9xf32, #tpu.memory_space<vmem>>, vector<1x1x4x8x8xf32>
    %25 = vector.shape_cast %24 : vector<1x1x4x8x8xf32> to vector<4x8x8xf32>
    %26 = vector.shape_cast %25 : vector<4x8x8xf32> to vector<4x64xf32>
    %c2 = arith.constant 2 : index
    %c0_22 = arith.constant 0 : index
    %c0_23 = arith.constant 0 : index
    %27 = vector.load %arg3[%c2, %c0_22, %c0_23] : memref<9x8x4xf32, #tpu.memory_space<vmem>>, vector<1x8x4xf32>
    %28 = vector.shape_cast %27 : vector<1x8x4xf32> to vector<8x4xf32>
    %cst_24 = arith.constant dense<0.000000e+00> : vector<8x64xf32>
    %29 = tpu.matmul %28, %26, %cst_24 {dimension_numbers = #tpu.dot_dimension_numbers<[1], [0], [0], [1], [0, 0, 1, 1], [], []>} : vector<8x4xf32>, vector<4x64xf32>, vector<8x64xf32> -> vector<8x64xf32>
    %30 = arith.addf %20, %29 : vector<8x64xf32>
    %c8_i32_25 = arith.constant 8 : i32
    %31 = arith.muli %arg1, %c8_i32_25 : i32
    %c0_i32_26 = arith.constant 0 : i32
    %32 = arith.addi %31, %c0_i32_26 : i32
    %c0_27 = arith.constant 0 : index
    %c2_28 = arith.constant 2 : index
    %c0_29 = arith.constant 0 : index
    %33 = arith.index_cast %32 : i32 to index
    %c0_30 = arith.constant 0 : index
    %34 = vector.load %arg2[%c0_27, %c2_28, %c0_29, %33, %c0_30] : memref<1x4x4x9x9xf32, #tpu.memory_space<vmem>>, vector<1x1x4x8x8xf32>
    %35 = vector.shape_cast %34 : vector<1x1x4x8x8xf32> to vector<4x8x8xf32>
    %36 = vector.shape_cast %35 : vector<4x8x8xf32> to vector<4x64xf32>
    %c3 = arith.constant 3 : index
    %c0_31 = arith.constant 0 : index
    %c0_32 = arith.constant 0 : index
    %37 = vector.load %arg3[%c3, %c0_31, %c0_32] : memref<9x8x4xf32, #tpu.memory_space<vmem>>, vector<1x8x4xf32>
    %38 = vector.shape_cast %37 : vector<1x8x4xf32> to vector<8x4xf32>
    %cst_33 = arith.constant dense<0.000000e+00> : vector<8x64xf32>
    %39 = tpu.matmul %38, %36, %cst_33 {dimension_numbers = #tpu.dot_dimension_numbers<[1], [0], [0], [1], [0, 0, 1, 1], [], []>} : vector<8x4xf32>, vector<4x64xf32>, vector<8x64xf32> -> vector<8x64xf32>
    %40 = arith.addf %30, %39 : vector<8x64xf32>
    %c8_i32_34 = arith.constant 8 : i32
    %41 = arith.muli %arg1, %c8_i32_34 : i32
    %c0_i32_35 = arith.constant 0 : i32
    %42 = arith.addi %41, %c0_i32_35 : i32
    %c0_36 = arith.constant 0 : index
    %c3_37 = arith.constant 3 : index
    %c0_38 = arith.constant 0 : index
    %43 = arith.index_cast %42 : i32 to index
    %c0_39 = arith.constant 0 : index
    %44 = vector.load %arg2[%c0_36, %c3_37, %c0_38, %43, %c0_39] : memref<1x4x4x9x9xf32, #tpu.memory_space<vmem>>, vector<1x1x4x8x8xf32>
    %45 = vector.shape_cast %44 : vector<1x1x4x8x8xf32> to vector<4x8x8xf32>
    %46 = vector.shape_cast %45 : vector<4x8x8xf32> to vector<4x64xf32>
    %c4 = arith.constant 4 : index
    %c0_40 = arith.constant 0 : index
    %c0_41 = arith.constant 0 : index
    %47 = vector.load %arg3[%c4, %c0_40, %c0_41] : memref<9x8x4xf32, #tpu.memory_space<vmem>>, vector<1x8x4xf32>
    %48 = vector.shape_cast %47 : vector<1x8x4xf32> to vector<8x4xf32>
    %cst_42 = arith.constant dense<0.000000e+00> : vector<8x64xf32>
    %49 = tpu.matmul %48, %46, %cst_42 {dimension_numbers = #tpu.dot_dimension_numbers<[1], [0], [0], [1], [0, 0, 1, 1], [], []>} : vector<8x4xf32>, vector<4x64xf32>, vector<8x64xf32> -> vector<8x64xf32>
    %50 = arith.addf %40, %49 : vector<8x64xf32>
    %c8_i32_43 = arith.constant 8 : i32
    %51 = arith.muli %arg1, %c8_i32_43 : i32
    %c0_i32_44 = arith.constant 0 : i32
    %52 = arith.addi %51, %c0_i32_44 : i32
    %c0_45 = arith.constant 0 : index
    %c2_46 = arith.constant 2 : index
    %c0_47 = arith.constant 0 : index
    %53 = arith.index_cast %52 : i32 to index
    %c1_48 = arith.constant 1 : index
    %54 = vector.load %arg2[%c0_45, %c2_46, %c0_47, %53, %c1_48] : memref<1x4x4x9x9xf32, #tpu.memory_space<vmem>>, vector<1x1x4x8x8xf32>
    %55 = vector.shape_cast %54 : vector<1x1x4x8x8xf32> to vector<4x8x8xf32>
    %56 = vector.shape_cast %55 : vector<4x8x8xf32> to vector<4x64xf32>
    %c5 = arith.constant 5 : index
    %c0_49 = arith.constant 0 : index
    %c0_50 = arith.constant 0 : index
    %57 = vector.load %arg3[%c5, %c0_49, %c0_50] : memref<9x8x4xf32, #tpu.memory_space<vmem>>, vector<1x8x4xf32>
    %58 = vector.shape_cast %57 : vector<1x8x4xf32> to vector<8x4xf32>
    %cst_51 = arith.constant dense<0.000000e+00> : vector<8x64xf32>
    %59 = tpu.matmul %58, %56, %cst_51 {dimension_numbers = #tpu.dot_dimension_numbers<[1], [0], [0], [1], [0, 0, 1, 1], [], []>} : vector<8x4xf32>, vector<4x64xf32>, vector<8x64xf32> -> vector<8x64xf32>
    %60 = arith.addf %50, %59 : vector<8x64xf32>
    %c8_i32_52 = arith.constant 8 : i32
    %61 = arith.muli %arg1, %c8_i32_52 : i32
    %c1_i32 = arith.constant 1 : i32
    %62 = arith.addi %61, %c1_i32 : i32
    %c0_53 = arith.constant 0 : index
    %c0_54 = arith.constant 0 : index
    %c0_55 = arith.constant 0 : index
    %63 = arith.index_cast %62 : i32 to index
    %c0_56 = arith.constant 0 : index
    %64 = vector.load %arg2[%c0_53, %c0_54, %c0_55, %63, %c0_56] : memref<1x4x4x9x9xf32, #tpu.memory_space<vmem>>, vector<1x1x4x8x8xf32>
    %65 = vector.shape_cast %64 : vector<1x1x4x8x8xf32> to vector<4x8x8xf32>
    %66 = vector.shape_cast %65 : vector<4x8x8xf32> to vector<4x64xf32>
    %c6 = arith.constant 6 : index
    %c0_57 = arith.constant 0 : index
    %c0_58 = arith.constant 0 : index
    %67 = vector.load %arg3[%c6, %c0_57, %c0_58] : memref<9x8x4xf32, #tpu.memory_space<vmem>>, vector<1x8x4xf32>
    %68 = vector.shape_cast %67 : vector<1x8x4xf32> to vector<8x4xf32>
    %cst_59 = arith.constant dense<0.000000e+00> : vector<8x64xf32>
    %69 = tpu.matmul %68, %66, %cst_59 {dimension_numbers = #tpu.dot_dimension_numbers<[1], [0], [0], [1], [0, 0, 1, 1], [], []>} : vector<8x4xf32>, vector<4x64xf32>, vector<8x64xf32> -> vector<8x64xf32>
    %70 = arith.addf %60, %69 : vector<8x64xf32>
    %c8_i32_60 = arith.constant 8 : i32
    %71 = arith.muli %arg1, %c8_i32_60 : i32
    %c1_i32_61 = arith.constant 1 : i32
    %72 = arith.addi %71, %c1_i32_61 : i32
    %c0_62 = arith.constant 0 : index
    %c1_63 = arith.constant 1 : index
    %c0_64 = arith.constant 0 : index
    %73 = arith.index_cast %72 : i32 to index
    %c0_65 = arith.constant 0 : index
    %74 = vector.load %arg2[%c0_62, %c1_63, %c0_64, %73, %c0_65] : memref<1x4x4x9x9xf32, #tpu.memory_space<vmem>>, vector<1x1x4x8x8xf32>
    %75 = vector.shape_cast %74 : vector<1x1x4x8x8xf32> to vector<4x8x8xf32>
    %76 = vector.shape_cast %75 : vector<4x8x8xf32> to vector<4x64xf32>
    %c7 = arith.constant 7 : index
    %c0_66 = arith.constant 0 : index
    %c0_67 = arith.constant 0 : index
    %77 = vector.load %arg3[%c7, %c0_66, %c0_67] : memref<9x8x4xf32, #tpu.memory_space<vmem>>, vector<1x8x4xf32>
    %78 = vector.shape_cast %77 : vector<1x8x4xf32> to vector<8x4xf32>
    %cst_68 = arith.constant dense<0.000000e+00> : vector<8x64xf32>
    %79 = tpu.matmul %78, %76, %cst_68 {dimension_numbers = #tpu.dot_dimension_numbers<[1], [0], [0], [1], [0, 0, 1, 1], [], []>} : vector<8x4xf32>, vector<4x64xf32>, vector<8x64xf32> -> vector<8x64xf32>
    %80 = arith.addf %70, %79 : vector<8x64xf32>
    %c8_i32_69 = arith.constant 8 : i32
    %81 = arith.muli %arg1, %c8_i32_69 : i32
    %c1_i32_70 = arith.constant 1 : i32
    %82 = arith.addi %81, %c1_i32_70 : i32
    %c0_71 = arith.constant 0 : index
    %c0_72 = arith.constant 0 : index
    %c0_73 = arith.constant 0 : index
    %83 = arith.index_cast %82 : i32 to index
    %c1_74 = arith.constant 1 : index
    %84 = vector.load %arg2[%c0_71, %c0_72, %c0_73, %83, %c1_74] : memref<1x4x4x9x9xf32, #tpu.memory_space<vmem>>, vector<1x1x4x8x8xf32>
    %85 = vector.shape_cast %84 : vector<1x1x4x8x8xf32> to vector<4x8x8xf32>
    %86 = vector.shape_cast %85 : vector<4x8x8xf32> to vector<4x64xf32>
    %c8 = arith.constant 8 : index
    %c0_75 = arith.constant 0 : index
    %c0_76 = arith.constant 0 : index
    %87 = vector.load %arg3[%c8, %c0_75, %c0_76] : memref<9x8x4xf32, #tpu.memory_space<vmem>>, vector<1x8x4xf32>
    %88 = vector.shape_cast %87 : vector<1x8x4xf32> to vector<8x4xf32>
    %cst_77 = arith.constant dense<0.000000e+00> : vector<8x64xf32>
    %89 = tpu.matmul %88, %86, %cst_77 {dimension_numbers = #tpu.dot_dimension_numbers<[1], [0], [0], [1], [0, 0, 1, 1], [], []>} : vector<8x4xf32>, vector<4x64xf32>, vector<8x64xf32> -> vector<8x64xf32>
    %90 = arith.addf %80, %89 : vector<8x64xf32>
    %c0_78 = arith.constant 0 : index
    %c0_79 = arith.constant 0 : index
    %91 = vector.load %arg4[%c0_78, %c0_79] : memref<8x1xf32, #tpu.memory_space<vmem>>, vector<8x1xf32>
    %92 = vector.broadcast %91 : vector<8x1xf32> to vector<8x64xf32>
    %93 = arith.addf %90, %92 : vector<8x64xf32>
    %cst_80 = arith.constant 0.000000e+00 : f32
    %94 = vector.broadcast %cst_80 : f32 to vector<8x64xf32>
    %95 = arith.cmpf ogt, %93, %94 : vector<8x64xf32>
    %cst_81 = arith.constant 2.000000e-01 : f32
    %96 = vector.broadcast %cst_81 : f32 to vector<8x64xf32>
    %97 = arith.mulf %96, %93 : vector<8x64xf32>
    %98 = arith.select %95, %93, %97 : vector<8x64xi1>, vector<8x64xf32>
    %c0_82 = arith.constant 0 : index
    %c0_83 = arith.constant 0 : index
    %c0_84 = arith.constant 0 : index
    %99 = vector.load %arg5[%c0_82, %c0_83, %c0_84] : memref<1x8x64xf32, #tpu.memory_space<vmem>>, vector<1x8x64xf32>
    %100 = vector.shape_cast %99 : vector<1x8x64xf32> to vector<8x64xf32>
    %101 = vector.shape_cast %98 : vector<8x64xf32> to vector<1x8x64xf32>
    tpu.vector_store %arg5[%c0_82, %c0_83, %c0_84], %101 {strides = array<i32>} : memref<1x8x64xf32, #tpu.memory_space<vmem>>, vector<1x8x64xf32>,
    return
  }
  func.func @transform_0(%arg0: i32, %arg1: i32) -> (i32, i32, i32, i32, i32) {
    %c0_i32 = arith.constant 0 : i32
    %c0_i32_0 = arith.constant 0 : i32
    %c0_i32_1 = arith.constant 0 : i32
    %c0_i32_2 = arith.constant 0 : i32
    %c0_i32_3 = arith.constant 0 : i32
    return %arg0, %c0_i32, %c0_i32_0, %c0_i32_1, %c0_i32_2 : i32, i32, i32, i32, i32
  }
  func.func @transform_1(%arg0: i32, %arg1: i32) -> (i32, i32, i32) {
    %c0_i32 = arith.constant 0 : i32
    %c0_i32_0 = arith.constant 0 : i32
    %c0_i32_1 = arith.constant 0 : i32
    %c0_i32_2 = arith.constant 0 : i32
    return %c0_i32, %c0_i32_0, %c0_i32_1 : i32, i32, i32
  }
  func.func @transform_2(%arg0: i32, %arg1: i32) -> (i32, i32) {
    %c0_i32 = arith.constant 0 : i32
    %c0_i32_0 = arith.constant 0 : i32
    %c0_i32_1 = arith.constant 0 : i32
    return %c0_i32, %c0_i32_0 : i32, i32
  }
  func.func @transform_3(%arg0: i32, %arg1: i32) -> (i32, i32, i32) {
    %c0_i32 = arith.constant 0 : i32
    %c0_i32_0 = arith.constant 0 : i32
    return %arg0, %c0_i32, %arg1 : i32, i32, i32
  }
}

module attributes {stable_mosaic.version = 11 : i64} {
  func.func @_dwpw_kernel(%arg0: i32, %arg1: i32, %arg2: memref<1x4x16x3x3xf32, #tpu.memory_space<vmem>>, %arg3: memref<9x32x16xf32, #tpu.memory_space<vmem>>, %arg4: memref<32x1xf32, #tpu.memory_space<vmem>>, %arg5: memref<1x32x4xf32, #tpu.memory_space<vmem>>) attributes {dimension_semantics = [#tpu.dimension_semantics<parallel>, #tpu.dimension_semantics<parallel>], iteration_bounds = array<i64: 2, 1>, scalar_prefetch = 0 : i64, scratch_operands = 0 : i64, tpu.core_type = #tpu.core_type<tc>, window_params = [{transform_indices = @transform_0, window_bounds = array<i64: 1, 4, 16, 3, 3>}, {pipeline_mode = #tpu.pipeline_mode<synchronous>, transform_indices = @transform_1, window_bounds = array<i64: 9, 32, 16>}, {pipeline_mode = #tpu.pipeline_mode<synchronous>, transform_indices = @transform_2, window_bounds = array<i64: 32, 1>}, {transform_indices = @transform_3, window_bounds = array<i64: 1, 32, 4>}]} {
    %cst = arith.constant 0.000000e+00 : f32
    %0 = vector.broadcast %cst : f32 to vector<32x4xf32>
    %c2_i32 = arith.constant 2 : i32
    %1 = arith.muli %arg1, %c2_i32 : i32
    %c0_i32 = arith.constant 0 : i32
    %2 = arith.addi %1, %c0_i32 : i32
    %c0 = arith.constant 0 : index
    %c0_0 = arith.constant 0 : index
    %c0_1 = arith.constant 0 : index
    %3 = arith.index_cast %2 : i32 to index
    %c0_2 = arith.constant 0 : index
    %4 = vector.load %arg2[%c0, %c0_0, %c0_1, %3, %c0_2] : memref<1x4x16x3x3xf32, #tpu.memory_space<vmem>>, vector<1x1x16x2x2xf32>
    %5 = vector.shape_cast %4 : vector<1x1x16x2x2xf32> to vector<16x2x2xf32>
    %6 = vector.shape_cast %5 : vector<16x2x2xf32> to vector<16x4xf32>
    %c0_3 = arith.constant 0 : index
    %c0_4 = arith.constant 0 : index
    %c0_5 = arith.constant 0 : index
    %7 = vector.load %arg3[%c0_3, %c0_4, %c0_5] : memref<9x32x16xf32, #tpu.memory_space<vmem>>, vector<1x32x16xf32>
    %8 = vector.shape_cast %7 : vector<1x32x16xf32> to vector<32x16xf32>
    %cst_6 = arith.constant dense<0.000000e+00> : vector<32x4xf32>
    %9 = tpu.matmul %8, %6, %cst_6 {dimension_numbers = #tpu.dot_dimension_numbers<[1], [0], [0], [1], [0, 0, 1, 1], [], []>} : vector<32x16xf32>, vector<16x4xf32>, vector<32x4xf32> -> vector<32x4xf32>
    %10 = arith.addf %0, %9 : vector<32x4xf32>
    %c2_i32_7 = arith.constant 2 : i32
    %11 = arith.muli %arg1, %c2_i32_7 : i32
    %c0_i32_8 = arith.constant 0 : i32
    %12 = arith.addi %11, %c0_i32_8 : i32
    %c0_9 = arith.constant 0 : index
    %c1 = arith.constant 1 : index
    %c0_10 = arith.constant 0 : index
    %13 = arith.index_cast %12 : i32 to index
    %c0_11 = arith.constant 0 : index
    %14 = vector.load %arg2[%c0_9, %c1, %c0_10, %13, %c0_11] : memref<1x4x16x3x3xf32, #tpu.memory_space<vmem>>, vector<1x1x16x2x2xf32>
    %15 = vector.shape_cast %14 : vector<1x1x16x2x2xf32> to vector<16x2x2xf32>
    %16 = vector.shape_cast %15 : vector<16x2x2xf32> to vector<16x4xf32>
    %c1_12 = arith.constant 1 : index
    %c0_13 = arith.constant 0 : index
    %c0_14 = arith.constant 0 : index
    %17 = vector.load %arg3[%c1_12, %c0_13, %c0_14] : memref<9x32x16xf32, #tpu.memory_space<vmem>>, vector<1x32x16xf32>
    %18 = vector.shape_cast %17 : vector<1x32x16xf32> to vector<32x16xf32>
    %cst_15 = arith.constant dense<0.000000e+00> : vector<32x4xf32>
    %19 = tpu.matmul %18, %16, %cst_15 {dimension_numbers = #tpu.dot_dimension_numbers<[1], [0], [0], [1], [0, 0, 1, 1], [], []>} : vector<32x16xf32>, vector<16x4xf32>, vector<32x4xf32> -> vector<32x4xf32>
    %20 = arith.addf %10, %19 : vector<32x4xf32>
    %c2_i32_16 = arith.constant 2 : i32
    %21 = arith.muli %arg1, %c2_i32_16 : i32
    %c0_i32_17 = arith.constant 0 : i32
    %22 = arith.addi %21, %c0_i32_17 : i32
    %c0_18 = arith.constant 0 : index
    %c0_19 = arith.constant 0 : index
    %c0_20 = arith.constant 0 : index
    %23 = arith.index_cast %22 : i32 to index
    %c1_21 = arith.constant 1 : index
    %24 = vector.load %arg2[%c0_18, %c0_19, %c0_20, %23, %c1_21] : memref<1x4x16x3x3xf32, #tpu.memory_space<vmem>>, vector<1x1x16x2x2xf32>
    %25 = vector.shape_cast %24 : vector<1x1x16x2x2xf32> to vector<16x2x2xf32>
    %26 = vector.shape_cast %25 : vector<16x2x2xf32> to vector<16x4xf32>
    %c2 = arith.constant 2 : index
    %c0_22 = arith.constant 0 : index
    %c0_23 = arith.constant 0 : index
    %27 = vector.load %arg3[%c2, %c0_22, %c0_23] : memref<9x32x16xf32, #tpu.memory_space<vmem>>, vector<1x32x16xf32>
    %28 = vector.shape_cast %27 : vector<1x32x16xf32> to vector<32x16xf32>
    %cst_24 = arith.constant dense<0.000000e+00> : vector<32x4xf32>
    %29 = tpu.matmul %28, %26, %cst_24 {dimension_numbers = #tpu.dot_dimension_numbers<[1], [0], [0], [1], [0, 0, 1, 1], [], []>} : vector<32x16xf32>, vector<16x4xf32>, vector<32x4xf32> -> vector<32x4xf32>
    %30 = arith.addf %20, %29 : vector<32x4xf32>
    %c2_i32_25 = arith.constant 2 : i32
    %31 = arith.muli %arg1, %c2_i32_25 : i32
    %c0_i32_26 = arith.constant 0 : i32
    %32 = arith.addi %31, %c0_i32_26 : i32
    %c0_27 = arith.constant 0 : index
    %c2_28 = arith.constant 2 : index
    %c0_29 = arith.constant 0 : index
    %33 = arith.index_cast %32 : i32 to index
    %c0_30 = arith.constant 0 : index
    %34 = vector.load %arg2[%c0_27, %c2_28, %c0_29, %33, %c0_30] : memref<1x4x16x3x3xf32, #tpu.memory_space<vmem>>, vector<1x1x16x2x2xf32>
    %35 = vector.shape_cast %34 : vector<1x1x16x2x2xf32> to vector<16x2x2xf32>
    %36 = vector.shape_cast %35 : vector<16x2x2xf32> to vector<16x4xf32>
    %c3 = arith.constant 3 : index
    %c0_31 = arith.constant 0 : index
    %c0_32 = arith.constant 0 : index
    %37 = vector.load %arg3[%c3, %c0_31, %c0_32] : memref<9x32x16xf32, #tpu.memory_space<vmem>>, vector<1x32x16xf32>
    %38 = vector.shape_cast %37 : vector<1x32x16xf32> to vector<32x16xf32>
    %cst_33 = arith.constant dense<0.000000e+00> : vector<32x4xf32>
    %39 = tpu.matmul %38, %36, %cst_33 {dimension_numbers = #tpu.dot_dimension_numbers<[1], [0], [0], [1], [0, 0, 1, 1], [], []>} : vector<32x16xf32>, vector<16x4xf32>, vector<32x4xf32> -> vector<32x4xf32>
    %40 = arith.addf %30, %39 : vector<32x4xf32>
    %c2_i32_34 = arith.constant 2 : i32
    %41 = arith.muli %arg1, %c2_i32_34 : i32
    %c0_i32_35 = arith.constant 0 : i32
    %42 = arith.addi %41, %c0_i32_35 : i32
    %c0_36 = arith.constant 0 : index
    %c3_37 = arith.constant 3 : index
    %c0_38 = arith.constant 0 : index
    %43 = arith.index_cast %42 : i32 to index
    %c0_39 = arith.constant 0 : index
    %44 = vector.load %arg2[%c0_36, %c3_37, %c0_38, %43, %c0_39] : memref<1x4x16x3x3xf32, #tpu.memory_space<vmem>>, vector<1x1x16x2x2xf32>
    %45 = vector.shape_cast %44 : vector<1x1x16x2x2xf32> to vector<16x2x2xf32>
    %46 = vector.shape_cast %45 : vector<16x2x2xf32> to vector<16x4xf32>
    %c4 = arith.constant 4 : index
    %c0_40 = arith.constant 0 : index
    %c0_41 = arith.constant 0 : index
    %47 = vector.load %arg3[%c4, %c0_40, %c0_41] : memref<9x32x16xf32, #tpu.memory_space<vmem>>, vector<1x32x16xf32>
    %48 = vector.shape_cast %47 : vector<1x32x16xf32> to vector<32x16xf32>
    %cst_42 = arith.constant dense<0.000000e+00> : vector<32x4xf32>
    %49 = tpu.matmul %48, %46, %cst_42 {dimension_numbers = #tpu.dot_dimension_numbers<[1], [0], [0], [1], [0, 0, 1, 1], [], []>} : vector<32x16xf32>, vector<16x4xf32>, vector<32x4xf32> -> vector<32x4xf32>
    %50 = arith.addf %40, %49 : vector<32x4xf32>
    %c2_i32_43 = arith.constant 2 : i32
    %51 = arith.muli %arg1, %c2_i32_43 : i32
    %c0_i32_44 = arith.constant 0 : i32
    %52 = arith.addi %51, %c0_i32_44 : i32
    %c0_45 = arith.constant 0 : index
    %c2_46 = arith.constant 2 : index
    %c0_47 = arith.constant 0 : index
    %53 = arith.index_cast %52 : i32 to index
    %c1_48 = arith.constant 1 : index
    %54 = vector.load %arg2[%c0_45, %c2_46, %c0_47, %53, %c1_48] : memref<1x4x16x3x3xf32, #tpu.memory_space<vmem>>, vector<1x1x16x2x2xf32>
    %55 = vector.shape_cast %54 : vector<1x1x16x2x2xf32> to vector<16x2x2xf32>
    %56 = vector.shape_cast %55 : vector<16x2x2xf32> to vector<16x4xf32>
    %c5 = arith.constant 5 : index
    %c0_49 = arith.constant 0 : index
    %c0_50 = arith.constant 0 : index
    %57 = vector.load %arg3[%c5, %c0_49, %c0_50] : memref<9x32x16xf32, #tpu.memory_space<vmem>>, vector<1x32x16xf32>
    %58 = vector.shape_cast %57 : vector<1x32x16xf32> to vector<32x16xf32>
    %cst_51 = arith.constant dense<0.000000e+00> : vector<32x4xf32>
    %59 = tpu.matmul %58, %56, %cst_51 {dimension_numbers = #tpu.dot_dimension_numbers<[1], [0], [0], [1], [0, 0, 1, 1], [], []>} : vector<32x16xf32>, vector<16x4xf32>, vector<32x4xf32> -> vector<32x4xf32>
    %60 = arith.addf %50, %59 : vector<32x4xf32>
    %c2_i32_52 = arith.constant 2 : i32
    %61 = arith.muli %arg1, %c2_i32_52 : i32
    %c1_i32 = arith.constant 1 : i32
    %62 = arith.addi %61, %c1_i32 : i32
    %c0_53 = arith.constant 0 : index
    %c0_54 = arith.constant 0 : index
    %c0_55 = arith.constant 0 : index
    %63 = arith.index_cast %62 : i32 to index
    %c0_56 = arith.constant 0 : index
    %64 = vector.load %arg2[%c0_53, %c0_54, %c0_55, %63, %c0_56] : memref<1x4x16x3x3xf32, #tpu.memory_space<vmem>>, vector<1x1x16x2x2xf32>
    %65 = vector.shape_cast %64 : vector<1x1x16x2x2xf32> to vector<16x2x2xf32>
    %66 = vector.shape_cast %65 : vector<16x2x2xf32> to vector<16x4xf32>
    %c6 = arith.constant 6 : index
    %c0_57 = arith.constant 0 : index
    %c0_58 = arith.constant 0 : index
    %67 = vector.load %arg3[%c6, %c0_57, %c0_58] : memref<9x32x16xf32, #tpu.memory_space<vmem>>, vector<1x32x16xf32>
    %68 = vector.shape_cast %67 : vector<1x32x16xf32> to vector<32x16xf32>
    %cst_59 = arith.constant dense<0.000000e+00> : vector<32x4xf32>
    %69 = tpu.matmul %68, %66, %cst_59 {dimension_numbers = #tpu.dot_dimension_numbers<[1], [0], [0], [1], [0, 0, 1, 1], [], []>} : vector<32x16xf32>, vector<16x4xf32>, vector<32x4xf32> -> vector<32x4xf32>
    %70 = arith.addf %60, %69 : vector<32x4xf32>
    %c2_i32_60 = arith.constant 2 : i32
    %71 = arith.muli %arg1, %c2_i32_60 : i32
    %c1_i32_61 = arith.constant 1 : i32
    %72 = arith.addi %71, %c1_i32_61 : i32
    %c0_62 = arith.constant 0 : index
    %c1_63 = arith.constant 1 : index
    %c0_64 = arith.constant 0 : index
    %73 = arith.index_cast %72 : i32 to index
    %c0_65 = arith.constant 0 : index
    %74 = vector.load %arg2[%c0_62, %c1_63, %c0_64, %73, %c0_65] : memref<1x4x16x3x3xf32, #tpu.memory_space<vmem>>, vector<1x1x16x2x2xf32>
    %75 = vector.shape_cast %74 : vector<1x1x16x2x2xf32> to vector<16x2x2xf32>
    %76 = vector.shape_cast %75 : vector<16x2x2xf32> to vector<16x4xf32>
    %c7 = arith.constant 7 : index
    %c0_66 = arith.constant 0 : index
    %c0_67 = arith.constant 0 : index
    %77 = vector.load %arg3[%c7, %c0_66, %c0_67] : memref<9x32x16xf32, #tpu.memory_space<vmem>>, vector<1x32x16xf32>
    %78 = vector.shape_cast %77 : vector<1x32x16xf32> to vector<32x16xf32>
    %cst_68 = arith.constant dense<0.000000e+00> : vector<32x4xf32>
    %79 = tpu.matmul %78, %76, %cst_68 {dimension_numbers = #tpu.dot_dimension_numbers<[1], [0], [0], [1], [0, 0, 1, 1], [], []>} : vector<32x16xf32>, vector<16x4xf32>, vector<32x4xf32> -> vector<32x4xf32>
    %80 = arith.addf %70, %79 : vector<32x4xf32>
    %c2_i32_69 = arith.constant 2 : i32
    %81 = arith.muli %arg1, %c2_i32_69 : i32
    %c1_i32_70 = arith.constant 1 : i32
    %82 = arith.addi %81, %c1_i32_70 : i32
    %c0_71 = arith.constant 0 : index
    %c0_72 = arith.constant 0 : index
    %c0_73 = arith.constant 0 : index
    %83 = arith.index_cast %82 : i32 to index
    %c1_74 = arith.constant 1 : index
    %84 = vector.load %arg2[%c0_71, %c0_72, %c0_73, %83, %c1_74] : memref<1x4x16x3x3xf32, #tpu.memory_space<vmem>>, vector<1x1x16x2x2xf32>
    %85 = vector.shape_cast %84 : vector<1x1x16x2x2xf32> to vector<16x2x2xf32>
    %86 = vector.shape_cast %85 : vector<16x2x2xf32> to vector<16x4xf32>
    %c8 = arith.constant 8 : index
    %c0_75 = arith.constant 0 : index
    %c0_76 = arith.constant 0 : index
    %87 = vector.load %arg3[%c8, %c0_75, %c0_76] : memref<9x32x16xf32, #tpu.memory_space<vmem>>, vector<1x32x16xf32>
    %88 = vector.shape_cast %87 : vector<1x32x16xf32> to vector<32x16xf32>
    %cst_77 = arith.constant dense<0.000000e+00> : vector<32x4xf32>
    %89 = tpu.matmul %88, %86, %cst_77 {dimension_numbers = #tpu.dot_dimension_numbers<[1], [0], [0], [1], [0, 0, 1, 1], [], []>} : vector<32x16xf32>, vector<16x4xf32>, vector<32x4xf32> -> vector<32x4xf32>
    %90 = arith.addf %80, %89 : vector<32x4xf32>
    %c0_78 = arith.constant 0 : index
    %c0_79 = arith.constant 0 : index
    %91 = vector.load %arg4[%c0_78, %c0_79] : memref<32x1xf32, #tpu.memory_space<vmem>>, vector<32x1xf32>
    %92 = vector.broadcast %91 : vector<32x1xf32> to vector<32x4xf32>
    %93 = arith.addf %90, %92 : vector<32x4xf32>
    %cst_80 = arith.constant 0.000000e+00 : f32
    %94 = vector.broadcast %cst_80 : f32 to vector<32x4xf32>
    %95 = arith.cmpf ogt, %93, %94 : vector<32x4xf32>
    %cst_81 = arith.constant 2.000000e-01 : f32
    %96 = vector.broadcast %cst_81 : f32 to vector<32x4xf32>
    %97 = arith.mulf %96, %93 : vector<32x4xf32>
    %98 = arith.select %95, %93, %97 : vector<32x4xi1>, vector<32x4xf32>
    %c0_82 = arith.constant 0 : index
    %c0_83 = arith.constant 0 : index
    %c0_84 = arith.constant 0 : index
    %99 = vector.load %arg5[%c0_82, %c0_83, %c0_84] : memref<1x32x4xf32, #tpu.memory_space<vmem>>, vector<1x32x4xf32>
    %100 = vector.shape_cast %99 : vector<1x32x4xf32> to vector<32x4xf32>
    %101 = vector.shape_cast %98 : vector<32x4xf32> to vector<1x32x4xf32>
    tpu.vector_store %arg5[%c0_82, %c0_83, %c0_84], %101 {strides = array<i32>} : memref<1x32x4xf32, #tpu.memory_space<vmem>>, vector<1x32x4xf32>,
    return
  }
  func.func @transform_0(%arg0: i32, %arg1: i32) -> (i32, i32, i32, i32, i32) {
    %c0_i32 = arith.constant 0 : i32
    %c0_i32_0 = arith.constant 0 : i32
    %c0_i32_1 = arith.constant 0 : i32
    %c0_i32_2 = arith.constant 0 : i32
    %c0_i32_3 = arith.constant 0 : i32
    return %arg0, %c0_i32, %c0_i32_0, %c0_i32_1, %c0_i32_2 : i32, i32, i32, i32, i32
  }
  func.func @transform_1(%arg0: i32, %arg1: i32) -> (i32, i32, i32) {
    %c0_i32 = arith.constant 0 : i32
    %c0_i32_0 = arith.constant 0 : i32
    %c0_i32_1 = arith.constant 0 : i32
    %c0_i32_2 = arith.constant 0 : i32
    return %c0_i32, %c0_i32_0, %c0_i32_1 : i32, i32, i32
  }
  func.func @transform_2(%arg0: i32, %arg1: i32) -> (i32, i32) {
    %c0_i32 = arith.constant 0 : i32
    %c0_i32_0 = arith.constant 0 : i32
    %c0_i32_1 = arith.constant 0 : i32
    return %c0_i32, %c0_i32_0 : i32, i32
  }
  func.func @transform_3(%arg0: i32, %arg1: i32) -> (i32, i32, i32) {
    %c0_i32 = arith.constant 0 : i32
    %c0_i32_0 = arith.constant 0 : i32
    return %arg0, %c0_i32, %arg1 : i32, i32, i32
  }
}

module attributes {stable_mosaic.version = 11 : i64} {
  func.func @_dwpw_kernel(%arg0: i32, %arg1: i32, %arg2: memref<1x4x32x2x2xf32, #tpu.memory_space<vmem>>, %arg3: memref<9x64x32xf32, #tpu.memory_space<vmem>>, %arg4: memref<64x1xf32, #tpu.memory_space<vmem>>, %arg5: memref<1x64x1xf32, #tpu.memory_space<vmem>>) attributes {dimension_semantics = [#tpu.dimension_semantics<parallel>, #tpu.dimension_semantics<parallel>], iteration_bounds = array<i64: 2, 1>, scalar_prefetch = 0 : i64, scratch_operands = 0 : i64, tpu.core_type = #tpu.core_type<tc>, window_params = [{transform_indices = @transform_0, window_bounds = array<i64: 1, 4, 32, 2, 2>}, {pipeline_mode = #tpu.pipeline_mode<synchronous>, transform_indices = @transform_1, window_bounds = array<i64: 9, 64, 32>}, {pipeline_mode = #tpu.pipeline_mode<synchronous>, transform_indices = @transform_2, window_bounds = array<i64: 64, 1>}, {transform_indices = @transform_3, window_bounds = array<i64: 1, 64, 1>}]} {
    %cst = arith.constant 0.000000e+00 : f32
    %0 = vector.broadcast %cst : f32 to vector<64x1xf32>
    %c1_i32 = arith.constant 1 : i32
    %1 = arith.muli %arg1, %c1_i32 : i32
    %c0_i32 = arith.constant 0 : i32
    %2 = arith.addi %1, %c0_i32 : i32
    %c0 = arith.constant 0 : index
    %c0_0 = arith.constant 0 : index
    %c0_1 = arith.constant 0 : index
    %3 = arith.index_cast %2 : i32 to index
    %c0_2 = arith.constant 0 : index
    %4 = vector.load %arg2[%c0, %c0_0, %c0_1, %3, %c0_2] : memref<1x4x32x2x2xf32, #tpu.memory_space<vmem>>, vector<1x1x32x1x1xf32>
    %5 = vector.shape_cast %4 : vector<1x1x32x1x1xf32> to vector<32x1x1xf32>
    %6 = vector.shape_cast %5 : vector<32x1x1xf32> to vector<32x1xf32>
    %c0_3 = arith.constant 0 : index
    %c0_4 = arith.constant 0 : index
    %c0_5 = arith.constant 0 : index
    %7 = vector.load %arg3[%c0_3, %c0_4, %c0_5] : memref<9x64x32xf32, #tpu.memory_space<vmem>>, vector<1x64x32xf32>
    %8 = vector.shape_cast %7 : vector<1x64x32xf32> to vector<64x32xf32>
    %cst_6 = arith.constant dense<0.000000e+00> : vector<64x1xf32>
    %9 = tpu.matmul %8, %6, %cst_6 {dimension_numbers = #tpu.dot_dimension_numbers<[1], [0], [0], [1], [0, 0, 1, 1], [], []>} : vector<64x32xf32>, vector<32x1xf32>, vector<64x1xf32> -> vector<64x1xf32>
    %10 = arith.addf %0, %9 : vector<64x1xf32>
    %c1_i32_7 = arith.constant 1 : i32
    %11 = arith.muli %arg1, %c1_i32_7 : i32
    %c0_i32_8 = arith.constant 0 : i32
    %12 = arith.addi %11, %c0_i32_8 : i32
    %c0_9 = arith.constant 0 : index
    %c1 = arith.constant 1 : index
    %c0_10 = arith.constant 0 : index
    %13 = arith.index_cast %12 : i32 to index
    %c0_11 = arith.constant 0 : index
    %14 = vector.load %arg2[%c0_9, %c1, %c0_10, %13, %c0_11] : memref<1x4x32x2x2xf32, #tpu.memory_space<vmem>>, vector<1x1x32x1x1xf32>
    %15 = vector.shape_cast %14 : vector<1x1x32x1x1xf32> to vector<32x1x1xf32>
    %16 = vector.shape_cast %15 : vector<32x1x1xf32> to vector<32x1xf32>
    %c1_12 = arith.constant 1 : index
    %c0_13 = arith.constant 0 : index
    %c0_14 = arith.constant 0 : index
    %17 = vector.load %arg3[%c1_12, %c0_13, %c0_14] : memref<9x64x32xf32, #tpu.memory_space<vmem>>, vector<1x64x32xf32>
    %18 = vector.shape_cast %17 : vector<1x64x32xf32> to vector<64x32xf32>
    %cst_15 = arith.constant dense<0.000000e+00> : vector<64x1xf32>
    %19 = tpu.matmul %18, %16, %cst_15 {dimension_numbers = #tpu.dot_dimension_numbers<[1], [0], [0], [1], [0, 0, 1, 1], [], []>} : vector<64x32xf32>, vector<32x1xf32>, vector<64x1xf32> -> vector<64x1xf32>
    %20 = arith.addf %10, %19 : vector<64x1xf32>
    %c1_i32_16 = arith.constant 1 : i32
    %21 = arith.muli %arg1, %c1_i32_16 : i32
    %c0_i32_17 = arith.constant 0 : i32
    %22 = arith.addi %21, %c0_i32_17 : i32
    %c0_18 = arith.constant 0 : index
    %c0_19 = arith.constant 0 : index
    %c0_20 = arith.constant 0 : index
    %23 = arith.index_cast %22 : i32 to index
    %c1_21 = arith.constant 1 : index
    %24 = vector.load %arg2[%c0_18, %c0_19, %c0_20, %23, %c1_21] : memref<1x4x32x2x2xf32, #tpu.memory_space<vmem>>, vector<1x1x32x1x1xf32>
    %25 = vector.shape_cast %24 : vector<1x1x32x1x1xf32> to vector<32x1x1xf32>
    %26 = vector.shape_cast %25 : vector<32x1x1xf32> to vector<32x1xf32>
    %c2 = arith.constant 2 : index
    %c0_22 = arith.constant 0 : index
    %c0_23 = arith.constant 0 : index
    %27 = vector.load %arg3[%c2, %c0_22, %c0_23] : memref<9x64x32xf32, #tpu.memory_space<vmem>>, vector<1x64x32xf32>
    %28 = vector.shape_cast %27 : vector<1x64x32xf32> to vector<64x32xf32>
    %cst_24 = arith.constant dense<0.000000e+00> : vector<64x1xf32>
    %29 = tpu.matmul %28, %26, %cst_24 {dimension_numbers = #tpu.dot_dimension_numbers<[1], [0], [0], [1], [0, 0, 1, 1], [], []>} : vector<64x32xf32>, vector<32x1xf32>, vector<64x1xf32> -> vector<64x1xf32>
    %30 = arith.addf %20, %29 : vector<64x1xf32>
    %c1_i32_25 = arith.constant 1 : i32
    %31 = arith.muli %arg1, %c1_i32_25 : i32
    %c0_i32_26 = arith.constant 0 : i32
    %32 = arith.addi %31, %c0_i32_26 : i32
    %c0_27 = arith.constant 0 : index
    %c2_28 = arith.constant 2 : index
    %c0_29 = arith.constant 0 : index
    %33 = arith.index_cast %32 : i32 to index
    %c0_30 = arith.constant 0 : index
    %34 = vector.load %arg2[%c0_27, %c2_28, %c0_29, %33, %c0_30] : memref<1x4x32x2x2xf32, #tpu.memory_space<vmem>>, vector<1x1x32x1x1xf32>
    %35 = vector.shape_cast %34 : vector<1x1x32x1x1xf32> to vector<32x1x1xf32>
    %36 = vector.shape_cast %35 : vector<32x1x1xf32> to vector<32x1xf32>
    %c3 = arith.constant 3 : index
    %c0_31 = arith.constant 0 : index
    %c0_32 = arith.constant 0 : index
    %37 = vector.load %arg3[%c3, %c0_31, %c0_32] : memref<9x64x32xf32, #tpu.memory_space<vmem>>, vector<1x64x32xf32>
    %38 = vector.shape_cast %37 : vector<1x64x32xf32> to vector<64x32xf32>
    %cst_33 = arith.constant dense<0.000000e+00> : vector<64x1xf32>
    %39 = tpu.matmul %38, %36, %cst_33 {dimension_numbers = #tpu.dot_dimension_numbers<[1], [0], [0], [1], [0, 0, 1, 1], [], []>} : vector<64x32xf32>, vector<32x1xf32>, vector<64x1xf32> -> vector<64x1xf32>
    %40 = arith.addf %30, %39 : vector<64x1xf32>
    %c1_i32_34 = arith.constant 1 : i32
    %41 = arith.muli %arg1, %c1_i32_34 : i32
    %c0_i32_35 = arith.constant 0 : i32
    %42 = arith.addi %41, %c0_i32_35 : i32
    %c0_36 = arith.constant 0 : index
    %c3_37 = arith.constant 3 : index
    %c0_38 = arith.constant 0 : index
    %43 = arith.index_cast %42 : i32 to index
    %c0_39 = arith.constant 0 : index
    %44 = vector.load %arg2[%c0_36, %c3_37, %c0_38, %43, %c0_39] : memref<1x4x32x2x2xf32, #tpu.memory_space<vmem>>, vector<1x1x32x1x1xf32>
    %45 = vector.shape_cast %44 : vector<1x1x32x1x1xf32> to vector<32x1x1xf32>
    %46 = vector.shape_cast %45 : vector<32x1x1xf32> to vector<32x1xf32>
    %c4 = arith.constant 4 : index
    %c0_40 = arith.constant 0 : index
    %c0_41 = arith.constant 0 : index
    %47 = vector.load %arg3[%c4, %c0_40, %c0_41] : memref<9x64x32xf32, #tpu.memory_space<vmem>>, vector<1x64x32xf32>
    %48 = vector.shape_cast %47 : vector<1x64x32xf32> to vector<64x32xf32>
    %cst_42 = arith.constant dense<0.000000e+00> : vector<64x1xf32>
    %49 = tpu.matmul %48, %46, %cst_42 {dimension_numbers = #tpu.dot_dimension_numbers<[1], [0], [0], [1], [0, 0, 1, 1], [], []>} : vector<64x32xf32>, vector<32x1xf32>, vector<64x1xf32> -> vector<64x1xf32>
    %50 = arith.addf %40, %49 : vector<64x1xf32>
    %c1_i32_43 = arith.constant 1 : i32
    %51 = arith.muli %arg1, %c1_i32_43 : i32
    %c0_i32_44 = arith.constant 0 : i32
    %52 = arith.addi %51, %c0_i32_44 : i32
    %c0_45 = arith.constant 0 : index
    %c2_46 = arith.constant 2 : index
    %c0_47 = arith.constant 0 : index
    %53 = arith.index_cast %52 : i32 to index
    %c1_48 = arith.constant 1 : index
    %54 = vector.load %arg2[%c0_45, %c2_46, %c0_47, %53, %c1_48] : memref<1x4x32x2x2xf32, #tpu.memory_space<vmem>>, vector<1x1x32x1x1xf32>
    %55 = vector.shape_cast %54 : vector<1x1x32x1x1xf32> to vector<32x1x1xf32>
    %56 = vector.shape_cast %55 : vector<32x1x1xf32> to vector<32x1xf32>
    %c5 = arith.constant 5 : index
    %c0_49 = arith.constant 0 : index
    %c0_50 = arith.constant 0 : index
    %57 = vector.load %arg3[%c5, %c0_49, %c0_50] : memref<9x64x32xf32, #tpu.memory_space<vmem>>, vector<1x64x32xf32>
    %58 = vector.shape_cast %57 : vector<1x64x32xf32> to vector<64x32xf32>
    %cst_51 = arith.constant dense<0.000000e+00> : vector<64x1xf32>
    %59 = tpu.matmul %58, %56, %cst_51 {dimension_numbers = #tpu.dot_dimension_numbers<[1], [0], [0], [1], [0, 0, 1, 1], [], []>} : vector<64x32xf32>, vector<32x1xf32>, vector<64x1xf32> -> vector<64x1xf32>
    %60 = arith.addf %50, %59 : vector<64x1xf32>
    %c1_i32_52 = arith.constant 1 : i32
    %61 = arith.muli %arg1, %c1_i32_52 : i32
    %c1_i32_53 = arith.constant 1 : i32
    %62 = arith.addi %61, %c1_i32_53 : i32
    %c0_54 = arith.constant 0 : index
    %c0_55 = arith.constant 0 : index
    %c0_56 = arith.constant 0 : index
    %63 = arith.index_cast %62 : i32 to index
    %c0_57 = arith.constant 0 : index
    %64 = vector.load %arg2[%c0_54, %c0_55, %c0_56, %63, %c0_57] : memref<1x4x32x2x2xf32, #tpu.memory_space<vmem>>, vector<1x1x32x1x1xf32>
    %65 = vector.shape_cast %64 : vector<1x1x32x1x1xf32> to vector<32x1x1xf32>
    %66 = vector.shape_cast %65 : vector<32x1x1xf32> to vector<32x1xf32>
    %c6 = arith.constant 6 : index
    %c0_58 = arith.constant 0 : index
    %c0_59 = arith.constant 0 : index
    %67 = vector.load %arg3[%c6, %c0_58, %c0_59] : memref<9x64x32xf32, #tpu.memory_space<vmem>>, vector<1x64x32xf32>
    %68 = vector.shape_cast %67 : vector<1x64x32xf32> to vector<64x32xf32>
    %cst_60 = arith.constant dense<0.000000e+00> : vector<64x1xf32>
    %69 = tpu.matmul %68, %66, %cst_60 {dimension_numbers = #tpu.dot_dimension_numbers<[1], [0], [0], [1], [0, 0, 1, 1], [], []>} : vector<64x32xf32>, vector<32x1xf32>, vector<64x1xf32> -> vector<64x1xf32>
    %70 = arith.addf %60, %69 : vector<64x1xf32>
    %c1_i32_61 = arith.constant 1 : i32
    %71 = arith.muli %arg1, %c1_i32_61 : i32
    %c1_i32_62 = arith.constant 1 : i32
    %72 = arith.addi %71, %c1_i32_62 : i32
    %c0_63 = arith.constant 0 : index
    %c1_64 = arith.constant 1 : index
    %c0_65 = arith.constant 0 : index
    %73 = arith.index_cast %72 : i32 to index
    %c0_66 = arith.constant 0 : index
    %74 = vector.load %arg2[%c0_63, %c1_64, %c0_65, %73, %c0_66] : memref<1x4x32x2x2xf32, #tpu.memory_space<vmem>>, vector<1x1x32x1x1xf32>
    %75 = vector.shape_cast %74 : vector<1x1x32x1x1xf32> to vector<32x1x1xf32>
    %76 = vector.shape_cast %75 : vector<32x1x1xf32> to vector<32x1xf32>
    %c7 = arith.constant 7 : index
    %c0_67 = arith.constant 0 : index
    %c0_68 = arith.constant 0 : index
    %77 = vector.load %arg3[%c7, %c0_67, %c0_68] : memref<9x64x32xf32, #tpu.memory_space<vmem>>, vector<1x64x32xf32>
    %78 = vector.shape_cast %77 : vector<1x64x32xf32> to vector<64x32xf32>
    %cst_69 = arith.constant dense<0.000000e+00> : vector<64x1xf32>
    %79 = tpu.matmul %78, %76, %cst_69 {dimension_numbers = #tpu.dot_dimension_numbers<[1], [0], [0], [1], [0, 0, 1, 1], [], []>} : vector<64x32xf32>, vector<32x1xf32>, vector<64x1xf32> -> vector<64x1xf32>
    %80 = arith.addf %70, %79 : vector<64x1xf32>
    %c1_i32_70 = arith.constant 1 : i32
    %81 = arith.muli %arg1, %c1_i32_70 : i32
    %c1_i32_71 = arith.constant 1 : i32
    %82 = arith.addi %81, %c1_i32_71 : i32
    %c0_72 = arith.constant 0 : index
    %c0_73 = arith.constant 0 : index
    %c0_74 = arith.constant 0 : index
    %83 = arith.index_cast %82 : i32 to index
    %c1_75 = arith.constant 1 : index
    %84 = vector.load %arg2[%c0_72, %c0_73, %c0_74, %83, %c1_75] : memref<1x4x32x2x2xf32, #tpu.memory_space<vmem>>, vector<1x1x32x1x1xf32>
    %85 = vector.shape_cast %84 : vector<1x1x32x1x1xf32> to vector<32x1x1xf32>
    %86 = vector.shape_cast %85 : vector<32x1x1xf32> to vector<32x1xf32>
    %c8 = arith.constant 8 : index
    %c0_76 = arith.constant 0 : index
    %c0_77 = arith.constant 0 : index
    %87 = vector.load %arg3[%c8, %c0_76, %c0_77] : memref<9x64x32xf32, #tpu.memory_space<vmem>>, vector<1x64x32xf32>
    %88 = vector.shape_cast %87 : vector<1x64x32xf32> to vector<64x32xf32>
    %cst_78 = arith.constant dense<0.000000e+00> : vector<64x1xf32>
    %89 = tpu.matmul %88, %86, %cst_78 {dimension_numbers = #tpu.dot_dimension_numbers<[1], [0], [0], [1], [0, 0, 1, 1], [], []>} : vector<64x32xf32>, vector<32x1xf32>, vector<64x1xf32> -> vector<64x1xf32>
    %90 = arith.addf %80, %89 : vector<64x1xf32>
    %c0_79 = arith.constant 0 : index
    %c0_80 = arith.constant 0 : index
    %91 = vector.load %arg4[%c0_79, %c0_80] : memref<64x1xf32, #tpu.memory_space<vmem>>, vector<64x1xf32>
    %92 = arith.addf %90, %91 : vector<64x1xf32>
    %cst_81 = arith.constant 0.000000e+00 : f32
    %93 = vector.broadcast %cst_81 : f32 to vector<64x1xf32>
    %94 = arith.cmpf ogt, %92, %93 : vector<64x1xf32>
    %cst_82 = arith.constant 2.000000e-01 : f32
    %95 = vector.broadcast %cst_82 : f32 to vector<64x1xf32>
    %96 = arith.mulf %95, %92 : vector<64x1xf32>
    %97 = arith.select %94, %92, %96 : vector<64x1xi1>, vector<64x1xf32>
    %c0_83 = arith.constant 0 : index
    %c0_84 = arith.constant 0 : index
    %c0_85 = arith.constant 0 : index
    %98 = vector.load %arg5[%c0_83, %c0_84, %c0_85] : memref<1x64x1xf32, #tpu.memory_space<vmem>>, vector<1x64x1xf32>
    %99 = vector.shape_cast %98 : vector<1x64x1xf32> to vector<64x1xf32>
    %100 = vector.shape_cast %97 : vector<64x1xf32> to vector<1x64x1xf32>
    tpu.vector_store %arg5[%c0_83, %c0_84, %c0_85], %100 {strides = array<i32>} : memref<1x64x1xf32, #tpu.memory_space<vmem>>, vector<1x64x1xf32>,
    return
  }
  func.func @transform_0(%arg0: i32, %arg1: i32) -> (i32, i32, i32, i32, i32) {
    %c0_i32 = arith.constant 0 : i32
    %c0_i32_0 = arith.constant 0 : i32
    %c0_i32_1 = arith.constant 0 : i32
    %c0_i32_2 = arith.constant 0 : i32
    %c0_i32_3 = arith.constant 0 : i32
    return %arg0, %c0_i32, %c0_i32_0, %c0_i32_1, %c0_i32_2 : i32, i32, i32, i32, i32
  }
  func.func @transform_1(%arg0: i32, %arg1: i32) -> (i32, i32, i32) {
    %c0_i32 = arith.constant 0 : i32
    %c0_i32_0 = arith.constant 0 : i32
    %c0_i32_1 = arith.constant 0 : i32
    %c0_i32_2 = arith.constant 0 : i32
    return %c0_i32, %c0_i32_0, %c0_i32_1 : i32, i32, i32
  }
  func.func @transform_2(%arg0: i32, %arg1: i32) -> (i32, i32) {
    %c0_i32 = arith.constant 0 : i32
    %c0_i32_0 = arith.constant 0 : i32
    %c0_i32_1 = arith.constant 0 : i32
    return %c0_i32, %c0_i32_0 : i32, i32
  }
  func.func @transform_3(%arg0: i32, %arg1: i32) -> (i32, i32, i32) {
    %c0_i32 = arith.constant 0 : i32
    %c0_i32_0 = arith.constant 0 : i32
    return %arg0, %c0_i32, %arg1 : i32, i32, i32
  }
}

module attributes {stable_mosaic.version = 11 : i64} {
  func.func @_dwpw_kernel(%arg0: i32, %arg1: i32, %arg2: memref<1x1x64x3x3xf32, #tpu.memory_space<vmem>>, %arg3: memref<9x1x64xf32, #tpu.memory_space<vmem>>, %arg4: memref<1x1xf32, #tpu.memory_space<vmem>>, %arg5: memref<1x1x1xf32, #tpu.memory_space<vmem>>) attributes {dimension_semantics = [#tpu.dimension_semantics<parallel>, #tpu.dimension_semantics<parallel>], iteration_bounds = array<i64: 2, 1>, scalar_prefetch = 0 : i64, scratch_operands = 0 : i64, tpu.core_type = #tpu.core_type<tc>, window_params = [{transform_indices = @transform_0, window_bounds = array<i64: 1, 1, 64, 3, 3>}, {pipeline_mode = #tpu.pipeline_mode<synchronous>, transform_indices = @transform_1, window_bounds = array<i64: 9, 1, 64>}, {pipeline_mode = #tpu.pipeline_mode<synchronous>, transform_indices = @transform_2, window_bounds = array<i64: 1, 1>}, {transform_indices = @transform_3, window_bounds = array<i64: 1, 1, 1>}]} {
    %cst = arith.constant 0.000000e+00 : f32
    %0 = vector.broadcast %cst : f32 to vector<1x1xf32>
    %c1_i32 = arith.constant 1 : i32
    %1 = arith.muli %arg1, %c1_i32 : i32
    %c0_i32 = arith.constant 0 : i32
    %2 = arith.addi %1, %c0_i32 : i32
    %c0 = arith.constant 0 : index
    %c0_0 = arith.constant 0 : index
    %c0_1 = arith.constant 0 : index
    %3 = arith.index_cast %2 : i32 to index
    %c0_2 = arith.constant 0 : index
    %4 = vector.load %arg2[%c0, %c0_0, %c0_1, %3, %c0_2] : memref<1x1x64x3x3xf32, #tpu.memory_space<vmem>>, vector<1x1x64x1x1xf32>
    %5 = vector.shape_cast %4 : vector<1x1x64x1x1xf32> to vector<64x1x1xf32>
    %6 = vector.shape_cast %5 : vector<64x1x1xf32> to vector<64x1xf32>
    %c0_3 = arith.constant 0 : index
    %c0_4 = arith.constant 0 : index
    %c0_5 = arith.constant 0 : index
    %7 = vector.load %arg3[%c0_3, %c0_4, %c0_5] : memref<9x1x64xf32, #tpu.memory_space<vmem>>, vector<1x1x64xf32>
    %8 = vector.shape_cast %7 : vector<1x1x64xf32> to vector<1x64xf32>
    %cst_6 = arith.constant dense<0.000000e+00> : vector<1x1xf32>
    %9 = tpu.matmul %8, %6, %cst_6 {dimension_numbers = #tpu.dot_dimension_numbers<[1], [0], [0], [1], [0, 0, 1, 1], [], []>} : vector<1x64xf32>, vector<64x1xf32>, vector<1x1xf32> -> vector<1x1xf32>
    %10 = arith.addf %0, %9 : vector<1x1xf32>
    %c1_i32_7 = arith.constant 1 : i32
    %11 = arith.muli %arg1, %c1_i32_7 : i32
    %c0_i32_8 = arith.constant 0 : i32
    %12 = arith.addi %11, %c0_i32_8 : i32
    %c0_9 = arith.constant 0 : index
    %c0_10 = arith.constant 0 : index
    %c0_11 = arith.constant 0 : index
    %13 = arith.index_cast %12 : i32 to index
    %c1 = arith.constant 1 : index
    %14 = vector.load %arg2[%c0_9, %c0_10, %c0_11, %13, %c1] : memref<1x1x64x3x3xf32, #tpu.memory_space<vmem>>, vector<1x1x64x1x1xf32>
    %15 = vector.shape_cast %14 : vector<1x1x64x1x1xf32> to vector<64x1x1xf32>
    %16 = vector.shape_cast %15 : vector<64x1x1xf32> to vector<64x1xf32>
    %c1_12 = arith.constant 1 : index
    %c0_13 = arith.constant 0 : index
    %c0_14 = arith.constant 0 : index
    %17 = vector.load %arg3[%c1_12, %c0_13, %c0_14] : memref<9x1x64xf32, #tpu.memory_space<vmem>>, vector<1x1x64xf32>
    %18 = vector.shape_cast %17 : vector<1x1x64xf32> to vector<1x64xf32>
    %cst_15 = arith.constant dense<0.000000e+00> : vector<1x1xf32>
    %19 = tpu.matmul %18, %16, %cst_15 {dimension_numbers = #tpu.dot_dimension_numbers<[1], [0], [0], [1], [0, 0, 1, 1], [], []>} : vector<1x64xf32>, vector<64x1xf32>, vector<1x1xf32> -> vector<1x1xf32>
    %20 = arith.addf %10, %19 : vector<1x1xf32>
    %c1_i32_16 = arith.constant 1 : i32
    %21 = arith.muli %arg1, %c1_i32_16 : i32
    %c0_i32_17 = arith.constant 0 : i32
    %22 = arith.addi %21, %c0_i32_17 : i32
    %c0_18 = arith.constant 0 : index
    %c0_19 = arith.constant 0 : index
    %c0_20 = arith.constant 0 : index
    %23 = arith.index_cast %22 : i32 to index
    %c2 = arith.constant 2 : index
    %24 = vector.load %arg2[%c0_18, %c0_19, %c0_20, %23, %c2] : memref<1x1x64x3x3xf32, #tpu.memory_space<vmem>>, vector<1x1x64x1x1xf32>
    %25 = vector.shape_cast %24 : vector<1x1x64x1x1xf32> to vector<64x1x1xf32>
    %26 = vector.shape_cast %25 : vector<64x1x1xf32> to vector<64x1xf32>
    %c2_21 = arith.constant 2 : index
    %c0_22 = arith.constant 0 : index
    %c0_23 = arith.constant 0 : index
    %27 = vector.load %arg3[%c2_21, %c0_22, %c0_23] : memref<9x1x64xf32, #tpu.memory_space<vmem>>, vector<1x1x64xf32>
    %28 = vector.shape_cast %27 : vector<1x1x64xf32> to vector<1x64xf32>
    %cst_24 = arith.constant dense<0.000000e+00> : vector<1x1xf32>
    %29 = tpu.matmul %28, %26, %cst_24 {dimension_numbers = #tpu.dot_dimension_numbers<[1], [0], [0], [1], [0, 0, 1, 1], [], []>} : vector<1x64xf32>, vector<64x1xf32>, vector<1x1xf32> -> vector<1x1xf32>
    %30 = arith.addf %20, %29 : vector<1x1xf32>
    %c1_i32_25 = arith.constant 1 : i32
    %31 = arith.muli %arg1, %c1_i32_25 : i32
    %c1_i32_26 = arith.constant 1 : i32
    %32 = arith.addi %31, %c1_i32_26 : i32
    %c0_27 = arith.constant 0 : index
    %c0_28 = arith.constant 0 : index
    %c0_29 = arith.constant 0 : index
    %33 = arith.index_cast %32 : i32 to index
    %c0_30 = arith.constant 0 : index
    %34 = vector.load %arg2[%c0_27, %c0_28, %c0_29, %33, %c0_30] : memref<1x1x64x3x3xf32, #tpu.memory_space<vmem>>, vector<1x1x64x1x1xf32>
    %35 = vector.shape_cast %34 : vector<1x1x64x1x1xf32> to vector<64x1x1xf32>
    %36 = vector.shape_cast %35 : vector<64x1x1xf32> to vector<64x1xf32>
    %c3 = arith.constant 3 : index
    %c0_31 = arith.constant 0 : index
    %c0_32 = arith.constant 0 : index
    %37 = vector.load %arg3[%c3, %c0_31, %c0_32] : memref<9x1x64xf32, #tpu.memory_space<vmem>>, vector<1x1x64xf32>
    %38 = vector.shape_cast %37 : vector<1x1x64xf32> to vector<1x64xf32>
    %cst_33 = arith.constant dense<0.000000e+00> : vector<1x1xf32>
    %39 = tpu.matmul %38, %36, %cst_33 {dimension_numbers = #tpu.dot_dimension_numbers<[1], [0], [0], [1], [0, 0, 1, 1], [], []>} : vector<1x64xf32>, vector<64x1xf32>, vector<1x1xf32> -> vector<1x1xf32>
    %40 = arith.addf %30, %39 : vector<1x1xf32>
    %c1_i32_34 = arith.constant 1 : i32
    %41 = arith.muli %arg1, %c1_i32_34 : i32
    %c1_i32_35 = arith.constant 1 : i32
    %42 = arith.addi %41, %c1_i32_35 : i32
    %c0_36 = arith.constant 0 : index
    %c0_37 = arith.constant 0 : index
    %c0_38 = arith.constant 0 : index
    %43 = arith.index_cast %42 : i32 to index
    %c1_39 = arith.constant 1 : index
    %44 = vector.load %arg2[%c0_36, %c0_37, %c0_38, %43, %c1_39] : memref<1x1x64x3x3xf32, #tpu.memory_space<vmem>>, vector<1x1x64x1x1xf32>
    %45 = vector.shape_cast %44 : vector<1x1x64x1x1xf32> to vector<64x1x1xf32>
    %46 = vector.shape_cast %45 : vector<64x1x1xf32> to vector<64x1xf32>
    %c4 = arith.constant 4 : index
    %c0_40 = arith.constant 0 : index
    %c0_41 = arith.constant 0 : index
    %47 = vector.load %arg3[%c4, %c0_40, %c0_41] : memref<9x1x64xf32, #tpu.memory_space<vmem>>, vector<1x1x64xf32>
    %48 = vector.shape_cast %47 : vector<1x1x64xf32> to vector<1x64xf32>
    %cst_42 = arith.constant dense<0.000000e+00> : vector<1x1xf32>
    %49 = tpu.matmul %48, %46, %cst_42 {dimension_numbers = #tpu.dot_dimension_numbers<[1], [0], [0], [1], [0, 0, 1, 1], [], []>} : vector<1x64xf32>, vector<64x1xf32>, vector<1x1xf32> -> vector<1x1xf32>
    %50 = arith.addf %40, %49 : vector<1x1xf32>
    %c1_i32_43 = arith.constant 1 : i32
    %51 = arith.muli %arg1, %c1_i32_43 : i32
    %c1_i32_44 = arith.constant 1 : i32
    %52 = arith.addi %51, %c1_i32_44 : i32
    %c0_45 = arith.constant 0 : index
    %c0_46 = arith.constant 0 : index
    %c0_47 = arith.constant 0 : index
    %53 = arith.index_cast %52 : i32 to index
    %c2_48 = arith.constant 2 : index
    %54 = vector.load %arg2[%c0_45, %c0_46, %c0_47, %53, %c2_48] : memref<1x1x64x3x3xf32, #tpu.memory_space<vmem>>, vector<1x1x64x1x1xf32>
    %55 = vector.shape_cast %54 : vector<1x1x64x1x1xf32> to vector<64x1x1xf32>
    %56 = vector.shape_cast %55 : vector<64x1x1xf32> to vector<64x1xf32>
    %c5 = arith.constant 5 : index
    %c0_49 = arith.constant 0 : index
    %c0_50 = arith.constant 0 : index
    %57 = vector.load %arg3[%c5, %c0_49, %c0_50] : memref<9x1x64xf32, #tpu.memory_space<vmem>>, vector<1x1x64xf32>
    %58 = vector.shape_cast %57 : vector<1x1x64xf32> to vector<1x64xf32>
    %cst_51 = arith.constant dense<0.000000e+00> : vector<1x1xf32>
    %59 = tpu.matmul %58, %56, %cst_51 {dimension_numbers = #tpu.dot_dimension_numbers<[1], [0], [0], [1], [0, 0, 1, 1], [], []>} : vector<1x64xf32>, vector<64x1xf32>, vector<1x1xf32> -> vector<1x1xf32>
    %60 = arith.addf %50, %59 : vector<1x1xf32>
    %c1_i32_52 = arith.constant 1 : i32
    %61 = arith.muli %arg1, %c1_i32_52 : i32
    %c2_i32 = arith.constant 2 : i32
    %62 = arith.addi %61, %c2_i32 : i32
    %c0_53 = arith.constant 0 : index
    %c0_54 = arith.constant 0 : index
    %c0_55 = arith.constant 0 : index
    %63 = arith.index_cast %62 : i32 to index
    %c0_56 = arith.constant 0 : index
    %64 = vector.load %arg2[%c0_53, %c0_54, %c0_55, %63, %c0_56] : memref<1x1x64x3x3xf32, #tpu.memory_space<vmem>>, vector<1x1x64x1x1xf32>
    %65 = vector.shape_cast %64 : vector<1x1x64x1x1xf32> to vector<64x1x1xf32>
    %66 = vector.shape_cast %65 : vector<64x1x1xf32> to vector<64x1xf32>
    %c6 = arith.constant 6 : index
    %c0_57 = arith.constant 0 : index
    %c0_58 = arith.constant 0 : index
    %67 = vector.load %arg3[%c6, %c0_57, %c0_58] : memref<9x1x64xf32, #tpu.memory_space<vmem>>, vector<1x1x64xf32>
    %68 = vector.shape_cast %67 : vector<1x1x64xf32> to vector<1x64xf32>
    %cst_59 = arith.constant dense<0.000000e+00> : vector<1x1xf32>
    %69 = tpu.matmul %68, %66, %cst_59 {dimension_numbers = #tpu.dot_dimension_numbers<[1], [0], [0], [1], [0, 0, 1, 1], [], []>} : vector<1x64xf32>, vector<64x1xf32>, vector<1x1xf32> -> vector<1x1xf32>
    %70 = arith.addf %60, %69 : vector<1x1xf32>
    %c1_i32_60 = arith.constant 1 : i32
    %71 = arith.muli %arg1, %c1_i32_60 : i32
    %c2_i32_61 = arith.constant 2 : i32
    %72 = arith.addi %71, %c2_i32_61 : i32
    %c0_62 = arith.constant 0 : index
    %c0_63 = arith.constant 0 : index
    %c0_64 = arith.constant 0 : index
    %73 = arith.index_cast %72 : i32 to index
    %c1_65 = arith.constant 1 : index
    %74 = vector.load %arg2[%c0_62, %c0_63, %c0_64, %73, %c1_65] : memref<1x1x64x3x3xf32, #tpu.memory_space<vmem>>, vector<1x1x64x1x1xf32>
    %75 = vector.shape_cast %74 : vector<1x1x64x1x1xf32> to vector<64x1x1xf32>
    %76 = vector.shape_cast %75 : vector<64x1x1xf32> to vector<64x1xf32>
    %c7 = arith.constant 7 : index
    %c0_66 = arith.constant 0 : index
    %c0_67 = arith.constant 0 : index
    %77 = vector.load %arg3[%c7, %c0_66, %c0_67] : memref<9x1x64xf32, #tpu.memory_space<vmem>>, vector<1x1x64xf32>
    %78 = vector.shape_cast %77 : vector<1x1x64xf32> to vector<1x64xf32>
    %cst_68 = arith.constant dense<0.000000e+00> : vector<1x1xf32>
    %79 = tpu.matmul %78, %76, %cst_68 {dimension_numbers = #tpu.dot_dimension_numbers<[1], [0], [0], [1], [0, 0, 1, 1], [], []>} : vector<1x64xf32>, vector<64x1xf32>, vector<1x1xf32> -> vector<1x1xf32>
    %80 = arith.addf %70, %79 : vector<1x1xf32>
    %c1_i32_69 = arith.constant 1 : i32
    %81 = arith.muli %arg1, %c1_i32_69 : i32
    %c2_i32_70 = arith.constant 2 : i32
    %82 = arith.addi %81, %c2_i32_70 : i32
    %c0_71 = arith.constant 0 : index
    %c0_72 = arith.constant 0 : index
    %c0_73 = arith.constant 0 : index
    %83 = arith.index_cast %82 : i32 to index
    %c2_74 = arith.constant 2 : index
    %84 = vector.load %arg2[%c0_71, %c0_72, %c0_73, %83, %c2_74] : memref<1x1x64x3x3xf32, #tpu.memory_space<vmem>>, vector<1x1x64x1x1xf32>
    %85 = vector.shape_cast %84 : vector<1x1x64x1x1xf32> to vector<64x1x1xf32>
    %86 = vector.shape_cast %85 : vector<64x1x1xf32> to vector<64x1xf32>
    %c8 = arith.constant 8 : index
    %c0_75 = arith.constant 0 : index
    %c0_76 = arith.constant 0 : index
    %87 = vector.load %arg3[%c8, %c0_75, %c0_76] : memref<9x1x64xf32, #tpu.memory_space<vmem>>, vector<1x1x64xf32>
    %88 = vector.shape_cast %87 : vector<1x1x64xf32> to vector<1x64xf32>
    %cst_77 = arith.constant dense<0.000000e+00> : vector<1x1xf32>
    %89 = tpu.matmul %88, %86, %cst_77 {dimension_numbers = #tpu.dot_dimension_numbers<[1], [0], [0], [1], [0, 0, 1, 1], [], []>} : vector<1x64xf32>, vector<64x1xf32>, vector<1x1xf32> -> vector<1x1xf32>
    %90 = arith.addf %80, %89 : vector<1x1xf32>
    %c0_78 = arith.constant 0 : index
    %c0_79 = arith.constant 0 : index
    %91 = vector.load %arg4[%c0_78, %c0_79] : memref<1x1xf32, #tpu.memory_space<vmem>>, vector<1x1xf32>
    %92 = arith.addf %90, %91 : vector<1x1xf32>
    %c0_80 = arith.constant 0 : index
    %c0_81 = arith.constant 0 : index
    %c0_82 = arith.constant 0 : index
    %93 = vector.load %arg5[%c0_80, %c0_81, %c0_82] : memref<1x1x1xf32, #tpu.memory_space<vmem>>, vector<1x1x1xf32>
    %94 = vector.shape_cast %93 : vector<1x1x1xf32> to vector<1x1xf32>
    %95 = vector.shape_cast %92 : vector<1x1xf32> to vector<1x1x1xf32>
    tpu.vector_store %arg5[%c0_80, %c0_81, %c0_82], %95 {strides = array<i32>} : memref<1x1x1xf32, #tpu.memory_space<vmem>>, vector<1x1x1xf32>,
    return
  }
  func.func @transform_0(%arg0: i32, %arg1: i32) -> (i32, i32, i32, i32, i32) {
    %c0_i32 = arith.constant 0 : i32
    %c0_i32_0 = arith.constant 0 : i32
    %c0_i32_1 = arith.constant 0 : i32
    %c0_i32_2 = arith.constant 0 : i32
    %c0_i32_3 = arith.constant 0 : i32
    return %arg0, %c0_i32, %c0_i32_0, %c0_i32_1, %c0_i32_2 : i32, i32, i32, i32, i32
  }
  func.func @transform_1(%arg0: i32, %arg1: i32) -> (i32, i32, i32) {
    %c0_i32 = arith.constant 0 : i32
    %c0_i32_0 = arith.constant 0 : i32
    %c0_i32_1 = arith.constant 0 : i32
    %c0_i32_2 = arith.constant 0 : i32
    return %c0_i32, %c0_i32_0, %c0_i32_1 : i32, i32, i32
  }
  func.func @transform_2(%arg0: i32, %arg1: i32) -> (i32, i32) {
    %c0_i32 = arith.constant 0 : i32
    %c0_i32_0 = arith.constant 0 : i32
    %c0_i32_1 = arith.constant 0 : i32
    return %c0_i32, %c0_i32_0 : i32, i32
  }
  func.func @transform_3(%arg0: i32, %arg1: i32) -> (i32, i32, i32) {
    %c0_i32 = arith.constant 0 : i32
    %c0_i32_0 = arith.constant 0 : i32
    return %arg0, %c0_i32, %arg1 : i32, i32, i32
  }
}

</mosaic_0001>

<llo_original>
// kernel: fwd.6
$region0: #{fwd.6}
  #allocation0 [shape = 'u32[]', space=smem, size = 0x4, offset = 0x4, fixed_abs, tag = 'smem constant byte address 0x4 - core index']
  #allocation1 [shape = 'u32[144,128]{1,0:T(1,128)}', space=vmem, size = 0x12000, scoped, tag = 'internal scratch']
  %s0 = inlined_call_operand.vmem [shape: f32[2,4,8,5,5], index: 0, kind: input, shape index: {}]
  %s1 = inlined_call_operand.vmem [shape: f32[9,16,8], index: 1, kind: input, shape index: {}]
  %s2 = inlined_call_operand.vmem [shape: f32[16,1], index: 2, kind: input, shape index: {}]
  %s3 = inlined_call_operand.vmem [shape: f32[2,16,16], index: 3, kind: output, shape index: {}]
  %s4 = sld [smem:[#allocation0]]
  $region45: #{fwd.6} parent=0
    _
  %s6 = ssub.s32 1, %s4
  %s7 = scalar_select 0, %s6, %s4
  loop: start=0, step=1, limit=4
  $region2: #{fwd.6} parent=0 // loop_pre_header
    _
  $region3: #{fwd.6} parent=0 // loop_header
    %s9 = sphi 0, %s13
    %p10 = scmp.ge.s32.totalorder %s9, 4
    %s16 = sphi 0, %s28
    %s17 = sphi 0, %s24
    %s18 = sphi 0, %s16
    %s19 = sphi 0, %s17
    %s20 = sphi 0, %s18
    %s21 = sphi 0, %s19
    %s31 = sphi 0, %s33
    %s34 = sphi 0, %s31
    %s35 = sphi 0, %s34
    %s51 = sphi 0, %s35
    %s55 = sphi 0, %s55
    %s57 = sphi 0, %s55
    %s58 = sphi 0, %s57
    %s72 = sphi 0, %s58
    %s76 = sphi 0, %s76
    %s78 = sphi 0, %s76
    %s79 = sphi 0, %s78
    %s93 = sphi 0, %s79
    %s101 = sphi 0, %s103
    %s104 = sphi 0, %s101
    %s105 = sphi 0, %s104
    %s121 = sphi 0, %s105
  $region4: #{fwd.6} parent=0 // loop_header_branch
    %12 = sbr.rel (%p10) target = $region8
  $region5: #{fwd.6} parent=0 // loop_body
    %s14 = ssub.s32 %s9, 1
    %s15 = ssub.s32 %s9, 2
    %s22 = sadd.s32 1, %s17
    %p23 = scmp.ge.s32.totalorder %s22, 1
    %s24 = scalar_select %p23, 0, %s22
    %s25 = sadd.s32 1, %s16
    %s26 = scalar_select %p23, %s25, %s16
    %p27 = scmp.ge.s32.totalorder %s26, 2
    %s28 = scalar_select %p27, 0, %s26
    %s29 = ssub.s32 %s16, %s28
    %p30 = scmp.eq.s32.totalorder %s29, 0
    %s32 = sadd.s32 %s31, 1
    %s33 = scalar_select %p30, %s31, %s32
    %p36 = pneg %p30
    %p37 = scmp.eq.s32.totalorder %s9, 1
    %p38 = por %p36, %p37
    %p39 = scmp.ne.s32.totalorder %s31, %s34
    %p40 = scmp.eq.s32.totalorder %s9, 0
    %p41 = por %p39, %p40
    %p42 = scmp.ne.s32.totalorder %s31, %s34
    %p43 = scmp.eq.s32.totalorder %s14, 1
    %p44 = por %p42, %p43
    %p45 = scmp.ne.s32.totalorder %s34, %s35
    %p46 = scmp.eq.s32.totalorder %s14, 0
    %p47 = por %p45, %p46
    %p48 = scmp.ne.s32.totalorder %s34, %s35
    %p49 = scmp.eq.s32.totalorder %s15, 1
    %p50 = por %p48, %p49
    %p52 = scmp.ne.s32.totalorder %s35, %s51
    %p53 = scmp.eq.s32.totalorder %s15, 0
    %p54 = por %p52, %p53
    %s56 = sadd.s32 %s55, 1
    %p59 = scmp.eq.s32.totalorder %s9, 1
    %p60 = scmp.ne.s32.totalorder %s55, %s57
    %p61 = scmp.eq.s32.totalorder %s9, 0
    %p62 = por %p60, %p61
    %p63 = scmp.ne.s32.totalorder %s55, %s57
    %p64 = scmp.eq.s32.totalorder %s14, 1
    %p65 = por %p63, %p64
    %p66 = scmp.ne.s32.totalorder %s57, %s58
    %p67 = scmp.eq.s32.totalorder %s14, 0
    %p68 = por %p66, %p67
    %p69 = scmp.ne.s32.totalorder %s57, %s58
    %p70 = scmp.eq.s32.totalorder %s15, 1
    %p71 = por %p69, %p70
    %p73 = scmp.ne.s32.totalorder %s58, %s72
    %p74 = scmp.eq.s32.totalorder %s15, 0
    %p75 = por %p73, %p74
    %s77 = sadd.s32 %s76, 1
    %p80 = scmp.eq.s32.totalorder %s9, 1
    %p81 = scmp.ne.s32.totalorder %s76, %s78
    %p82 = scmp.eq.s32.totalorder %s9, 0
    %p83 = por %p81, %p82
    %p84 = scmp.ne.s32.totalorder %s76, %s78
    %p85 = scmp.eq.s32.totalorder %s14, 1
    %p86 = por %p84, %p85
    %p87 = scmp.ne.s32.totalorder %s78, %s79
    %p88 = scmp.eq.s32.totalorder %s14, 0
    %p89 = por %p87, %p88
    %p90 = scmp.ne.s32.totalorder %s78, %s79
    %p91 = scmp.eq.s32.totalorder %s15, 1
    %p92 = por %p90, %p91
    %p94 = scmp.ne.s32.totalorder %s79, %s93
    %p95 = scmp.eq.s32.totalorder %s15, 0
    %p96 = por %p94, %p95
    %s97 = ssub.s32 %s16, %s28
    %s98 = ssub.s32 %s17, %s24
    %s99 = sor.u32 %s97, %s98
    %p100 = scmp.eq.s32.totalorder %s99, 0
    %s102 = sadd.s32 %s101, 1
    %s103 = scalar_select %p100, %s101, %s102
    %p106 = pneg %p100
    %p107 = scmp.eq.s32.totalorder %s9, 1
    %p108 = por %p106, %p107
    %p109 = scmp.ne.s32.totalorder %s101, %s104
    %p110 = scmp.eq.s32.totalorder %s9, 0
    %p111 = por %p109, %p110
    %p112 = scmp.ne.s32.totalorder %s101, %s104
    %p113 = scmp.eq.s32.totalorder %s14, 1
    %p114 = por %p112, %p113
    %p115 = scmp.ne.s32.totalorder %s104, %s105
    %p116 = scmp.eq.s32.totalorder %s14, 0
    %p117 = por %p115, %p116
    %p118 = scmp.ne.s32.totalorder %s104, %s105
    %p119 = scmp.eq.s32.totalorder %s15, 1
    %p120 = por %p118, %p119
    %p122 = scmp.ne.s32.totalorder %s105, %s121
    %p123 = scmp.eq.s32.totalorder %s15, 0
    %p124 = por %p122, %p123
    %p125 = scmp.le.s32.totalorder 1, %s9
    %p126 = scmp.lt.s32.totalorder %s9, 3
    %p127 = pnand %p125, %p126
    %p128 = pneg %p127
    // Predicated region
    $region9: #{fwd.6} parent=5 // pred_check
      _
    $region10: #{fwd.6} parent=5 // pred_check_branch
      %130 = sbr.rel (%p127) target = $region12
    $region11: #{fwd.6} parent=5 // pred_region
      %s131 = ssub.s32 %s9, 1
      // Predicated region
      $region13: #{fwd.6} parent=11 // pred_check
        %p132 = pneg %p68
      $region14: #{fwd.6} parent=11 // pred_check_branch
        %134 = sbr.rel (%p132) target = $region16
      $region15: #{fwd.6} parent=11 // pred_region
        _
      $region16: #{fwd.6} parent=11 // pred_fallthru
        _
      // Predicated region
      $region17: #{fwd.6} parent=11 // pred_check
        %p135 = pneg %p89
      $region18: #{fwd.6} parent=11 // pred_check_branch
        %137 = sbr.rel (%p135) target = $region20
      $region19: #{fwd.6} parent=11 // pred_region
        _
      $region20: #{fwd.6} parent=11 // pred_fallthru
        _
    $region12: #{fwd.6} parent=5 // pred_fallthru
      _
    %p138 = scmp.lt.s32.totalorder %s9, 2
    // Predicated region
    $region21: #{fwd.6} parent=5 // pred_check
      %p139 = pneg %p138
    $region22: #{fwd.6} parent=5 // pred_check_branch
      %141 = sbr.rel (%p139) target = $region24
    $region23: #{fwd.6} parent=5 // pred_region
      // Predicated region
      $region25: #{fwd.6} parent=23 // pred_check
        %p142 = pneg %p41
      $region26: #{fwd.6} parent=23 // pred_check_branch
        %144 = sbr.rel (%p142) target = $region28
      $region27: #{fwd.6} parent=23 // pred_region
        %p145 = scmp.lt.s32.totalorder %s16, 1
        %s146 = scalar_select %p145, %s16, 1
        %s147 = smul.addr %s146, 32
        %s148 = smul.addr %s147, 8
        %s149 = scalar_lea.vmem %s0, %s148
      $region28: #{fwd.6} parent=23 // pred_fallthru
        _
    $region24: #{fwd.6} parent=5 // pred_fallthru
      _
    %p150 = scmp.le.s32.totalorder 1, %s9
    %p151 = scmp.lt.s32.totalorder %s9, 3
    %p152 = pnand %p150, %p151
    %p153 = pneg %p152
    // Predicated region
    $region29: #{fwd.6} parent=5 // pred_check
      _
    $region30: #{fwd.6} parent=5 // pred_check_branch
      %155 = sbr.rel (%p152) target = $region32
    $region31: #{fwd.6} parent=5 // pred_region
      %s156 = ssub.s32 %s9, 1
      %p157 = scmp.lt.s32.totalorder %s18, 1
      %s158 = scalar_select %p157, %s18, 1
      %s159 = smul.addr %s158, 32
      %s160 = smul.addr %s159, 8
      %s161 = scalar_lea.vmem %s0, %s160
      %p162 = pneg %p47
      %p163 = pneg %p44
      %p164 = pneg %p68
      %p165 = pneg %p65
      %p166 = pneg %p89
      %p167 = pneg %p86
      %p168 = pneg %p117
      %p169 = pneg %p114
      %p170 = scmp.lt.s32.totalorder %s18, 1
      %s171 = scalar_select %p170, %s18, 1
      %p172 = scmp.lt.s32.totalorder %s19, 0
      %s173 = scalar_select %p172, %s19, 0
      %s174 = smul.addr %s171, 2
      %s175 = sadd.s32 %s173, %s174
      %s176 = smul.addr %s175, 8
      %s177 = scalar_lea.vmem %s3, %s176
      %p178 = scmp.lt.s32.totalorder %s18, 1
      %s179 = scalar_select %p178, %s18, 1
      %s180 = smul.addr %s179, 32
      %s181 = smul.addr %s180, 8
      %s182 = scalar_lea.vmem %s0, %s181
      %p183 = scmp.lt.s32.totalorder %s18, 1
      %s184 = scalar_select %p183, %s18, 1
      %p185 = scmp.lt.s32.totalorder %s19, 0
      %s186 = scalar_select %p185, %s19, 0
      %s187 = smul.addr %s184, 2
      %s188 = sadd.s32 %s186, %s187
      %s189 = smul.addr %s188, 8
      %s190 = scalar_lea.vmem %s3, %s189
      %s191 = smul.u32 %s19, 4
      %s192 = scalar_lea.vmem %s182, %s191
      %v193 = vld [vmem:[%s192] sm:$0xf]
      %v194 = vld [vmem:[%s192 + $0x8] sm:$0xf]
      %v195 = vld [vmem:[%s192 + $0x10] sm:$0xf]
      %v196 = vld [vmem:[%s192 + $0x18] sm:$0xf]
      %v197 = vld [vmem:[%s192 + $0x20] sm:$0xf]
      %v198 = vld [vmem:[%s192 + $0x28] sm:$0xf]
      %v199 = vld [vmem:[%s192 + $0x30] sm:$0xf]
      %v200 = vld [vmem:[%s192 + $0x38] sm:$0xf]
      %v201 = vcombine.low %v193, %v195
      %v203 = vunpack.c.l.s4 1983009808
      %v204 = vunpack.c.0.s8 %v203
      %v205 = vlaneseq
      %v206 = vshrl.u32 %v205, 7
      %v207 = vsub.s32 %v204, %v206
      %v208 = vrot.slane %v201, %v207
      %v209 = vcombine.low %v194, %v196
      %v211 = vunpack.c.l.s4 1983009808
      %v212 = vunpack.c.0.s8 %v211
      %v213 = vlaneseq
      %v214 = vshrl.u32 %v213, 7
      %v215 = vsub.s32 %v212, %v214
      %v216 = vrot.slane %v209, %v215
      %v217 = vcombine.low %v197, %v199
      %v219 = vunpack.c.l.s4 1983009808
      %v220 = vunpack.c.0.s8 %v219
      %v221 = vlaneseq
      %v222 = vshrl.u32 %v221, 7
      %v223 = vsub.s32 %v220, %v222
      %v224 = vrot.slane %v217, %v223
      %v225 = vcombine.low %v198, %v200
      %v227 = vunpack.c.l.s4 1983009808
      %v228 = vunpack.c.0.s8 %v227
      %v229 = vlaneseq
      %v230 = vshrl.u32 %v229, 7
      %v231 = vsub.s32 %v228, %v230
      %v232 = vrot.slane %v225, %v231
      %v233 = vcombine.low %v208, %v216
      %v234 = vcombine.high %v208, %v216
      %v236 = vunpack.c.l.s4 1934713408
      %v237 = vunpack.c.0.s8 %v236
      %v238 = vlaneseq
      %v239 = vshrl.u32 %v238, 7
      %v240 = vsub.s32 %v237, %v239
      %v241 = vrot.slane %v233, %v240
      %v243 = vunpack.c.l.s4 1934713408
      %v244 = vunpack.c.0.s8 %v243
      %v245 = vlaneseq
      %v246 = vshrl.u32 %v245, 7
      %v247 = vsub.s32 %v244, %v246
      %v248 = vrot.slane %v234, %v247
      %v249 = vcombine.low %v224, %v232
      %v250 = vcombine.high %v224, %v232
      %v252 = vunpack.c.l.s4 1934713408
      %v253 = vunpack.c.0.s8 %v252
      %v254 = vlaneseq
      %v255 = vshrl.u32 %v254, 7
      %v256 = vsub.s32 %v253, %v255
      %v257 = vrot.slane %v249, %v256
      %v259 = vunpack.c.l.s4 1934713408
      %v260 = vunpack.c.0.s8 %v259
      %v261 = vlaneseq
      %v262 = vshrl.u32 %v261, 7
      %v263 = vsub.s32 %v260, %v262
      %v264 = vrot.slane %v250, %v263
      %v265 = vcombine.low %v241, %v257
      %v266 = vcombine.high %v241, %v257
      %v267 = vcombine.low %v248, %v264
      %v268 = vcombine.high %v248, %v264
      %270 = vrot.lane.b32.xlu0 %v266, 4
      %v271 = vpop.permute.xlu0 %270
      %274 = vrot.lane.b32.xlu0 %v267, 8
      %v275 = vpop.permute.xlu0 %274
      %278 = vrot.lane.b32.xlu0 %v268, 12
      %v279 = vpop.permute.xlu0 %278
      %vm281 = vcmask 31744
      %v282 = vsel %vm281, %v265, %v271
      %vm283 = vcmask 64512
      %v284 = vsel %vm283, %v282, %v275
      %vm285 = vcmask 97280
      %v286 = vsel %vm285, %v284, %v279
      %v287 = vld [vmem:[%s1] sm:$0xff]
      %v288 = vld [vmem:[%s1 + $0x8] sm:$0xff]
      %s289 = sadd.s32 %s191, 64
      %s290 = scalar_lea.vmem %s182, %s289
      %v291 = vld [vmem:[%s290] sm:$0xf]
      %v292 = vld [vmem:[%s290 + $0x8] sm:$0xf]
      %v293 = vld [vmem:[%s290 + $0x10] sm:$0xf]
      %v294 = vld [vmem:[%s290 + $0x18] sm:$0xf]
      %v295 = vld [vmem:[%s290 + $0x20] sm:$0xf]
      %v296 = vld [vmem:[%s290 + $0x28] sm:$0xf]
      %v297 = vld [vmem:[%s290 + $0x30] sm:$0xf]
      %v298 = vld [vmem:[%s290 + $0x38] sm:$0xf]
      %v299 = vcombine.low %v291, %v293
      %v301 = vunpack.c.l.s4 1983009808
      %v302 = vunpack.c.0.s8 %v301
      %v303 = vlaneseq
      %v304 = vshrl.u32 %v303, 7
      %v305 = vsub.s32 %v302, %v304
      %v306 = vrot.slane %v299, %v305
      %v307 = vcombine.low %v292, %v294
      %v309 = vunpack.c.l.s4 1983009808
      %v310 = vunpack.c.0.s8 %v309
      %v311 = vlaneseq
      %v312 = vshrl.u32 %v311, 7
      %v313 = vsub.s32 %v310, %v312
      %v314 = vrot.slane %v307, %v313
      %v315 = vcombine.low %v295, %v297
      %v317 = vunpack.c.l.s4 1983009808
      %v318 = vunpack.c.0.s8 %v317
      %v319 = vlaneseq
      %v320 = vshrl.u32 %v319, 7
      %v321 = vsub.s32 %v318, %v320
      %v322 = vrot.slane %v315, %v321
      %v323 = vcombine.low %v296, %v298
      %v325 = vunpack.c.l.s4 1983009808
      %v326 = vunpack.c.0.s8 %v325
      %v327 = vlaneseq
      %v328 = vshrl.u32 %v327, 7
      %v329 = vsub.s32 %v326, %v328
      %v330 = vrot.slane %v323, %v329
      %v331 = vcombine.low %v306, %v314
      %v332 = vcombine.high %v306, %v314
      %v334 = vunpack.c.l.s4 1934713408
      %v335 = vunpack.c.0.s8 %v334
      %v336 = vlaneseq
      %v337 = vshrl.u32 %v336, 7
      %v338 = vsub.s32 %v335, %v337
      %v339 = vrot.slane %v331, %v338
      %v341 = vunpack.c.l.s4 1934713408
      %v342 = vunpack.c.0.s8 %v341
      %v343 = vlaneseq
      %v344 = vshrl.u32 %v343, 7
      %v345 = vsub.s32 %v342, %v344
      %v346 = vrot.slane %v332, %v345
      %v347 = vcombine.low %v322, %v330
      %v348 = vcombine.high %v322, %v330
      %v350 = vunpack.c.l.s4 1934713408
      %v351 = vunpack.c.0.s8 %v350
      %v352 = vlaneseq
      %v353 = vshrl.u32 %v352, 7
      %v354 = vsub.s32 %v351, %v353
      %v355 = vrot.slane %v347, %v354
      %v357 = vunpack.c.l.s4 1934713408
      %v358 = vunpack.c.0.s8 %v357
      %v359 = vlaneseq
      %v360 = vshrl.u32 %v359, 7
      %v361 = vsub.s32 %v358, %v360
      %v362 = vrot.slane %v348, %v361
      %v363 = vcombine.low %v339, %v355
      %v364 = vcombine.high %v339, %v355
      %v365 = vcombine.low %v346, %v362
      %v366 = vcombine.high %v346, %v362
      %368 = vrot.lane.b32.xlu0 %v364, 4
      %v369 = vpop.permute.xlu0 %368
      %372 = vrot.lane.b32.xlu0 %v365, 8
      %v373 = vpop.permute.xlu0 %372
      %376 = vrot.lane.b32.xlu0 %v366, 12
      %v377 = vpop.permute.xlu0 %376
      %v379 = vsel %vm281, %v363, %v369
      %v380 = vsel %vm283, %v379, %v373
      %v381 = vsel %vm285, %v380, %v377
      %s382 = scalar_lea.vmem %s1, 16
      %v383 = vld [vmem:[%s382] sm:$0xff]
      %v384 = vld [vmem:[%s382 + $0x8] sm:$0xff]
      %v386 = vsel %vm283, %v383, 0
      %v389 = vsel %vm283, %v384, 0
      %391 = vmatprep.subr.mxu0 0.0
      %392 = vmatpush1.msra.mxu0 0.0
      %393 = vmatprep.subr.mxu0 0.0
      %394 = vmatpush1.msra.mxu0 0.0
      %395 = vmatprep.subr.mxu0 0.0
      %396 = vmatpush1.msra.mxu0 0.0
      %397 = vmatprep.subr.mxu0 0.0
      %398 = vmatpush1.msra.mxu0 0.0
      %399 = vmatprep.subr.mxu0 0.0
      %400 = vmatpush1.msra.mxu0 0.0
      %401 = vmatprep.subr.mxu0 0.0
      %402 = vmatpush1.msra.mxu0 0.0
      %403 = vmatprep.subr.mxu0 0.0
      %404 = vmatpush1.msra.mxu0 0.0
      %405 = vmatprep.subr.mxu0 0.0
      %406 = vmatpush1.msra.mxu0 0.0
      %407 = vmatprep.subr.mxu0 0.0
      %408 = vmatpush1.msra.mxu0 0.0
      %409 = vmatprep.subr.mxu0 0.0
      %410 = vmatpush1.msra.mxu0 0.0
      %411 = vmatprep.subr.mxu0 0.0
      %412 = vmatpush1.msra.mxu0 0.0
      %413 = vmatprep.subr.mxu0 0.0
      %414 = vmatpush1.msra.mxu0 0.0
      %415 = vmatprep.subr.mxu0 0.0
      %416 = vmatpush1.msra.mxu0 0.0
      %417 = vmatprep.subr.mxu0 0.0
      %418 = vmatpush1.msra.mxu0 0.0
      %419 = vmatprep.subr.mxu0 0.0
      %420 = vmatpush1.msra.mxu0 0.0
      %421 = vmatprep.subr.mxu0 0.0
      %422 = vmatpush1.msra.mxu0 %v381
      %423 = vmatprep.subr.mxu0 0.0
      %424 = vmatpush2.msra.mxu0 0.0
      %425 = vmatprep.subr.mxu0 0.0
      %426 = vmatpush2.msra.mxu0 0.0
      %427 = vmatprep.subr.mxu0 0.0
      %428 = vmatpush2.msra.mxu0 0.0
      %429 = vmatprep.subr.mxu0 0.0
      %430 = vmatpush2.msra.mxu0 0.0
      %431 = vmatprep.subr.mxu0 0.0
      %432 = vmatpush2.msra.mxu0 0.0
      %433 = vmatprep.subr.mxu0 0.0
      %434 = vmatpush2.msra.mxu0 0.0
      %435 = vmatprep.subr.mxu0 0.0
      %436 = vmatpush2.msra.mxu0 0.0
      %437 = vmatprep.subr.mxu0 0.0
      %438 = vmatpush2.msra.mxu0 0.0
      %439 = vmatprep.subr.mxu0 0.0
      %440 = vmatpush2.msra.mxu0 0.0
      %441 = vmatprep.subr.mxu0 0.0
      %442 = vmatpush2.msra.mxu0 0.0
      %443 = vmatprep.subr.mxu0 0.0
      %444 = vmatpush2.msra.mxu0 0.0
      %445 = vmatprep.subr.mxu0 0.0
      %446 = vmatpush2.msra.mxu0 0.0
      %447 = vmatprep.subr.mxu0 0.0
      %448 = vmatpush2.msra.mxu0 0.0
      %449 = vmatprep.subr.mxu0 0.0
      %450 = vmatpush2.msra.mxu0 0.0
      %451 = vmatprep.subr.mxu0 0.0
      %452 = vmatpush2.msra.mxu0 0.0
      %453 = vmatprep.subr.mxu0 0.0
      %454 = vmatpush2.msra.mxu0 0.0
      %455 = vmatprep.mubr.f32.mxu0 0.0
      %456 = vmatmul.mubr.f32.gmra.mxu0 %v386
      %v457 = vpop.f32.mrf.mxu0
      %v458 = vadd.f32 0.0, %v457
      %v459 = vpop.f32.mrf.mxu0
      %460 = vmatprep.mubr.f32.mxu0 0.0
      %461 = vmatmul.mubr.f32.gmra.mxu0 %v389
      %v462 = vpop.f32.mrf.mxu0
      %v463 = vadd.f32 0.0, %v462
      %v464 = vpop.f32.mrf.mxu0
      %465 = vdwg.mxu0
      %v467 = vsel %vm283, %v287, 0
      %v470 = vsel %vm283, %v288, 0
      %472 = vmatprep.subr.mxu0 0.0
      %473 = vmatpush1.msra.mxu0 0.0
      %474 = vmatprep.subr.mxu0 0.0
      %475 = vmatpush1.msra.mxu0 0.0
      %476 = vmatprep.subr.mxu0 0.0
      %477 = vmatpush1.msra.mxu0 0.0
      %478 = vmatprep.subr.mxu0 0.0
      %479 = vmatpush1.msra.mxu0 0.0
      %480 = vmatprep.subr.mxu0 0.0
      %481 = vmatpush1.msra.mxu0 0.0
      %482 = vmatprep.subr.mxu0 0.0
      %483 = vmatpush1.msra.mxu0 0.0
      %484 = vmatprep.subr.mxu0 0.0
      %485 = vmatpush1.msra.mxu0 0.0
      %486 = vmatprep.subr.mxu0 0.0
      %487 = vmatpush1.msra.mxu0 0.0
      %488 = vmatprep.subr.mxu0 0.0
      %489 = vmatpush1.msra.mxu0 0.0
      %490 = vmatprep.subr.mxu0 0.0
      %491 = vmatpush1.msra.mxu0 0.0
      %492 = vmatprep.subr.mxu0 0.0
      %493 = vmatpush1.msra.mxu0 0.0
      %494 = vmatprep.subr.mxu0 0.0
      %495 = vmatpush1.msra.mxu0 0.0
      %496 = vmatprep.subr.mxu0 0.0
      %497 = vmatpush1.msra.mxu0 0.0
      %498 = vmatprep.subr.mxu0 0.0
      %499 = vmatpush1.msra.mxu0 0.0
      %500 = vmatprep.subr.mxu0 0.0
      %501 = vmatpush1.msra.mxu0 0.0
      %502 = vmatprep.subr.mxu0 0.0
      %503 = vmatpush1.msra.mxu0 %v286
      %504 = vmatprep.subr.mxu0 0.0
      %505 = vmatpush2.msra.mxu0 0.0
      %506 = vmatprep.subr.mxu0 0.0
      %507 = vmatpush2.msra.mxu0 0.0
      %508 = vmatprep.subr.mxu0 0.0
      %509 = vmatpush2.msra.mxu0 0.0
      %510 = vmatprep.subr.mxu0 0.0
      %511 = vmatpush2.msra.mxu0 0.0
      %512 = vmatprep.subr.mxu0 0.0
      %513 = vmatpush2.msra.mxu0 0.0
      %514 = vmatprep.subr.mxu0 0.0
      %515 = vmatpush2.msra.mxu0 0.0
      %516 = vmatprep.subr.mxu0 0.0
      %517 = vmatpush2.msra.mxu0 0.0
      %518 = vmatprep.subr.mxu0 0.0
      %519 = vmatpush2.msra.mxu0 0.0
      %520 = vmatprep.subr.mxu0 0.0
      %521 = vmatpush2.msra.mxu0 0.0
      %522 = vmatprep.subr.mxu0 0.0
      %523 = vmatpush2.msra.mxu0 0.0
      %524 = vmatprep.subr.mxu0 0.0
      %525 = vmatpush2.msra.mxu0 0.0
      %526 = vmatprep.subr.mxu0 0.0
      %527 = vmatpush2.msra.mxu0 0.0
      %528 = vmatprep.subr.mxu0 0.0
      %529 = vmatpush2.msra.mxu0 0.0
      %530 = vmatprep.subr.mxu0 0.0
      %531 = vmatpush2.msra.mxu0 0.0
      %532 = vmatprep.subr.mxu0 0.0
      %533 = vmatpush2.msra.mxu0 0.0
      %534 = vmatprep.subr.mxu0 0.0
      %535 = vmatpush2.msra.mxu0 0.0
      %536 = vmatprep.mubr.f32.mxu0 0.0
      %537 = vmatmul.mubr.f32.gmra.mxu0 %v467
      %v538 = vpop.f32.mrf.mxu0
      %v539 = vadd.f32 %v458, %v538
      %v540 = vpop.f32.mrf.mxu0
      %541 = vmatprep.mubr.f32.mxu0 0.0
      %542 = vmatmul.mubr.f32.gmra.mxu0 %v470
      %v543 = vpop.f32.mrf.mxu0
      %v544 = vadd.f32 %v463, %v543
      %v545 = vpop.f32.mrf.mxu0
      %546 = vdwg.mxu0
      %v547 = vld [vmem:[%s192] sm:$0xf]
      %v548 = vld [vmem:[%s192 + $0x8] sm:$0xf]
      %v549 = vld [vmem:[%s192 + $0x10] sm:$0xf]
      %v550 = vld [vmem:[%s192 + $0x18] sm:$0xf]
      %v551 = vld [vmem:[%s192 + $0x20] sm:$0xf]
      %v552 = vld [vmem:[%s192 + $0x28] sm:$0xf]
      %v553 = vld [vmem:[%s192 + $0x30] sm:$0xf]
      %v554 = vld [vmem:[%s192 + $0x38] sm:$0xf]
      %563 = vrot.lane.b32.xlu0 %v547, 127
      %v564 = vpop.permute.xlu0 %563
      %565 = vrot.lane.b32.xlu0 %v548, 127
      %v566 = vpop.permute.xlu0 %565
      %567 = vrot.lane.b32.xlu0 %v549, 127
      %v568 = vpop.permute.xlu0 %567
      %569 = vrot.lane.b32.xlu0 %v550, 127
      %v570 = vpop.permute.xlu0 %569
      %571 = vrot.lane.b32.xlu0 %v551, 127
      %v572 = vpop.permute.xlu0 %571
      %573 = vrot.lane.b32.xlu0 %v552, 127
      %v574 = vpop.permute.xlu0 %573
      %575 = vrot.lane.b32.xlu0 %v553, 127
      %v576 = vpop.permute.xlu0 %575
      %577 = vrot.lane.b32.xlu0 %v554, 127
      %v578 = vpop.permute.xlu0 %577
      %v587 = vcombine.low %v564, %v568
      %v589 = vunpack.c.l.s4 1983009808
      %v590 = vunpack.c.0.s8 %v589
      %v591 = vlaneseq
      %v592 = vshrl.u32 %v591, 7
      %v593 = vsub.s32 %v590, %v592
      %v594 = vrot.slane %v587, %v593
      %v595 = vcombine.low %v566, %v570
      %v597 = vunpack.c.l.s4 1983009808
      %v598 = vunpack.c.0.s8 %v597
      %v599 = vlaneseq
      %v600 = vshrl.u32 %v599, 7
      %v601 = vsub.s32 %v598, %v600
      %v602 = vrot.slane %v595, %v601
      %v603 = vcombine.low %v572, %v576
      %v605 = vunpack.c.l.s4 1983009808
      %v606 = vunpack.c.0.s8 %v605
      %v607 = vlaneseq
      %v608 = vshrl.u32 %v607, 7
      %v609 = vsub.s32 %v606, %v608
      %v610 = vrot.slane %v603, %v609
      %v611 = vcombine.low %v574, %v578
      %v613 = vunpack.c.l.s4 1983009808
      %v614 = vunpack.c.0.s8 %v613
      %v615 = vlaneseq
      %v616 = vshrl.u32 %v615, 7
      %v617 = vsub.s32 %v614, %v616
      %v618 = vrot.slane %v611, %v617
      %v619 = vcombine.low %v594, %v602
      %v620 = vcombine.high %v594, %v602
      %v622 = vunpack.c.l.s4 1934713408
      %v623 = vunpack.c.0.s8 %v622
      %v624 = vlaneseq
      %v625 = vshrl.u32 %v624, 7
      %v626 = vsub.s32 %v623, %v625
      %v627 = vrot.slane %v619, %v626
      %v629 = vunpack.c.l.s4 1934713408
      %v630 = vunpack.c.0.s8 %v629
      %v631 = vlaneseq
      %v632 = vshrl.u32 %v631, 7
      %v633 = vsub.s32 %v630, %v632
      %v634 = vrot.slane %v620, %v633
      %v635 = vcombine.low %v610, %v618
      %v636 = vcombine.high %v610, %v618
      %v638 = vunpack.c.l.s4 1934713408
      %v639 = vunpack.c.0.s8 %v638
      %v640 = vlaneseq
      %v641 = vshrl.u32 %v640, 7
      %v642 = vsub.s32 %v639, %v641
      %v643 = vrot.slane %v635, %v642
      %v645 = vunpack.c.l.s4 1934713408
      %v646 = vunpack.c.0.s8 %v645
      %v647 = vlaneseq
      %v648 = vshrl.u32 %v647, 7
      %v649 = vsub.s32 %v646, %v648
      %v650 = vrot.slane %v636, %v649
      %v651 = vcombine.low %v627, %v643
      %v652 = vcombine.high %v627, %v643
      %v653 = vcombine.low %v634, %v650
      %v654 = vcombine.high %v634, %v650
      %656 = vrot.lane.b32.xlu0 %v652, 4
      %v657 = vpop.permute.xlu0 %656
      %660 = vrot.lane.b32.xlu0 %v653, 8
      %v661 = vpop.permute.xlu0 %660
      %664 = vrot.lane.b32.xlu0 %v654, 12
      %v665 = vpop.permute.xlu0 %664
      %v667 = vsel %vm281, %v651, %v657
      %v668 = vsel %vm283, %v667, %v661
      %v669 = vsel %vm285, %v668, %v665
      %s670 = scalar_lea.vmem %s1, 32
      %v671 = vld [vmem:[%s670] sm:$0xff]
      %v672 = vld [vmem:[%s670 + $0x8] sm:$0xff]
      %v674 = vsel %vm283, %v671, 0
      %v677 = vsel %vm283, %v672, 0
      %679 = vmatprep.subr.mxu0 0.0
      %680 = vmatpush1.msra.mxu0 0.0
      %681 = vmatprep.subr.mxu0 0.0
      %682 = vmatpush1.msra.mxu0 0.0
      %683 = vmatprep.subr.mxu0 0.0
      %684 = vmatpush1.msra.mxu0 0.0
      %685 = vmatprep.subr.mxu0 0.0
      %686 = vmatpush1.msra.mxu0 0.0
      %687 = vmatprep.subr.mxu0 0.0
      %688 = vmatpush1.msra.mxu0 0.0
      %689 = vmatprep.subr.mxu0 0.0
      %690 = vmatpush1.msra.mxu0 0.0
      %691 = vmatprep.subr.mxu0 0.0
      %692 = vmatpush1.msra.mxu0 0.0
      %693 = vmatprep.subr.mxu0 0.0
      %694 = vmatpush1.msra.mxu0 0.0
      %695 = vmatprep.subr.mxu0 0.0
      %696 = vmatpush1.msra.mxu0 0.0
      %697 = vmatprep.subr.mxu0 0.0
      %698 = vmatpush1.msra.mxu0 0.0
      %699 = vmatprep.subr.mxu0 0.0
      %700 = vmatpush1.msra.mxu0 0.0
      %701 = vmatprep.subr.mxu0 0.0
      %702 = vmatpush1.msra.mxu0 0.0
      %703 = vmatprep.subr.mxu0 0.0
      %704 = vmatpush1.msra.mxu0 0.0
      %705 = vmatprep.subr.mxu0 0.0
      %706 = vmatpush1.msra.mxu0 0.0
      %707 = vmatprep.subr.mxu0 0.0
      %708 = vmatpush1.msra.mxu0 0.0
      %709 = vmatprep.subr.mxu0 0.0
      %710 = vmatpush1.msra.mxu0 %v669
      %711 = vmatprep.subr.mxu0 0.0
      %712 = vmatpush2.msra.mxu0 0.0
      %713 = vmatprep.subr.mxu0 0.0
      %714 = vmatpush2.msra.mxu0 0.0
      %715 = vmatprep.subr.mxu0 0.0
      %716 = vmatpush2.msra.mxu0 0.0
      %717 = vmatprep.subr.mxu0 0.0
      %718 = vmatpush2.msra.mxu0 0.0
      %719 = vmatprep.subr.mxu0 0.0
      %720 = vmatpush2.msra.mxu0 0.0
      %721 = vmatprep.subr.mxu0 0.0
      %722 = vmatpush2.msra.mxu0 0.0
      %723 = vmatprep.subr.mxu0 0.0
      %724 = vmatpush2.msra.mxu0 0.0
      %725 = vmatprep.subr.mxu0 0.0
      %726 = vmatpush2.msra.mxu0 0.0
      %727 = vmatprep.subr.mxu0 0.0
      %728 = vmatpush2.msra.mxu0 0.0
      %729 = vmatprep.subr.mxu0 0.0
      %730 = vmatpush2.msra.mxu0 0.0
      %731 = vmatprep.subr.mxu0 0.0
      %732 = vmatpush2.msra.mxu0 0.0
      %733 = vmatprep.subr.mxu0 0.0
      %734 = vmatpush2.msra.mxu0 0.0
      %735 = vmatprep.subr.mxu0 0.0
      %736 = vmatpush2.msra.mxu0 0.0
      %737 = vmatprep.subr.mxu0 0.0
      %738 = vmatpush2.msra.mxu0 0.0
      %739 = vmatprep.subr.mxu0 0.0
      %740 = vmatpush2.msra.mxu0 0.0
      %741 = vmatprep.subr.mxu0 0.0
      %742 = vmatpush2.msra.mxu0 0.0
      %743 = vmatprep.mubr.f32.mxu0 0.0
      %744 = vmatmul.mubr.f32.gmra.mxu0 %v674
      %v745 = vpop.f32.mrf.mxu0
      %v746 = vadd.f32 0.0, %v745
      %v747 = vpop.f32.mrf.mxu0
      %748 = vmatprep.mubr.f32.mxu0 0.0
      %749 = vmatmul.mubr.f32.gmra.mxu0 %v677
      %v750 = vpop.f32.mrf.mxu0
      %v751 = vadd.f32 0.0, %v750
      %v752 = vpop.f32.mrf.mxu0
      %753 = vdwg.mxu0
      %v754 = vadd.f32 %v539, %v746
      %v755 = vadd.f32 %v544, %v751
      %s756 = sadd.s32 %s191, 128
      %s757 = scalar_lea.vmem %s182, %s756
      %v758 = vld [vmem:[%s757] sm:$0xf]
      %v759 = vld [vmem:[%s757 + $0x8] sm:$0xf]
      %v760 = vld [vmem:[%s757 + $0x10] sm:$0xf]
      %v761 = vld [vmem:[%s757 + $0x18] sm:$0xf]
      %v762 = vld [vmem:[%s757 + $0x20] sm:$0xf]
      %v763 = vld [vmem:[%s757 + $0x28] sm:$0xf]
      %v764 = vld [vmem:[%s757 + $0x30] sm:$0xf]
      %v765 = vld [vmem:[%s757 + $0x38] sm:$0xf]
      %v766 = vcombine.low %v758, %v760
      %v768 = vunpack.c.l.s4 1983009808
      %v769 = vunpack.c.0.s8 %v768
      %v770 = vlaneseq
      %v771 = vshrl.u32 %v770, 7
      %v772 = vsub.s32 %v769, %v771
      %v773 = vrot.slane %v766, %v772
      %v774 = vcombine.low %v759, %v761
      %v776 = vunpack.c.l.s4 1983009808
      %v777 = vunpack.c.0.s8 %v776
      %v778 = vlaneseq
      %v779 = vshrl.u32 %v778, 7
      %v780 = vsub.s32 %v777, %v779
      %v781 = vrot.slane %v774, %v780
      %v782 = vcombine.low %v762, %v764
      %v784 = vunpack.c.l.s4 1983009808
      %v785 = vunpack.c.0.s8 %v784
      %v786 = vlaneseq
      %v787 = vshrl.u32 %v786, 7
      %v788 = vsub.s32 %v785, %v787
      %v789 = vrot.slane %v782, %v788
      %v790 = vcombine.low %v763, %v765
      %v792 = vunpack.c.l.s4 1983009808
      %v793 = vunpack.c.0.s8 %v792
      %v794 = vlaneseq
      %v795 = vshrl.u32 %v794, 7
      %v796 = vsub.s32 %v793, %v795
      %v797 = vrot.slane %v790, %v796
      %v798 = vcombine.low %v773, %v781
      %v799 = vcombine.high %v773, %v781
      %v801 = vunpack.c.l.s4 1934713408
      %v802 = vunpack.c.0.s8 %v801
      %v803 = vlaneseq
      %v804 = vshrl.u32 %v803, 7
      %v805 = vsub.s32 %v802, %v804
      %v806 = vrot.slane %v798, %v805
      %v808 = vunpack.c.l.s4 1934713408
      %v809 = vunpack.c.0.s8 %v808
      %v810 = vlaneseq
      %v811 = vshrl.u32 %v810, 7
      %v812 = vsub.s32 %v809, %v811
      %v813 = vrot.slane %v799, %v812
      %v814 = vcombine.low %v789, %v797
      %v815 = vcombine.high %v789, %v797
      %v817 = vunpack.c.l.s4 1934713408
      %v818 = vunpack.c.0.s8 %v817
      %v819 = vlaneseq
      %v820 = vshrl.u32 %v819, 7
      %v821 = vsub.s32 %v818, %v820
      %v822 = vrot.slane %v814, %v821
      %v824 = vunpack.c.l.s4 1934713408
      %v825 = vunpack.c.0.s8 %v824
      %v826 = vlaneseq
      %v827 = vshrl.u32 %v826, 7
      %v828 = vsub.s32 %v825, %v827
      %v829 = vrot.slane %v815, %v828
      %v830 = vcombine.low %v806, %v822
      %v831 = vcombine.high %v806, %v822
      %v832 = vcombine.low %v813, %v829
      %v833 = vcombine.high %v813, %v829
      %835 = vrot.lane.b32.xlu0 %v831, 4
      %v836 = vpop.permute.xlu0 %835
      %839 = vrot.lane.b32.xlu0 %v832, 8
      %v840 = vpop.permute.xlu0 %839
      %843 = vrot.lane.b32.xlu0 %v833, 12
      %v844 = vpop.permute.xlu0 %843
      %v846 = vsel %vm281, %v830, %v836
      %v847 = vsel %vm283, %v846, %v840
      %v848 = vsel %vm285, %v847, %v844
      %s849 = scalar_lea.vmem %s1, 48
      %v850 = vld [vmem:[%s849] sm:$0xff]
      %v851 = vld [vmem:[%s849 + $0x8] sm:$0xff]
      %v853 = vsel %vm283, %v850, 0
      %v856 = vsel %vm283, %v851, 0
      %858 = vmatprep.subr.mxu0 0.0
      %859 = vmatpush1.msra.mxu0 0.0
      %860 = vmatprep.subr.mxu0 0.0
      %861 = vmatpush1.msra.mxu0 0.0
      %862 = vmatprep.subr.mxu0 0.0
      %863 = vmatpush1.msra.mxu0 0.0
      %864 = vmatprep.subr.mxu0 0.0
      %865 = vmatpush1.msra.mxu0 0.0
      %866 = vmatprep.subr.mxu0 0.0
      %867 = vmatpush1.msra.mxu0 0.0
      %868 = vmatprep.subr.mxu0 0.0
      %869 = vmatpush1.msra.mxu0 0.0
      %870 = vmatprep.subr.mxu0 0.0
      %871 = vmatpush1.msra.mxu0 0.0
      %872 = vmatprep.subr.mxu0 0.0
      %873 = vmatpush1.msra.mxu0 0.0
      %874 = vmatprep.subr.mxu0 0.0
      %875 = vmatpush1.msra.mxu0 0.0
      %876 = vmatprep.subr.mxu0 0.0
      %877 = vmatpush1.msra.mxu0 0.0
      %878 = vmatprep.subr.mxu0 0.0
      %879 = vmatpush1.msra.mxu0 0.0
      %880 = vmatprep.subr.mxu0 0.0
      %881 = vmatpush1.msra.mxu0 0.0
      %882 = vmatprep.subr.mxu0 0.0
      %883 = vmatpush1.msra.mxu0 0.0
      %884 = vmatprep.subr.mxu0 0.0
      %885 = vmatpush1.msra.mxu0 0.0
      %886 = vmatprep.subr.mxu0 0.0
      %887 = vmatpush1.msra.mxu0 0.0
      %888 = vmatprep.subr.mxu0 0.0
      %889 = vmatpush1.msra.mxu0 %v848
      %890 = vmatprep.subr.mxu0 0.0
      %891 = vmatpush2.msra.mxu0 0.0
      %892 = vmatprep.subr.mxu0 0.0
      %893 = vmatpush2.msra.mxu0 0.0
      %894 = vmatprep.subr.mxu0 0.0
      %895 = vmatpush2.msra.mxu0 0.0
      %896 = vmatprep.subr.mxu0 0.0
      %897 = vmatpush2.msra.mxu0 0.0
      %898 = vmatprep.subr.mxu0 0.0
      %899 = vmatpush2.msra.mxu0 0.0
      %900 = vmatprep.subr.mxu0 0.0
      %901 = vmatpush2.msra.mxu0 0.0
      %902 = vmatprep.subr.mxu0 0.0
      %903 = vmatpush2.msra.mxu0 0.0
      %904 = vmatprep.subr.mxu0 0.0
      %905 = vmatpush2.msra.mxu0 0.0
      %906 = vmatprep.subr.mxu0 0.0
      %907 = vmatpush2.msra.mxu0 0.0
      %908 = vmatprep.subr.mxu0 0.0
      %909 = vmatpush2.msra.mxu0 0.0
      %910 = vmatprep.subr.mxu0 0.0
      %911 = vmatpush2.msra.mxu0 0.0
      %912 = vmatprep.subr.mxu0 0.0
      %913 = vmatpush2.msra.mxu0 0.0
      %914 = vmatprep.subr.mxu0 0.0
      %915 = vmatpush2.msra.mxu0 0.0
      %916 = vmatprep.subr.mxu0 0.0
      %917 = vmatpush2.msra.mxu0 0.0
      %918 = vmatprep.subr.mxu0 0.0
      %919 = vmatpush2.msra.mxu0 0.0
      %920 = vmatprep.subr.mxu0 0.0
      %921 = vmatpush2.msra.mxu0 0.0
      %922 = vmatprep.mubr.f32.mxu0 0.0
      %923 = vmatmul.mubr.f32.gmra.mxu0 %v853
      %v924 = vpop.f32.mrf.mxu0
      %v925 = vadd.f32 0.0, %v924
      %v926 = vpop.f32.mrf.mxu0
      %927 = vmatprep.mubr.f32.mxu0 0.0
      %928 = vmatmul.mubr.f32.gmra.mxu0 %v856
      %v929 = vpop.f32.mrf.mxu0
      %v930 = vadd.f32 0.0, %v929
      %v931 = vpop.f32.mrf.mxu0
      %932 = vdwg.mxu0
      %v933 = vadd.f32 %v754, %v925
      %v934 = vadd.f32 %v755, %v930
      %s935 = sadd.s32 %s191, 192
      %s936 = scalar_lea.vmem %s182, %s935
      %v937 = vld [vmem:[%s936] sm:$0xf]
      %v938 = vld [vmem:[%s936 + $0x8] sm:$0xf]
      %v939 = vld [vmem:[%s936 + $0x10] sm:$0xf]
      %v940 = vld [vmem:[%s936 + $0x18] sm:$0xf]
      %v941 = vld [vmem:[%s936 + $0x20] sm:$0xf]
      %v942 = vld [vmem:[%s936 + $0x28] sm:$0xf]
      %v943 = vld [vmem:[%s936 + $0x30] sm:$0xf]
      %v944 = vld [vmem:[%s936 + $0x38] sm:$0xf]
      %v945 = vcombine.low %v937, %v939
      %v947 = vunpack.c.l.s4 1983009808
      %v948 = vunpack.c.0.s8 %v947
      %v949 = vlaneseq
      %v950 = vshrl.u32 %v949, 7
      %v951 = vsub.s32 %v948, %v950
      %v952 = vrot.slane %v945, %v951
      %v953 = vcombine.low %v938, %v940
      %v955 = vunpack.c.l.s4 1983009808
      %v956 = vunpack.c.0.s8 %v955
      %v957 = vlaneseq
      %v958 = vshrl.u32 %v957, 7
      %v959 = vsub.s32 %v956, %v958
      %v960 = vrot.slane %v953, %v959
      %v961 = vcombine.low %v941, %v943
      %v963 = vunpack.c.l.s4 1983009808
      %v964 = vunpack.c.0.s8 %v963
      %v965 = vlaneseq
      %v966 = vshrl.u32 %v965, 7
      %v967 = vsub.s32 %v964, %v966
      %v968 = vrot.slane %v961, %v967
      %v969 = vcombine.low %v942, %v944
      %v971 = vunpack.c.l.s4 1983009808
      %v972 = vunpack.c.0.s8 %v971
      %v973 = vlaneseq
      %v974 = vshrl.u32 %v973, 7
      %v975 = vsub.s32 %v972, %v974
      %v976 = vrot.slane %v969, %v975
      %v977 = vcombine.low %v952, %v960
      %v978 = vcombine.high %v952, %v960
      %v980 = vunpack.c.l.s4 1934713408
      %v981 = vunpack.c.0.s8 %v980
      %v982 = vlaneseq
      %v983 = vshrl.u32 %v982, 7
      %v984 = vsub.s32 %v981, %v983
      %v985 = vrot.slane %v977, %v984
      %v987 = vunpack.c.l.s4 1934713408
      %v988 = vunpack.c.0.s8 %v987
      %v989 = vlaneseq
      %v990 = vshrl.u32 %v989, 7
      %v991 = vsub.s32 %v988, %v990
      %v992 = vrot.slane %v978, %v991
      %v993 = vcombine.low %v968, %v976
      %v994 = vcombine.high %v968, %v976
      %v996 = vunpack.c.l.s4 1934713408
      %v997 = vunpack.c.0.s8 %v996
      %v998 = vlaneseq
      %v999 = vshrl.u32 %v998, 7
      %v1000 = vsub.s32 %v997, %v999
      %v1001 = vrot.slane %v993, %v1000
      %v1003 = vunpack.c.l.s4 1934713408
      %v1004 = vunpack.c.0.s8 %v1003
      %v1005 = vlaneseq
      %v1006 = vshrl.u32 %v1005, 7
      %v1007 = vsub.s32 %v1004, %v1006
      %v1008 = vrot.slane %v994, %v1007
      %v1009 = vcombine.low %v985, %v1001
      %v1010 = vcombine.high %v985, %v1001
      %v1011 = vcombine.low %v992, %v1008
      %v1012 = vcombine.high %v992, %v1008
      %1014 = vrot.lane.b32.xlu0 %v1010, 4
      %v1015 = vpop.permute.xlu0 %1014
      %1018 = vrot.lane.b32.xlu0 %v1011, 8
      %v1019 = vpop.permute.xlu0 %1018
      %1022 = vrot.lane.b32.xlu0 %v1012, 12
      %v1023 = vpop.permute.xlu0 %1022
      %v1025 = vsel %vm281, %v1009, %v1015
      %v1026 = vsel %vm283, %v1025, %v1019
      %v1027 = vsel %vm285, %v1026, %v1023
      %s1028 = scalar_lea.vmem %s1, 64
      %v1029 = vld [vmem:[%s1028] sm:$0xff]
      %v1030 = vld [vmem:[%s1028 + $0x8] sm:$0xff]
      %v1032 = vsel %vm283, %v1029, 0
      %v1035 = vsel %vm283, %v1030, 0
      %1037 = vmatprep.subr.mxu0 0.0
      %1038 = vmatpush1.msra.mxu0 0.0
      %1039 = vmatprep.subr.mxu0 0.0
      %1040 = vmatpush1.msra.mxu0 0.0
      %1041 = vmatprep.subr.mxu0 0.0
      %1042 = vmatpush1.msra.mxu0 0.0
      %1043 = vmatprep.subr.mxu0 0.0
      %1044 = vmatpush1.msra.mxu0 0.0
      %1045 = vmatprep.subr.mxu0 0.0
      %1046 = vmatpush1.msra.mxu0 0.0
      %1047 = vmatprep.subr.mxu0 0.0
      %1048 = vmatpush1.msra.mxu0 0.0
      %1049 = vmatprep.subr.mxu0 0.0
      %1050 = vmatpush1.msra.mxu0 0.0
      %1051 = vmatprep.subr.mxu0 0.0
      %1052 = vmatpush1.msra.mxu0 0.0
      %1053 = vmatprep.subr.mxu0 0.0
      %1054 = vmatpush1.msra.mxu0 0.0
      %1055 = vmatprep.subr.mxu0 0.0
      %1056 = vmatpush1.msra.mxu0 0.0
      %1057 = vmatprep.subr.mxu0 0.0
      %1058 = vmatpush1.msra.mxu0 0.0
      %1059 = vmatprep.subr.mxu0 0.0
      %1060 = vmatpush1.msra.mxu0 0.0
      %1061 = vmatprep.subr.mxu0 0.0
      %1062 = vmatpush1.msra.mxu0 0.0
      %1063 = vmatprep.subr.mxu0 0.0
      %1064 = vmatpush1.msra.mxu0 0.0
      %1065 = vmatprep.subr.mxu0 0.0
      %1066 = vmatpush1.msra.mxu0 0.0
      %1067 = vmatprep.subr.mxu0 0.0
      %1068 = vmatpush1.msra.mxu0 %v1027
      %1069 = vmatprep.subr.mxu0 0.0
      %1070 = vmatpush2.msra.mxu0 0.0
      %1071 = vmatprep.subr.mxu0 0.0
      %1072 = vmatpush2.msra.mxu0 0.0
      %1073 = vmatprep.subr.mxu0 0.0
      %1074 = vmatpush2.msra.mxu0 0.0
      %1075 = vmatprep.subr.mxu0 0.0
      %1076 = vmatpush2.msra.mxu0 0.0
      %1077 = vmatprep.subr.mxu0 0.0
      %1078 = vmatpush2.msra.mxu0 0.0
      %1079 = vmatprep.subr.mxu0 0.0
      %1080 = vmatpush2.msra.mxu0 0.0
      %1081 = vmatprep.subr.mxu0 0.0
      %1082 = vmatpush2.msra.mxu0 0.0
      %1083 = vmatprep.subr.mxu0 0.0
      %1084 = vmatpush2.msra.mxu0 0.0
      %1085 = vmatprep.subr.mxu0 0.0
      %1086 = vmatpush2.msra.mxu0 0.0
      %1087 = vmatprep.subr.mxu0 0.0
      %1088 = vmatpush2.msra.mxu0 0.0
      %1089 = vmatprep.subr.mxu0 0.0
      %1090 = vmatpush2.msra.mxu0 0.0
      %1091 = vmatprep.subr.mxu0 0.0
      %1092 = vmatpush2.msra.mxu0 0.0
      %1093 = vmatprep.subr.mxu0 0.0
      %1094 = vmatpush2.msra.mxu0 0.0
      %1095 = vmatprep.subr.mxu0 0.0
      %1096 = vmatpush2.msra.mxu0 0.0
      %1097 = vmatprep.subr.mxu0 0.0
      %1098 = vmatpush2.msra.mxu0 0.0
      %1099 = vmatprep.subr.mxu0 0.0
      %1100 = vmatpush2.msra.mxu0 0.0
      %1101 = vmatprep.mubr.f32.mxu0 0.0
      %1102 = vmatmul.mubr.f32.gmra.mxu0 %v1032
      %v1103 = vpop.f32.mrf.mxu0
      %v1104 = vadd.f32 0.0, %v1103
      %v1105 = vpop.f32.mrf.mxu0
      %1106 = vmatprep.mubr.f32.mxu0 0.0
      %1107 = vmatmul.mubr.f32.gmra.mxu0 %v1035
      %v1108 = vpop.f32.mrf.mxu0
      %v1109 = vadd.f32 0.0, %v1108
      %v1110 = vpop.f32.mrf.mxu0
      %1111 = vdwg.mxu0
      %v1112 = vadd.f32 %v933, %v1104
      %v1113 = vadd.f32 %v934, %v1109
      %v1114 = vld [vmem:[%s757] sm:$0xf]
      %v1115 = vld [vmem:[%s757 + $0x8] sm:$0xf]
      %v1116 = vld [vmem:[%s757 + $0x10] sm:$0xf]
      %v1117 = vld [vmem:[%s757 + $0x18] sm:$0xf]
      %v1118 = vld [vmem:[%s757 + $0x20] sm:$0xf]
      %v1119 = vld [vmem:[%s757 + $0x28] sm:$0xf]
      %v1120 = vld [vmem:[%s757 + $0x30] sm:$0xf]
      %v1121 = vld [vmem:[%s757 + $0x38] sm:$0xf]
      %1130 = vrot.lane.b32.xlu0 %v1114, 127
      %v1131 = vpop.permute.xlu0 %1130
      %1132 = vrot.lane.b32.xlu0 %v1115, 127
      %v1133 = vpop.permute.xlu0 %1132
      %1134 = vrot.lane.b32.xlu0 %v1116, 127
      %v1135 = vpop.permute.xlu0 %1134
      %1136 = vrot.lane.b32.xlu0 %v1117, 127
      %v1137 = vpop.permute.xlu0 %1136
      %1138 = vrot.lane.b32.xlu0 %v1118, 127
      %v1139 = vpop.permute.xlu0 %1138
      %1140 = vrot.lane.b32.xlu0 %v1119, 127
      %v1141 = vpop.permute.xlu0 %1140
      %1142 = vrot.lane.b32.xlu0 %v1120, 127
      %v1143 = vpop.permute.xlu0 %1142
      %1144 = vrot.lane.b32.xlu0 %v1121, 127
      %v1145 = vpop.permute.xlu0 %1144
      %v1154 = vcombine.low %v1131, %v1135
      %v1156 = vunpack.c.l.s4 1983009808
      %v1157 = vunpack.c.0.s8 %v1156
      %v1158 = vlaneseq
      %v1159 = vshrl.u32 %v1158, 7
      %v1160 = vsub.s32 %v1157, %v1159
      %v1161 = vrot.slane %v1154, %v1160
      %v1162 = vcombine.low %v1133, %v1137
      %v1164 = vunpack.c.l.s4 1983009808
      %v1165 = vunpack.c.0.s8 %v1164
      %v1166 = vlaneseq
      %v1167 = vshrl.u32 %v1166, 7
      %v1168 = vsub.s32 %v1165, %v1167
      %v1169 = vrot.slane %v1162, %v1168
      %v1170 = vcombine.low %v1139, %v1143
      %v1172 = vunpack.c.l.s4 1983009808
      %v1173 = vunpack.c.0.s8 %v1172
      %v1174 = vlaneseq
      %v1175 = vshrl.u32 %v1174, 7
      %v1176 = vsub.s32 %v1173, %v1175
      %v1177 = vrot.slane %v1170, %v1176
      %v1178 = vcombine.low %v1141, %v1145
      %v1180 = vunpack.c.l.s4 1983009808
      %v1181 = vunpack.c.0.s8 %v1180
      %v1182 = vlaneseq
      %v1183 = vshrl.u32 %v1182, 7
      %v1184 = vsub.s32 %v1181, %v1183
      %v1185 = vrot.slane %v1178, %v1184
      %v1186 = vcombine.low %v1161, %v1169
      %v1187 = vcombine.high %v1161, %v1169
      %v1189 = vunpack.c.l.s4 1934713408
      %v1190 = vunpack.c.0.s8 %v1189
      %v1191 = vlaneseq
      %v1192 = vshrl.u32 %v1191, 7
      %v1193 = vsub.s32 %v1190, %v1192
      %v1194 = vrot.slane %v1186, %v1193
      %v1196 = vunpack.c.l.s4 1934713408
      %v1197 = vunpack.c.0.s8 %v1196
      %v1198 = vlaneseq
      %v1199 = vshrl.u32 %v1198, 7
      %v1200 = vsub.s32 %v1197, %v1199
      %v1201 = vrot.slane %v1187, %v1200
      %v1202 = vcombine.low %v1177, %v1185
      %v1203 = vcombine.high %v1177, %v1185
      %v1205 = vunpack.c.l.s4 1934713408
      %v1206 = vunpack.c.0.s8 %v1205
      %v1207 = vlaneseq
      %v1208 = vshrl.u32 %v1207, 7
      %v1209 = vsub.s32 %v1206, %v1208
      %v1210 = vrot.slane %v1202, %v1209
      %v1212 = vunpack.c.l.s4 1934713408
      %v1213 = vunpack.c.0.s8 %v1212
      %v1214 = vlaneseq
      %v1215 = vshrl.u32 %v1214, 7
      %v1216 = vsub.s32 %v1213, %v1215
      %v1217 = vrot.slane %v1203, %v1216
      %v1218 = vcombine.low %v1194, %v1210
      %v1219 = vcombine.high %v1194, %v1210
      %v1220 = vcombine.low %v1201, %v1217
      %v1221 = vcombine.high %v1201, %v1217
      %1223 = vrot.lane.b32.xlu0 %v1219, 4
      %v1224 = vpop.permute.xlu0 %1223
      %1227 = vrot.lane.b32.xlu0 %v1220, 8
      %v1228 = vpop.permute.xlu0 %1227
      %1231 = vrot.lane.b32.xlu0 %v1221, 12
      %v1232 = vpop.permute.xlu0 %1231
      %v1234 = vsel %vm281, %v1218, %v1224
      %v1235 = vsel %vm283, %v1234, %v1228
      %v1236 = vsel %vm285, %v1235, %v1232
      %s1237 = scalar_lea.vmem %s1, 80
      %v1238 = vld [vmem:[%s1237] sm:$0xff]
      %v1239 = vld [vmem:[%s1237 + $0x8] sm:$0xff]
      %v1241 = vsel %vm283, %v1238, 0
      %v1244 = vsel %vm283, %v1239, 0
      %1246 = vmatprep.subr.mxu0 0.0
      %1247 = vmatpush1.msra.mxu0 0.0
      %1248 = vmatprep.subr.mxu0 0.0
      %1249 = vmatpush1.msra.mxu0 0.0
      %1250 = vmatprep.subr.mxu0 0.0
      %1251 = vmatpush1.msra.mxu0 0.0
      %1252 = vmatprep.subr.mxu0 0.0
      %1253 = vmatpush1.msra.mxu0 0.0
      %1254 = vmatprep.subr.mxu0 0.0
      %1255 = vmatpush1.msra.mxu0 0.0
      %1256 = vmatprep.subr.mxu0 0.0
      %1257 = vmatpush1.msra.mxu0 0.0
      %1258 = vmatprep.subr.mxu0 0.0
      %1259 = vmatpush1.msra.mxu0 0.0
      %1260 = vmatprep.subr.mxu0 0.0
      %1261 = vmatpush1.msra.mxu0 0.0
      %1262 = vmatprep.subr.mxu0 0.0
      %1263 = vmatpush1.msra.mxu0 0.0
      %1264 = vmatprep.subr.mxu0 0.0
      %1265 = vmatpush1.msra.mxu0 0.0
      %1266 = vmatprep.subr.mxu0 0.0
      %1267 = vmatpush1.msra.mxu0 0.0
      %1268 = vmatprep.subr.mxu0 0.0
      %1269 = vmatpush1.msra.mxu0 0.0
      %1270 = vmatprep.subr.mxu0 0.0
      %1271 = vmatpush1.msra.mxu0 0.0
      %1272 = vmatprep.subr.mxu0 0.0
      %1273 = vmatpush1.msra.mxu0 0.0
      %1274 = vmatprep.subr.mxu0 0.0
      %1275 = vmatpush1.msra.mxu0 0.0
      %1276 = vmatprep.subr.mxu0 0.0
      %1277 = vmatpush1.msra.mxu0 %v1236
      %1278 = vmatprep.subr.mxu0 0.0
      %1279 = vmatpush2.msra.mxu0 0.0
      %1280 = vmatprep.subr.mxu0 0.0
      %1281 = vmatpush2.msra.mxu0 0.0
      %1282 = vmatprep.subr.mxu0 0.0
      %1283 = vmatpush2.msra.mxu0 0.0
      %1284 = vmatprep.subr.mxu0 0.0
      %1285 = vmatpush2.msra.mxu0 0.0
      %1286 = vmatprep.subr.mxu0 0.0
      %1287 = vmatpush2.msra.mxu0 0.0
      %1288 = vmatprep.subr.mxu0 0.0
      %1289 = vmatpush2.msra.mxu0 0.0
      %1290 = vmatprep.subr.mxu0 0.0
      %1291 = vmatpush2.msra.mxu0 0.0
      %1292 = vmatprep.subr.mxu0 0.0
      %1293 = vmatpush2.msra.mxu0 0.0
      %1294 = vmatprep.subr.mxu0 0.0
      %1295 = vmatpush2.msra.mxu0 0.0
      %1296 = vmatprep.subr.mxu0 0.0
      %1297 = vmatpush2.msra.mxu0 0.0
      %1298 = vmatprep.subr.mxu0 0.0
      %1299 = vmatpush2.msra.mxu0 0.0
      %1300 = vmatprep.subr.mxu0 0.0
      %1301 = vmatpush2.msra.mxu0 0.0
      %1302 = vmatprep.subr.mxu0 0.0
      %1303 = vmatpush2.msra.mxu0 0.0
      %1304 = vmatprep.subr.mxu0 0.0
      %1305 = vmatpush2.msra.mxu0 0.0
      %1306 = vmatprep.subr.mxu0 0.0
      %1307 = vmatpush2.msra.mxu0 0.0
      %1308 = vmatprep.subr.mxu0 0.0
      %1309 = vmatpush2.msra.mxu0 0.0
      %1310 = vmatprep.mubr.f32.mxu0 0.0
      %1311 = vmatmul.mubr.f32.gmra.mxu0 %v1241
      %v1312 = vpop.f32.mrf.mxu0
      %v1313 = vadd.f32 0.0, %v1312
      %v1314 = vpop.f32.mrf.mxu0
      %1315 = vmatprep.mubr.f32.mxu0 0.0
      %1316 = vmatmul.mubr.f32.gmra.mxu0 %v1244
      %v1317 = vpop.f32.mrf.mxu0
      %v1318 = vadd.f32 0.0, %v1317
      %v1319 = vpop.f32.mrf.mxu0
      %1320 = vdwg.mxu0
      %v1321 = vadd.f32 %v1112, %v1313
      %v1322 = vadd.f32 %v1113, %v1318
      %s1323 = sadd.s32 %s191, 1
      %s1324 = scalar_lea.vmem %s182, %s1323
      %v1325 = vld [vmem:[%s1324] sm:$0xf]
      %v1326 = vld [vmem:[%s1324 + $0x8] sm:$0xf]
      %v1327 = vld [vmem:[%s1324 + $0x10] sm:$0xf]
      %v1328 = vld [vmem:[%s1324 + $0x18] sm:$0xf]
      %v1329 = vld [vmem:[%s1324 + $0x20] sm:$0xf]
      %v1330 = vld [vmem:[%s1324 + $0x28] sm:$0xf]
      %v1331 = vld [vmem:[%s1324 + $0x30] sm:$0xf]
      %v1332 = vld [vmem:[%s1324 + $0x38] sm:$0xf]
      %v1333 = vcombine.low %v1325, %v1327
      %v1335 = vunpack.c.l.s4 1983009808
      %v1336 = vunpack.c.0.s8 %v1335
      %v1337 = vlaneseq
      %v1338 = vshrl.u32 %v1337, 7
      %v1339 = vsub.s32 %v1336, %v1338
      %v1340 = vrot.slane %v1333, %v1339
      %v1341 = vcombine.low %v1326, %v1328
      %v1343 = vunpack.c.l.s4 1983009808
      %v1344 = vunpack.c.0.s8 %v1343
      %v1345 = vlaneseq
      %v1346 = vshrl.u32 %v1345, 7
      %v1347 = vsub.s32 %v1344, %v1346
      %v1348 = vrot.slane %v1341, %v1347
      %v1349 = vcombine.low %v1329, %v1331
      %v1351 = vunpack.c.l.s4 1983009808
      %v1352 = vunpack.c.0.s8 %v1351
      %v1353 = vlaneseq
      %v1354 = vshrl.u32 %v1353, 7
      %v1355 = vsub.s32 %v1352, %v1354
      %v1356 = vrot.slane %v1349, %v1355
      %v1357 = vcombine.low %v1330, %v1332
      %v1359 = vunpack.c.l.s4 1983009808
      %v1360 = vunpack.c.0.s8 %v1359
      %v1361 = vlaneseq
      %v1362 = vshrl.u32 %v1361, 7
      %v1363 = vsub.s32 %v1360, %v1362
      %v1364 = vrot.slane %v1357, %v1363
      %v1365 = vcombine.low %v1340, %v1348
      %v1366 = vcombine.high %v1340, %v1348
      %v1368 = vunpack.c.l.s4 1934713408
      %v1369 = vunpack.c.0.s8 %v1368
      %v1370 = vlaneseq
      %v1371 = vshrl.u32 %v1370, 7
      %v1372 = vsub.s32 %v1369, %v1371
      %v1373 = vrot.slane %v1365, %v1372
      %v1375 = vunpack.c.l.s4 1934713408
      %v1376 = vunpack.c.0.s8 %v1375
      %v1377 = vlaneseq
      %v1378 = vshrl.u32 %v1377, 7
      %v1379 = vsub.s32 %v1376, %v1378
      %v1380 = vrot.slane %v1366, %v1379
      %v1381 = vcombine.low %v1356, %v1364
      %v1382 = vcombine.high %v1356, %v1364
      %v1384 = vunpack.c.l.s4 1934713408
      %v1385 = vunpack.c.0.s8 %v1384
      %v1386 = vlaneseq
      %v1387 = vshrl.u32 %v1386, 7
      %v1388 = vsub.s32 %v1385, %v1387
      %v1389 = vrot.slane %v1381, %v1388
      %v1391 = vunpack.c.l.s4 1934713408
      %v1392 = vunpack.c.0.s8 %v1391
      %v1393 = vlaneseq
      %v1394 = vshrl.u32 %v1393, 7
      %v1395 = vsub.s32 %v1392, %v1394
      %v1396 = vrot.slane %v1382, %v1395
      %v1397 = vcombine.low %v1373, %v1389
      %v1398 = vcombine.high %v1373, %v1389
      %v1399 = vcombine.low %v1380, %v1396
      %v1400 = vcombine.high %v1380, %v1396
      %1402 = vrot.lane.b32.xlu0 %v1398, 4
      %v1403 = vpop.permute.xlu0 %1402
      %1406 = vrot.lane.b32.xlu0 %v1399, 8
      %v1407 = vpop.permute.xlu0 %1406
      %1410 = vrot.lane.b32.xlu0 %v1400, 12
      %v1411 = vpop.permute.xlu0 %1410
      %v1413 = vsel %vm281, %v1397, %v1403
      %v1414 = vsel %vm283, %v1413, %v1407
      %v1415 = vsel %vm285, %v1414, %v1411
      %s1416 = scalar_lea.vmem %s1, 96
      %v1417 = vld [vmem:[%s1416] sm:$0xff]
      %v1418 = vld [vmem:[%s1416 + $0x8] sm:$0xff]
      %v1420 = vsel %vm283, %v1417, 0
      %v1423 = vsel %vm283, %v1418, 0
      %1425 = vmatprep.subr.mxu0 0.0
      %1426 = vmatpush1.msra.mxu0 0.0
      %1427 = vmatprep.subr.mxu0 0.0
      %1428 = vmatpush1.msra.mxu0 0.0
      %1429 = vmatprep.subr.mxu0 0.0
      %1430 = vmatpush1.msra.mxu0 0.0
      %1431 = vmatprep.subr.mxu0 0.0
      %1432 = vmatpush1.msra.mxu0 0.0
      %1433 = vmatprep.subr.mxu0 0.0
      %1434 = vmatpush1.msra.mxu0 0.0
      %1435 = vmatprep.subr.mxu0 0.0
      %1436 = vmatpush1.msra.mxu0 0.0
      %1437 = vmatprep.subr.mxu0 0.0
      %1438 = vmatpush1.msra.mxu0 0.0
      %1439 = vmatprep.subr.mxu0 0.0
      %1440 = vmatpush1.msra.mxu0 0.0
      %1441 = vmatprep.subr.mxu0 0.0
      %1442 = vmatpush1.msra.mxu0 0.0
      %1443 = vmatprep.subr.mxu0 0.0
      %1444 = vmatpush1.msra.mxu0 0.0
      %1445 = vmatprep.subr.mxu0 0.0
      %1446 = vmatpush1.msra.mxu0 0.0
      %1447 = vmatprep.subr.mxu0 0.0
      %1448 = vmatpush1.msra.mxu0 0.0
      %1449 = vmatprep.subr.mxu0 0.0
      %1450 = vmatpush1.msra.mxu0 0.0
      %1451 = vmatprep.subr.mxu0 0.0
      %1452 = vmatpush1.msra.mxu0 0.0
      %1453 = vmatprep.subr.mxu0 0.0
      %1454 = vmatpush1.msra.mxu0 0.0
      %1455 = vmatprep.subr.mxu0 0.0
      %1456 = vmatpush1.msra.mxu0 %v1415
      %1457 = vmatprep.subr.mxu0 0.0
      %1458 = vmatpush2.msra.mxu0 0.0
      %1459 = vmatprep.subr.mxu0 0.0
      %1460 = vmatpush2.msra.mxu0 0.0
      %1461 = vmatprep.subr.mxu0 0.0
      %1462 = vmatpush2.msra.mxu0 0.0
      %1463 = vmatprep.subr.mxu0 0.0
      %1464 = vmatpush2.msra.mxu0 0.0
      %1465 = vmatprep.subr.mxu0 0.0
      %1466 = vmatpush2.msra.mxu0 0.0
      %1467 = vmatprep.subr.mxu0 0.0
      %1468 = vmatpush2.msra.mxu0 0.0
      %1469 = vmatprep.subr.mxu0 0.0
      %1470 = vmatpush2.msra.mxu0 0.0
      %1471 = vmatprep.subr.mxu0 0.0
      %1472 = vmatpush2.msra.mxu0 0.0
      %1473 = vmatprep.subr.mxu0 0.0
      %1474 = vmatpush2.msra.mxu0 0.0
      %1475 = vmatprep.subr.mxu0 0.0
      %1476 = vmatpush2.msra.mxu0 0.0
      %1477 = vmatprep.subr.mxu0 0.0
      %1478 = vmatpush2.msra.mxu0 0.0
      %1479 = vmatprep.subr.mxu0 0.0
      %1480 = vmatpush2.msra.mxu0 0.0
      %1481 = vmatprep.subr.mxu0 0.0
      %1482 = vmatpush2.msra.mxu0 0.0
      %1483 = vmatprep.subr.mxu0 0.0
      %1484 = vmatpush2.msra.mxu0 0.0
      %1485 = vmatprep.subr.mxu0 0.0
      %1486 = vmatpush2.msra.mxu0 0.0
      %1487 = vmatprep.subr.mxu0 0.0
      %1488 = vmatpush2.msra.mxu0 0.0
      %1489 = vmatprep.mubr.f32.mxu0 0.0
      %1490 = vmatmul.mubr.f32.gmra.mxu0 %v1420
      %v1491 = vpop.f32.mrf.mxu0
      %v1492 = vadd.f32 0.0, %v1491
      %v1493 = vpop.f32.mrf.mxu0
      %1494 = vmatprep.mubr.f32.mxu0 0.0
      %1495 = vmatmul.mubr.f32.gmra.mxu0 %v1423
      %v1496 = vpop.f32.mrf.mxu0
      %v1497 = vadd.f32 0.0, %v1496
      %v1498 = vpop.f32.mrf.mxu0
      %1499 = vdwg.mxu0
      %v1500 = vadd.f32 %v1321, %v1492
      %v1501 = vadd.f32 %v1322, %v1497
      %s1502 = sadd.s32 %s1323, 64
      %s1503 = scalar_lea.vmem %s182, %s1502
      %v1504 = vld [vmem:[%s1503] sm:$0xf]
      %v1505 = vld [vmem:[%s1503 + $0x8] sm:$0xf]
      %v1506 = vld [vmem:[%s1503 + $0x10] sm:$0xf]
      %v1507 = vld [vmem:[%s1503 + $0x18] sm:$0xf]
      %v1508 = vld [vmem:[%s1503 + $0x20] sm:$0xf]
      %v1509 = vld [vmem:[%s1503 + $0x28] sm:$0xf]
      %v1510 = vld [vmem:[%s1503 + $0x30] sm:$0xf]
      %v1511 = vld [vmem:[%s1503 + $0x38] sm:$0xf]
      %v1512 = vcombine.low %v1504, %v1506
      %v1514 = vunpack.c.l.s4 1983009808
      %v1515 = vunpack.c.0.s8 %v1514
      %v1516 = vlaneseq
      %v1517 = vshrl.u32 %v1516, 7
      %v1518 = vsub.s32 %v1515, %v1517
      %v1519 = vrot.slane %v1512, %v1518
      %v1520 = vcombine.low %v1505, %v1507
      %v1522 = vunpack.c.l.s4 1983009808
      %v1523 = vunpack.c.0.s8 %v1522
      %v1524 = vlaneseq
      %v1525 = vshrl.u32 %v1524, 7
      %v1526 = vsub.s32 %v1523, %v1525
      %v1527 = vrot.slane %v1520, %v1526
      %v1528 = vcombine.low %v1508, %v1510
      %v1530 = vunpack.c.l.s4 1983009808
      %v1531 = vunpack.c.0.s8 %v1530
      %v1532 = vlaneseq
      %v1533 = vshrl.u32 %v1532, 7
      %v1534 = vsub.s32 %v1531, %v1533
      %v1535 = vrot.slane %v1528, %v1534
      %v1536 = vcombine.low %v1509, %v1511
      %v1538 = vunpack.c.l.s4 1983009808
      %v1539 = vunpack.c.0.s8 %v1538
      %v1540 = vlaneseq
      %v1541 = vshrl.u32 %v1540, 7
      %v1542 = vsub.s32 %v1539, %v1541
      %v1543 = vrot.slane %v1536, %v1542
      %v1544 = vcombine.low %v1519, %v1527
      %v1545 = vcombine.high %v1519, %v1527
      %v1547 = vunpack.c.l.s4 1934713408
      %v1548 = vunpack.c.0.s8 %v1547
      %v1549 = vlaneseq
      %v1550 = vshrl.u32 %v1549, 7
      %v1551 = vsub.s32 %v1548, %v1550
      %v1552 = vrot.slane %v1544, %v1551
      %v1554 = vunpack.c.l.s4 1934713408
      %v1555 = vunpack.c.0.s8 %v1554
      %v1556 = vlaneseq
      %v1557 = vshrl.u32 %v1556, 7
      %v1558 = vsub.s32 %v1555, %v1557
      %v1559 = vrot.slane %v1545, %v1558
      %v1560 = vcombine.low %v1535, %v1543
      %v1561 = vcombine.high %v1535, %v1543
      %v1563 = vunpack.c.l.s4 1934713408
      %v1564 = vunpack.c.0.s8 %v1563
      %v1565 = vlaneseq
      %v1566 = vshrl.u32 %v1565, 7
      %v1567 = vsub.s32 %v1564, %v1566
      %v1568 = vrot.slane %v1560, %v1567
      %v1570 = vunpack.c.l.s4 1934713408
      %v1571 = vunpack.c.0.s8 %v1570
      %v1572 = vlaneseq
      %v1573 = vshrl.u32 %v1572, 7
      %v1574 = vsub.s32 %v1571, %v1573
      %v1575 = vrot.slane %v1561, %v1574
      %v1576 = vcombine.low %v1552, %v1568
      %v1577 = vcombine.high %v1552, %v1568
      %v1578 = vcombine.low %v1559, %v1575
      %v1579 = vcombine.high %v1559, %v1575
      %1581 = vrot.lane.b32.xlu0 %v1577, 4
      %v1582 = vpop.permute.xlu0 %1581
      %1585 = vrot.lane.b32.xlu0 %v1578, 8
      %v1586 = vpop.permute.xlu0 %1585
      %1589 = vrot.lane.b32.xlu0 %v1579, 12
      %v1590 = vpop.permute.xlu0 %1589
      %v1592 = vsel %vm281, %v1576, %v1582
      %v1593 = vsel %vm283, %v1592, %v1586
      %v1594 = vsel %vm285, %v1593, %v1590
      %s1595 = scalar_lea.vmem %s1, 112
      %v1596 = vld [vmem:[%s1595] sm:$0xff]
      %v1597 = vld [vmem:[%s1595 + $0x8] sm:$0xff]
      %v1599 = vsel %vm283, %v1596, 0
      %v1602 = vsel %vm283, %v1597, 0
      %1604 = vmatprep.subr.mxu0 0.0
      %1605 = vmatpush1.msra.mxu0 0.0
      %1606 = vmatprep.subr.mxu0 0.0
      %1607 = vmatpush1.msra.mxu0 0.0
      %1608 = vmatprep.subr.mxu0 0.0
      %1609 = vmatpush1.msra.mxu0 0.0
      %1610 = vmatprep.subr.mxu0 0.0
      %1611 = vmatpush1.msra.mxu0 0.0
      %1612 = vmatprep.subr.mxu0 0.0
      %1613 = vmatpush1.msra.mxu0 0.0
      %1614 = vmatprep.subr.mxu0 0.0
      %1615 = vmatpush1.msra.mxu0 0.0
      %1616 = vmatprep.subr.mxu0 0.0
      %1617 = vmatpush1.msra.mxu0 0.0
      %1618 = vmatprep.subr.mxu0 0.0
      %1619 = vmatpush1.msra.mxu0 0.0
      %1620 = vmatprep.subr.mxu0 0.0
      %1621 = vmatpush1.msra.mxu0 0.0
      %1622 = vmatprep.subr.mxu0 0.0
      %1623 = vmatpush1.msra.mxu0 0.0
      %1624 = vmatprep.subr.mxu0 0.0
      %1625 = vmatpush1.msra.mxu0 0.0
      %1626 = vmatprep.subr.mxu0 0.0
      %1627 = vmatpush1.msra.mxu0 0.0
      %1628 = vmatprep.subr.mxu0 0.0
      %1629 = vmatpush1.msra.mxu0 0.0
      %1630 = vmatprep.subr.mxu0 0.0
      %1631 = vmatpush1.msra.mxu0 0.0
      %1632 = vmatprep.subr.mxu0 0.0
      %1633 = vmatpush1.msra.mxu0 0.0
      %1634 = vmatprep.subr.mxu0 0.0
      %1635 = vmatpush1.msra.mxu0 %v1594
      %1636 = vmatprep.subr.mxu0 0.0
      %1637 = vmatpush2.msra.mxu0 0.0
      %1638 = vmatprep.subr.mxu0 0.0
      %1639 = vmatpush2.msra.mxu0 0.0
      %1640 = vmatprep.subr.mxu0 0.0
      %1641 = vmatpush2.msra.mxu0 0.0
      %1642 = vmatprep.subr.mxu0 0.0
      %1643 = vmatpush2.msra.mxu0 0.0
      %1644 = vmatprep.subr.mxu0 0.0
      %1645 = vmatpush2.msra.mxu0 0.0
      %1646 = vmatprep.subr.mxu0 0.0
      %1647 = vmatpush2.msra.mxu0 0.0
      %1648 = vmatprep.subr.mxu0 0.0
      %1649 = vmatpush2.msra.mxu0 0.0
      %1650 = vmatprep.subr.mxu0 0.0
      %1651 = vmatpush2.msra.mxu0 0.0
      %1652 = vmatprep.subr.mxu0 0.0
      %1653 = vmatpush2.msra.mxu0 0.0
      %1654 = vmatprep.subr.mxu0 0.0
      %1655 = vmatpush2.msra.mxu0 0.0
      %1656 = vmatprep.subr.mxu0 0.0
      %1657 = vmatpush2.msra.mxu0 0.0
      %1658 = vmatprep.subr.mxu0 0.0
      %1659 = vmatpush2.msra.mxu0 0.0
      %1660 = vmatprep.subr.mxu0 0.0
      %1661 = vmatpush2.msra.mxu0 0.0
      %1662 = vmatprep.subr.mxu0 0.0
      %1663 = vmatpush2.msra.mxu0 0.0
      %1664 = vmatprep.subr.mxu0 0.0
      %1665 = vmatpush2.msra.mxu0 0.0
      %1666 = vmatprep.subr.mxu0 0.0
      %1667 = vmatpush2.msra.mxu0 0.0
      %1668 = vmatprep.mubr.f32.mxu0 0.0
      %1669 = vmatmul.mubr.f32.gmra.mxu0 %v1599
      %v1670 = vpop.f32.mrf.mxu0
      %v1671 = vadd.f32 0.0, %v1670
      %v1672 = vpop.f32.mrf.mxu0
      %1673 = vmatprep.mubr.f32.mxu0 0.0
      %1674 = vmatmul.mubr.f32.gmra.mxu0 %v1602
      %v1675 = vpop.f32.mrf.mxu0
      %v1676 = vadd.f32 0.0, %v1675
      %v1677 = vpop.f32.mrf.mxu0
      %1678 = vdwg.mxu0
      %v1679 = vadd.f32 %v1500, %v1671
      %v1680 = vadd.f32 %v1501, %v1676
      %v1681 = vld [vmem:[%s1324] sm:$0xf]
      %v1682 = vld [vmem:[%s1324 + $0x8] sm:$0xf]
      %v1683 = vld [vmem:[%s1324 + $0x10] sm:$0xf]
      %v1684 = vld [vmem:[%s1324 + $0x18] sm:$0xf]
      %v1685 = vld [vmem:[%s1324 + $0x20] sm:$0xf]
      %v1686 = vld [vmem:[%s1324 + $0x28] sm:$0xf]
      %v1687 = vld [vmem:[%s1324 + $0x30] sm:$0xf]
      %v1688 = vld [vmem:[%s1324 + $0x38] sm:$0xf]
      %1697 = vrot.lane.b32.xlu0 %v1681, 127
      %v1698 = vpop.permute.xlu0 %1697
      %1699 = vrot.lane.b32.xlu0 %v1682, 127
      %v1700 = vpop.permute.xlu0 %1699
      %1701 = vrot.lane.b32.xlu0 %v1683, 127
      %v1702 = vpop.permute.xlu0 %1701
      %1703 = vrot.lane.b32.xlu0 %v1684, 127
      %v1704 = vpop.permute.xlu0 %1703
      %1705 = vrot.lane.b32.xlu0 %v1685, 127
      %v1706 = vpop.permute.xlu0 %1705
      %1707 = vrot.lane.b32.xlu0 %v1686, 127
      %v1708 = vpop.permute.xlu0 %1707
      %1709 = vrot.lane.b32.xlu0 %v1687, 127
      %v1710 = vpop.permute.xlu0 %1709
      %1711 = vrot.lane.b32.xlu0 %v1688, 127
      %v1712 = vpop.permute.xlu0 %1711
      %v1721 = vcombine.low %v1698, %v1702
      %v1723 = vunpack.c.l.s4 1983009808
      %v1724 = vunpack.c.0.s8 %v1723
      %v1725 = vlaneseq
      %v1726 = vshrl.u32 %v1725, 7
      %v1727 = vsub.s32 %v1724, %v1726
      %v1728 = vrot.slane %v1721, %v1727
      %v1729 = vcombine.low %v1700, %v1704
      %v1731 = vunpack.c.l.s4 1983009808
      %v1732 = vunpack.c.0.s8 %v1731
      %v1733 = vlaneseq
      %v1734 = vshrl.u32 %v1733, 7
      %v1735 = vsub.s32 %v1732, %v1734
      %v1736 = vrot.slane %v1729, %v1735
      %v1737 = vcombine.low %v1706, %v1710
      %v1739 = vunpack.c.l.s4 1983009808
      %v1740 = vunpack.c.0.s8 %v1739
      %v1741 = vlaneseq
      %v1742 = vshrl.u32 %v1741, 7
      %v1743 = vsub.s32 %v1740, %v1742
      %v1744 = vrot.slane %v1737, %v1743
      %v1745 = vcombine.low %v1708, %v1712
      %v1747 = vunpack.c.l.s4 1983009808
      %v1748 = vunpack.c.0.s8 %v1747
      %v1749 = vlaneseq
      %v1750 = vshrl.u32 %v1749, 7
      %v1751 = vsub.s32 %v1748, %v1750
      %v1752 = vrot.slane %v1745, %v1751
      %v1753 = vcombine.low %v1728, %v1736
      %v1754 = vcombine.high %v1728, %v1736
      %v1756 = vunpack.c.l.s4 1934713408
      %v1757 = vunpack.c.0.s8 %v1756
      %v1758 = vlaneseq
      %v1759 = vshrl.u32 %v1758, 7
      %v1760 = vsub.s32 %v1757, %v1759
      %v1761 = vrot.slane %v1753, %v1760
      %v1763 = vunpack.c.l.s4 1934713408
      %v1764 = vunpack.c.0.s8 %v1763
      %v1765 = vlaneseq
      %v1766 = vshrl.u32 %v1765, 7
      %v1767 = vsub.s32 %v1764, %v1766
      %v1768 = vrot.slane %v1754, %v1767
      %v1769 = vcombine.low %v1744, %v1752
      %v1770 = vcombine.high %v1744, %v1752
      %v1772 = vunpack.c.l.s4 1934713408
      %v1773 = vunpack.c.0.s8 %v1772
      %v1774 = vlaneseq
      %v1775 = vshrl.u32 %v1774, 7
      %v1776 = vsub.s32 %v1773, %v1775
      %v1777 = vrot.slane %v1769, %v1776
      %v1779 = vunpack.c.l.s4 1934713408
      %v1780 = vunpack.c.0.s8 %v1779
      %v1781 = vlaneseq
      %v1782 = vshrl.u32 %v1781, 7
      %v1783 = vsub.s32 %v1780, %v1782
      %v1784 = vrot.slane %v1770, %v1783
      %v1785 = vcombine.low %v1761, %v1777
      %v1786 = vcombine.high %v1761, %v1777
      %v1787 = vcombine.low %v1768, %v1784
      %v1788 = vcombine.high %v1768, %v1784
      %1790 = vrot.lane.b32.xlu0 %v1786, 4
      %v1791 = vpop.permute.xlu0 %1790
      %1794 = vrot.lane.b32.xlu0 %v1787, 8
      %v1795 = vpop.permute.xlu0 %1794
      %1798 = vrot.lane.b32.xlu0 %v1788, 12
      %v1799 = vpop.permute.xlu0 %1798
      %v1801 = vsel %vm281, %v1785, %v1791
      %v1802 = vsel %vm283, %v1801, %v1795
      %v1803 = vsel %vm285, %v1802, %v1799
      %s1804 = scalar_lea.vmem %s1, 128
      %v1805 = vld [vmem:[%s1804] sm:$0xff]
      %v1806 = vld [vmem:[%s1804 + $0x8] sm:$0xff]
      %v1808 = vsel %vm283, %v1805, 0
      %v1811 = vsel %vm283, %v1806, 0
      %1813 = vmatprep.subr.mxu0 0.0
      %1814 = vmatpush1.msra.mxu0 0.0
      %1815 = vmatprep.subr.mxu0 0.0
      %1816 = vmatpush1.msra.mxu0 0.0
      %1817 = vmatprep.subr.mxu0 0.0
      %1818 = vmatpush1.msra.mxu0 0.0
      %1819 = vmatprep.subr.mxu0 0.0
      %1820 = vmatpush1.msra.mxu0 0.0
      %1821 = vmatprep.subr.mxu0 0.0
      %1822 = vmatpush1.msra.mxu0 0.0
      %1823 = vmatprep.subr.mxu0 0.0
      %1824 = vmatpush1.msra.mxu0 0.0
      %1825 = vmatprep.subr.mxu0 0.0
      %1826 = vmatpush1.msra.mxu0 0.0
      %1827 = vmatprep.subr.mxu0 0.0
      %1828 = vmatpush1.msra.mxu0 0.0
      %1829 = vmatprep.subr.mxu0 0.0
      %1830 = vmatpush1.msra.mxu0 0.0
      %1831 = vmatprep.subr.mxu0 0.0
      %1832 = vmatpush1.msra.mxu0 0.0
      %1833 = vmatprep.subr.mxu0 0.0
      %1834 = vmatpush1.msra.mxu0 0.0
      %1835 = vmatprep.subr.mxu0 0.0
      %1836 = vmatpush1.msra.mxu0 0.0
      %1837 = vmatprep.subr.mxu0 0.0
      %1838 = vmatpush1.msra.mxu0 0.0
      %1839 = vmatprep.subr.mxu0 0.0
      %1840 = vmatpush1.msra.mxu0 0.0
      %1841 = vmatprep.subr.mxu0 0.0
      %1842 = vmatpush1.msra.mxu0 0.0
      %1843 = vmatprep.subr.mxu0 0.0
      %1844 = vmatpush1.msra.mxu0 %v1803
      %1845 = vmatprep.subr.mxu0 0.0
      %1846 = vmatpush2.msra.mxu0 0.0
      %1847 = vmatprep.subr.mxu0 0.0
      %1848 = vmatpush2.msra.mxu0 0.0
      %1849 = vmatprep.subr.mxu0 0.0
      %1850 = vmatpush2.msra.mxu0 0.0
      %1851 = vmatprep.subr.mxu0 0.0
      %1852 = vmatpush2.msra.mxu0 0.0
      %1853 = vmatprep.subr.mxu0 0.0
      %1854 = vmatpush2.msra.mxu0 0.0
      %1855 = vmatprep.subr.mxu0 0.0
      %1856 = vmatpush2.msra.mxu0 0.0
      %1857 = vmatprep.subr.mxu0 0.0
      %1858 = vmatpush2.msra.mxu0 0.0
      %1859 = vmatprep.subr.mxu0 0.0
      %1860 = vmatpush2.msra.mxu0 0.0
      %1861 = vmatprep.subr.mxu0 0.0
      %1862 = vmatpush2.msra.mxu0 0.0
      %1863 = vmatprep.subr.mxu0 0.0
      %1864 = vmatpush2.msra.mxu0 0.0
      %1865 = vmatprep.subr.mxu0 0.0
      %1866 = vmatpush2.msra.mxu0 0.0
      %1867 = vmatprep.subr.mxu0 0.0
      %1868 = vmatpush2.msra.mxu0 0.0
      %1869 = vmatprep.subr.mxu0 0.0
      %1870 = vmatpush2.msra.mxu0 0.0
      %1871 = vmatprep.subr.mxu0 0.0
      %1872 = vmatpush2.msra.mxu0 0.0
      %1873 = vmatprep.subr.mxu0 0.0
      %1874 = vmatpush2.msra.mxu0 0.0
      %1875 = vmatprep.subr.mxu0 0.0
      %1876 = vmatpush2.msra.mxu0 0.0
      %1877 = vmatprep.mubr.f32.mxu0 0.0
      %1878 = vmatmul.mubr.f32.gmra.mxu0 %v1808
      %v1879 = vpop.f32.mrf.mxu0
      %v1880 = vadd.f32 0.0, %v1879
      %v1881 = vpop.f32.mrf.mxu0
      %1882 = vmatprep.mubr.f32.mxu0 0.0
      %1883 = vmatmul.mubr.f32.gmra.mxu0 %v1811
      %v1884 = vpop.f32.mrf.mxu0
      %v1885 = vadd.f32 0.0, %v1884
      %v1886 = vpop.f32.mrf.mxu0
      %1887 = vdwg.mxu0
      %v1888 = vadd.f32 %v1679, %v1880
      %v1889 = vadd.f32 %v1680, %v1885
      %v1890 = vld [vmem:[%s2] sm:$0xff]
      %v1891 = vld [vmem:[%s2 + $0x8] sm:$0xff]
      %1893 = vset.pattern.permute.xlu0 0
      %1894 = vperm.xlu0 %1893, %v1890
      %v1895 = vpop.permute.xlu0 %1894
      %1898 = vset.pattern.permute.xlu0 0
      %1899 = vperm.xlu0 %1898, %v1891
      %v1900 = vpop.permute.xlu0 %1899
      %v1902 = vadd.f32 %v1888, %v1895
      %v1903 = vadd.f32 %v1889, %v1900
      %vm1904 = vcmp.gt.f32.partialorder %v1902, 0.0
      %vm1905 = vcmp.gt.f32.partialorder %v1903, 0.0
      %v1906 = vmul.f32 %v1902, 0.2
      %v1907 = vmul.f32 %v1903, 0.2
      %v1908 = vsel %vm1904, %v1902, %v1906
      %v1909 = vsel %vm1905, %v1903, %v1907
      %vm1910 = vcmask 130048
      %1911 = vst.msk [vmem:[%s190] sm:$0xff] %vm1910, %v1908
      %1912 = vst.msk [vmem:[%s190 + $0x8] sm:$0xff] %vm1910, %v1909
      %p1913 = scmp.lt.s32.totalorder %s18, 1
      %s1914 = scalar_select %p1913, %s18, 1
      %p1915 = scmp.lt.s32.totalorder %s19, 0
      %s1916 = scalar_select %p1915, %s19, 0
      %s1917 = smul.addr %s1914, 2
      %s1918 = sadd.s32 %s1916, %s1917
      %s1919 = smul.addr %s1918, 8
      %s1920 = scalar_lea.vmem %s3, %s1919
      // Predicated region
      $region33: #{fwd.6} parent=31 // pred_check
        %p1921 = pneg %p114
      $region34: #{fwd.6} parent=31 // pred_check_branch
        %1923 = sbr.rel (%p1921) target = $region36
      $region35: #{fwd.6} parent=31 // pred_region
        _
      $region36: #{fwd.6} parent=31 // pred_fallthru
        _
    $region32: #{fwd.6} parent=5 // pred_fallthru
      _
    %p1924 = scmp.le.s32.totalorder 2, %s9
    // Predicated region
    $region37: #{fwd.6} parent=5 // pred_check
      %p1925 = pneg %p1924
    $region38: #{fwd.6} parent=5 // pred_check_branch
      %1927 = sbr.rel (%p1925) target = $region40
    $region39: #{fwd.6} parent=5 // pred_region
      %s1928 = ssub.s32 %s9, 2
      // Predicated region
      $region41: #{fwd.6} parent=39 // pred_check
        %p1929 = pneg %p120
      $region42: #{fwd.6} parent=39 // pred_check_branch
        %1931 = sbr.rel (%p1929) target = $region44
      $region43: #{fwd.6} parent=39 // pred_region
        %p1932 = scmp.lt.s32.totalorder %s20, 1
        %s1933 = scalar_select %p1932, %s20, 1
        %p1934 = scmp.lt.s32.totalorder %s21, 0
        %s1935 = scalar_select %p1934, %s21, 0
        %s1936 = smul.addr %s1933, 2
        %s1937 = sadd.s32 %s1935, %s1936
        %s1938 = smul.addr %s1937, 8
        %s1939 = scalar_lea.vmem %s3, %s1938
      $region44: #{fwd.6} parent=39 // pred_fallthru
        _
    $region40: #{fwd.6} parent=5 // pred_fallthru
      _
  $region6: #{fwd.6} parent=0 // loop_footer
    %s13 = sadd.s32 1, %s9
  $region7: #{fwd.6} parent=0 // loop_footer_branch
    %8 = sbr.rel target = $region3
  $region8: #{fwd.6} parent=0 // loop_exit
    _

// kernel: fwd.5
$region0: #{fwd.5}
  #allocation0 [shape = 'u32[]', space=smem, size = 0x4, offset = 0x4, fixed_abs, tag = 'smem constant byte address 0x4 - core index']
  #allocation1 [shape = 'u32[144,128]{1,0:T(1,128)}', space=vmem, size = 0x12000, scoped, tag = 'internal scratch']
  %s0 = inlined_call_operand.vmem [shape: f32[2,4,4,9,9], index: 0, kind: input, shape index: {}]
  %s1 = inlined_call_operand.vmem [shape: f32[9,8,4], index: 1, kind: input, shape index: {}]
  %s2 = inlined_call_operand.vmem [shape: f32[8,1], index: 2, kind: input, shape index: {}]
  %s3 = inlined_call_operand.vmem [shape: f32[2,8,64], index: 3, kind: output, shape index: {}]
  %s4 = sld [smem:[#allocation0]]
  $region45: #{fwd.5} parent=0
    _
  %s6 = ssub.s32 1, %s4
  %s7 = scalar_select 0, %s6, %s4
  loop: start=0, step=1, limit=4
  $region2: #{fwd.5} parent=0 // loop_pre_header
    _
  $region3: #{fwd.5} parent=0 // loop_header
    %s9 = sphi 0, %s13
    %p10 = scmp.ge.s32.totalorder %s9, 4
    %s16 = sphi 0, %s28
    %s17 = sphi 0, %s24
    %s18 = sphi 0, %s16
    %s19 = sphi 0, %s17
    %s20 = sphi 0, %s18
    %s21 = sphi 0, %s19
    %s31 = sphi 0, %s33
    %s34 = sphi 0, %s31
    %s35 = sphi 0, %s34
    %s51 = sphi 0, %s35
    %s55 = sphi 0, %s55
    %s57 = sphi 0, %s55
    %s58 = sphi 0, %s57
    %s72 = sphi 0, %s58
    %s76 = sphi 0, %s76
    %s78 = sphi 0, %s76
    %s79 = sphi 0, %s78
    %s93 = sphi 0, %s79
    %s101 = sphi 0, %s103
    %s104 = sphi 0, %s101
    %s105 = sphi 0, %s104
    %s121 = sphi 0, %s105
  $region4: #{fwd.5} parent=0 // loop_header_branch
    %12 = sbr.rel (%p10) target = $region8
  $region5: #{fwd.5} parent=0 // loop_body
    %s14 = ssub.s32 %s9, 1
    %s15 = ssub.s32 %s9, 2
    %s22 = sadd.s32 1, %s17
    %p23 = scmp.ge.s32.totalorder %s22, 1
    %s24 = scalar_select %p23, 0, %s22
    %s25 = sadd.s32 1, %s16
    %s26 = scalar_select %p23, %s25, %s16
    %p27 = scmp.ge.s32.totalorder %s26, 2
    %s28 = scalar_select %p27, 0, %s26
    %s29 = ssub.s32 %s16, %s28
    %p30 = scmp.eq.s32.totalorder %s29, 0
    %s32 = sadd.s32 %s31, 1
    %s33 = scalar_select %p30, %s31, %s32
    %p36 = pneg %p30
    %p37 = scmp.eq.s32.totalorder %s9, 1
    %p38 = por %p36, %p37
    %p39 = scmp.ne.s32.totalorder %s31, %s34
    %p40 = scmp.eq.s32.totalorder %s9, 0
    %p41 = por %p39, %p40
    %p42 = scmp.ne.s32.totalorder %s31, %s34
    %p43 = scmp.eq.s32.totalorder %s14, 1
    %p44 = por %p42, %p43
    %p45 = scmp.ne.s32.totalorder %s34, %s35
    %p46 = scmp.eq.s32.totalorder %s14, 0
    %p47 = por %p45, %p46
    %p48 = scmp.ne.s32.totalorder %s34, %s35
    %p49 = scmp.eq.s32.totalorder %s15, 1
    %p50 = por %p48, %p49
    %p52 = scmp.ne.s32.totalorder %s35, %s51
    %p53 = scmp.eq.s32.totalorder %s15, 0
    %p54 = por %p52, %p53
    %s56 = sadd.s32 %s55, 1
    %p59 = scmp.eq.s32.totalorder %s9, 1
    %p60 = scmp.ne.s32.totalorder %s55, %s57
    %p61 = scmp.eq.s32.totalorder %s9, 0
    %p62 = por %p60, %p61
    %p63 = scmp.ne.s32.totalorder %s55, %s57
    %p64 = scmp.eq.s32.totalorder %s14, 1
    %p65 = por %p63, %p64
    %p66 = scmp.ne.s32.totalorder %s57, %s58
    %p67 = scmp.eq.s32.totalorder %s14, 0
    %p68 = por %p66, %p67
    %p69 = scmp.ne.s32.totalorder %s57, %s58
    %p70 = scmp.eq.s32.totalorder %s15, 1
    %p71 = por %p69, %p70
    %p73 = scmp.ne.s32.totalorder %s58, %s72
    %p74 = scmp.eq.s32.totalorder %s15, 0
    %p75 = por %p73, %p74
    %s77 = sadd.s32 %s76, 1
    %p80 = scmp.eq.s32.totalorder %s9, 1
    %p81 = scmp.ne.s32.totalorder %s76, %s78
    %p82 = scmp.eq.s32.totalorder %s9, 0
    %p83 = por %p81, %p82
    %p84 = scmp.ne.s32.totalorder %s76, %s78
    %p85 = scmp.eq.s32.totalorder %s14, 1
    %p86 = por %p84, %p85
    %p87 = scmp.ne.s32.totalorder %s78, %s79
    %p88 = scmp.eq.s32.totalorder %s14, 0
    %p89 = por %p87, %p88
    %p90 = scmp.ne.s32.totalorder %s78, %s79
    %p91 = scmp.eq.s32.totalorder %s15, 1
    %p92 = por %p90, %p91
    %p94 = scmp.ne.s32.totalorder %s79, %s93
    %p95 = scmp.eq.s32.totalorder %s15, 0
    %p96 = por %p94, %p95
    %s97 = ssub.s32 %s16, %s28
    %s98 = ssub.s32 %s17, %s24
    %s99 = sor.u32 %s97, %s98
    %p100 = scmp.eq.s32.totalorder %s99, 0
    %s102 = sadd.s32 %s101, 1
    %s103 = scalar_select %p100, %s101, %s102
    %p106 = pneg %p100
    %p107 = scmp.eq.s32.totalorder %s9, 1
    %p108 = por %p106, %p107
    %p109 = scmp.ne.s32.totalorder %s101, %s104
    %p110 = scmp.eq.s32.totalorder %s9, 0
    %p111 = por %p109, %p110
    %p112 = scmp.ne.s32.totalorder %s101, %s104
    %p113 = scmp.eq.s32.totalorder %s14, 1
    %p114 = por %p112, %p113
    %p115 = scmp.ne.s32.totalorder %s104, %s105
    %p116 = scmp.eq.s32.totalorder %s14, 0
    %p117 = por %p115, %p116
    %p118 = scmp.ne.s32.totalorder %s104, %s105
    %p119 = scmp.eq.s32.totalorder %s15, 1
    %p120 = por %p118, %p119
    %p122 = scmp.ne.s32.totalorder %s105, %s121
    %p123 = scmp.eq.s32.totalorder %s15, 0
    %p124 = por %p122, %p123
    %p125 = scmp.le.s32.totalorder 1, %s9
    %p126 = scmp.lt.s32.totalorder %s9, 3
    %p127 = pnand %p125, %p126
    %p128 = pneg %p127
    // Predicated region
    $region9: #{fwd.5} parent=5 // pred_check
      _
    $region10: #{fwd.5} parent=5 // pred_check_branch
      %130 = sbr.rel (%p127) target = $region12
    $region11: #{fwd.5} parent=5 // pred_region
      %s131 = ssub.s32 %s9, 1
      // Predicated region
      $region13: #{fwd.5} parent=11 // pred_check
        %p132 = pneg %p68
      $region14: #{fwd.5} parent=11 // pred_check_branch
        %134 = sbr.rel (%p132) target = $region16
      $region15: #{fwd.5} parent=11 // pred_region
        _
      $region16: #{fwd.5} parent=11 // pred_fallthru
        _
      // Predicated region
      $region17: #{fwd.5} parent=11 // pred_check
        %p135 = pneg %p89
      $region18: #{fwd.5} parent=11 // pred_check_branch
        %137 = sbr.rel (%p135) target = $region20
      $region19: #{fwd.5} parent=11 // pred_region
        _
      $region20: #{fwd.5} parent=11 // pred_fallthru
        _
    $region12: #{fwd.5} parent=5 // pred_fallthru
      _
    %p138 = scmp.lt.s32.totalorder %s9, 2
    // Predicated region
    $region21: #{fwd.5} parent=5 // pred_check
      %p139 = pneg %p138
    $region22: #{fwd.5} parent=5 // pred_check_branch
      %141 = sbr.rel (%p139) target = $region24
    $region23: #{fwd.5} parent=5 // pred_region
      // Predicated region
      $region25: #{fwd.5} parent=23 // pred_check
        %p142 = pneg %p41
      $region26: #{fwd.5} parent=23 // pred_check_branch
        %144 = sbr.rel (%p142) target = $region28
      $region27: #{fwd.5} parent=23 // pred_region
        %p145 = scmp.lt.s32.totalorder %s16, 1
        %s146 = scalar_select %p145, %s16, 1
        %s147 = smul.addr %s146, 32
        %s148 = smul.addr %s147, 8
        %s149 = scalar_lea.vmem %s0, %s148
      $region28: #{fwd.5} parent=23 // pred_fallthru
        _
    $region24: #{fwd.5} parent=5 // pred_fallthru
      _
    %p150 = scmp.le.s32.totalorder 1, %s9
    %p151 = scmp.lt.s32.totalorder %s9, 3
    %p152 = pnand %p150, %p151
    %p153 = pneg %p152
    // Predicated region
    $region29: #{fwd.5} parent=5 // pred_check
      _
    $region30: #{fwd.5} parent=5 // pred_check_branch
      %155 = sbr.rel (%p152) target = $region32
    $region31: #{fwd.5} parent=5 // pred_region
      %s156 = ssub.s32 %s9, 1
      %p157 = scmp.lt.s32.totalorder %s18, 1
      %s158 = scalar_select %p157, %s18, 1
      %s159 = smul.addr %s158, 32
      %s160 = smul.addr %s159, 8
      %s161 = scalar_lea.vmem %s0, %s160
      %p162 = pneg %p47
      %p163 = pneg %p44
      %p164 = pneg %p68
      %p165 = pneg %p65
      %p166 = pneg %p89
      %p167 = pneg %p86
      %p168 = pneg %p117
      %p169 = pneg %p114
      %p170 = scmp.lt.s32.totalorder %s18, 1
      %s171 = scalar_select %p170, %s18, 1
      %p172 = scmp.lt.s32.totalorder %s19, 0
      %s173 = scalar_select %p172, %s19, 0
      %s174 = sadd.s32 %s173, %s171
      %s175 = smul.addr %s174, 8
      %s176 = scalar_lea.vmem %s3, %s175
      %p177 = scmp.lt.s32.totalorder %s18, 1
      %s178 = scalar_select %p177, %s18, 1
      %s179 = smul.addr %s178, 32
      %s180 = smul.addr %s179, 8
      %s181 = scalar_lea.vmem %s0, %s180
      %p182 = scmp.lt.s32.totalorder %s18, 1
      %s183 = scalar_select %p182, %s18, 1
      %p184 = scmp.lt.s32.totalorder %s19, 0
      %s185 = scalar_select %p184, %s19, 0
      %s186 = sadd.s32 %s185, %s183
      %s187 = smul.addr %s186, 8
      %s188 = scalar_lea.vmem %s3, %s187
      %s189 = smul.u32 %s19, 8
      %s190 = scalar_lea.vmem %s181, %s189
      %v191 = vld [vmem:[%s190] sm:$0xff]
      %v192 = vld [vmem:[%s190 + $0x10] sm:$0xff]
      %v193 = vld [vmem:[%s190 + $0x20] sm:$0xff]
      %v194 = vld [vmem:[%s190 + $0x30] sm:$0xff]
      %v195 = vcombine.low %v191, %v193
      %v196 = vcombine.high %v191, %v193
      %v198 = vunpack.c.l.s4 1983009808
      %v199 = vunpack.c.0.s8 %v198
      %v200 = vlaneseq
      %v201 = vshrl.u32 %v200, 7
      %v202 = vsub.s32 %v199, %v201
      %v203 = vrot.slane %v195, %v202
      %v205 = vunpack.c.l.s4 1983009808
      %v206 = vunpack.c.0.s8 %v205
      %v207 = vlaneseq
      %v208 = vshrl.u32 %v207, 7
      %v209 = vsub.s32 %v206, %v208
      %v210 = vrot.slane %v196, %v209
      %v211 = vcombine.low %v192, %v194
      %v212 = vcombine.high %v192, %v194
      %v214 = vunpack.c.l.s4 1983009808
      %v215 = vunpack.c.0.s8 %v214
      %v216 = vlaneseq
      %v217 = vshrl.u32 %v216, 7
      %v218 = vsub.s32 %v215, %v217
      %v219 = vrot.slane %v211, %v218
      %v221 = vunpack.c.l.s4 1983009808
      %v222 = vunpack.c.0.s8 %v221
      %v223 = vlaneseq
      %v224 = vshrl.u32 %v223, 7
      %v225 = vsub.s32 %v222, %v224
      %v226 = vrot.slane %v212, %v225
      %v227 = vcombine.low %v203, %v219
      %v228 = vcombine.high %v203, %v219
      %v230 = vunpack.c.l.s4 1934713408
      %v231 = vunpack.c.0.s8 %v230
      %v232 = vlaneseq
      %v233 = vshrl.u32 %v232, 7
      %v234 = vsub.s32 %v231, %v233
      %v235 = vrot.slane %v227, %v234
      %v237 = vunpack.c.l.s4 1934713408
      %v238 = vunpack.c.0.s8 %v237
      %v239 = vlaneseq
      %v240 = vshrl.u32 %v239, 7
      %v241 = vsub.s32 %v238, %v240
      %v242 = vrot.slane %v228, %v241
      %v243 = vcombine.low %v210, %v226
      %v244 = vcombine.high %v210, %v226
      %v246 = vunpack.c.l.s4 1934713408
      %v247 = vunpack.c.0.s8 %v246
      %v248 = vlaneseq
      %v249 = vshrl.u32 %v248, 7
      %v250 = vsub.s32 %v247, %v249
      %v251 = vrot.slane %v243, %v250
      %v253 = vunpack.c.l.s4 1934713408
      %v254 = vunpack.c.0.s8 %v253
      %v255 = vlaneseq
      %v256 = vshrl.u32 %v255, 7
      %v257 = vsub.s32 %v254, %v256
      %v258 = vrot.slane %v244, %v257
      %v259 = vcombine.high %v235, 0.0
      %v260 = vcombine.high %v242, 0.0
      %v261 = vcombine.high %v251, 0.0
      %v262 = vcombine.high %v258, 0.0
      %264 = vrot.lane.b32.xlu0 %v259, 8
      %v265 = vpop.permute.xlu0 %264
      %268 = vrot.lane.b32.xlu0 %v242, 16
      %v269 = vpop.permute.xlu0 %268
      %272 = vrot.lane.b32.xlu0 %v260, 24
      %v273 = vpop.permute.xlu0 %272
      %276 = vrot.lane.b32.xlu0 %v251, 32
      %v277 = vpop.permute.xlu0 %276
      %280 = vrot.lane.b32.xlu0 %v261, 40
      %v281 = vpop.permute.xlu0 %280
      %284 = vrot.lane.b32.xlu0 %v258, 48
      %v285 = vpop.permute.xlu0 %284
      %288 = vrot.lane.b32.xlu0 %v262, 56
      %v289 = vpop.permute.xlu0 %288
      %vm291 = vcmask 64512
      %v292 = vsel %vm291, %v235, %v265
      %vm293 = vcmask 130048
      %v294 = vsel %vm293, %v292, %v269
      %vm295 = vcmask 195584
      %v296 = vsel %vm295, %v294, %v273
      %vm297 = vcmask 261120
      %v298 = vsel %vm297, %v296, %v277
      %vm299 = vcmask 326656
      %v300 = vsel %vm299, %v298, %v281
      %vm301 = vcmask 392192
      %v302 = vsel %vm301, %v300, %v285
      %vm303 = vcmask 457728
      %v304 = vsel %vm303, %v302, %v289
      %v305 = vld [vmem:[%s1] sm:$0xff]
      %s306 = sadd.s32 %s189, 64
      %s307 = scalar_lea.vmem %s181, %s306
      %v308 = vld [vmem:[%s307] sm:$0xff]
      %v309 = vld [vmem:[%s307 + $0x10] sm:$0xff]
      %v310 = vld [vmem:[%s307 + $0x20] sm:$0xff]
      %v311 = vld [vmem:[%s307 + $0x30] sm:$0xff]
      %v312 = vcombine.low %v308, %v310
      %v313 = vcombine.high %v308, %v310
      %v315 = vunpack.c.l.s4 1983009808
      %v316 = vunpack.c.0.s8 %v315
      %v317 = vlaneseq
      %v318 = vshrl.u32 %v317, 7
      %v319 = vsub.s32 %v316, %v318
      %v320 = vrot.slane %v312, %v319
      %v322 = vunpack.c.l.s4 1983009808
      %v323 = vunpack.c.0.s8 %v322
      %v324 = vlaneseq
      %v325 = vshrl.u32 %v324, 7
      %v326 = vsub.s32 %v323, %v325
      %v327 = vrot.slane %v313, %v326
      %v328 = vcombine.low %v309, %v311
      %v329 = vcombine.high %v309, %v311
      %v331 = vunpack.c.l.s4 1983009808
      %v332 = vunpack.c.0.s8 %v331
      %v333 = vlaneseq
      %v334 = vshrl.u32 %v333, 7
      %v335 = vsub.s32 %v332, %v334
      %v336 = vrot.slane %v328, %v335
      %v338 = vunpack.c.l.s4 1983009808
      %v339 = vunpack.c.0.s8 %v338
      %v340 = vlaneseq
      %v341 = vshrl.u32 %v340, 7
      %v342 = vsub.s32 %v339, %v341
      %v343 = vrot.slane %v329, %v342
      %v344 = vcombine.low %v320, %v336
      %v345 = vcombine.high %v320, %v336
      %v347 = vunpack.c.l.s4 1934713408
      %v348 = vunpack.c.0.s8 %v347
      %v349 = vlaneseq
      %v350 = vshrl.u32 %v349, 7
      %v351 = vsub.s32 %v348, %v350
      %v352 = vrot.slane %v344, %v351
      %v354 = vunpack.c.l.s4 1934713408
      %v355 = vunpack.c.0.s8 %v354
      %v356 = vlaneseq
      %v357 = vshrl.u32 %v356, 7
      %v358 = vsub.s32 %v355, %v357
      %v359 = vrot.slane %v345, %v358
      %v360 = vcombine.low %v327, %v343
      %v361 = vcombine.high %v327, %v343
      %v363 = vunpack.c.l.s4 1934713408
      %v364 = vunpack.c.0.s8 %v363
      %v365 = vlaneseq
      %v366 = vshrl.u32 %v365, 7
      %v367 = vsub.s32 %v364, %v366
      %v368 = vrot.slane %v360, %v367
      %v370 = vunpack.c.l.s4 1934713408
      %v371 = vunpack.c.0.s8 %v370
      %v372 = vlaneseq
      %v373 = vshrl.u32 %v372, 7
      %v374 = vsub.s32 %v371, %v373
      %v375 = vrot.slane %v361, %v374
      %v376 = vcombine.high %v352, 0.0
      %v377 = vcombine.high %v359, 0.0
      %v378 = vcombine.high %v368, 0.0
      %v379 = vcombine.high %v375, 0.0
      %381 = vrot.lane.b32.xlu0 %v376, 8
      %v382 = vpop.permute.xlu0 %381
      %385 = vrot.lane.b32.xlu0 %v359, 16
      %v386 = vpop.permute.xlu0 %385
      %389 = vrot.lane.b32.xlu0 %v377, 24
      %v390 = vpop.permute.xlu0 %389
      %393 = vrot.lane.b32.xlu0 %v368, 32
      %v394 = vpop.permute.xlu0 %393
      %397 = vrot.lane.b32.xlu0 %v378, 40
      %v398 = vpop.permute.xlu0 %397
      %401 = vrot.lane.b32.xlu0 %v375, 48
      %v402 = vpop.permute.xlu0 %401
      %405 = vrot.lane.b32.xlu0 %v379, 56
      %v406 = vpop.permute.xlu0 %405
      %v408 = vsel %vm291, %v352, %v382
      %v409 = vsel %vm293, %v408, %v386
      %v410 = vsel %vm295, %v409, %v390
      %v411 = vsel %vm297, %v410, %v394
      %v412 = vsel %vm299, %v411, %v398
      %v413 = vsel %vm301, %v412, %v402
      %v414 = vsel %vm303, %v413, %v406
      %s415 = scalar_lea.vmem %s1, 8
      %v416 = vld [vmem:[%s415] sm:$0xff]
      %vm417 = vcmask 31744
      %v419 = vsel %vm417, %v416, 0
      %vm421 = vcmask 1043456
      %v423 = vsel %vm421, %v414, 0
      %425 = vmatprep.subr.mxu0 0.0
      %426 = vmatpush1.msra.mxu0 0.0
      %427 = vmatprep.subr.mxu0 0.0
      %428 = vmatpush1.msra.mxu0 0.0
      %429 = vmatprep.subr.mxu0 0.0
      %430 = vmatpush1.msra.mxu0 0.0
      %431 = vmatprep.subr.mxu0 0.0
      %432 = vmatpush1.msra.mxu0 0.0
      %433 = vmatprep.subr.mxu0 0.0
      %434 = vmatpush1.msra.mxu0 0.0
      %435 = vmatprep.subr.mxu0 0.0
      %436 = vmatpush1.msra.mxu0 0.0
      %437 = vmatprep.subr.mxu0 0.0
      %438 = vmatpush1.msra.mxu0 0.0
      %439 = vmatprep.subr.mxu0 0.0
      %440 = vmatpush1.msra.mxu0 0.0
      %441 = vmatprep.subr.mxu0 0.0
      %442 = vmatpush1.msra.mxu0 0.0
      %443 = vmatprep.subr.mxu0 0.0
      %444 = vmatpush1.msra.mxu0 0.0
      %445 = vmatprep.subr.mxu0 0.0
      %446 = vmatpush1.msra.mxu0 0.0
      %447 = vmatprep.subr.mxu0 0.0
      %448 = vmatpush1.msra.mxu0 0.0
      %449 = vmatprep.subr.mxu0 0.0
      %450 = vmatpush1.msra.mxu0 0.0
      %451 = vmatprep.subr.mxu0 0.0
      %452 = vmatpush1.msra.mxu0 0.0
      %453 = vmatprep.subr.mxu0 0.0
      %454 = vmatpush1.msra.mxu0 0.0
      %455 = vmatprep.subr.mxu0 0.0
      %456 = vmatpush1.msra.mxu0 %v423
      %457 = vmatprep.subr.mxu0 0.0
      %458 = vmatpush2.msra.mxu0 0.0
      %459 = vmatprep.subr.mxu0 0.0
      %460 = vmatpush2.msra.mxu0 0.0
      %461 = vmatprep.subr.mxu0 0.0
      %462 = vmatpush2.msra.mxu0 0.0
      %463 = vmatprep.subr.mxu0 0.0
      %464 = vmatpush2.msra.mxu0 0.0
      %465 = vmatprep.subr.mxu0 0.0
      %466 = vmatpush2.msra.mxu0 0.0
      %467 = vmatprep.subr.mxu0 0.0
      %468 = vmatpush2.msra.mxu0 0.0
      %469 = vmatprep.subr.mxu0 0.0
      %470 = vmatpush2.msra.mxu0 0.0
      %471 = vmatprep.subr.mxu0 0.0
      %472 = vmatpush2.msra.mxu0 0.0
      %473 = vmatprep.subr.mxu0 0.0
      %474 = vmatpush2.msra.mxu0 0.0
      %475 = vmatprep.subr.mxu0 0.0
      %476 = vmatpush2.msra.mxu0 0.0
      %477 = vmatprep.subr.mxu0 0.0
      %478 = vmatpush2.msra.mxu0 0.0
      %479 = vmatprep.subr.mxu0 0.0
      %480 = vmatpush2.msra.mxu0 0.0
      %481 = vmatprep.subr.mxu0 0.0
      %482 = vmatpush2.msra.mxu0 0.0
      %483 = vmatprep.subr.mxu0 0.0
      %484 = vmatpush2.msra.mxu0 0.0
      %485 = vmatprep.subr.mxu0 0.0
      %486 = vmatpush2.msra.mxu0 0.0
      %487 = vmatprep.subr.mxu0 0.0
      %488 = vmatpush2.msra.mxu0 0.0
      %489 = vmatprep.mubr.f32.mxu0 0.0
      %490 = vmatmul.mubr.f32.gmra.mxu0 %v419
      %v491 = vpop.f32.mrf.mxu0
      %v492 = vadd.f32 0.0, %v491
      %v493 = vpop.f32.mrf.mxu0
      %494 = vdwg.mxu0
      %v496 = vsel %vm417, %v305, 0
      %v499 = vsel %vm421, %v304, 0
      %501 = vmatprep.subr.mxu0 0.0
      %502 = vmatpush1.msra.mxu0 0.0
      %503 = vmatprep.subr.mxu0 0.0
      %504 = vmatpush1.msra.mxu0 0.0
      %505 = vmatprep.subr.mxu0 0.0
      %506 = vmatpush1.msra.mxu0 0.0
      %507 = vmatprep.subr.mxu0 0.0
      %508 = vmatpush1.msra.mxu0 0.0
      %509 = vmatprep.subr.mxu0 0.0
      %510 = vmatpush1.msra.mxu0 0.0
      %511 = vmatprep.subr.mxu0 0.0
      %512 = vmatpush1.msra.mxu0 0.0
      %513 = vmatprep.subr.mxu0 0.0
      %514 = vmatpush1.msra.mxu0 0.0
      %515 = vmatprep.subr.mxu0 0.0
      %516 = vmatpush1.msra.mxu0 0.0
      %517 = vmatprep.subr.mxu0 0.0
      %518 = vmatpush1.msra.mxu0 0.0
      %519 = vmatprep.subr.mxu0 0.0
      %520 = vmatpush1.msra.mxu0 0.0
      %521 = vmatprep.subr.mxu0 0.0
      %522 = vmatpush1.msra.mxu0 0.0
      %523 = vmatprep.subr.mxu0 0.0
      %524 = vmatpush1.msra.mxu0 0.0
      %525 = vmatprep.subr.mxu0 0.0
      %526 = vmatpush1.msra.mxu0 0.0
      %527 = vmatprep.subr.mxu0 0.0
      %528 = vmatpush1.msra.mxu0 0.0
      %529 = vmatprep.subr.mxu0 0.0
      %530 = vmatpush1.msra.mxu0 0.0
      %531 = vmatprep.subr.mxu0 0.0
      %532 = vmatpush1.msra.mxu0 %v499
      %533 = vmatprep.subr.mxu0 0.0
      %534 = vmatpush2.msra.mxu0 0.0
      %535 = vmatprep.subr.mxu0 0.0
      %536 = vmatpush2.msra.mxu0 0.0
      %537 = vmatprep.subr.mxu0 0.0
      %538 = vmatpush2.msra.mxu0 0.0
      %539 = vmatprep.subr.mxu0 0.0
      %540 = vmatpush2.msra.mxu0 0.0
      %541 = vmatprep.subr.mxu0 0.0
      %542 = vmatpush2.msra.mxu0 0.0
      %543 = vmatprep.subr.mxu0 0.0
      %544 = vmatpush2.msra.mxu0 0.0
      %545 = vmatprep.subr.mxu0 0.0
      %546 = vmatpush2.msra.mxu0 0.0
      %547 = vmatprep.subr.mxu0 0.0
      %548 = vmatpush2.msra.mxu0 0.0
      %549 = vmatprep.subr.mxu0 0.0
      %550 = vmatpush2.msra.mxu0 0.0
      %551 = vmatprep.subr.mxu0 0.0
      %552 = vmatpush2.msra.mxu0 0.0
      %553 = vmatprep.subr.mxu0 0.0
      %554 = vmatpush2.msra.mxu0 0.0
      %555 = vmatprep.subr.mxu0 0.0
      %556 = vmatpush2.msra.mxu0 0.0
      %557 = vmatprep.subr.mxu0 0.0
      %558 = vmatpush2.msra.mxu0 0.0
      %559 = vmatprep.subr.mxu0 0.0
      %560 = vmatpush2.msra.mxu0 0.0
      %561 = vmatprep.subr.mxu0 0.0
      %562 = vmatpush2.msra.mxu0 0.0
      %563 = vmatprep.subr.mxu0 0.0
      %564 = vmatpush2.msra.mxu0 0.0
      %565 = vmatprep.mubr.f32.mxu0 0.0
      %566 = vmatmul.mubr.f32.gmra.mxu0 %v496
      %v567 = vpop.f32.mrf.mxu0
      %v568 = vadd.f32 %v492, %v567
      %v569 = vpop.f32.mrf.mxu0
      %570 = vdwg.mxu0
      %v571 = vld [vmem:[%s190] sm:$0xff]
      %v572 = vld [vmem:[%s190 + $0x10] sm:$0xff]
      %v573 = vld [vmem:[%s190 + $0x20] sm:$0xff]
      %v574 = vld [vmem:[%s190 + $0x30] sm:$0xff]
      %579 = vrot.lane.b32.xlu0 %v571, 127
      %v580 = vpop.permute.xlu0 %579
      %581 = vrot.lane.b32.xlu0 %v572, 127
      %v582 = vpop.permute.xlu0 %581
      %583 = vrot.lane.b32.xlu0 %v573, 127
      %v584 = vpop.permute.xlu0 %583
      %585 = vrot.lane.b32.xlu0 %v574, 127
      %v586 = vpop.permute.xlu0 %585
      %v591 = vcombine.low %v580, %v584
      %v592 = vcombine.high %v580, %v584
      %v594 = vunpack.c.l.s4 1983009808
      %v595 = vunpack.c.0.s8 %v594
      %v596 = vlaneseq
      %v597 = vshrl.u32 %v596, 7
      %v598 = vsub.s32 %v595, %v597
      %v599 = vrot.slane %v591, %v598
      %v601 = vunpack.c.l.s4 1983009808
      %v602 = vunpack.c.0.s8 %v601
      %v603 = vlaneseq
      %v604 = vshrl.u32 %v603, 7
      %v605 = vsub.s32 %v602, %v604
      %v606 = vrot.slane %v592, %v605
      %v607 = vcombine.low %v582, %v586
      %v608 = vcombine.high %v582, %v586
      %v610 = vunpack.c.l.s4 1983009808
      %v611 = vunpack.c.0.s8 %v610
      %v612 = vlaneseq
      %v613 = vshrl.u32 %v612, 7
      %v614 = vsub.s32 %v611, %v613
      %v615 = vrot.slane %v607, %v614
      %v617 = vunpack.c.l.s4 1983009808
      %v618 = vunpack.c.0.s8 %v617
      %v619 = vlaneseq
      %v620 = vshrl.u32 %v619, 7
      %v621 = vsub.s32 %v618, %v620
      %v622 = vrot.slane %v608, %v621
      %v623 = vcombine.low %v599, %v615
      %v624 = vcombine.high %v599, %v615
      %v626 = vunpack.c.l.s4 1934713408
      %v627 = vunpack.c.0.s8 %v626
      %v628 = vlaneseq
      %v629 = vshrl.u32 %v628, 7
      %v630 = vsub.s32 %v627, %v629
      %v631 = vrot.slane %v623, %v630
      %v633 = vunpack.c.l.s4 1934713408
      %v634 = vunpack.c.0.s8 %v633
      %v635 = vlaneseq
      %v636 = vshrl.u32 %v635, 7
      %v637 = vsub.s32 %v634, %v636
      %v638 = vrot.slane %v624, %v637
      %v639 = vcombine.low %v606, %v622
      %v640 = vcombine.high %v606, %v622
      %v642 = vunpack.c.l.s4 1934713408
      %v643 = vunpack.c.0.s8 %v642
      %v644 = vlaneseq
      %v645 = vshrl.u32 %v644, 7
      %v646 = vsub.s32 %v643, %v645
      %v647 = vrot.slane %v639, %v646
      %v649 = vunpack.c.l.s4 1934713408
      %v650 = vunpack.c.0.s8 %v649
      %v651 = vlaneseq
      %v652 = vshrl.u32 %v651, 7
      %v653 = vsub.s32 %v650, %v652
      %v654 = vrot.slane %v640, %v653
      %v655 = vcombine.high %v631, 0.0
      %v656 = vcombine.high %v638, 0.0
      %v657 = vcombine.high %v647, 0.0
      %v658 = vcombine.high %v654, 0.0
      %660 = vrot.lane.b32.xlu0 %v655, 8
      %v661 = vpop.permute.xlu0 %660
      %664 = vrot.lane.b32.xlu0 %v638, 16
      %v665 = vpop.permute.xlu0 %664
      %668 = vrot.lane.b32.xlu0 %v656, 24
      %v669 = vpop.permute.xlu0 %668
      %672 = vrot.lane.b32.xlu0 %v647, 32
      %v673 = vpop.permute.xlu0 %672
      %676 = vrot.lane.b32.xlu0 %v657, 40
      %v677 = vpop.permute.xlu0 %676
      %680 = vrot.lane.b32.xlu0 %v654, 48
      %v681 = vpop.permute.xlu0 %680
      %684 = vrot.lane.b32.xlu0 %v658, 56
      %v685 = vpop.permute.xlu0 %684
      %v687 = vsel %vm291, %v631, %v661
      %v688 = vsel %vm293, %v687, %v665
      %v689 = vsel %vm295, %v688, %v669
      %v690 = vsel %vm297, %v689, %v673
      %v691 = vsel %vm299, %v690, %v677
      %v692 = vsel %vm301, %v691, %v681
      %v693 = vsel %vm303, %v692, %v685
      %s694 = scalar_lea.vmem %s1, 16
      %v695 = vld [vmem:[%s694] sm:$0xff]
      %v697 = vsel %vm417, %v695, 0
      %v700 = vsel %vm421, %v693, 0
      %702 = vmatprep.subr.mxu0 0.0
      %703 = vmatpush1.msra.mxu0 0.0
      %704 = vmatprep.subr.mxu0 0.0
      %705 = vmatpush1.msra.mxu0 0.0
      %706 = vmatprep.subr.mxu0 0.0
      %707 = vmatpush1.msra.mxu0 0.0
      %708 = vmatprep.subr.mxu0 0.0
      %709 = vmatpush1.msra.mxu0 0.0
      %710 = vmatprep.subr.mxu0 0.0
      %711 = vmatpush1.msra.mxu0 0.0
      %712 = vmatprep.subr.mxu0 0.0
      %713 = vmatpush1.msra.mxu0 0.0
      %714 = vmatprep.subr.mxu0 0.0
      %715 = vmatpush1.msra.mxu0 0.0
      %716 = vmatprep.subr.mxu0 0.0
      %717 = vmatpush1.msra.mxu0 0.0
      %718 = vmatprep.subr.mxu0 0.0
      %719 = vmatpush1.msra.mxu0 0.0
      %720 = vmatprep.subr.mxu0 0.0
      %721 = vmatpush1.msra.mxu0 0.0
      %722 = vmatprep.subr.mxu0 0.0
      %723 = vmatpush1.msra.mxu0 0.0
      %724 = vmatprep.subr.mxu0 0.0
      %725 = vmatpush1.msra.mxu0 0.0
      %726 = vmatprep.subr.mxu0 0.0
      %727 = vmatpush1.msra.mxu0 0.0
      %728 = vmatprep.subr.mxu0 0.0
      %729 = vmatpush1.msra.mxu0 0.0
      %730 = vmatprep.subr.mxu0 0.0
      %731 = vmatpush1.msra.mxu0 0.0
      %732 = vmatprep.subr.mxu0 0.0
      %733 = vmatpush1.msra.mxu0 %v700
      %734 = vmatprep.subr.mxu0 0.0
      %735 = vmatpush2.msra.mxu0 0.0
      %736 = vmatprep.subr.mxu0 0.0
      %737 = vmatpush2.msra.mxu0 0.0
      %738 = vmatprep.subr.mxu0 0.0
      %739 = vmatpush2.msra.mxu0 0.0
      %740 = vmatprep.subr.mxu0 0.0
      %741 = vmatpush2.msra.mxu0 0.0
      %742 = vmatprep.subr.mxu0 0.0
      %743 = vmatpush2.msra.mxu0 0.0
      %744 = vmatprep.subr.mxu0 0.0
      %745 = vmatpush2.msra.mxu0 0.0
      %746 = vmatprep.subr.mxu0 0.0
      %747 = vmatpush2.msra.mxu0 0.0
      %748 = vmatprep.subr.mxu0 0.0
      %749 = vmatpush2.msra.mxu0 0.0
      %750 = vmatprep.subr.mxu0 0.0
      %751 = vmatpush2.msra.mxu0 0.0
      %752 = vmatprep.subr.mxu0 0.0
      %753 = vmatpush2.msra.mxu0 0.0
      %754 = vmatprep.subr.mxu0 0.0
      %755 = vmatpush2.msra.mxu0 0.0
      %756 = vmatprep.subr.mxu0 0.0
      %757 = vmatpush2.msra.mxu0 0.0
      %758 = vmatprep.subr.mxu0 0.0
      %759 = vmatpush2.msra.mxu0 0.0
      %760 = vmatprep.subr.mxu0 0.0
      %761 = vmatpush2.msra.mxu0 0.0
      %762 = vmatprep.subr.mxu0 0.0
      %763 = vmatpush2.msra.mxu0 0.0
      %764 = vmatprep.subr.mxu0 0.0
      %765 = vmatpush2.msra.mxu0 0.0
      %766 = vmatprep.mubr.f32.mxu0 0.0
      %767 = vmatmul.mubr.f32.gmra.mxu0 %v697
      %v768 = vpop.f32.mrf.mxu0
      %v769 = vadd.f32 0.0, %v768
      %v770 = vpop.f32.mrf.mxu0
      %771 = vdwg.mxu0
      %v772 = vadd.f32 %v568, %v769
      %s773 = sadd.s32 %s189, 128
      %s774 = scalar_lea.vmem %s181, %s773
      %v775 = vld [vmem:[%s774] sm:$0xff]
      %v776 = vld [vmem:[%s774 + $0x10] sm:$0xff]
      %v777 = vld [vmem:[%s774 + $0x20] sm:$0xff]
      %v778 = vld [vmem:[%s774 + $0x30] sm:$0xff]
      %v779 = vcombine.low %v775, %v777
      %v780 = vcombine.high %v775, %v777
      %v782 = vunpack.c.l.s4 1983009808
      %v783 = vunpack.c.0.s8 %v782
      %v784 = vlaneseq
      %v785 = vshrl.u32 %v784, 7
      %v786 = vsub.s32 %v783, %v785
      %v787 = vrot.slane %v779, %v786
      %v789 = vunpack.c.l.s4 1983009808
      %v790 = vunpack.c.0.s8 %v789
      %v791 = vlaneseq
      %v792 = vshrl.u32 %v791, 7
      %v793 = vsub.s32 %v790, %v792
      %v794 = vrot.slane %v780, %v793
      %v795 = vcombine.low %v776, %v778
      %v796 = vcombine.high %v776, %v778
      %v798 = vunpack.c.l.s4 1983009808
      %v799 = vunpack.c.0.s8 %v798
      %v800 = vlaneseq
      %v801 = vshrl.u32 %v800, 7
      %v802 = vsub.s32 %v799, %v801
      %v803 = vrot.slane %v795, %v802
      %v805 = vunpack.c.l.s4 1983009808
      %v806 = vunpack.c.0.s8 %v805
      %v807 = vlaneseq
      %v808 = vshrl.u32 %v807, 7
      %v809 = vsub.s32 %v806, %v808
      %v810 = vrot.slane %v796, %v809
      %v811 = vcombine.low %v787, %v803
      %v812 = vcombine.high %v787, %v803
      %v814 = vunpack.c.l.s4 1934713408
      %v815 = vunpack.c.0.s8 %v814
      %v816 = vlaneseq
      %v817 = vshrl.u32 %v816, 7
      %v818 = vsub.s32 %v815, %v817
      %v819 = vrot.slane %v811, %v818
      %v821 = vunpack.c.l.s4 1934713408
      %v822 = vunpack.c.0.s8 %v821
      %v823 = vlaneseq
      %v824 = vshrl.u32 %v823, 7
      %v825 = vsub.s32 %v822, %v824
      %v826 = vrot.slane %v812, %v825
      %v827 = vcombine.low %v794, %v810
      %v828 = vcombine.high %v794, %v810
      %v830 = vunpack.c.l.s4 1934713408
      %v831 = vunpack.c.0.s8 %v830
      %v832 = vlaneseq
      %v833 = vshrl.u32 %v832, 7
      %v834 = vsub.s32 %v831, %v833
      %v835 = vrot.slane %v827, %v834
      %v837 = vunpack.c.l.s4 1934713408
      %v838 = vunpack.c.0.s8 %v837
      %v839 = vlaneseq
      %v840 = vshrl.u32 %v839, 7
      %v841 = vsub.s32 %v838, %v840
      %v842 = vrot.slane %v828, %v841
      %v843 = vcombine.high %v819, 0.0
      %v844 = vcombine.high %v826, 0.0
      %v845 = vcombine.high %v835, 0.0
      %v846 = vcombine.high %v842, 0.0
      %848 = vrot.lane.b32.xlu0 %v843, 8
      %v849 = vpop.permute.xlu0 %848
      %852 = vrot.lane.b32.xlu0 %v826, 16
      %v853 = vpop.permute.xlu0 %852
      %856 = vrot.lane.b32.xlu0 %v844, 24
      %v857 = vpop.permute.xlu0 %856
      %860 = vrot.lane.b32.xlu0 %v835, 32
      %v861 = vpop.permute.xlu0 %860
      %864 = vrot.lane.b32.xlu0 %v845, 40
      %v865 = vpop.permute.xlu0 %864
      %868 = vrot.lane.b32.xlu0 %v842, 48
      %v869 = vpop.permute.xlu0 %868
      %872 = vrot.lane.b32.xlu0 %v846, 56
      %v873 = vpop.permute.xlu0 %872
      %v875 = vsel %vm291, %v819, %v849
      %v876 = vsel %vm293, %v875, %v853
      %v877 = vsel %vm295, %v876, %v857
      %v878 = vsel %vm297, %v877, %v861
      %v879 = vsel %vm299, %v878, %v865
      %v880 = vsel %vm301, %v879, %v869
      %v881 = vsel %vm303, %v880, %v873
      %s882 = scalar_lea.vmem %s1, 24
      %v883 = vld [vmem:[%s882] sm:$0xff]
      %v885 = vsel %vm417, %v883, 0
      %v888 = vsel %vm421, %v881, 0
      %890 = vmatprep.subr.mxu0 0.0
      %891 = vmatpush1.msra.mxu0 0.0
      %892 = vmatprep.subr.mxu0 0.0
      %893 = vmatpush1.msra.mxu0 0.0
      %894 = vmatprep.subr.mxu0 0.0
      %895 = vmatpush1.msra.mxu0 0.0
      %896 = vmatprep.subr.mxu0 0.0
      %897 = vmatpush1.msra.mxu0 0.0
      %898 = vmatprep.subr.mxu0 0.0
      %899 = vmatpush1.msra.mxu0 0.0
      %900 = vmatprep.subr.mxu0 0.0
      %901 = vmatpush1.msra.mxu0 0.0
      %902 = vmatprep.subr.mxu0 0.0
      %903 = vmatpush1.msra.mxu0 0.0
      %904 = vmatprep.subr.mxu0 0.0
      %905 = vmatpush1.msra.mxu0 0.0
      %906 = vmatprep.subr.mxu0 0.0
      %907 = vmatpush1.msra.mxu0 0.0
      %908 = vmatprep.subr.mxu0 0.0
      %909 = vmatpush1.msra.mxu0 0.0
      %910 = vmatprep.subr.mxu0 0.0
      %911 = vmatpush1.msra.mxu0 0.0
      %912 = vmatprep.subr.mxu0 0.0
      %913 = vmatpush1.msra.mxu0 0.0
      %914 = vmatprep.subr.mxu0 0.0
      %915 = vmatpush1.msra.mxu0 0.0
      %916 = vmatprep.subr.mxu0 0.0
      %917 = vmatpush1.msra.mxu0 0.0
      %918 = vmatprep.subr.mxu0 0.0
      %919 = vmatpush1.msra.mxu0 0.0
      %920 = vmatprep.subr.mxu0 0.0
      %921 = vmatpush1.msra.mxu0 %v888
      %922 = vmatprep.subr.mxu0 0.0
      %923 = vmatpush2.msra.mxu0 0.0
      %924 = vmatprep.subr.mxu0 0.0
      %925 = vmatpush2.msra.mxu0 0.0
      %926 = vmatprep.subr.mxu0 0.0
      %927 = vmatpush2.msra.mxu0 0.0
      %928 = vmatprep.subr.mxu0 0.0
      %929 = vmatpush2.msra.mxu0 0.0
      %930 = vmatprep.subr.mxu0 0.0
      %931 = vmatpush2.msra.mxu0 0.0
      %932 = vmatprep.subr.mxu0 0.0
      %933 = vmatpush2.msra.mxu0 0.0
      %934 = vmatprep.subr.mxu0 0.0
      %935 = vmatpush2.msra.mxu0 0.0
      %936 = vmatprep.subr.mxu0 0.0
      %937 = vmatpush2.msra.mxu0 0.0
      %938 = vmatprep.subr.mxu0 0.0
      %939 = vmatpush2.msra.mxu0 0.0
      %940 = vmatprep.subr.mxu0 0.0
      %941 = vmatpush2.msra.mxu0 0.0
      %942 = vmatprep.subr.mxu0 0.0
      %943 = vmatpush2.msra.mxu0 0.0
      %944 = vmatprep.subr.mxu0 0.0
      %945 = vmatpush2.msra.mxu0 0.0
      %946 = vmatprep.subr.mxu0 0.0
      %947 = vmatpush2.msra.mxu0 0.0
      %948 = vmatprep.subr.mxu0 0.0
      %949 = vmatpush2.msra.mxu0 0.0
      %950 = vmatprep.subr.mxu0 0.0
      %951 = vmatpush2.msra.mxu0 0.0
      %952 = vmatprep.subr.mxu0 0.0
      %953 = vmatpush2.msra.mxu0 0.0
      %954 = vmatprep.mubr.f32.mxu0 0.0
      %955 = vmatmul.mubr.f32.gmra.mxu0 %v885
      %v956 = vpop.f32.mrf.mxu0
      %v957 = vadd.f32 0.0, %v956
      %v958 = vpop.f32.mrf.mxu0
      %959 = vdwg.mxu0
      %v960 = vadd.f32 %v772, %v957
      %s961 = sadd.s32 %s189, 192
      %s962 = scalar_lea.vmem %s181, %s961
      %v963 = vld [vmem:[%s962] sm:$0xff]
      %v964 = vld [vmem:[%s962 + $0x10] sm:$0xff]
      %v965 = vld [vmem:[%s962 + $0x20] sm:$0xff]
      %v966 = vld [vmem:[%s962 + $0x30] sm:$0xff]
      %v967 = vcombine.low %v963, %v965
      %v968 = vcombine.high %v963, %v965
      %v970 = vunpack.c.l.s4 1983009808
      %v971 = vunpack.c.0.s8 %v970
      %v972 = vlaneseq
      %v973 = vshrl.u32 %v972, 7
      %v974 = vsub.s32 %v971, %v973
      %v975 = vrot.slane %v967, %v974
      %v977 = vunpack.c.l.s4 1983009808
      %v978 = vunpack.c.0.s8 %v977
      %v979 = vlaneseq
      %v980 = vshrl.u32 %v979, 7
      %v981 = vsub.s32 %v978, %v980
      %v982 = vrot.slane %v968, %v981
      %v983 = vcombine.low %v964, %v966
      %v984 = vcombine.high %v964, %v966
      %v986 = vunpack.c.l.s4 1983009808
      %v987 = vunpack.c.0.s8 %v986
      %v988 = vlaneseq
      %v989 = vshrl.u32 %v988, 7
      %v990 = vsub.s32 %v987, %v989
      %v991 = vrot.slane %v983, %v990
      %v993 = vunpack.c.l.s4 1983009808
      %v994 = vunpack.c.0.s8 %v993
      %v995 = vlaneseq
      %v996 = vshrl.u32 %v995, 7
      %v997 = vsub.s32 %v994, %v996
      %v998 = vrot.slane %v984, %v997
      %v999 = vcombine.low %v975, %v991
      %v1000 = vcombine.high %v975, %v991
      %v1002 = vunpack.c.l.s4 1934713408
      %v1003 = vunpack.c.0.s8 %v1002
      %v1004 = vlaneseq
      %v1005 = vshrl.u32 %v1004, 7
      %v1006 = vsub.s32 %v1003, %v1005
      %v1007 = vrot.slane %v999, %v1006
      %v1009 = vunpack.c.l.s4 1934713408
      %v1010 = vunpack.c.0.s8 %v1009
      %v1011 = vlaneseq
      %v1012 = vshrl.u32 %v1011, 7
      %v1013 = vsub.s32 %v1010, %v1012
      %v1014 = vrot.slane %v1000, %v1013
      %v1015 = vcombine.low %v982, %v998
      %v1016 = vcombine.high %v982, %v998
      %v1018 = vunpack.c.l.s4 1934713408
      %v1019 = vunpack.c.0.s8 %v1018
      %v1020 = vlaneseq
      %v1021 = vshrl.u32 %v1020, 7
      %v1022 = vsub.s32 %v1019, %v1021
      %v1023 = vrot.slane %v1015, %v1022
      %v1025 = vunpack.c.l.s4 1934713408
      %v1026 = vunpack.c.0.s8 %v1025
      %v1027 = vlaneseq
      %v1028 = vshrl.u32 %v1027, 7
      %v1029 = vsub.s32 %v1026, %v1028
      %v1030 = vrot.slane %v1016, %v1029
      %v1031 = vcombine.high %v1007, 0.0
      %v1032 = vcombine.high %v1014, 0.0
      %v1033 = vcombine.high %v1023, 0.0
      %v1034 = vcombine.high %v1030, 0.0
      %1036 = vrot.lane.b32.xlu0 %v1031, 8
      %v1037 = vpop.permute.xlu0 %1036
      %1040 = vrot.lane.b32.xlu0 %v1014, 16
      %v1041 = vpop.permute.xlu0 %1040
      %1044 = vrot.lane.b32.xlu0 %v1032, 24
      %v1045 = vpop.permute.xlu0 %1044
      %1048 = vrot.lane.b32.xlu0 %v1023, 32
      %v1049 = vpop.permute.xlu0 %1048
      %1052 = vrot.lane.b32.xlu0 %v1033, 40
      %v1053 = vpop.permute.xlu0 %1052
      %1056 = vrot.lane.b32.xlu0 %v1030, 48
      %v1057 = vpop.permute.xlu0 %1056
      %1060 = vrot.lane.b32.xlu0 %v1034, 56
      %v1061 = vpop.permute.xlu0 %1060
      %v1063 = vsel %vm291, %v1007, %v1037
      %v1064 = vsel %vm293, %v1063, %v1041
      %v1065 = vsel %vm295, %v1064, %v1045
      %v1066 = vsel %vm297, %v1065, %v1049
      %v1067 = vsel %vm299, %v1066, %v1053
      %v1068 = vsel %vm301, %v1067, %v1057
      %v1069 = vsel %vm303, %v1068, %v1061
      %s1070 = scalar_lea.vmem %s1, 32
      %v1071 = vld [vmem:[%s1070] sm:$0xff]
      %v1073 = vsel %vm417, %v1071, 0
      %v1076 = vsel %vm421, %v1069, 0
      %1078 = vmatprep.subr.mxu0 0.0
      %1079 = vmatpush1.msra.mxu0 0.0
      %1080 = vmatprep.subr.mxu0 0.0
      %1081 = vmatpush1.msra.mxu0 0.0
      %1082 = vmatprep.subr.mxu0 0.0
      %1083 = vmatpush1.msra.mxu0 0.0
      %1084 = vmatprep.subr.mxu0 0.0
      %1085 = vmatpush1.msra.mxu0 0.0
      %1086 = vmatprep.subr.mxu0 0.0
      %1087 = vmatpush1.msra.mxu0 0.0
      %1088 = vmatprep.subr.mxu0 0.0
      %1089 = vmatpush1.msra.mxu0 0.0
      %1090 = vmatprep.subr.mxu0 0.0
      %1091 = vmatpush1.msra.mxu0 0.0
      %1092 = vmatprep.subr.mxu0 0.0
      %1093 = vmatpush1.msra.mxu0 0.0
      %1094 = vmatprep.subr.mxu0 0.0
      %1095 = vmatpush1.msra.mxu0 0.0
      %1096 = vmatprep.subr.mxu0 0.0
      %1097 = vmatpush1.msra.mxu0 0.0
      %1098 = vmatprep.subr.mxu0 0.0
      %1099 = vmatpush1.msra.mxu0 0.0
      %1100 = vmatprep.subr.mxu0 0.0
      %1101 = vmatpush1.msra.mxu0 0.0
      %1102 = vmatprep.subr.mxu0 0.0
      %1103 = vmatpush1.msra.mxu0 0.0
      %1104 = vmatprep.subr.mxu0 0.0
      %1105 = vmatpush1.msra.mxu0 0.0
      %1106 = vmatprep.subr.mxu0 0.0
      %1107 = vmatpush1.msra.mxu0 0.0
      %1108 = vmatprep.subr.mxu0 0.0
      %1109 = vmatpush1.msra.mxu0 %v1076
      %1110 = vmatprep.subr.mxu0 0.0
      %1111 = vmatpush2.msra.mxu0 0.0
      %1112 = vmatprep.subr.mxu0 0.0
      %1113 = vmatpush2.msra.mxu0 0.0
      %1114 = vmatprep.subr.mxu0 0.0
      %1115 = vmatpush2.msra.mxu0 0.0
      %1116 = vmatprep.subr.mxu0 0.0
      %1117 = vmatpush2.msra.mxu0 0.0
      %1118 = vmatprep.subr.mxu0 0.0
      %1119 = vmatpush2.msra.mxu0 0.0
      %1120 = vmatprep.subr.mxu0 0.0
      %1121 = vmatpush2.msra.mxu0 0.0
      %1122 = vmatprep.subr.mxu0 0.0
      %1123 = vmatpush2.msra.mxu0 0.0
      %1124 = vmatprep.subr.mxu0 0.0
      %1125 = vmatpush2.msra.mxu0 0.0
      %1126 = vmatprep.subr.mxu0 0.0
      %1127 = vmatpush2.msra.mxu0 0.0
      %1128 = vmatprep.subr.mxu0 0.0
      %1129 = vmatpush2.msra.mxu0 0.0
      %1130 = vmatprep.subr.mxu0 0.0
      %1131 = vmatpush2.msra.mxu0 0.0
      %1132 = vmatprep.subr.mxu0 0.0
      %1133 = vmatpush2.msra.mxu0 0.0
      %1134 = vmatprep.subr.mxu0 0.0
      %1135 = vmatpush2.msra.mxu0 0.0
      %1136 = vmatprep.subr.mxu0 0.0
      %1137 = vmatpush2.msra.mxu0 0.0
      %1138 = vmatprep.subr.mxu0 0.0
      %1139 = vmatpush2.msra.mxu0 0.0
      %1140 = vmatprep.subr.mxu0 0.0
      %1141 = vmatpush2.msra.mxu0 0.0
      %1142 = vmatprep.mubr.f32.mxu0 0.0
      %1143 = vmatmul.mubr.f32.gmra.mxu0 %v1073
      %v1144 = vpop.f32.mrf.mxu0
      %v1145 = vadd.f32 0.0, %v1144
      %v1146 = vpop.f32.mrf.mxu0
      %1147 = vdwg.mxu0
      %v1148 = vadd.f32 %v960, %v1145
      %v1149 = vld [vmem:[%s774] sm:$0xff]
      %v1150 = vld [vmem:[%s774 + $0x10] sm:$0xff]
      %v1151 = vld [vmem:[%s774 + $0x20] sm:$0xff]
      %v1152 = vld [vmem:[%s774 + $0x30] sm:$0xff]
      %1157 = vrot.lane.b32.xlu0 %v1149, 127
      %v1158 = vpop.permute.xlu0 %1157
      %1159 = vrot.lane.b32.xlu0 %v1150, 127
      %v1160 = vpop.permute.xlu0 %1159
      %1161 = vrot.lane.b32.xlu0 %v1151, 127
      %v1162 = vpop.permute.xlu0 %1161
      %1163 = vrot.lane.b32.xlu0 %v1152, 127
      %v1164 = vpop.permute.xlu0 %1163
      %v1169 = vcombine.low %v1158, %v1162
      %v1170 = vcombine.high %v1158, %v1162
      %v1172 = vunpack.c.l.s4 1983009808
      %v1173 = vunpack.c.0.s8 %v1172
      %v1174 = vlaneseq
      %v1175 = vshrl.u32 %v1174, 7
      %v1176 = vsub.s32 %v1173, %v1175
      %v1177 = vrot.slane %v1169, %v1176
      %v1179 = vunpack.c.l.s4 1983009808
      %v1180 = vunpack.c.0.s8 %v1179
      %v1181 = vlaneseq
      %v1182 = vshrl.u32 %v1181, 7
      %v1183 = vsub.s32 %v1180, %v1182
      %v1184 = vrot.slane %v1170, %v1183
      %v1185 = vcombine.low %v1160, %v1164
      %v1186 = vcombine.high %v1160, %v1164
      %v1188 = vunpack.c.l.s4 1983009808
      %v1189 = vunpack.c.0.s8 %v1188
      %v1190 = vlaneseq
      %v1191 = vshrl.u32 %v1190, 7
      %v1192 = vsub.s32 %v1189, %v1191
      %v1193 = vrot.slane %v1185, %v1192
      %v1195 = vunpack.c.l.s4 1983009808
      %v1196 = vunpack.c.0.s8 %v1195
      %v1197 = vlaneseq
      %v1198 = vshrl.u32 %v1197, 7
      %v1199 = vsub.s32 %v1196, %v1198
      %v1200 = vrot.slane %v1186, %v1199
      %v1201 = vcombine.low %v1177, %v1193
      %v1202 = vcombine.high %v1177, %v1193
      %v1204 = vunpack.c.l.s4 1934713408
      %v1205 = vunpack.c.0.s8 %v1204
      %v1206 = vlaneseq
      %v1207 = vshrl.u32 %v1206, 7
      %v1208 = vsub.s32 %v1205, %v1207
      %v1209 = vrot.slane %v1201, %v1208
      %v1211 = vunpack.c.l.s4 1934713408
      %v1212 = vunpack.c.0.s8 %v1211
      %v1213 = vlaneseq
      %v1214 = vshrl.u32 %v1213, 7
      %v1215 = vsub.s32 %v1212, %v1214
      %v1216 = vrot.slane %v1202, %v1215
      %v1217 = vcombine.low %v1184, %v1200
      %v1218 = vcombine.high %v1184, %v1200
      %v1220 = vunpack.c.l.s4 1934713408
      %v1221 = vunpack.c.0.s8 %v1220
      %v1222 = vlaneseq
      %v1223 = vshrl.u32 %v1222, 7
      %v1224 = vsub.s32 %v1221, %v1223
      %v1225 = vrot.slane %v1217, %v1224
      %v1227 = vunpack.c.l.s4 1934713408
      %v1228 = vunpack.c.0.s8 %v1227
      %v1229 = vlaneseq
      %v1230 = vshrl.u32 %v1229, 7
      %v1231 = vsub.s32 %v1228, %v1230
      %v1232 = vrot.slane %v1218, %v1231
      %v1233 = vcombine.high %v1209, 0.0
      %v1234 = vcombine.high %v1216, 0.0
      %v1235 = vcombine.high %v1225, 0.0
      %v1236 = vcombine.high %v1232, 0.0
      %1238 = vrot.lane.b32.xlu0 %v1233, 8
      %v1239 = vpop.permute.xlu0 %1238
      %1242 = vrot.lane.b32.xlu0 %v1216, 16
      %v1243 = vpop.permute.xlu0 %1242
      %1246 = vrot.lane.b32.xlu0 %v1234, 24
      %v1247 = vpop.permute.xlu0 %1246
      %1250 = vrot.lane.b32.xlu0 %v1225, 32
      %v1251 = vpop.permute.xlu0 %1250
      %1254 = vrot.lane.b32.xlu0 %v1235, 40
      %v1255 = vpop.permute.xlu0 %1254
      %1258 = vrot.lane.b32.xlu0 %v1232, 48
      %v1259 = vpop.permute.xlu0 %1258
      %1262 = vrot.lane.b32.xlu0 %v1236, 56
      %v1263 = vpop.permute.xlu0 %1262
      %v1265 = vsel %vm291, %v1209, %v1239
      %v1266 = vsel %vm293, %v1265, %v1243
      %v1267 = vsel %vm295, %v1266, %v1247
      %v1268 = vsel %vm297, %v1267, %v1251
      %v1269 = vsel %vm299, %v1268, %v1255
      %v1270 = vsel %vm301, %v1269, %v1259
      %v1271 = vsel %vm303, %v1270, %v1263
      %s1272 = scalar_lea.vmem %s1, 40
      %v1273 = vld [vmem:[%s1272] sm:$0xff]
      %v1275 = vsel %vm417, %v1273, 0
      %v1278 = vsel %vm421, %v1271, 0
      %1280 = vmatprep.subr.mxu0 0.0
      %1281 = vmatpush1.msra.mxu0 0.0
      %1282 = vmatprep.subr.mxu0 0.0
      %1283 = vmatpush1.msra.mxu0 0.0
      %1284 = vmatprep.subr.mxu0 0.0
      %1285 = vmatpush1.msra.mxu0 0.0
      %1286 = vmatprep.subr.mxu0 0.0
      %1287 = vmatpush1.msra.mxu0 0.0
      %1288 = vmatprep.subr.mxu0 0.0
      %1289 = vmatpush1.msra.mxu0 0.0
      %1290 = vmatprep.subr.mxu0 0.0
      %1291 = vmatpush1.msra.mxu0 0.0
      %1292 = vmatprep.subr.mxu0 0.0
      %1293 = vmatpush1.msra.mxu0 0.0
      %1294 = vmatprep.subr.mxu0 0.0
      %1295 = vmatpush1.msra.mxu0 0.0
      %1296 = vmatprep.subr.mxu0 0.0
      %1297 = vmatpush1.msra.mxu0 0.0
      %1298 = vmatprep.subr.mxu0 0.0
      %1299 = vmatpush1.msra.mxu0 0.0
      %1300 = vmatprep.subr.mxu0 0.0
      %1301 = vmatpush1.msra.mxu0 0.0
      %1302 = vmatprep.subr.mxu0 0.0
      %1303 = vmatpush1.msra.mxu0 0.0
      %1304 = vmatprep.subr.mxu0 0.0
      %1305 = vmatpush1.msra.mxu0 0.0
      %1306 = vmatprep.subr.mxu0 0.0
      %1307 = vmatpush1.msra.mxu0 0.0
      %1308 = vmatprep.subr.mxu0 0.0
      %1309 = vmatpush1.msra.mxu0 0.0
      %1310 = vmatprep.subr.mxu0 0.0
      %1311 = vmatpush1.msra.mxu0 %v1278
      %1312 = vmatprep.subr.mxu0 0.0
      %1313 = vmatpush2.msra.mxu0 0.0
      %1314 = vmatprep.subr.mxu0 0.0
      %1315 = vmatpush2.msra.mxu0 0.0
      %1316 = vmatprep.subr.mxu0 0.0
      %1317 = vmatpush2.msra.mxu0 0.0
      %1318 = vmatprep.subr.mxu0 0.0
      %1319 = vmatpush2.msra.mxu0 0.0
      %1320 = vmatprep.subr.mxu0 0.0
      %1321 = vmatpush2.msra.mxu0 0.0
      %1322 = vmatprep.subr.mxu0 0.0
      %1323 = vmatpush2.msra.mxu0 0.0
      %1324 = vmatprep.subr.mxu0 0.0
      %1325 = vmatpush2.msra.mxu0 0.0
      %1326 = vmatprep.subr.mxu0 0.0
      %1327 = vmatpush2.msra.mxu0 0.0
      %1328 = vmatprep.subr.mxu0 0.0
      %1329 = vmatpush2.msra.mxu0 0.0
      %1330 = vmatprep.subr.mxu0 0.0
      %1331 = vmatpush2.msra.mxu0 0.0
      %1332 = vmatprep.subr.mxu0 0.0
      %1333 = vmatpush2.msra.mxu0 0.0
      %1334 = vmatprep.subr.mxu0 0.0
      %1335 = vmatpush2.msra.mxu0 0.0
      %1336 = vmatprep.subr.mxu0 0.0
      %1337 = vmatpush2.msra.mxu0 0.0
      %1338 = vmatprep.subr.mxu0 0.0
      %1339 = vmatpush2.msra.mxu0 0.0
      %1340 = vmatprep.subr.mxu0 0.0
      %1341 = vmatpush2.msra.mxu0 0.0
      %1342 = vmatprep.subr.mxu0 0.0
      %1343 = vmatpush2.msra.mxu0 0.0
      %1344 = vmatprep.mubr.f32.mxu0 0.0
      %1345 = vmatmul.mubr.f32.gmra.mxu0 %v1275
      %v1346 = vpop.f32.mrf.mxu0
      %v1347 = vadd.f32 0.0, %v1346
      %v1348 = vpop.f32.mrf.mxu0
      %1349 = vdwg.mxu0
      %v1350 = vadd.f32 %v1148, %v1347
      %s1351 = sadd.s32 %s189, 1
      %s1352 = scalar_lea.vmem %s181, %s1351
      %v1353 = vld [vmem:[%s1352] sm:$0xff]
      %v1354 = vld [vmem:[%s1352 + $0x10] sm:$0xff]
      %v1355 = vld [vmem:[%s1352 + $0x20] sm:$0xff]
      %v1356 = vld [vmem:[%s1352 + $0x30] sm:$0xff]
      %v1357 = vcombine.low %v1353, %v1355
      %v1358 = vcombine.high %v1353, %v1355
      %v1360 = vunpack.c.l.s4 1983009808
      %v1361 = vunpack.c.0.s8 %v1360
      %v1362 = vlaneseq
      %v1363 = vshrl.u32 %v1362, 7
      %v1364 = vsub.s32 %v1361, %v1363
      %v1365 = vrot.slane %v1357, %v1364
      %v1367 = vunpack.c.l.s4 1983009808
      %v1368 = vunpack.c.0.s8 %v1367
      %v1369 = vlaneseq
      %v1370 = vshrl.u32 %v1369, 7
      %v1371 = vsub.s32 %v1368, %v1370
      %v1372 = vrot.slane %v1358, %v1371
      %v1373 = vcombine.low %v1354, %v1356
      %v1374 = vcombine.high %v1354, %v1356
      %v1376 = vunpack.c.l.s4 1983009808
      %v1377 = vunpack.c.0.s8 %v1376
      %v1378 = vlaneseq
      %v1379 = vshrl.u32 %v1378, 7
      %v1380 = vsub.s32 %v1377, %v1379
      %v1381 = vrot.slane %v1373, %v1380
      %v1383 = vunpack.c.l.s4 1983009808
      %v1384 = vunpack.c.0.s8 %v1383
      %v1385 = vlaneseq
      %v1386 = vshrl.u32 %v1385, 7
      %v1387 = vsub.s32 %v1384, %v1386
      %v1388 = vrot.slane %v1374, %v1387
      %v1389 = vcombine.low %v1365, %v1381
      %v1390 = vcombine.high %v1365, %v1381
      %v1392 = vunpack.c.l.s4 1934713408
      %v1393 = vunpack.c.0.s8 %v1392
      %v1394 = vlaneseq
      %v1395 = vshrl.u32 %v1394, 7
      %v1396 = vsub.s32 %v1393, %v1395
      %v1397 = vrot.slane %v1389, %v1396
      %v1399 = vunpack.c.l.s4 1934713408
      %v1400 = vunpack.c.0.s8 %v1399
      %v1401 = vlaneseq
      %v1402 = vshrl.u32 %v1401, 7
      %v1403 = vsub.s32 %v1400, %v1402
      %v1404 = vrot.slane %v1390, %v1403
      %v1405 = vcombine.low %v1372, %v1388
      %v1406 = vcombine.high %v1372, %v1388
      %v1408 = vunpack.c.l.s4 1934713408
      %v1409 = vunpack.c.0.s8 %v1408
      %v1410 = vlaneseq
      %v1411 = vshrl.u32 %v1410, 7
      %v1412 = vsub.s32 %v1409, %v1411
      %v1413 = vrot.slane %v1405, %v1412
      %v1415 = vunpack.c.l.s4 1934713408
      %v1416 = vunpack.c.0.s8 %v1415
      %v1417 = vlaneseq
      %v1418 = vshrl.u32 %v1417, 7
      %v1419 = vsub.s32 %v1416, %v1418
      %v1420 = vrot.slane %v1406, %v1419
      %v1421 = vcombine.high %v1397, 0.0
      %v1422 = vcombine.high %v1404, 0.0
      %v1423 = vcombine.high %v1413, 0.0
      %v1424 = vcombine.high %v1420, 0.0
      %1426 = vrot.lane.b32.xlu0 %v1421, 8
      %v1427 = vpop.permute.xlu0 %1426
      %1430 = vrot.lane.b32.xlu0 %v1404, 16
      %v1431 = vpop.permute.xlu0 %1430
      %1434 = vrot.lane.b32.xlu0 %v1422, 24
      %v1435 = vpop.permute.xlu0 %1434
      %1438 = vrot.lane.b32.xlu0 %v1413, 32
      %v1439 = vpop.permute.xlu0 %1438
      %1442 = vrot.lane.b32.xlu0 %v1423, 40
      %v1443 = vpop.permute.xlu0 %1442
      %1446 = vrot.lane.b32.xlu0 %v1420, 48
      %v1447 = vpop.permute.xlu0 %1446
      %1450 = vrot.lane.b32.xlu0 %v1424, 56
      %v1451 = vpop.permute.xlu0 %1450
      %v1453 = vsel %vm291, %v1397, %v1427
      %v1454 = vsel %vm293, %v1453, %v1431
      %v1455 = vsel %vm295, %v1454, %v1435
      %v1456 = vsel %vm297, %v1455, %v1439
      %v1457 = vsel %vm299, %v1456, %v1443
      %v1458 = vsel %vm301, %v1457, %v1447
      %v1459 = vsel %vm303, %v1458, %v1451
      %s1460 = scalar_lea.vmem %s1, 48
      %v1461 = vld [vmem:[%s1460] sm:$0xff]
      %v1463 = vsel %vm417, %v1461, 0
      %v1466 = vsel %vm421, %v1459, 0
      %1468 = vmatprep.subr.mxu0 0.0
      %1469 = vmatpush1.msra.mxu0 0.0
      %1470 = vmatprep.subr.mxu0 0.0
      %1471 = vmatpush1.msra.mxu0 0.0
      %1472 = vmatprep.subr.mxu0 0.0
      %1473 = vmatpush1.msra.mxu0 0.0
      %1474 = vmatprep.subr.mxu0 0.0
      %1475 = vmatpush1.msra.mxu0 0.0
      %1476 = vmatprep.subr.mxu0 0.0
      %1477 = vmatpush1.msra.mxu0 0.0
      %1478 = vmatprep.subr.mxu0 0.0
      %1479 = vmatpush1.msra.mxu0 0.0
      %1480 = vmatprep.subr.mxu0 0.0
      %1481 = vmatpush1.msra.mxu0 0.0
      %1482 = vmatprep.subr.mxu0 0.0
      %1483 = vmatpush1.msra.mxu0 0.0
      %1484 = vmatprep.subr.mxu0 0.0
      %1485 = vmatpush1.msra.mxu0 0.0
      %1486 = vmatprep.subr.mxu0 0.0
      %1487 = vmatpush1.msra.mxu0 0.0
      %1488 = vmatprep.subr.mxu0 0.0
      %1489 = vmatpush1.msra.mxu0 0.0
      %1490 = vmatprep.subr.mxu0 0.0
      %1491 = vmatpush1.msra.mxu0 0.0
      %1492 = vmatprep.subr.mxu0 0.0
      %1493 = vmatpush1.msra.mxu0 0.0
      %1494 = vmatprep.subr.mxu0 0.0
      %1495 = vmatpush1.msra.mxu0 0.0
      %1496 = vmatprep.subr.mxu0 0.0
      %1497 = vmatpush1.msra.mxu0 0.0
      %1498 = vmatprep.subr.mxu0 0.0
      %1499 = vmatpush1.msra.mxu0 %v1466
      %1500 = vmatprep.subr.mxu0 0.0
      %1501 = vmatpush2.msra.mxu0 0.0
      %1502 = vmatprep.subr.mxu0 0.0
      %1503 = vmatpush2.msra.mxu0 0.0
      %1504 = vmatprep.subr.mxu0 0.0
      %1505 = vmatpush2.msra.mxu0 0.0
      %1506 = vmatprep.subr.mxu0 0.0
      %1507 = vmatpush2.msra.mxu0 0.0
      %1508 = vmatprep.subr.mxu0 0.0
      %1509 = vmatpush2.msra.mxu0 0.0
      %1510 = vmatprep.subr.mxu0 0.0
      %1511 = vmatpush2.msra.mxu0 0.0
      %1512 = vmatprep.subr.mxu0 0.0
      %1513 = vmatpush2.msra.mxu0 0.0
      %1514 = vmatprep.subr.mxu0 0.0
      %1515 = vmatpush2.msra.mxu0 0.0
      %1516 = vmatprep.subr.mxu0 0.0
      %1517 = vmatpush2.msra.mxu0 0.0
      %1518 = vmatprep.subr.mxu0 0.0
      %1519 = vmatpush2.msra.mxu0 0.0
      %1520 = vmatprep.subr.mxu0 0.0
      %1521 = vmatpush2.msra.mxu0 0.0
      %1522 = vmatprep.subr.mxu0 0.0
      %1523 = vmatpush2.msra.mxu0 0.0
      %1524 = vmatprep.subr.mxu0 0.0
      %1525 = vmatpush2.msra.mxu0 0.0
      %1526 = vmatprep.subr.mxu0 0.0
      %1527 = vmatpush2.msra.mxu0 0.0
      %1528 = vmatprep.subr.mxu0 0.0
      %1529 = vmatpush2.msra.mxu0 0.0
      %1530 = vmatprep.subr.mxu0 0.0
      %1531 = vmatpush2.msra.mxu0 0.0
      %1532 = vmatprep.mubr.f32.mxu0 0.0
      %1533 = vmatmul.mubr.f32.gmra.mxu0 %v1463
      %v1534 = vpop.f32.mrf.mxu0
      %v1535 = vadd.f32 0.0, %v1534
      %v1536 = vpop.f32.mrf.mxu0
      %1537 = vdwg.mxu0
      %v1538 = vadd.f32 %v1350, %v1535
      %s1539 = sadd.s32 %s1351, 64
      %s1540 = scalar_lea.vmem %s181, %s1539
      %v1541 = vld [vmem:[%s1540] sm:$0xff]
      %v1542 = vld [vmem:[%s1540 + $0x10] sm:$0xff]
      %v1543 = vld [vmem:[%s1540 + $0x20] sm:$0xff]
      %v1544 = vld [vmem:[%s1540 + $0x30] sm:$0xff]
      %v1545 = vcombine.low %v1541, %v1543
      %v1546 = vcombine.high %v1541, %v1543
      %v1548 = vunpack.c.l.s4 1983009808
      %v1549 = vunpack.c.0.s8 %v1548
      %v1550 = vlaneseq
      %v1551 = vshrl.u32 %v1550, 7
      %v1552 = vsub.s32 %v1549, %v1551
      %v1553 = vrot.slane %v1545, %v1552
      %v1555 = vunpack.c.l.s4 1983009808
      %v1556 = vunpack.c.0.s8 %v1555
      %v1557 = vlaneseq
      %v1558 = vshrl.u32 %v1557, 7
      %v1559 = vsub.s32 %v1556, %v1558
      %v1560 = vrot.slane %v1546, %v1559
      %v1561 = vcombine.low %v1542, %v1544
      %v1562 = vcombine.high %v1542, %v1544
      %v1564 = vunpack.c.l.s4 1983009808
      %v1565 = vunpack.c.0.s8 %v1564
      %v1566 = vlaneseq
      %v1567 = vshrl.u32 %v1566, 7
      %v1568 = vsub.s32 %v1565, %v1567
      %v1569 = vrot.slane %v1561, %v1568
      %v1571 = vunpack.c.l.s4 1983009808
      %v1572 = vunpack.c.0.s8 %v1571
      %v1573 = vlaneseq
      %v1574 = vshrl.u32 %v1573, 7
      %v1575 = vsub.s32 %v1572, %v1574
      %v1576 = vrot.slane %v1562, %v1575
      %v1577 = vcombine.low %v1553, %v1569
      %v1578 = vcombine.high %v1553, %v1569
      %v1580 = vunpack.c.l.s4 1934713408
      %v1581 = vunpack.c.0.s8 %v1580
      %v1582 = vlaneseq
      %v1583 = vshrl.u32 %v1582, 7
      %v1584 = vsub.s32 %v1581, %v1583
      %v1585 = vrot.slane %v1577, %v1584
      %v1587 = vunpack.c.l.s4 1934713408
      %v1588 = vunpack.c.0.s8 %v1587
      %v1589 = vlaneseq
      %v1590 = vshrl.u32 %v1589, 7
      %v1591 = vsub.s32 %v1588, %v1590
      %v1592 = vrot.slane %v1578, %v1591
      %v1593 = vcombine.low %v1560, %v1576
      %v1594 = vcombine.high %v1560, %v1576
      %v1596 = vunpack.c.l.s4 1934713408
      %v1597 = vunpack.c.0.s8 %v1596
      %v1598 = vlaneseq
      %v1599 = vshrl.u32 %v1598, 7
      %v1600 = vsub.s32 %v1597, %v1599
      %v1601 = vrot.slane %v1593, %v1600
      %v1603 = vunpack.c.l.s4 1934713408
      %v1604 = vunpack.c.0.s8 %v1603
      %v1605 = vlaneseq
      %v1606 = vshrl.u32 %v1605, 7
      %v1607 = vsub.s32 %v1604, %v1606
      %v1608 = vrot.slane %v1594, %v1607
      %v1609 = vcombine.high %v1585, 0.0
      %v1610 = vcombine.high %v1592, 0.0
      %v1611 = vcombine.high %v1601, 0.0
      %v1612 = vcombine.high %v1608, 0.0
      %1614 = vrot.lane.b32.xlu0 %v1609, 8
      %v1615 = vpop.permute.xlu0 %1614
      %1618 = vrot.lane.b32.xlu0 %v1592, 16
      %v1619 = vpop.permute.xlu0 %1618
      %1622 = vrot.lane.b32.xlu0 %v1610, 24
      %v1623 = vpop.permute.xlu0 %1622
      %1626 = vrot.lane.b32.xlu0 %v1601, 32
      %v1627 = vpop.permute.xlu0 %1626
      %1630 = vrot.lane.b32.xlu0 %v1611, 40
      %v1631 = vpop.permute.xlu0 %1630
      %1634 = vrot.lane.b32.xlu0 %v1608, 48
      %v1635 = vpop.permute.xlu0 %1634
      %1638 = vrot.lane.b32.xlu0 %v1612, 56
      %v1639 = vpop.permute.xlu0 %1638
      %v1641 = vsel %vm291, %v1585, %v1615
      %v1642 = vsel %vm293, %v1641, %v1619
      %v1643 = vsel %vm295, %v1642, %v1623
      %v1644 = vsel %vm297, %v1643, %v1627
      %v1645 = vsel %vm299, %v1644, %v1631
      %v1646 = vsel %vm301, %v1645, %v1635
      %v1647 = vsel %vm303, %v1646, %v1639
      %s1648 = scalar_lea.vmem %s1, 56
      %v1649 = vld [vmem:[%s1648] sm:$0xff]
      %v1651 = vsel %vm417, %v1649, 0
      %v1654 = vsel %vm421, %v1647, 0
      %1656 = vmatprep.subr.mxu0 0.0
      %1657 = vmatpush1.msra.mxu0 0.0
      %1658 = vmatprep.subr.mxu0 0.0
      %1659 = vmatpush1.msra.mxu0 0.0
      %1660 = vmatprep.subr.mxu0 0.0
      %1661 = vmatpush1.msra.mxu0 0.0
      %1662 = vmatprep.subr.mxu0 0.0
      %1663 = vmatpush1.msra.mxu0 0.0
      %1664 = vmatprep.subr.mxu0 0.0
      %1665 = vmatpush1.msra.mxu0 0.0
      %1666 = vmatprep.subr.mxu0 0.0
      %1667 = vmatpush1.msra.mxu0 0.0
      %1668 = vmatprep.subr.mxu0 0.0
      %1669 = vmatpush1.msra.mxu0 0.0
      %1670 = vmatprep.subr.mxu0 0.0
      %1671 = vmatpush1.msra.mxu0 0.0
      %1672 = vmatprep.subr.mxu0 0.0
      %1673 = vmatpush1.msra.mxu0 0.0
      %1674 = vmatprep.subr.mxu0 0.0
      %1675 = vmatpush1.msra.mxu0 0.0
      %1676 = vmatprep.subr.mxu0 0.0
      %1677 = vmatpush1.msra.mxu0 0.0
      %1678 = vmatprep.subr.mxu0 0.0
      %1679 = vmatpush1.msra.mxu0 0.0
      %1680 = vmatprep.subr.mxu0 0.0
      %1681 = vmatpush1.msra.mxu0 0.0
      %1682 = vmatprep.subr.mxu0 0.0
      %1683 = vmatpush1.msra.mxu0 0.0
      %1684 = vmatprep.subr.mxu0 0.0
      %1685 = vmatpush1.msra.mxu0 0.0
      %1686 = vmatprep.subr.mxu0 0.0
      %1687 = vmatpush1.msra.mxu0 %v1654
      %1688 = vmatprep.subr.mxu0 0.0
      %1689 = vmatpush2.msra.mxu0 0.0
      %1690 = vmatprep.subr.mxu0 0.0
      %1691 = vmatpush2.msra.mxu0 0.0
      %1692 = vmatprep.subr.mxu0 0.0
      %1693 = vmatpush2.msra.mxu0 0.0
      %1694 = vmatprep.subr.mxu0 0.0
      %1695 = vmatpush2.msra.mxu0 0.0
      %1696 = vmatprep.subr.mxu0 0.0
      %1697 = vmatpush2.msra.mxu0 0.0
      %1698 = vmatprep.subr.mxu0 0.0
      %1699 = vmatpush2.msra.mxu0 0.0
      %1700 = vmatprep.subr.mxu0 0.0
      %1701 = vmatpush2.msra.mxu0 0.0
      %1702 = vmatprep.subr.mxu0 0.0
      %1703 = vmatpush2.msra.mxu0 0.0
      %1704 = vmatprep.subr.mxu0 0.0
      %1705 = vmatpush2.msra.mxu0 0.0
      %1706 = vmatprep.subr.mxu0 0.0
      %1707 = vmatpush2.msra.mxu0 0.0
      %1708 = vmatprep.subr.mxu0 0.0
      %1709 = vmatpush2.msra.mxu0 0.0
      %1710 = vmatprep.subr.mxu0 0.0
      %1711 = vmatpush2.msra.mxu0 0.0
      %1712 = vmatprep.subr.mxu0 0.0
      %1713 = vmatpush2.msra.mxu0 0.0
      %1714 = vmatprep.subr.mxu0 0.0
      %1715 = vmatpush2.msra.mxu0 0.0
      %1716 = vmatprep.subr.mxu0 0.0
      %1717 = vmatpush2.msra.mxu0 0.0
      %1718 = vmatprep.subr.mxu0 0.0
      %1719 = vmatpush2.msra.mxu0 0.0
      %1720 = vmatprep.mubr.f32.mxu0 0.0
      %1721 = vmatmul.mubr.f32.gmra.mxu0 %v1651
      %v1722 = vpop.f32.mrf.mxu0
      %v1723 = vadd.f32 0.0, %v1722
      %v1724 = vpop.f32.mrf.mxu0
      %1725 = vdwg.mxu0
      %v1726 = vadd.f32 %v1538, %v1723
      %v1727 = vld [vmem:[%s1352] sm:$0xff]
      %v1728 = vld [vmem:[%s1352 + $0x10] sm:$0xff]
      %v1729 = vld [vmem:[%s1352 + $0x20] sm:$0xff]
      %v1730 = vld [vmem:[%s1352 + $0x30] sm:$0xff]
      %1735 = vrot.lane.b32.xlu0 %v1727, 127
      %v1736 = vpop.permute.xlu0 %1735
      %1737 = vrot.lane.b32.xlu0 %v1728, 127
      %v1738 = vpop.permute.xlu0 %1737
      %1739 = vrot.lane.b32.xlu0 %v1729, 127
      %v1740 = vpop.permute.xlu0 %1739
      %1741 = vrot.lane.b32.xlu0 %v1730, 127
      %v1742 = vpop.permute.xlu0 %1741
      %v1747 = vcombine.low %v1736, %v1740
      %v1748 = vcombine.high %v1736, %v1740
      %v1750 = vunpack.c.l.s4 1983009808
      %v1751 = vunpack.c.0.s8 %v1750
      %v1752 = vlaneseq
      %v1753 = vshrl.u32 %v1752, 7
      %v1754 = vsub.s32 %v1751, %v1753
      %v1755 = vrot.slane %v1747, %v1754
      %v1757 = vunpack.c.l.s4 1983009808
      %v1758 = vunpack.c.0.s8 %v1757
      %v1759 = vlaneseq
      %v1760 = vshrl.u32 %v1759, 7
      %v1761 = vsub.s32 %v1758, %v1760
      %v1762 = vrot.slane %v1748, %v1761
      %v1763 = vcombine.low %v1738, %v1742
      %v1764 = vcombine.high %v1738, %v1742
      %v1766 = vunpack.c.l.s4 1983009808
      %v1767 = vunpack.c.0.s8 %v1766
      %v1768 = vlaneseq
      %v1769 = vshrl.u32 %v1768, 7
      %v1770 = vsub.s32 %v1767, %v1769
      %v1771 = vrot.slane %v1763, %v1770
      %v1773 = vunpack.c.l.s4 1983009808
      %v1774 = vunpack.c.0.s8 %v1773
      %v1775 = vlaneseq
      %v1776 = vshrl.u32 %v1775, 7
      %v1777 = vsub.s32 %v1774, %v1776
      %v1778 = vrot.slane %v1764, %v1777
      %v1779 = vcombine.low %v1755, %v1771
      %v1780 = vcombine.high %v1755, %v1771
      %v1782 = vunpack.c.l.s4 1934713408
      %v1783 = vunpack.c.0.s8 %v1782
      %v1784 = vlaneseq
      %v1785 = vshrl.u32 %v1784, 7
      %v1786 = vsub.s32 %v1783, %v1785
      %v1787 = vrot.slane %v1779, %v1786
      %v1789 = vunpack.c.l.s4 1934713408
      %v1790 = vunpack.c.0.s8 %v1789
      %v1791 = vlaneseq
      %v1792 = vshrl.u32 %v1791, 7
      %v1793 = vsub.s32 %v1790, %v1792
      %v1794 = vrot.slane %v1780, %v1793
      %v1795 = vcombine.low %v1762, %v1778
      %v1796 = vcombine.high %v1762, %v1778
      %v1798 = vunpack.c.l.s4 1934713408
      %v1799 = vunpack.c.0.s8 %v1798
      %v1800 = vlaneseq
      %v1801 = vshrl.u32 %v1800, 7
      %v1802 = vsub.s32 %v1799, %v1801
      %v1803 = vrot.slane %v1795, %v1802
      %v1805 = vunpack.c.l.s4 1934713408
      %v1806 = vunpack.c.0.s8 %v1805
      %v1807 = vlaneseq
      %v1808 = vshrl.u32 %v1807, 7
      %v1809 = vsub.s32 %v1806, %v1808
      %v1810 = vrot.slane %v1796, %v1809
      %v1811 = vcombine.high %v1787, 0.0
      %v1812 = vcombine.high %v1794, 0.0
      %v1813 = vcombine.high %v1803, 0.0
      %v1814 = vcombine.high %v1810, 0.0
      %1816 = vrot.lane.b32.xlu0 %v1811, 8
      %v1817 = vpop.permute.xlu0 %1816
      %1820 = vrot.lane.b32.xlu0 %v1794, 16
      %v1821 = vpop.permute.xlu0 %1820
      %1824 = vrot.lane.b32.xlu0 %v1812, 24
      %v1825 = vpop.permute.xlu0 %1824
      %1828 = vrot.lane.b32.xlu0 %v1803, 32
      %v1829 = vpop.permute.xlu0 %1828
      %1832 = vrot.lane.b32.xlu0 %v1813, 40
      %v1833 = vpop.permute.xlu0 %1832
      %1836 = vrot.lane.b32.xlu0 %v1810, 48
      %v1837 = vpop.permute.xlu0 %1836
      %1840 = vrot.lane.b32.xlu0 %v1814, 56
      %v1841 = vpop.permute.xlu0 %1840
      %v1843 = vsel %vm291, %v1787, %v1817
      %v1844 = vsel %vm293, %v1843, %v1821
      %v1845 = vsel %vm295, %v1844, %v1825
      %v1846 = vsel %vm297, %v1845, %v1829
      %v1847 = vsel %vm299, %v1846, %v1833
      %v1848 = vsel %vm301, %v1847, %v1837
      %v1849 = vsel %vm303, %v1848, %v1841
      %s1850 = scalar_lea.vmem %s1, 64
      %v1851 = vld [vmem:[%s1850] sm:$0xff]
      %v1853 = vsel %vm417, %v1851, 0
      %v1856 = vsel %vm421, %v1849, 0
      %1858 = vmatprep.subr.mxu0 0.0
      %1859 = vmatpush1.msra.mxu0 0.0
      %1860 = vmatprep.subr.mxu0 0.0
      %1861 = vmatpush1.msra.mxu0 0.0
      %1862 = vmatprep.subr.mxu0 0.0
      %1863 = vmatpush1.msra.mxu0 0.0
      %1864 = vmatprep.subr.mxu0 0.0
      %1865 = vmatpush1.msra.mxu0 0.0
      %1866 = vmatprep.subr.mxu0 0.0
      %1867 = vmatpush1.msra.mxu0 0.0
      %1868 = vmatprep.subr.mxu0 0.0
      %1869 = vmatpush1.msra.mxu0 0.0
      %1870 = vmatprep.subr.mxu0 0.0
      %1871 = vmatpush1.msra.mxu0 0.0
      %1872 = vmatprep.subr.mxu0 0.0
      %1873 = vmatpush1.msra.mxu0 0.0
      %1874 = vmatprep.subr.mxu0 0.0
      %1875 = vmatpush1.msra.mxu0 0.0
      %1876 = vmatprep.subr.mxu0 0.0
      %1877 = vmatpush1.msra.mxu0 0.0
      %1878 = vmatprep.subr.mxu0 0.0
      %1879 = vmatpush1.msra.mxu0 0.0
      %1880 = vmatprep.subr.mxu0 0.0
      %1881 = vmatpush1.msra.mxu0 0.0
      %1882 = vmatprep.subr.mxu0 0.0
      %1883 = vmatpush1.msra.mxu0 0.0
      %1884 = vmatprep.subr.mxu0 0.0
      %1885 = vmatpush1.msra.mxu0 0.0
      %1886 = vmatprep.subr.mxu0 0.0
      %1887 = vmatpush1.msra.mxu0 0.0
      %1888 = vmatprep.subr.mxu0 0.0
      %1889 = vmatpush1.msra.mxu0 %v1856
      %1890 = vmatprep.subr.mxu0 0.0
      %1891 = vmatpush2.msra.mxu0 0.0
      %1892 = vmatprep.subr.mxu0 0.0
      %1893 = vmatpush2.msra.mxu0 0.0
      %1894 = vmatprep.subr.mxu0 0.0
      %1895 = vmatpush2.msra.mxu0 0.0
      %1896 = vmatprep.subr.mxu0 0.0
      %1897 = vmatpush2.msra.mxu0 0.0
      %1898 = vmatprep.subr.mxu0 0.0
      %1899 = vmatpush2.msra.mxu0 0.0
      %1900 = vmatprep.subr.mxu0 0.0
      %1901 = vmatpush2.msra.mxu0 0.0
      %1902 = vmatprep.subr.mxu0 0.0
      %1903 = vmatpush2.msra.mxu0 0.0
      %1904 = vmatprep.subr.mxu0 0.0
      %1905 = vmatpush2.msra.mxu0 0.0
      %1906 = vmatprep.subr.mxu0 0.0
      %1907 = vmatpush2.msra.mxu0 0.0
      %1908 = vmatprep.subr.mxu0 0.0
      %1909 = vmatpush2.msra.mxu0 0.0
      %1910 = vmatprep.subr.mxu0 0.0
      %1911 = vmatpush2.msra.mxu0 0.0
      %1912 = vmatprep.subr.mxu0 0.0
      %1913 = vmatpush2.msra.mxu0 0.0
      %1914 = vmatprep.subr.mxu0 0.0
      %1915 = vmatpush2.msra.mxu0 0.0
      %1916 = vmatprep.subr.mxu0 0.0
      %1917 = vmatpush2.msra.mxu0 0.0
      %1918 = vmatprep.subr.mxu0 0.0
      %1919 = vmatpush2.msra.mxu0 0.0
      %1920 = vmatprep.subr.mxu0 0.0
      %1921 = vmatpush2.msra.mxu0 0.0
      %1922 = vmatprep.mubr.f32.mxu0 0.0
      %1923 = vmatmul.mubr.f32.gmra.mxu0 %v1853
      %v1924 = vpop.f32.mrf.mxu0
      %v1925 = vadd.f32 0.0, %v1924
      %v1926 = vpop.f32.mrf.mxu0
      %1927 = vdwg.mxu0
      %v1928 = vadd.f32 %v1726, %v1925
      %v1929 = vld [vmem:[%s2] sm:$0xff]
      %1931 = vset.pattern.permute.xlu0 0
      %1932 = vperm.xlu0 %1931, %v1929
      %v1933 = vpop.permute.xlu0 %1932
      %v1935 = vadd.f32 %v1928, %v1933
      %vm1936 = vcmp.gt.f32.partialorder %v1935, 0.0
      %v1937 = vmul.f32 %v1935, 0.2
      %v1938 = vsel %vm1936, %v1935, %v1937
      %vm1939 = vcmask 523264
      %1940 = vst.msk [vmem:[%s188] sm:$0xff] %vm1939, %v1938
      %p1941 = scmp.lt.s32.totalorder %s18, 1
      %s1942 = scalar_select %p1941, %s18, 1
      %p1943 = scmp.lt.s32.totalorder %s19, 0
      %s1944 = scalar_select %p1943, %s19, 0
      %s1945 = sadd.s32 %s1944, %s1942
      %s1946 = smul.addr %s1945, 8
      %s1947 = scalar_lea.vmem %s3, %s1946
      // Predicated region
      $region33: #{fwd.5} parent=31 // pred_check
        %p1948 = pneg %p114
      $region34: #{fwd.5} parent=31 // pred_check_branch
        %1950 = sbr.rel (%p1948) target = $region36
      $region35: #{fwd.5} parent=31 // pred_region
        _
      $region36: #{fwd.5} parent=31 // pred_fallthru
        _
    $region32: #{fwd.5} parent=5 // pred_fallthru
      _
    %p1951 = scmp.le.s32.totalorder 2, %s9
    // Predicated region
    $region37: #{fwd.5} parent=5 // pred_check
      %p1952 = pneg %p1951
    $region38: #{fwd.5} parent=5 // pred_check_branch
      %1954 = sbr.rel (%p1952) target = $region40
    $region39: #{fwd.5} parent=5 // pred_region
      %s1955 = ssub.s32 %s9, 2
      // Predicated region
      $region41: #{fwd.5} parent=39 // pred_check
        %p1956 = pneg %p120
      $region42: #{fwd.5} parent=39 // pred_check_branch
        %1958 = sbr.rel (%p1956) target = $region44
      $region43: #{fwd.5} parent=39 // pred_region
        %p1959 = scmp.lt.s32.totalorder %s20, 1
        %s1960 = scalar_select %p1959, %s20, 1
        %p1961 = scmp.lt.s32.totalorder %s21, 0
        %s1962 = scalar_select %p1961, %s21, 0
        %s1963 = sadd.s32 %s1962, %s1960
        %s1964 = smul.addr %s1963, 8
        %s1965 = scalar_lea.vmem %s3, %s1964
      $region44: #{fwd.5} parent=39 // pred_fallthru
        _
    $region40: #{fwd.5} parent=5 // pred_fallthru
      _
  $region6: #{fwd.5} parent=0 // loop_footer
    %s13 = sadd.s32 1, %s9
  $region7: #{fwd.5} parent=0 // loop_footer_branch
    %8 = sbr.rel target = $region3
  $region8: #{fwd.5} parent=0 // loop_exit
    _

// kernel: fwd.7
$region0: #{fwd.7}
  #allocation0 [shape = 'u32[]', space=smem, size = 0x4, offset = 0x4, fixed_abs, tag = 'smem constant byte address 0x4 - core index']
  #allocation1 [shape = 'u32[144,128]{1,0:T(1,128)}', space=vmem, size = 0x12000, scoped, tag = 'internal scratch']
  %s0 = inlined_call_operand.vmem [shape: f32[2,4,16,3,3], index: 0, kind: input, shape index: {}]
  %s1 = inlined_call_operand.vmem [shape: f32[9,32,16], index: 1, kind: input, shape index: {}]
  %s2 = inlined_call_operand.vmem [shape: f32[32,1], index: 2, kind: input, shape index: {}]
  %s3 = inlined_call_operand.vmem [shape: f32[2,32,4], index: 3, kind: output, shape index: {}]
  %s4 = sld [smem:[#allocation0]]
  $region45: #{fwd.7} parent=0
    _
  %s6 = ssub.s32 1, %s4
  %s7 = scalar_select 0, %s6, %s4
  loop: start=0, step=1, limit=4
  $region2: #{fwd.7} parent=0 // loop_pre_header
    _
  $region3: #{fwd.7} parent=0 // loop_header
    %s9 = sphi 0, %s13
    %p10 = scmp.ge.s32.totalorder %s9, 4
    %s16 = sphi 0, %s28
    %s17 = sphi 0, %s24
    %s18 = sphi 0, %s16
    %s19 = sphi 0, %s17
    %s20 = sphi 0, %s18
    %s21 = sphi 0, %s19
    %s31 = sphi 0, %s33
    %s34 = sphi 0, %s31
    %s35 = sphi 0, %s34
    %s51 = sphi 0, %s35
    %s55 = sphi 0, %s55
    %s57 = sphi 0, %s55
    %s58 = sphi 0, %s57
    %s72 = sphi 0, %s58
    %s76 = sphi 0, %s76
    %s78 = sphi 0, %s76
    %s79 = sphi 0, %s78
    %s93 = sphi 0, %s79
    %s101 = sphi 0, %s103
    %s104 = sphi 0, %s101
    %s105 = sphi 0, %s104
    %s121 = sphi 0, %s105
  $region4: #{fwd.7} parent=0 // loop_header_branch
    %12 = sbr.rel (%p10) target = $region8
  $region5: #{fwd.7} parent=0 // loop_body
    %s14 = ssub.s32 %s9, 1
    %s15 = ssub.s32 %s9, 2
    %s22 = sadd.s32 1, %s17
    %p23 = scmp.ge.s32.totalorder %s22, 1
    %s24 = scalar_select %p23, 0, %s22
    %s25 = sadd.s32 1, %s16
    %s26 = scalar_select %p23, %s25, %s16
    %p27 = scmp.ge.s32.totalorder %s26, 2
    %s28 = scalar_select %p27, 0, %s26
    %s29 = ssub.s32 %s16, %s28
    %p30 = scmp.eq.s32.totalorder %s29, 0
    %s32 = sadd.s32 %s31, 1
    %s33 = scalar_select %p30, %s31, %s32
    %p36 = pneg %p30
    %p37 = scmp.eq.s32.totalorder %s9, 1
    %p38 = por %p36, %p37
    %p39 = scmp.ne.s32.totalorder %s31, %s34
    %p40 = scmp.eq.s32.totalorder %s9, 0
    %p41 = por %p39, %p40
    %p42 = scmp.ne.s32.totalorder %s31, %s34
    %p43 = scmp.eq.s32.totalorder %s14, 1
    %p44 = por %p42, %p43
    %p45 = scmp.ne.s32.totalorder %s34, %s35
    %p46 = scmp.eq.s32.totalorder %s14, 0
    %p47 = por %p45, %p46
    %p48 = scmp.ne.s32.totalorder %s34, %s35
    %p49 = scmp.eq.s32.totalorder %s15, 1
    %p50 = por %p48, %p49
    %p52 = scmp.ne.s32.totalorder %s35, %s51
    %p53 = scmp.eq.s32.totalorder %s15, 0
    %p54 = por %p52, %p53
    %s56 = sadd.s32 %s55, 1
    %p59 = scmp.eq.s32.totalorder %s9, 1
    %p60 = scmp.ne.s32.totalorder %s55, %s57
    %p61 = scmp.eq.s32.totalorder %s9, 0
    %p62 = por %p60, %p61
    %p63 = scmp.ne.s32.totalorder %s55, %s57
    %p64 = scmp.eq.s32.totalorder %s14, 1
    %p65 = por %p63, %p64
    %p66 = scmp.ne.s32.totalorder %s57, %s58
    %p67 = scmp.eq.s32.totalorder %s14, 0
    %p68 = por %p66, %p67
    %p69 = scmp.ne.s32.totalorder %s57, %s58
    %p70 = scmp.eq.s32.totalorder %s15, 1
    %p71 = por %p69, %p70
    %p73 = scmp.ne.s32.totalorder %s58, %s72
    %p74 = scmp.eq.s32.totalorder %s15, 0
    %p75 = por %p73, %p74
    %s77 = sadd.s32 %s76, 1
    %p80 = scmp.eq.s32.totalorder %s9, 1
    %p81 = scmp.ne.s32.totalorder %s76, %s78
    %p82 = scmp.eq.s32.totalorder %s9, 0
    %p83 = por %p81, %p82
    %p84 = scmp.ne.s32.totalorder %s76, %s78
    %p85 = scmp.eq.s32.totalorder %s14, 1
    %p86 = por %p84, %p85
    %p87 = scmp.ne.s32.totalorder %s78, %s79
    %p88 = scmp.eq.s32.totalorder %s14, 0
    %p89 = por %p87, %p88
    %p90 = scmp.ne.s32.totalorder %s78, %s79
    %p91 = scmp.eq.s32.totalorder %s15, 1
    %p92 = por %p90, %p91
    %p94 = scmp.ne.s32.totalorder %s79, %s93
    %p95 = scmp.eq.s32.totalorder %s15, 0
    %p96 = por %p94, %p95
    %s97 = ssub.s32 %s16, %s28
    %s98 = ssub.s32 %s17, %s24
    %s99 = sor.u32 %s97, %s98
    %p100 = scmp.eq.s32.totalorder %s99, 0
    %s102 = sadd.s32 %s101, 1
    %s103 = scalar_select %p100, %s101, %s102
    %p106 = pneg %p100
    %p107 = scmp.eq.s32.totalorder %s9, 1
    %p108 = por %p106, %p107
    %p109 = scmp.ne.s32.totalorder %s101, %s104
    %p110 = scmp.eq.s32.totalorder %s9, 0
    %p111 = por %p109, %p110
    %p112 = scmp.ne.s32.totalorder %s101, %s104
    %p113 = scmp.eq.s32.totalorder %s14, 1
    %p114 = por %p112, %p113
    %p115 = scmp.ne.s32.totalorder %s104, %s105
    %p116 = scmp.eq.s32.totalorder %s14, 0
    %p117 = por %p115, %p116
    %p118 = scmp.ne.s32.totalorder %s104, %s105
    %p119 = scmp.eq.s32.totalorder %s15, 1
    %p120 = por %p118, %p119
    %p122 = scmp.ne.s32.totalorder %s105, %s121
    %p123 = scmp.eq.s32.totalorder %s15, 0
    %p124 = por %p122, %p123
    %p125 = scmp.le.s32.totalorder 1, %s9
    %p126 = scmp.lt.s32.totalorder %s9, 3
    %p127 = pnand %p125, %p126
    %p128 = pneg %p127
    // Predicated region
    $region9: #{fwd.7} parent=5 // pred_check
      _
    $region10: #{fwd.7} parent=5 // pred_check_branch
      %130 = sbr.rel (%p127) target = $region12
    $region11: #{fwd.7} parent=5 // pred_region
      %s131 = ssub.s32 %s9, 1
      // Predicated region
      $region13: #{fwd.7} parent=11 // pred_check
        %p132 = pneg %p68
      $region14: #{fwd.7} parent=11 // pred_check_branch
        %134 = sbr.rel (%p132) target = $region16
      $region15: #{fwd.7} parent=11 // pred_region
        _
      $region16: #{fwd.7} parent=11 // pred_fallthru
        _
      // Predicated region
      $region17: #{fwd.7} parent=11 // pred_check
        %p135 = pneg %p89
      $region18: #{fwd.7} parent=11 // pred_check_branch
        %137 = sbr.rel (%p135) target = $region20
      $region19: #{fwd.7} parent=11 // pred_region
        _
      $region20: #{fwd.7} parent=11 // pred_fallthru
        _
    $region12: #{fwd.7} parent=5 // pred_fallthru
      _
    %p138 = scmp.lt.s32.totalorder %s9, 2
    // Predicated region
    $region21: #{fwd.7} parent=5 // pred_check
      %p139 = pneg %p138
    $region22: #{fwd.7} parent=5 // pred_check_branch
      %141 = sbr.rel (%p139) target = $region24
    $region23: #{fwd.7} parent=5 // pred_region
      // Predicated region
      $region25: #{fwd.7} parent=23 // pred_check
        %p142 = pneg %p41
      $region26: #{fwd.7} parent=23 // pred_check_branch
        %144 = sbr.rel (%p142) target = $region28
      $region27: #{fwd.7} parent=23 // pred_region
        %p145 = scmp.lt.s32.totalorder %s16, 1
        %s146 = scalar_select %p145, %s16, 1
        %s147 = smul.addr %s146, 64
        %s148 = smul.addr %s147, 4
        %s149 = scalar_lea.vmem %s0, %s148
      $region28: #{fwd.7} parent=23 // pred_fallthru
        _
    $region24: #{fwd.7} parent=5 // pred_fallthru
      _
    %p150 = scmp.le.s32.totalorder 1, %s9
    %p151 = scmp.lt.s32.totalorder %s9, 3
    %p152 = pnand %p150, %p151
    %p153 = pneg %p152
    // Predicated region
    $region29: #{fwd.7} parent=5 // pred_check
      _
    $region30: #{fwd.7} parent=5 // pred_check_branch
      %155 = sbr.rel (%p152) target = $region32
    $region31: #{fwd.7} parent=5 // pred_region
      %s156 = ssub.s32 %s9, 1
      %p157 = scmp.lt.s32.totalorder %s18, 1
      %s158 = scalar_select %p157, %s18, 1
      %s159 = smul.addr %s158, 64
      %s160 = smul.addr %s159, 4
      %s161 = scalar_lea.vmem %s0, %s160
      %p162 = pneg %p47
      %p163 = pneg %p44
      %p164 = pneg %p68
      %p165 = pneg %p65
      %p166 = pneg %p89
      %p167 = pneg %p86
      %p168 = pneg %p117
      %p169 = pneg %p114
      %p170 = scmp.lt.s32.totalorder %s18, 1
      %s171 = scalar_select %p170, %s18, 1
      %p172 = scmp.lt.s32.totalorder %s19, 0
      %s173 = scalar_select %p172, %s19, 0
      %s174 = smul.addr %s171, 4
      %s175 = sadd.s32 %s173, %s174
      %s176 = smul.addr %s175, 8
      %s177 = scalar_lea.vmem %s3, %s176
      %p178 = scmp.lt.s32.totalorder %s18, 1
      %s179 = scalar_select %p178, %s18, 1
      %s180 = smul.addr %s179, 64
      %s181 = smul.addr %s180, 4
      %s182 = scalar_lea.vmem %s0, %s181
      %p183 = scmp.lt.s32.totalorder %s18, 1
      %s184 = scalar_select %p183, %s18, 1
      %p185 = scmp.lt.s32.totalorder %s19, 0
      %s186 = scalar_select %p185, %s19, 0
      %s187 = smul.addr %s184, 4
      %s188 = sadd.s32 %s186, %s187
      %s189 = smul.addr %s188, 8
      %s190 = scalar_lea.vmem %s3, %s189
      %s191 = smul.u32 %s19, 2
      %s192 = scalar_lea.vmem %s182, %s191
      %v193 = vld [vmem:[%s192] sm:$0x3]
      %v194 = vld [vmem:[%s192 + $0x4] sm:$0x3]
      %v195 = vld [vmem:[%s192 + $0x8] sm:$0x3]
      %v196 = vld [vmem:[%s192 + $0xc] sm:$0x3]
      %v197 = vld [vmem:[%s192 + $0x10] sm:$0x3]
      %v198 = vld [vmem:[%s192 + $0x14] sm:$0x3]
      %v199 = vld [vmem:[%s192 + $0x18] sm:$0x3]
      %v200 = vld [vmem:[%s192 + $0x1c] sm:$0x3]
      %v201 = vld [vmem:[%s192 + $0x20] sm:$0x3]
      %v202 = vld [vmem:[%s192 + $0x24] sm:$0x3]
      %v203 = vld [vmem:[%s192 + $0x28] sm:$0x3]
      %v204 = vld [vmem:[%s192 + $0x2c] sm:$0x3]
      %v205 = vld [vmem:[%s192 + $0x30] sm:$0x3]
      %v206 = vld [vmem:[%s192 + $0x34] sm:$0x3]
      %v207 = vld [vmem:[%s192 + $0x38] sm:$0x3]
      %v208 = vld [vmem:[%s192 + $0x3c] sm:$0x3]
      %v209 = vcombine.low %v193, %v195
      %v211 = vunpack.c.l.s4 1983009808
      %v212 = vunpack.c.0.s8 %v211
      %v213 = vlaneseq
      %v214 = vshrl.u32 %v213, 7
      %v215 = vsub.s32 %v212, %v214
      %v216 = vrot.slane %v209, %v215
      %v217 = vcombine.low %v194, %v196
      %v219 = vunpack.c.l.s4 1983009808
      %v220 = vunpack.c.0.s8 %v219
      %v221 = vlaneseq
      %v222 = vshrl.u32 %v221, 7
      %v223 = vsub.s32 %v220, %v222
      %v224 = vrot.slane %v217, %v223
      %v225 = vcombine.low %v197, %v199
      %v227 = vunpack.c.l.s4 1983009808
      %v228 = vunpack.c.0.s8 %v227
      %v229 = vlaneseq
      %v230 = vshrl.u32 %v229, 7
      %v231 = vsub.s32 %v228, %v230
      %v232 = vrot.slane %v225, %v231
      %v233 = vcombine.low %v198, %v200
      %v235 = vunpack.c.l.s4 1983009808
      %v236 = vunpack.c.0.s8 %v235
      %v237 = vlaneseq
      %v238 = vshrl.u32 %v237, 7
      %v239 = vsub.s32 %v236, %v238
      %v240 = vrot.slane %v233, %v239
      %v241 = vcombine.low %v216, %v224
      %v243 = vunpack.c.l.s4 1934713408
      %v244 = vunpack.c.0.s8 %v243
      %v245 = vlaneseq
      %v246 = vshrl.u32 %v245, 7
      %v247 = vsub.s32 %v244, %v246
      %v248 = vrot.slane %v241, %v247
      %v249 = vcombine.low %v232, %v240
      %v251 = vunpack.c.l.s4 1934713408
      %v252 = vunpack.c.0.s8 %v251
      %v253 = vlaneseq
      %v254 = vshrl.u32 %v253, 7
      %v255 = vsub.s32 %v252, %v254
      %v256 = vrot.slane %v249, %v255
      %v257 = vcombine.low %v248, %v256
      %v258 = vcombine.high %v248, %v256
      %v259 = vcombine.low %v201, %v203
      %v261 = vunpack.c.l.s4 1983009808
      %v262 = vunpack.c.0.s8 %v261
      %v263 = vlaneseq
      %v264 = vshrl.u32 %v263, 7
      %v265 = vsub.s32 %v262, %v264
      %v266 = vrot.slane %v259, %v265
      %v267 = vcombine.low %v202, %v204
      %v269 = vunpack.c.l.s4 1983009808
      %v270 = vunpack.c.0.s8 %v269
      %v271 = vlaneseq
      %v272 = vshrl.u32 %v271, 7
      %v273 = vsub.s32 %v270, %v272
      %v274 = vrot.slane %v267, %v273
      %v275 = vcombine.low %v205, %v207
      %v277 = vunpack.c.l.s4 1983009808
      %v278 = vunpack.c.0.s8 %v277
      %v279 = vlaneseq
      %v280 = vshrl.u32 %v279, 7
      %v281 = vsub.s32 %v278, %v280
      %v282 = vrot.slane %v275, %v281
      %v283 = vcombine.low %v206, %v208
      %v285 = vunpack.c.l.s4 1983009808
      %v286 = vunpack.c.0.s8 %v285
      %v287 = vlaneseq
      %v288 = vshrl.u32 %v287, 7
      %v289 = vsub.s32 %v286, %v288
      %v290 = vrot.slane %v283, %v289
      %v291 = vcombine.low %v266, %v274
      %v293 = vunpack.c.l.s4 1934713408
      %v294 = vunpack.c.0.s8 %v293
      %v295 = vlaneseq
      %v296 = vshrl.u32 %v295, 7
      %v297 = vsub.s32 %v294, %v296
      %v298 = vrot.slane %v291, %v297
      %v299 = vcombine.low %v282, %v290
      %v301 = vunpack.c.l.s4 1934713408
      %v302 = vunpack.c.0.s8 %v301
      %v303 = vlaneseq
      %v304 = vshrl.u32 %v303, 7
      %v305 = vsub.s32 %v302, %v304
      %v306 = vrot.slane %v299, %v305
      %v307 = vcombine.low %v298, %v306
      %v308 = vcombine.high %v298, %v306
      %311 = vrot.lane.b32.xlu0 %v258, 2
      %v312 = vpop.permute.xlu0 %311
      %313 = vrot.lane.b32.xlu0 %v308, 2
      %v314 = vpop.permute.xlu0 %313
      %vm317 = vcmask 15360
      %v318 = vsel %vm317, %v257, %v312
      %v319 = vsel %vm317, %v307, %v314
      %v320 = vld [vmem:[%s1] sm:$0xff]
      %v321 = vld [vmem:[%s1 + $0x8] sm:$0xff]
      %v322 = vld [vmem:[%s1 + $0x10] sm:$0xff]
      %v323 = vld [vmem:[%s1 + $0x18] sm:$0xff]
      %s324 = sadd.s32 %s191, 64
      %s325 = scalar_lea.vmem %s182, %s324
      %v326 = vld [vmem:[%s325] sm:$0x3]
      %v327 = vld [vmem:[%s325 + $0x4] sm:$0x3]
      %v328 = vld [vmem:[%s325 + $0x8] sm:$0x3]
      %v329 = vld [vmem:[%s325 + $0xc] sm:$0x3]
      %v330 = vld [vmem:[%s325 + $0x10] sm:$0x3]
      %v331 = vld [vmem:[%s325 + $0x14] sm:$0x3]
      %v332 = vld [vmem:[%s325 + $0x18] sm:$0x3]
      %v333 = vld [vmem:[%s325 + $0x1c] sm:$0x3]
      %v334 = vld [vmem:[%s325 + $0x20] sm:$0x3]
      %v335 = vld [vmem:[%s325 + $0x24] sm:$0x3]
      %v336 = vld [vmem:[%s325 + $0x28] sm:$0x3]
      %v337 = vld [vmem:[%s325 + $0x2c] sm:$0x3]
      %v338 = vld [vmem:[%s325 + $0x30] sm:$0x3]
      %v339 = vld [vmem:[%s325 + $0x34] sm:$0x3]
      %v340 = vld [vmem:[%s325 + $0x38] sm:$0x3]
      %v341 = vld [vmem:[%s325 + $0x3c] sm:$0x3]
      %v342 = vcombine.low %v326, %v328
      %v344 = vunpack.c.l.s4 1983009808
      %v345 = vunpack.c.0.s8 %v344
      %v346 = vlaneseq
      %v347 = vshrl.u32 %v346, 7
      %v348 = vsub.s32 %v345, %v347
      %v349 = vrot.slane %v342, %v348
      %v350 = vcombine.low %v327, %v329
      %v352 = vunpack.c.l.s4 1983009808
      %v353 = vunpack.c.0.s8 %v352
      %v354 = vlaneseq
      %v355 = vshrl.u32 %v354, 7
      %v356 = vsub.s32 %v353, %v355
      %v357 = vrot.slane %v350, %v356
      %v358 = vcombine.low %v330, %v332
      %v360 = vunpack.c.l.s4 1983009808
      %v361 = vunpack.c.0.s8 %v360
      %v362 = vlaneseq
      %v363 = vshrl.u32 %v362, 7
      %v364 = vsub.s32 %v361, %v363
      %v365 = vrot.slane %v358, %v364
      %v366 = vcombine.low %v331, %v333
      %v368 = vunpack.c.l.s4 1983009808
      %v369 = vunpack.c.0.s8 %v368
      %v370 = vlaneseq
      %v371 = vshrl.u32 %v370, 7
      %v372 = vsub.s32 %v369, %v371
      %v373 = vrot.slane %v366, %v372
      %v374 = vcombine.low %v349, %v357
      %v376 = vunpack.c.l.s4 1934713408
      %v377 = vunpack.c.0.s8 %v376
      %v378 = vlaneseq
      %v379 = vshrl.u32 %v378, 7
      %v380 = vsub.s32 %v377, %v379
      %v381 = vrot.slane %v374, %v380
      %v382 = vcombine.low %v365, %v373
      %v384 = vunpack.c.l.s4 1934713408
      %v385 = vunpack.c.0.s8 %v384
      %v386 = vlaneseq
      %v387 = vshrl.u32 %v386, 7
      %v388 = vsub.s32 %v385, %v387
      %v389 = vrot.slane %v382, %v388
      %v390 = vcombine.low %v381, %v389
      %v391 = vcombine.high %v381, %v389
      %v392 = vcombine.low %v334, %v336
      %v394 = vunpack.c.l.s4 1983009808
      %v395 = vunpack.c.0.s8 %v394
      %v396 = vlaneseq
      %v397 = vshrl.u32 %v396, 7
      %v398 = vsub.s32 %v395, %v397
      %v399 = vrot.slane %v392, %v398
      %v400 = vcombine.low %v335, %v337
      %v402 = vunpack.c.l.s4 1983009808
      %v403 = vunpack.c.0.s8 %v402
      %v404 = vlaneseq
      %v405 = vshrl.u32 %v404, 7
      %v406 = vsub.s32 %v403, %v405
      %v407 = vrot.slane %v400, %v406
      %v408 = vcombine.low %v338, %v340
      %v410 = vunpack.c.l.s4 1983009808
      %v411 = vunpack.c.0.s8 %v410
      %v412 = vlaneseq
      %v413 = vshrl.u32 %v412, 7
      %v414 = vsub.s32 %v411, %v413
      %v415 = vrot.slane %v408, %v414
      %v416 = vcombine.low %v339, %v341
      %v418 = vunpack.c.l.s4 1983009808
      %v419 = vunpack.c.0.s8 %v418
      %v420 = vlaneseq
      %v421 = vshrl.u32 %v420, 7
      %v422 = vsub.s32 %v419, %v421
      %v423 = vrot.slane %v416, %v422
      %v424 = vcombine.low %v399, %v407
      %v426 = vunpack.c.l.s4 1934713408
      %v427 = vunpack.c.0.s8 %v426
      %v428 = vlaneseq
      %v429 = vshrl.u32 %v428, 7
      %v430 = vsub.s32 %v427, %v429
      %v431 = vrot.slane %v424, %v430
      %v432 = vcombine.low %v415, %v423
      %v434 = vunpack.c.l.s4 1934713408
      %v435 = vunpack.c.0.s8 %v434
      %v436 = vlaneseq
      %v437 = vshrl.u32 %v436, 7
      %v438 = vsub.s32 %v435, %v437
      %v439 = vrot.slane %v432, %v438
      %v440 = vcombine.low %v431, %v439
      %v441 = vcombine.high %v431, %v439
      %444 = vrot.lane.b32.xlu0 %v391, 2
      %v445 = vpop.permute.xlu0 %444
      %446 = vrot.lane.b32.xlu0 %v441, 2
      %v447 = vpop.permute.xlu0 %446
      %v450 = vsel %vm317, %v390, %v445
      %v451 = vsel %vm317, %v440, %v447
      %s452 = scalar_lea.vmem %s1, 32
      %v453 = vld [vmem:[%s452] sm:$0xff]
      %v454 = vld [vmem:[%s452 + $0x8] sm:$0xff]
      %v455 = vld [vmem:[%s452 + $0x10] sm:$0xff]
      %v456 = vld [vmem:[%s452 + $0x18] sm:$0xff]
      %vm457 = vcmask 130048
      %v459 = vsel %vm457, %v453, 0
      %v462 = vsel %vm457, %v454, 0
      %v465 = vsel %vm457, %v455, 0
      %v468 = vsel %vm457, %v456, 0
      %470 = vmatprep.subr.mxu0 0.0
      %471 = vmatpush1.msra.mxu0 0.0
      %472 = vmatprep.subr.mxu0 0.0
      %473 = vmatpush1.msra.mxu0 0.0
      %474 = vmatprep.subr.mxu0 0.0
      %475 = vmatpush1.msra.mxu0 0.0
      %476 = vmatprep.subr.mxu0 0.0
      %477 = vmatpush1.msra.mxu0 0.0
      %478 = vmatprep.subr.mxu0 0.0
      %479 = vmatpush1.msra.mxu0 0.0
      %480 = vmatprep.subr.mxu0 0.0
      %481 = vmatpush1.msra.mxu0 0.0
      %482 = vmatprep.subr.mxu0 0.0
      %483 = vmatpush1.msra.mxu0 0.0
      %484 = vmatprep.subr.mxu0 0.0
      %485 = vmatpush1.msra.mxu0 0.0
      %486 = vmatprep.subr.mxu0 0.0
      %487 = vmatpush1.msra.mxu0 0.0
      %488 = vmatprep.subr.mxu0 0.0
      %489 = vmatpush1.msra.mxu0 0.0
      %490 = vmatprep.subr.mxu0 0.0
      %491 = vmatpush1.msra.mxu0 0.0
      %492 = vmatprep.subr.mxu0 0.0
      %493 = vmatpush1.msra.mxu0 0.0
      %494 = vmatprep.subr.mxu0 0.0
      %495 = vmatpush1.msra.mxu0 0.0
      %496 = vmatprep.subr.mxu0 0.0
      %497 = vmatpush1.msra.mxu0 0.0
      %498 = vmatprep.subr.mxu0 0.0
      %499 = vmatpush1.msra.mxu0 %v451
      %500 = vmatprep.subr.mxu0 0.0
      %501 = vmatpush1.msra.mxu0 %v450
      %502 = vmatprep.subr.mxu0 0.0
      %503 = vmatpush2.msra.mxu0 0.0
      %504 = vmatprep.subr.mxu0 0.0
      %505 = vmatpush2.msra.mxu0 0.0
      %506 = vmatprep.subr.mxu0 0.0
      %507 = vmatpush2.msra.mxu0 0.0
      %508 = vmatprep.subr.mxu0 0.0
      %509 = vmatpush2.msra.mxu0 0.0
      %510 = vmatprep.subr.mxu0 0.0
      %511 = vmatpush2.msra.mxu0 0.0
      %512 = vmatprep.subr.mxu0 0.0
      %513 = vmatpush2.msra.mxu0 0.0
      %514 = vmatprep.subr.mxu0 0.0
      %515 = vmatpush2.msra.mxu0 0.0
      %516 = vmatprep.subr.mxu0 0.0
      %517 = vmatpush2.msra.mxu0 0.0
      %518 = vmatprep.subr.mxu0 0.0
      %519 = vmatpush2.msra.mxu0 0.0
      %520 = vmatprep.subr.mxu0 0.0
      %521 = vmatpush2.msra.mxu0 0.0
      %522 = vmatprep.subr.mxu0 0.0
      %523 = vmatpush2.msra.mxu0 0.0
      %524 = vmatprep.subr.mxu0 0.0
      %525 = vmatpush2.msra.mxu0 0.0
      %526 = vmatprep.subr.mxu0 0.0
      %527 = vmatpush2.msra.mxu0 0.0
      %528 = vmatprep.subr.mxu0 0.0
      %529 = vmatpush2.msra.mxu0 0.0
      %530 = vmatprep.subr.mxu0 0.0
      %531 = vmatpush2.msra.mxu0 0.0
      %532 = vmatprep.subr.mxu0 0.0
      %533 = vmatpush2.msra.mxu0 0.0
      %534 = vmatprep.mubr.f32.mxu0 0.0
      %535 = vmatmul.mubr.f32.gmra.mxu0 %v459
      %v536 = vpop.f32.mrf.mxu0
      %v537 = vadd.f32 0.0, %v536
      %v538 = vpop.f32.mrf.mxu0
      %539 = vmatprep.mubr.f32.mxu0 0.0
      %540 = vmatmul.mubr.f32.gmra.mxu0 %v462
      %v541 = vpop.f32.mrf.mxu0
      %v542 = vadd.f32 0.0, %v541
      %v543 = vpop.f32.mrf.mxu0
      %544 = vmatprep.mubr.f32.mxu0 0.0
      %545 = vmatmul.mubr.f32.gmra.mxu0 %v465
      %v546 = vpop.f32.mrf.mxu0
      %v547 = vadd.f32 0.0, %v546
      %v548 = vpop.f32.mrf.mxu0
      %549 = vmatprep.mubr.f32.mxu0 0.0
      %550 = vmatmul.mubr.f32.gmra.mxu0 %v468
      %v551 = vpop.f32.mrf.mxu0
      %v552 = vadd.f32 0.0, %v551
      %v553 = vpop.f32.mrf.mxu0
      %554 = vdwg.mxu0
      %v556 = vsel %vm457, %v320, 0
      %v559 = vsel %vm457, %v321, 0
      %v562 = vsel %vm457, %v322, 0
      %v565 = vsel %vm457, %v323, 0
      %567 = vmatprep.subr.mxu0 0.0
      %568 = vmatpush1.msra.mxu0 0.0
      %569 = vmatprep.subr.mxu0 0.0
      %570 = vmatpush1.msra.mxu0 0.0
      %571 = vmatprep.subr.mxu0 0.0
      %572 = vmatpush1.msra.mxu0 0.0
      %573 = vmatprep.subr.mxu0 0.0
      %574 = vmatpush1.msra.mxu0 0.0
      %575 = vmatprep.subr.mxu0 0.0
      %576 = vmatpush1.msra.mxu0 0.0
      %577 = vmatprep.subr.mxu0 0.0
      %578 = vmatpush1.msra.mxu0 0.0
      %579 = vmatprep.subr.mxu0 0.0
      %580 = vmatpush1.msra.mxu0 0.0
      %581 = vmatprep.subr.mxu0 0.0
      %582 = vmatpush1.msra.mxu0 0.0
      %583 = vmatprep.subr.mxu0 0.0
      %584 = vmatpush1.msra.mxu0 0.0
      %585 = vmatprep.subr.mxu0 0.0
      %586 = vmatpush1.msra.mxu0 0.0
      %587 = vmatprep.subr.mxu0 0.0
      %588 = vmatpush1.msra.mxu0 0.0
      %589 = vmatprep.subr.mxu0 0.0
      %590 = vmatpush1.msra.mxu0 0.0
      %591 = vmatprep.subr.mxu0 0.0
      %592 = vmatpush1.msra.mxu0 0.0
      %593 = vmatprep.subr.mxu0 0.0
      %594 = vmatpush1.msra.mxu0 0.0
      %595 = vmatprep.subr.mxu0 0.0
      %596 = vmatpush1.msra.mxu0 %v319
      %597 = vmatprep.subr.mxu0 0.0
      %598 = vmatpush1.msra.mxu0 %v318
      %599 = vmatprep.subr.mxu0 0.0
      %600 = vmatpush2.msra.mxu0 0.0
      %601 = vmatprep.subr.mxu0 0.0
      %602 = vmatpush2.msra.mxu0 0.0
      %603 = vmatprep.subr.mxu0 0.0
      %604 = vmatpush2.msra.mxu0 0.0
      %605 = vmatprep.subr.mxu0 0.0
      %606 = vmatpush2.msra.mxu0 0.0
      %607 = vmatprep.subr.mxu0 0.0
      %608 = vmatpush2.msra.mxu0 0.0
      %609 = vmatprep.subr.mxu0 0.0
      %610 = vmatpush2.msra.mxu0 0.0
      %611 = vmatprep.subr.mxu0 0.0
      %612 = vmatpush2.msra.mxu0 0.0
      %613 = vmatprep.subr.mxu0 0.0
      %614 = vmatpush2.msra.mxu0 0.0
      %615 = vmatprep.subr.mxu0 0.0
      %616 = vmatpush2.msra.mxu0 0.0
      %617 = vmatprep.subr.mxu0 0.0
      %618 = vmatpush2.msra.mxu0 0.0
      %619 = vmatprep.subr.mxu0 0.0
      %620 = vmatpush2.msra.mxu0 0.0
      %621 = vmatprep.subr.mxu0 0.0
      %622 = vmatpush2.msra.mxu0 0.0
      %623 = vmatprep.subr.mxu0 0.0
      %624 = vmatpush2.msra.mxu0 0.0
      %625 = vmatprep.subr.mxu0 0.0
      %626 = vmatpush2.msra.mxu0 0.0
      %627 = vmatprep.subr.mxu0 0.0
      %628 = vmatpush2.msra.mxu0 0.0
      %629 = vmatprep.subr.mxu0 0.0
      %630 = vmatpush2.msra.mxu0 0.0
      %631 = vmatprep.mubr.f32.mxu0 0.0
      %632 = vmatmul.mubr.f32.gmra.mxu0 %v556
      %v633 = vpop.f32.mrf.mxu0
      %v634 = vadd.f32 %v537, %v633
      %v635 = vpop.f32.mrf.mxu0
      %636 = vmatprep.mubr.f32.mxu0 0.0
      %637 = vmatmul.mubr.f32.gmra.mxu0 %v559
      %v638 = vpop.f32.mrf.mxu0
      %v639 = vadd.f32 %v542, %v638
      %v640 = vpop.f32.mrf.mxu0
      %641 = vmatprep.mubr.f32.mxu0 0.0
      %642 = vmatmul.mubr.f32.gmra.mxu0 %v562
      %v643 = vpop.f32.mrf.mxu0
      %v644 = vadd.f32 %v547, %v643
      %v645 = vpop.f32.mrf.mxu0
      %646 = vmatprep.mubr.f32.mxu0 0.0
      %647 = vmatmul.mubr.f32.gmra.mxu0 %v565
      %v648 = vpop.f32.mrf.mxu0
      %v649 = vadd.f32 %v552, %v648
      %v650 = vpop.f32.mrf.mxu0
      %651 = vdwg.mxu0
      %v652 = vld [vmem:[%s192] sm:$0x3]
      %v653 = vld [vmem:[%s192 + $0x4] sm:$0x3]
      %v654 = vld [vmem:[%s192 + $0x8] sm:$0x3]
      %v655 = vld [vmem:[%s192 + $0xc] sm:$0x3]
      %v656 = vld [vmem:[%s192 + $0x10] sm:$0x3]
      %v657 = vld [vmem:[%s192 + $0x14] sm:$0x3]
      %v658 = vld [vmem:[%s192 + $0x18] sm:$0x3]
      %v659 = vld [vmem:[%s192 + $0x1c] sm:$0x3]
      %v660 = vld [vmem:[%s192 + $0x20] sm:$0x3]
      %v661 = vld [vmem:[%s192 + $0x24] sm:$0x3]
      %v662 = vld [vmem:[%s192 + $0x28] sm:$0x3]
      %v663 = vld [vmem:[%s192 + $0x2c] sm:$0x3]
      %v664 = vld [vmem:[%s192 + $0x30] sm:$0x3]
      %v665 = vld [vmem:[%s192 + $0x34] sm:$0x3]
      %v666 = vld [vmem:[%s192 + $0x38] sm:$0x3]
      %v667 = vld [vmem:[%s192 + $0x3c] sm:$0x3]
      %684 = vrot.lane.b32.xlu0 %v652, 127
      %v685 = vpop.permute.xlu0 %684
      %686 = vrot.lane.b32.xlu0 %v653, 127
      %v687 = vpop.permute.xlu0 %686
      %688 = vrot.lane.b32.xlu0 %v654, 127
      %v689 = vpop.permute.xlu0 %688
      %690 = vrot.lane.b32.xlu0 %v655, 127
      %v691 = vpop.permute.xlu0 %690
      %692 = vrot.lane.b32.xlu0 %v656, 127
      %v693 = vpop.permute.xlu0 %692
      %694 = vrot.lane.b32.xlu0 %v657, 127
      %v695 = vpop.permute.xlu0 %694
      %696 = vrot.lane.b32.xlu0 %v658, 127
      %v697 = vpop.permute.xlu0 %696
      %698 = vrot.lane.b32.xlu0 %v659, 127
      %v699 = vpop.permute.xlu0 %698
      %700 = vrot.lane.b32.xlu0 %v660, 127
      %v701 = vpop.permute.xlu0 %700
      %702 = vrot.lane.b32.xlu0 %v661, 127
      %v703 = vpop.permute.xlu0 %702
      %704 = vrot.lane.b32.xlu0 %v662, 127
      %v705 = vpop.permute.xlu0 %704
      %706 = vrot.lane.b32.xlu0 %v663, 127
      %v707 = vpop.permute.xlu0 %706
      %708 = vrot.lane.b32.xlu0 %v664, 127
      %v709 = vpop.permute.xlu0 %708
      %710 = vrot.lane.b32.xlu0 %v665, 127
      %v711 = vpop.permute.xlu0 %710
      %712 = vrot.lane.b32.xlu0 %v666, 127
      %v713 = vpop.permute.xlu0 %712
      %714 = vrot.lane.b32.xlu0 %v667, 127
      %v715 = vpop.permute.xlu0 %714
      %v732 = vcombine.low %v685, %v689
      %v734 = vunpack.c.l.s4 1983009808
      %v735 = vunpack.c.0.s8 %v734
      %v736 = vlaneseq
      %v737 = vshrl.u32 %v736, 7
      %v738 = vsub.s32 %v735, %v737
      %v739 = vrot.slane %v732, %v738
      %v740 = vcombine.low %v687, %v691
      %v742 = vunpack.c.l.s4 1983009808
      %v743 = vunpack.c.0.s8 %v742
      %v744 = vlaneseq
      %v745 = vshrl.u32 %v744, 7
      %v746 = vsub.s32 %v743, %v745
      %v747 = vrot.slane %v740, %v746
      %v748 = vcombine.low %v693, %v697
      %v750 = vunpack.c.l.s4 1983009808
      %v751 = vunpack.c.0.s8 %v750
      %v752 = vlaneseq
      %v753 = vshrl.u32 %v752, 7
      %v754 = vsub.s32 %v751, %v753
      %v755 = vrot.slane %v748, %v754
      %v756 = vcombine.low %v695, %v699
      %v758 = vunpack.c.l.s4 1983009808
      %v759 = vunpack.c.0.s8 %v758
      %v760 = vlaneseq
      %v761 = vshrl.u32 %v760, 7
      %v762 = vsub.s32 %v759, %v761
      %v763 = vrot.slane %v756, %v762
      %v764 = vcombine.low %v739, %v747
      %v766 = vunpack.c.l.s4 1934713408
      %v767 = vunpack.c.0.s8 %v766
      %v768 = vlaneseq
      %v769 = vshrl.u32 %v768, 7
      %v770 = vsub.s32 %v767, %v769
      %v771 = vrot.slane %v764, %v770
      %v772 = vcombine.low %v755, %v763
      %v774 = vunpack.c.l.s4 1934713408
      %v775 = vunpack.c.0.s8 %v774
      %v776 = vlaneseq
      %v777 = vshrl.u32 %v776, 7
      %v778 = vsub.s32 %v775, %v777
      %v779 = vrot.slane %v772, %v778
      %v780 = vcombine.low %v771, %v779
      %v781 = vcombine.high %v771, %v779
      %v782 = vcombine.low %v701, %v705
      %v784 = vunpack.c.l.s4 1983009808
      %v785 = vunpack.c.0.s8 %v784
      %v786 = vlaneseq
      %v787 = vshrl.u32 %v786, 7
      %v788 = vsub.s32 %v785, %v787
      %v789 = vrot.slane %v782, %v788
      %v790 = vcombine.low %v703, %v707
      %v792 = vunpack.c.l.s4 1983009808
      %v793 = vunpack.c.0.s8 %v792
      %v794 = vlaneseq
      %v795 = vshrl.u32 %v794, 7
      %v796 = vsub.s32 %v793, %v795
      %v797 = vrot.slane %v790, %v796
      %v798 = vcombine.low %v709, %v713
      %v800 = vunpack.c.l.s4 1983009808
      %v801 = vunpack.c.0.s8 %v800
      %v802 = vlaneseq
      %v803 = vshrl.u32 %v802, 7
      %v804 = vsub.s32 %v801, %v803
      %v805 = vrot.slane %v798, %v804
      %v806 = vcombine.low %v711, %v715
      %v808 = vunpack.c.l.s4 1983009808
      %v809 = vunpack.c.0.s8 %v808
      %v810 = vlaneseq
      %v811 = vshrl.u32 %v810, 7
      %v812 = vsub.s32 %v809, %v811
      %v813 = vrot.slane %v806, %v812
      %v814 = vcombine.low %v789, %v797
      %v816 = vunpack.c.l.s4 1934713408
      %v817 = vunpack.c.0.s8 %v816
      %v818 = vlaneseq
      %v819 = vshrl.u32 %v818, 7
      %v820 = vsub.s32 %v817, %v819
      %v821 = vrot.slane %v814, %v820
      %v822 = vcombine.low %v805, %v813
      %v824 = vunpack.c.l.s4 1934713408
      %v825 = vunpack.c.0.s8 %v824
      %v826 = vlaneseq
      %v827 = vshrl.u32 %v826, 7
      %v828 = vsub.s32 %v825, %v827
      %v829 = vrot.slane %v822, %v828
      %v830 = vcombine.low %v821, %v829
      %v831 = vcombine.high %v821, %v829
      %834 = vrot.lane.b32.xlu0 %v781, 2
      %v835 = vpop.permute.xlu0 %834
      %836 = vrot.lane.b32.xlu0 %v831, 2
      %v837 = vpop.permute.xlu0 %836
      %v840 = vsel %vm317, %v780, %v835
      %v841 = vsel %vm317, %v830, %v837
      %s842 = scalar_lea.vmem %s1, 64
      %v843 = vld [vmem:[%s842] sm:$0xff]
      %v844 = vld [vmem:[%s842 + $0x8] sm:$0xff]
      %v845 = vld [vmem:[%s842 + $0x10] sm:$0xff]
      %v846 = vld [vmem:[%s842 + $0x18] sm:$0xff]
      %v848 = vsel %vm457, %v843, 0
      %v851 = vsel %vm457, %v844, 0
      %v854 = vsel %vm457, %v845, 0
      %v857 = vsel %vm457, %v846, 0
      %859 = vmatprep.subr.mxu0 0.0
      %860 = vmatpush1.msra.mxu0 0.0
      %861 = vmatprep.subr.mxu0 0.0
      %862 = vmatpush1.msra.mxu0 0.0
      %863 = vmatprep.subr.mxu0 0.0
      %864 = vmatpush1.msra.mxu0 0.0
      %865 = vmatprep.subr.mxu0 0.0
      %866 = vmatpush1.msra.mxu0 0.0
      %867 = vmatprep.subr.mxu0 0.0
      %868 = vmatpush1.msra.mxu0 0.0
      %869 = vmatprep.subr.mxu0 0.0
      %870 = vmatpush1.msra.mxu0 0.0
      %871 = vmatprep.subr.mxu0 0.0
      %872 = vmatpush1.msra.mxu0 0.0
      %873 = vmatprep.subr.mxu0 0.0
      %874 = vmatpush1.msra.mxu0 0.0
      %875 = vmatprep.subr.mxu0 0.0
      %876 = vmatpush1.msra.mxu0 0.0
      %877 = vmatprep.subr.mxu0 0.0
      %878 = vmatpush1.msra.mxu0 0.0
      %879 = vmatprep.subr.mxu0 0.0
      %880 = vmatpush1.msra.mxu0 0.0
      %881 = vmatprep.subr.mxu0 0.0
      %882 = vmatpush1.msra.mxu0 0.0
      %883 = vmatprep.subr.mxu0 0.0
      %884 = vmatpush1.msra.mxu0 0.0
      %885 = vmatprep.subr.mxu0 0.0
      %886 = vmatpush1.msra.mxu0 0.0
      %887 = vmatprep.subr.mxu0 0.0
      %888 = vmatpush1.msra.mxu0 %v841
      %889 = vmatprep.subr.mxu0 0.0
      %890 = vmatpush1.msra.mxu0 %v840
      %891 = vmatprep.subr.mxu0 0.0
      %892 = vmatpush2.msra.mxu0 0.0
      %893 = vmatprep.subr.mxu0 0.0
      %894 = vmatpush2.msra.mxu0 0.0
      %895 = vmatprep.subr.mxu0 0.0
      %896 = vmatpush2.msra.mxu0 0.0
      %897 = vmatprep.subr.mxu0 0.0
      %898 = vmatpush2.msra.mxu0 0.0
      %899 = vmatprep.subr.mxu0 0.0
      %900 = vmatpush2.msra.mxu0 0.0
      %901 = vmatprep.subr.mxu0 0.0
      %902 = vmatpush2.msra.mxu0 0.0
      %903 = vmatprep.subr.mxu0 0.0
      %904 = vmatpush2.msra.mxu0 0.0
      %905 = vmatprep.subr.mxu0 0.0
      %906 = vmatpush2.msra.mxu0 0.0
      %907 = vmatprep.subr.mxu0 0.0
      %908 = vmatpush2.msra.mxu0 0.0
      %909 = vmatprep.subr.mxu0 0.0
      %910 = vmatpush2.msra.mxu0 0.0
      %911 = vmatprep.subr.mxu0 0.0
      %912 = vmatpush2.msra.mxu0 0.0
      %913 = vmatprep.subr.mxu0 0.0
      %914 = vmatpush2.msra.mxu0 0.0
      %915 = vmatprep.subr.mxu0 0.0
      %916 = vmatpush2.msra.mxu0 0.0
      %917 = vmatprep.subr.mxu0 0.0
      %918 = vmatpush2.msra.mxu0 0.0
      %919 = vmatprep.subr.mxu0 0.0
      %920 = vmatpush2.msra.mxu0 0.0
      %921 = vmatprep.subr.mxu0 0.0
      %922 = vmatpush2.msra.mxu0 0.0
      %923 = vmatprep.mubr.f32.mxu0 0.0
      %924 = vmatmul.mubr.f32.gmra.mxu0 %v848
      %v925 = vpop.f32.mrf.mxu0
      %v926 = vadd.f32 0.0, %v925
      %v927 = vpop.f32.mrf.mxu0
      %928 = vmatprep.mubr.f32.mxu0 0.0
      %929 = vmatmul.mubr.f32.gmra.mxu0 %v851
      %v930 = vpop.f32.mrf.mxu0
      %v931 = vadd.f32 0.0, %v930
      %v932 = vpop.f32.mrf.mxu0
      %933 = vmatprep.mubr.f32.mxu0 0.0
      %934 = vmatmul.mubr.f32.gmra.mxu0 %v854
      %v935 = vpop.f32.mrf.mxu0
      %v936 = vadd.f32 0.0, %v935
      %v937 = vpop.f32.mrf.mxu0
      %938 = vmatprep.mubr.f32.mxu0 0.0
      %939 = vmatmul.mubr.f32.gmra.mxu0 %v857
      %v940 = vpop.f32.mrf.mxu0
      %v941 = vadd.f32 0.0, %v940
      %v942 = vpop.f32.mrf.mxu0
      %943 = vdwg.mxu0
      %v944 = vadd.f32 %v634, %v926
      %v945 = vadd.f32 %v639, %v931
      %v946 = vadd.f32 %v644, %v936
      %v947 = vadd.f32 %v649, %v941
      %s948 = sadd.s32 %s191, 128
      %s949 = scalar_lea.vmem %s182, %s948
      %v950 = vld [vmem:[%s949] sm:$0x3]
      %v951 = vld [vmem:[%s949 + $0x4] sm:$0x3]
      %v952 = vld [vmem:[%s949 + $0x8] sm:$0x3]
      %v953 = vld [vmem:[%s949 + $0xc] sm:$0x3]
      %v954 = vld [vmem:[%s949 + $0x10] sm:$0x3]
      %v955 = vld [vmem:[%s949 + $0x14] sm:$0x3]
      %v956 = vld [vmem:[%s949 + $0x18] sm:$0x3]
      %v957 = vld [vmem:[%s949 + $0x1c] sm:$0x3]
      %v958 = vld [vmem:[%s949 + $0x20] sm:$0x3]
      %v959 = vld [vmem:[%s949 + $0x24] sm:$0x3]
      %v960 = vld [vmem:[%s949 + $0x28] sm:$0x3]
      %v961 = vld [vmem:[%s949 + $0x2c] sm:$0x3]
      %v962 = vld [vmem:[%s949 + $0x30] sm:$0x3]
      %v963 = vld [vmem:[%s949 + $0x34] sm:$0x3]
      %v964 = vld [vmem:[%s949 + $0x38] sm:$0x3]
      %v965 = vld [vmem:[%s949 + $0x3c] sm:$0x3]
      %v966 = vcombine.low %v950, %v952
      %v968 = vunpack.c.l.s4 1983009808
      %v969 = vunpack.c.0.s8 %v968
      %v970 = vlaneseq
      %v971 = vshrl.u32 %v970, 7
      %v972 = vsub.s32 %v969, %v971
      %v973 = vrot.slane %v966, %v972
      %v974 = vcombine.low %v951, %v953
      %v976 = vunpack.c.l.s4 1983009808
      %v977 = vunpack.c.0.s8 %v976
      %v978 = vlaneseq
      %v979 = vshrl.u32 %v978, 7
      %v980 = vsub.s32 %v977, %v979
      %v981 = vrot.slane %v974, %v980
      %v982 = vcombine.low %v954, %v956
      %v984 = vunpack.c.l.s4 1983009808
      %v985 = vunpack.c.0.s8 %v984
      %v986 = vlaneseq
      %v987 = vshrl.u32 %v986, 7
      %v988 = vsub.s32 %v985, %v987
      %v989 = vrot.slane %v982, %v988
      %v990 = vcombine.low %v955, %v957
      %v992 = vunpack.c.l.s4 1983009808
      %v993 = vunpack.c.0.s8 %v992
      %v994 = vlaneseq
      %v995 = vshrl.u32 %v994, 7
      %v996 = vsub.s32 %v993, %v995
      %v997 = vrot.slane %v990, %v996
      %v998 = vcombine.low %v973, %v981
      %v1000 = vunpack.c.l.s4 1934713408
      %v1001 = vunpack.c.0.s8 %v1000
      %v1002 = vlaneseq
      %v1003 = vshrl.u32 %v1002, 7
      %v1004 = vsub.s32 %v1001, %v1003
      %v1005 = vrot.slane %v998, %v1004
      %v1006 = vcombine.low %v989, %v997
      %v1008 = vunpack.c.l.s4 1934713408
      %v1009 = vunpack.c.0.s8 %v1008
      %v1010 = vlaneseq
      %v1011 = vshrl.u32 %v1010, 7
      %v1012 = vsub.s32 %v1009, %v1011
      %v1013 = vrot.slane %v1006, %v1012
      %v1014 = vcombine.low %v1005, %v1013
      %v1015 = vcombine.high %v1005, %v1013
      %v1016 = vcombine.low %v958, %v960
      %v1018 = vunpack.c.l.s4 1983009808
      %v1019 = vunpack.c.0.s8 %v1018
      %v1020 = vlaneseq
      %v1021 = vshrl.u32 %v1020, 7
      %v1022 = vsub.s32 %v1019, %v1021
      %v1023 = vrot.slane %v1016, %v1022
      %v1024 = vcombine.low %v959, %v961
      %v1026 = vunpack.c.l.s4 1983009808
      %v1027 = vunpack.c.0.s8 %v1026
      %v1028 = vlaneseq
      %v1029 = vshrl.u32 %v1028, 7
      %v1030 = vsub.s32 %v1027, %v1029
      %v1031 = vrot.slane %v1024, %v1030
      %v1032 = vcombine.low %v962, %v964
      %v1034 = vunpack.c.l.s4 1983009808
      %v1035 = vunpack.c.0.s8 %v1034
      %v1036 = vlaneseq
      %v1037 = vshrl.u32 %v1036, 7
      %v1038 = vsub.s32 %v1035, %v1037
      %v1039 = vrot.slane %v1032, %v1038
      %v1040 = vcombine.low %v963, %v965
      %v1042 = vunpack.c.l.s4 1983009808
      %v1043 = vunpack.c.0.s8 %v1042
      %v1044 = vlaneseq
      %v1045 = vshrl.u32 %v1044, 7
      %v1046 = vsub.s32 %v1043, %v1045
      %v1047 = vrot.slane %v1040, %v1046
      %v1048 = vcombine.low %v1023, %v1031
      %v1050 = vunpack.c.l.s4 1934713408
      %v1051 = vunpack.c.0.s8 %v1050
      %v1052 = vlaneseq
      %v1053 = vshrl.u32 %v1052, 7
      %v1054 = vsub.s32 %v1051, %v1053
      %v1055 = vrot.slane %v1048, %v1054
      %v1056 = vcombine.low %v1039, %v1047
      %v1058 = vunpack.c.l.s4 1934713408
      %v1059 = vunpack.c.0.s8 %v1058
      %v1060 = vlaneseq
      %v1061 = vshrl.u32 %v1060, 7
      %v1062 = vsub.s32 %v1059, %v1061
      %v1063 = vrot.slane %v1056, %v1062
      %v1064 = vcombine.low %v1055, %v1063
      %v1065 = vcombine.high %v1055, %v1063
      %1068 = vrot.lane.b32.xlu0 %v1015, 2
      %v1069 = vpop.permute.xlu0 %1068
      %1070 = vrot.lane.b32.xlu0 %v1065, 2
      %v1071 = vpop.permute.xlu0 %1070
      %v1074 = vsel %vm317, %v1014, %v1069
      %v1075 = vsel %vm317, %v1064, %v1071
      %s1076 = scalar_lea.vmem %s1, 96
      %v1077 = vld [vmem:[%s1076] sm:$0xff]
      %v1078 = vld [vmem:[%s1076 + $0x8] sm:$0xff]
      %v1079 = vld [vmem:[%s1076 + $0x10] sm:$0xff]
      %v1080 = vld [vmem:[%s1076 + $0x18] sm:$0xff]
      %v1082 = vsel %vm457, %v1077, 0
      %v1085 = vsel %vm457, %v1078, 0
      %v1088 = vsel %vm457, %v1079, 0
      %v1091 = vsel %vm457, %v1080, 0
      %1093 = vmatprep.subr.mxu0 0.0
      %1094 = vmatpush1.msra.mxu0 0.0
      %1095 = vmatprep.subr.mxu0 0.0
      %1096 = vmatpush1.msra.mxu0 0.0
      %1097 = vmatprep.subr.mxu0 0.0
      %1098 = vmatpush1.msra.mxu0 0.0
      %1099 = vmatprep.subr.mxu0 0.0
      %1100 = vmatpush1.msra.mxu0 0.0
      %1101 = vmatprep.subr.mxu0 0.0
      %1102 = vmatpush1.msra.mxu0 0.0
      %1103 = vmatprep.subr.mxu0 0.0
      %1104 = vmatpush1.msra.mxu0 0.0
      %1105 = vmatprep.subr.mxu0 0.0
      %1106 = vmatpush1.msra.mxu0 0.0
      %1107 = vmatprep.subr.mxu0 0.0
      %1108 = vmatpush1.msra.mxu0 0.0
      %1109 = vmatprep.subr.mxu0 0.0
      %1110 = vmatpush1.msra.mxu0 0.0
      %1111 = vmatprep.subr.mxu0 0.0
      %1112 = vmatpush1.msra.mxu0 0.0
      %1113 = vmatprep.subr.mxu0 0.0
      %1114 = vmatpush1.msra.mxu0 0.0
      %1115 = vmatprep.subr.mxu0 0.0
      %1116 = vmatpush1.msra.mxu0 0.0
      %1117 = vmatprep.subr.mxu0 0.0
      %1118 = vmatpush1.msra.mxu0 0.0
      %1119 = vmatprep.subr.mxu0 0.0
      %1120 = vmatpush1.msra.mxu0 0.0
      %1121 = vmatprep.subr.mxu0 0.0
      %1122 = vmatpush1.msra.mxu0 %v1075
      %1123 = vmatprep.subr.mxu0 0.0
      %1124 = vmatpush1.msra.mxu0 %v1074
      %1125 = vmatprep.subr.mxu0 0.0
      %1126 = vmatpush2.msra.mxu0 0.0
      %1127 = vmatprep.subr.mxu0 0.0
      %1128 = vmatpush2.msra.mxu0 0.0
      %1129 = vmatprep.subr.mxu0 0.0
      %1130 = vmatpush2.msra.mxu0 0.0
      %1131 = vmatprep.subr.mxu0 0.0
      %1132 = vmatpush2.msra.mxu0 0.0
      %1133 = vmatprep.subr.mxu0 0.0
      %1134 = vmatpush2.msra.mxu0 0.0
      %1135 = vmatprep.subr.mxu0 0.0
      %1136 = vmatpush2.msra.mxu0 0.0
      %1137 = vmatprep.subr.mxu0 0.0
      %1138 = vmatpush2.msra.mxu0 0.0
      %1139 = vmatprep.subr.mxu0 0.0
      %1140 = vmatpush2.msra.mxu0 0.0
      %1141 = vmatprep.subr.mxu0 0.0
      %1142 = vmatpush2.msra.mxu0 0.0
      %1143 = vmatprep.subr.mxu0 0.0
      %1144 = vmatpush2.msra.mxu0 0.0
      %1145 = vmatprep.subr.mxu0 0.0
      %1146 = vmatpush2.msra.mxu0 0.0
      %1147 = vmatprep.subr.mxu0 0.0
      %1148 = vmatpush2.msra.mxu0 0.0
      %1149 = vmatprep.subr.mxu0 0.0
      %1150 = vmatpush2.msra.mxu0 0.0
      %1151 = vmatprep.subr.mxu0 0.0
      %1152 = vmatpush2.msra.mxu0 0.0
      %1153 = vmatprep.subr.mxu0 0.0
      %1154 = vmatpush2.msra.mxu0 0.0
      %1155 = vmatprep.subr.mxu0 0.0
      %1156 = vmatpush2.msra.mxu0 0.0
      %1157 = vmatprep.mubr.f32.mxu0 0.0
      %1158 = vmatmul.mubr.f32.gmra.mxu0 %v1082
      %v1159 = vpop.f32.mrf.mxu0
      %v1160 = vadd.f32 0.0, %v1159
      %v1161 = vpop.f32.mrf.mxu0
      %1162 = vmatprep.mubr.f32.mxu0 0.0
      %1163 = vmatmul.mubr.f32.gmra.mxu0 %v1085
      %v1164 = vpop.f32.mrf.mxu0
      %v1165 = vadd.f32 0.0, %v1164
      %v1166 = vpop.f32.mrf.mxu0
      %1167 = vmatprep.mubr.f32.mxu0 0.0
      %1168 = vmatmul.mubr.f32.gmra.mxu0 %v1088
      %v1169 = vpop.f32.mrf.mxu0
      %v1170 = vadd.f32 0.0, %v1169
      %v1171 = vpop.f32.mrf.mxu0
      %1172 = vmatprep.mubr.f32.mxu0 0.0
      %1173 = vmatmul.mubr.f32.gmra.mxu0 %v1091
      %v1174 = vpop.f32.mrf.mxu0
      %v1175 = vadd.f32 0.0, %v1174
      %v1176 = vpop.f32.mrf.mxu0
      %1177 = vdwg.mxu0
      %v1178 = vadd.f32 %v944, %v1160
      %v1179 = vadd.f32 %v945, %v1165
      %v1180 = vadd.f32 %v946, %v1170
      %v1181 = vadd.f32 %v947, %v1175
      %s1182 = sadd.s32 %s191, 192
      %s1183 = scalar_lea.vmem %s182, %s1182
      %v1184 = vld [vmem:[%s1183] sm:$0x3]
      %v1185 = vld [vmem:[%s1183 + $0x4] sm:$0x3]
      %v1186 = vld [vmem:[%s1183 + $0x8] sm:$0x3]
      %v1187 = vld [vmem:[%s1183 + $0xc] sm:$0x3]
      %v1188 = vld [vmem:[%s1183 + $0x10] sm:$0x3]
      %v1189 = vld [vmem:[%s1183 + $0x14] sm:$0x3]
      %v1190 = vld [vmem:[%s1183 + $0x18] sm:$0x3]
      %v1191 = vld [vmem:[%s1183 + $0x1c] sm:$0x3]
      %v1192 = vld [vmem:[%s1183 + $0x20] sm:$0x3]
      %v1193 = vld [vmem:[%s1183 + $0x24] sm:$0x3]
      %v1194 = vld [vmem:[%s1183 + $0x28] sm:$0x3]
      %v1195 = vld [vmem:[%s1183 + $0x2c] sm:$0x3]
      %v1196 = vld [vmem:[%s1183 + $0x30] sm:$0x3]
      %v1197 = vld [vmem:[%s1183 + $0x34] sm:$0x3]
      %v1198 = vld [vmem:[%s1183 + $0x38] sm:$0x3]
      %v1199 = vld [vmem:[%s1183 + $0x3c] sm:$0x3]
      %v1200 = vcombine.low %v1184, %v1186
      %v1202 = vunpack.c.l.s4 1983009808
      %v1203 = vunpack.c.0.s8 %v1202
      %v1204 = vlaneseq
      %v1205 = vshrl.u32 %v1204, 7
      %v1206 = vsub.s32 %v1203, %v1205
      %v1207 = vrot.slane %v1200, %v1206
      %v1208 = vcombine.low %v1185, %v1187
      %v1210 = vunpack.c.l.s4 1983009808
      %v1211 = vunpack.c.0.s8 %v1210
      %v1212 = vlaneseq
      %v1213 = vshrl.u32 %v1212, 7
      %v1214 = vsub.s32 %v1211, %v1213
      %v1215 = vrot.slane %v1208, %v1214
      %v1216 = vcombine.low %v1188, %v1190
      %v1218 = vunpack.c.l.s4 1983009808
      %v1219 = vunpack.c.0.s8 %v1218
      %v1220 = vlaneseq
      %v1221 = vshrl.u32 %v1220, 7
      %v1222 = vsub.s32 %v1219, %v1221
      %v1223 = vrot.slane %v1216, %v1222
      %v1224 = vcombine.low %v1189, %v1191
      %v1226 = vunpack.c.l.s4 1983009808
      %v1227 = vunpack.c.0.s8 %v1226
      %v1228 = vlaneseq
      %v1229 = vshrl.u32 %v1228, 7
      %v1230 = vsub.s32 %v1227, %v1229
      %v1231 = vrot.slane %v1224, %v1230
      %v1232 = vcombine.low %v1207, %v1215
      %v1234 = vunpack.c.l.s4 1934713408
      %v1235 = vunpack.c.0.s8 %v1234
      %v1236 = vlaneseq
      %v1237 = vshrl.u32 %v1236, 7
      %v1238 = vsub.s32 %v1235, %v1237
      %v1239 = vrot.slane %v1232, %v1238
      %v1240 = vcombine.low %v1223, %v1231
      %v1242 = vunpack.c.l.s4 1934713408
      %v1243 = vunpack.c.0.s8 %v1242
      %v1244 = vlaneseq
      %v1245 = vshrl.u32 %v1244, 7
      %v1246 = vsub.s32 %v1243, %v1245
      %v1247 = vrot.slane %v1240, %v1246
      %v1248 = vcombine.low %v1239, %v1247
      %v1249 = vcombine.high %v1239, %v1247
      %v1250 = vcombine.low %v1192, %v1194
      %v1252 = vunpack.c.l.s4 1983009808
      %v1253 = vunpack.c.0.s8 %v1252
      %v1254 = vlaneseq
      %v1255 = vshrl.u32 %v1254, 7
      %v1256 = vsub.s32 %v1253, %v1255
      %v1257 = vrot.slane %v1250, %v1256
      %v1258 = vcombine.low %v1193, %v1195
      %v1260 = vunpack.c.l.s4 1983009808
      %v1261 = vunpack.c.0.s8 %v1260
      %v1262 = vlaneseq
      %v1263 = vshrl.u32 %v1262, 7
      %v1264 = vsub.s32 %v1261, %v1263
      %v1265 = vrot.slane %v1258, %v1264
      %v1266 = vcombine.low %v1196, %v1198
      %v1268 = vunpack.c.l.s4 1983009808
      %v1269 = vunpack.c.0.s8 %v1268
      %v1270 = vlaneseq
      %v1271 = vshrl.u32 %v1270, 7
      %v1272 = vsub.s32 %v1269, %v1271
      %v1273 = vrot.slane %v1266, %v1272
      %v1274 = vcombine.low %v1197, %v1199
      %v1276 = vunpack.c.l.s4 1983009808
      %v1277 = vunpack.c.0.s8 %v1276
      %v1278 = vlaneseq
      %v1279 = vshrl.u32 %v1278, 7
      %v1280 = vsub.s32 %v1277, %v1279
      %v1281 = vrot.slane %v1274, %v1280
      %v1282 = vcombine.low %v1257, %v1265
      %v1284 = vunpack.c.l.s4 1934713408
      %v1285 = vunpack.c.0.s8 %v1284
      %v1286 = vlaneseq
      %v1287 = vshrl.u32 %v1286, 7
      %v1288 = vsub.s32 %v1285, %v1287
      %v1289 = vrot.slane %v1282, %v1288
      %v1290 = vcombine.low %v1273, %v1281
      %v1292 = vunpack.c.l.s4 1934713408
      %v1293 = vunpack.c.0.s8 %v1292
      %v1294 = vlaneseq
      %v1295 = vshrl.u32 %v1294, 7
      %v1296 = vsub.s32 %v1293, %v1295
      %v1297 = vrot.slane %v1290, %v1296
      %v1298 = vcombine.low %v1289, %v1297
      %v1299 = vcombine.high %v1289, %v1297
      %1302 = vrot.lane.b32.xlu0 %v1249, 2
      %v1303 = vpop.permute.xlu0 %1302
      %1304 = vrot.lane.b32.xlu0 %v1299, 2
      %v1305 = vpop.permute.xlu0 %1304
      %v1308 = vsel %vm317, %v1248, %v1303
      %v1309 = vsel %vm317, %v1298, %v1305
      %s1310 = scalar_lea.vmem %s1, 128
      %v1311 = vld [vmem:[%s1310] sm:$0xff]
      %v1312 = vld [vmem:[%s1310 + $0x8] sm:$0xff]
      %v1313 = vld [vmem:[%s1310 + $0x10] sm:$0xff]
      %v1314 = vld [vmem:[%s1310 + $0x18] sm:$0xff]
      %v1316 = vsel %vm457, %v1311, 0
      %v1319 = vsel %vm457, %v1312, 0
      %v1322 = vsel %vm457, %v1313, 0
      %v1325 = vsel %vm457, %v1314, 0
      %1327 = vmatprep.subr.mxu0 0.0
      %1328 = vmatpush1.msra.mxu0 0.0
      %1329 = vmatprep.subr.mxu0 0.0
      %1330 = vmatpush1.msra.mxu0 0.0
      %1331 = vmatprep.subr.mxu0 0.0
      %1332 = vmatpush1.msra.mxu0 0.0
      %1333 = vmatprep.subr.mxu0 0.0
      %1334 = vmatpush1.msra.mxu0 0.0
      %1335 = vmatprep.subr.mxu0 0.0
      %1336 = vmatpush1.msra.mxu0 0.0
      %1337 = vmatprep.subr.mxu0 0.0
      %1338 = vmatpush1.msra.mxu0 0.0
      %1339 = vmatprep.subr.mxu0 0.0
      %1340 = vmatpush1.msra.mxu0 0.0
      %1341 = vmatprep.subr.mxu0 0.0
      %1342 = vmatpush1.msra.mxu0 0.0
      %1343 = vmatprep.subr.mxu0 0.0
      %1344 = vmatpush1.msra.mxu0 0.0
      %1345 = vmatprep.subr.mxu0 0.0
      %1346 = vmatpush1.msra.mxu0 0.0
      %1347 = vmatprep.subr.mxu0 0.0
      %1348 = vmatpush1.msra.mxu0 0.0
      %1349 = vmatprep.subr.mxu0 0.0
      %1350 = vmatpush1.msra.mxu0 0.0
      %1351 = vmatprep.subr.mxu0 0.0
      %1352 = vmatpush1.msra.mxu0 0.0
      %1353 = vmatprep.subr.mxu0 0.0
      %1354 = vmatpush1.msra.mxu0 0.0
      %1355 = vmatprep.subr.mxu0 0.0
      %1356 = vmatpush1.msra.mxu0 %v1309
      %1357 = vmatprep.subr.mxu0 0.0
      %1358 = vmatpush1.msra.mxu0 %v1308
      %1359 = vmatprep.subr.mxu0 0.0
      %1360 = vmatpush2.msra.mxu0 0.0
      %1361 = vmatprep.subr.mxu0 0.0
      %1362 = vmatpush2.msra.mxu0 0.0
      %1363 = vmatprep.subr.mxu0 0.0
      %1364 = vmatpush2.msra.mxu0 0.0
      %1365 = vmatprep.subr.mxu0 0.0
      %1366 = vmatpush2.msra.mxu0 0.0
      %1367 = vmatprep.subr.mxu0 0.0
      %1368 = vmatpush2.msra.mxu0 0.0
      %1369 = vmatprep.subr.mxu0 0.0
      %1370 = vmatpush2.msra.mxu0 0.0
      %1371 = vmatprep.subr.mxu0 0.0
      %1372 = vmatpush2.msra.mxu0 0.0
      %1373 = vmatprep.subr.mxu0 0.0
      %1374 = vmatpush2.msra.mxu0 0.0
      %1375 = vmatprep.subr.mxu0 0.0
      %1376 = vmatpush2.msra.mxu0 0.0
      %1377 = vmatprep.subr.mxu0 0.0
      %1378 = vmatpush2.msra.mxu0 0.0
      %1379 = vmatprep.subr.mxu0 0.0
      %1380 = vmatpush2.msra.mxu0 0.0
      %1381 = vmatprep.subr.mxu0 0.0
      %1382 = vmatpush2.msra.mxu0 0.0
      %1383 = vmatprep.subr.mxu0 0.0
      %1384 = vmatpush2.msra.mxu0 0.0
      %1385 = vmatprep.subr.mxu0 0.0
      %1386 = vmatpush2.msra.mxu0 0.0
      %1387 = vmatprep.subr.mxu0 0.0
      %1388 = vmatpush2.msra.mxu0 0.0
      %1389 = vmatprep.subr.mxu0 0.0
      %1390 = vmatpush2.msra.mxu0 0.0
      %1391 = vmatprep.mubr.f32.mxu0 0.0
      %1392 = vmatmul.mubr.f32.gmra.mxu0 %v1316
      %v1393 = vpop.f32.mrf.mxu0
      %v1394 = vadd.f32 0.0, %v1393
      %v1395 = vpop.f32.mrf.mxu0
      %1396 = vmatprep.mubr.f32.mxu0 0.0
      %1397 = vmatmul.mubr.f32.gmra.mxu0 %v1319
      %v1398 = vpop.f32.mrf.mxu0
      %v1399 = vadd.f32 0.0, %v1398
      %v1400 = vpop.f32.mrf.mxu0
      %1401 = vmatprep.mubr.f32.mxu0 0.0
      %1402 = vmatmul.mubr.f32.gmra.mxu0 %v1322
      %v1403 = vpop.f32.mrf.mxu0
      %v1404 = vadd.f32 0.0, %v1403
      %v1405 = vpop.f32.mrf.mxu0
      %1406 = vmatprep.mubr.f32.mxu0 0.0
      %1407 = vmatmul.mubr.f32.gmra.mxu0 %v1325
      %v1408 = vpop.f32.mrf.mxu0
      %v1409 = vadd.f32 0.0, %v1408
      %v1410 = vpop.f32.mrf.mxu0
      %1411 = vdwg.mxu0
      %v1412 = vadd.f32 %v1178, %v1394
      %v1413 = vadd.f32 %v1179, %v1399
      %v1414 = vadd.f32 %v1180, %v1404
      %v1415 = vadd.f32 %v1181, %v1409
      %v1416 = vld [vmem:[%s949] sm:$0x3]
      %v1417 = vld [vmem:[%s949 + $0x4] sm:$0x3]
      %v1418 = vld [vmem:[%s949 + $0x8] sm:$0x3]
      %v1419 = vld [vmem:[%s949 + $0xc] sm:$0x3]
      %v1420 = vld [vmem:[%s949 + $0x10] sm:$0x3]
      %v1421 = vld [vmem:[%s949 + $0x14] sm:$0x3]
      %v1422 = vld [vmem:[%s949 + $0x18] sm:$0x3]
      %v1423 = vld [vmem:[%s949 + $0x1c] sm:$0x3]
      %v1424 = vld [vmem:[%s949 + $0x20] sm:$0x3]
      %v1425 = vld [vmem:[%s949 + $0x24] sm:$0x3]
      %v1426 = vld [vmem:[%s949 + $0x28] sm:$0x3]
      %v1427 = vld [vmem:[%s949 + $0x2c] sm:$0x3]
      %v1428 = vld [vmem:[%s949 + $0x30] sm:$0x3]
      %v1429 = vld [vmem:[%s949 + $0x34] sm:$0x3]
      %v1430 = vld [vmem:[%s949 + $0x38] sm:$0x3]
      %v1431 = vld [vmem:[%s949 + $0x3c] sm:$0x3]
      %1448 = vrot.lane.b32.xlu0 %v1416, 127
      %v1449 = vpop.permute.xlu0 %1448
      %1450 = vrot.lane.b32.xlu0 %v1417, 127
      %v1451 = vpop.permute.xlu0 %1450
      %1452 = vrot.lane.b32.xlu0 %v1418, 127
      %v1453 = vpop.permute.xlu0 %1452
      %1454 = vrot.lane.b32.xlu0 %v1419, 127
      %v1455 = vpop.permute.xlu0 %1454
      %1456 = vrot.lane.b32.xlu0 %v1420, 127
      %v1457 = vpop.permute.xlu0 %1456
      %1458 = vrot.lane.b32.xlu0 %v1421, 127
      %v1459 = vpop.permute.xlu0 %1458
      %1460 = vrot.lane.b32.xlu0 %v1422, 127
      %v1461 = vpop.permute.xlu0 %1460
      %1462 = vrot.lane.b32.xlu0 %v1423, 127
      %v1463 = vpop.permute.xlu0 %1462
      %1464 = vrot.lane.b32.xlu0 %v1424, 127
      %v1465 = vpop.permute.xlu0 %1464
      %1466 = vrot.lane.b32.xlu0 %v1425, 127
      %v1467 = vpop.permute.xlu0 %1466
      %1468 = vrot.lane.b32.xlu0 %v1426, 127
      %v1469 = vpop.permute.xlu0 %1468
      %1470 = vrot.lane.b32.xlu0 %v1427, 127
      %v1471 = vpop.permute.xlu0 %1470
      %1472 = vrot.lane.b32.xlu0 %v1428, 127
      %v1473 = vpop.permute.xlu0 %1472
      %1474 = vrot.lane.b32.xlu0 %v1429, 127
      %v1475 = vpop.permute.xlu0 %1474
      %1476 = vrot.lane.b32.xlu0 %v1430, 127
      %v1477 = vpop.permute.xlu0 %1476
      %1478 = vrot.lane.b32.xlu0 %v1431, 127
      %v1479 = vpop.permute.xlu0 %1478
      %v1496 = vcombine.low %v1449, %v1453
      %v1498 = vunpack.c.l.s4 1983009808
      %v1499 = vunpack.c.0.s8 %v1498
      %v1500 = vlaneseq
      %v1501 = vshrl.u32 %v1500, 7
      %v1502 = vsub.s32 %v1499, %v1501
      %v1503 = vrot.slane %v1496, %v1502
      %v1504 = vcombine.low %v1451, %v1455
      %v1506 = vunpack.c.l.s4 1983009808
      %v1507 = vunpack.c.0.s8 %v1506
      %v1508 = vlaneseq
      %v1509 = vshrl.u32 %v1508, 7
      %v1510 = vsub.s32 %v1507, %v1509
      %v1511 = vrot.slane %v1504, %v1510
      %v1512 = vcombine.low %v1457, %v1461
      %v1514 = vunpack.c.l.s4 1983009808
      %v1515 = vunpack.c.0.s8 %v1514
      %v1516 = vlaneseq
      %v1517 = vshrl.u32 %v1516, 7
      %v1518 = vsub.s32 %v1515, %v1517
      %v1519 = vrot.slane %v1512, %v1518
      %v1520 = vcombine.low %v1459, %v1463
      %v1522 = vunpack.c.l.s4 1983009808
      %v1523 = vunpack.c.0.s8 %v1522
      %v1524 = vlaneseq
      %v1525 = vshrl.u32 %v1524, 7
      %v1526 = vsub.s32 %v1523, %v1525
      %v1527 = vrot.slane %v1520, %v1526
      %v1528 = vcombine.low %v1503, %v1511
      %v1530 = vunpack.c.l.s4 1934713408
      %v1531 = vunpack.c.0.s8 %v1530
      %v1532 = vlaneseq
      %v1533 = vshrl.u32 %v1532, 7
      %v1534 = vsub.s32 %v1531, %v1533
      %v1535 = vrot.slane %v1528, %v1534
      %v1536 = vcombine.low %v1519, %v1527
      %v1538 = vunpack.c.l.s4 1934713408
      %v1539 = vunpack.c.0.s8 %v1538
      %v1540 = vlaneseq
      %v1541 = vshrl.u32 %v1540, 7
      %v1542 = vsub.s32 %v1539, %v1541
      %v1543 = vrot.slane %v1536, %v1542
      %v1544 = vcombine.low %v1535, %v1543
      %v1545 = vcombine.high %v1535, %v1543
      %v1546 = vcombine.low %v1465, %v1469
      %v1548 = vunpack.c.l.s4 1983009808
      %v1549 = vunpack.c.0.s8 %v1548
      %v1550 = vlaneseq
      %v1551 = vshrl.u32 %v1550, 7
      %v1552 = vsub.s32 %v1549, %v1551
      %v1553 = vrot.slane %v1546, %v1552
      %v1554 = vcombine.low %v1467, %v1471
      %v1556 = vunpack.c.l.s4 1983009808
      %v1557 = vunpack.c.0.s8 %v1556
      %v1558 = vlaneseq
      %v1559 = vshrl.u32 %v1558, 7
      %v1560 = vsub.s32 %v1557, %v1559
      %v1561 = vrot.slane %v1554, %v1560
      %v1562 = vcombine.low %v1473, %v1477
      %v1564 = vunpack.c.l.s4 1983009808
      %v1565 = vunpack.c.0.s8 %v1564
      %v1566 = vlaneseq
      %v1567 = vshrl.u32 %v1566, 7
      %v1568 = vsub.s32 %v1565, %v1567
      %v1569 = vrot.slane %v1562, %v1568
      %v1570 = vcombine.low %v1475, %v1479
      %v1572 = vunpack.c.l.s4 1983009808
      %v1573 = vunpack.c.0.s8 %v1572
      %v1574 = vlaneseq
      %v1575 = vshrl.u32 %v1574, 7
      %v1576 = vsub.s32 %v1573, %v1575
      %v1577 = vrot.slane %v1570, %v1576
      %v1578 = vcombine.low %v1553, %v1561
      %v1580 = vunpack.c.l.s4 1934713408
      %v1581 = vunpack.c.0.s8 %v1580
      %v1582 = vlaneseq
      %v1583 = vshrl.u32 %v1582, 7
      %v1584 = vsub.s32 %v1581, %v1583
      %v1585 = vrot.slane %v1578, %v1584
      %v1586 = vcombine.low %v1569, %v1577
      %v1588 = vunpack.c.l.s4 1934713408
      %v1589 = vunpack.c.0.s8 %v1588
      %v1590 = vlaneseq
      %v1591 = vshrl.u32 %v1590, 7
      %v1592 = vsub.s32 %v1589, %v1591
      %v1593 = vrot.slane %v1586, %v1592
      %v1594 = vcombine.low %v1585, %v1593
      %v1595 = vcombine.high %v1585, %v1593
      %1598 = vrot.lane.b32.xlu0 %v1545, 2
      %v1599 = vpop.permute.xlu0 %1598
      %1600 = vrot.lane.b32.xlu0 %v1595, 2
      %v1601 = vpop.permute.xlu0 %1600
      %v1604 = vsel %vm317, %v1544, %v1599
      %v1605 = vsel %vm317, %v1594, %v1601
      %s1606 = scalar_lea.vmem %s1, 160
      %v1607 = vld [vmem:[%s1606] sm:$0xff]
      %v1608 = vld [vmem:[%s1606 + $0x8] sm:$0xff]
      %v1609 = vld [vmem:[%s1606 + $0x10] sm:$0xff]
      %v1610 = vld [vmem:[%s1606 + $0x18] sm:$0xff]
      %v1612 = vsel %vm457, %v1607, 0
      %v1615 = vsel %vm457, %v1608, 0
      %v1618 = vsel %vm457, %v1609, 0
      %v1621 = vsel %vm457, %v1610, 0
      %1623 = vmatprep.subr.mxu0 0.0
      %1624 = vmatpush1.msra.mxu0 0.0
      %1625 = vmatprep.subr.mxu0 0.0
      %1626 = vmatpush1.msra.mxu0 0.0
      %1627 = vmatprep.subr.mxu0 0.0
      %1628 = vmatpush1.msra.mxu0 0.0
      %1629 = vmatprep.subr.mxu0 0.0
      %1630 = vmatpush1.msra.mxu0 0.0
      %1631 = vmatprep.subr.mxu0 0.0
      %1632 = vmatpush1.msra.mxu0 0.0
      %1633 = vmatprep.subr.mxu0 0.0
      %1634 = vmatpush1.msra.mxu0 0.0
      %1635 = vmatprep.subr.mxu0 0.0
      %1636 = vmatpush1.msra.mxu0 0.0
      %1637 = vmatprep.subr.mxu0 0.0
      %1638 = vmatpush1.msra.mxu0 0.0
      %1639 = vmatprep.subr.mxu0 0.0
      %1640 = vmatpush1.msra.mxu0 0.0
      %1641 = vmatprep.subr.mxu0 0.0
      %1642 = vmatpush1.msra.mxu0 0.0
      %1643 = vmatprep.subr.mxu0 0.0
      %1644 = vmatpush1.msra.mxu0 0.0
      %1645 = vmatprep.subr.mxu0 0.0
      %1646 = vmatpush1.msra.mxu0 0.0
      %1647 = vmatprep.subr.mxu0 0.0
      %1648 = vmatpush1.msra.mxu0 0.0
      %1649 = vmatprep.subr.mxu0 0.0
      %1650 = vmatpush1.msra.mxu0 0.0
      %1651 = vmatprep.subr.mxu0 0.0
      %1652 = vmatpush1.msra.mxu0 %v1605
      %1653 = vmatprep.subr.mxu0 0.0
      %1654 = vmatpush1.msra.mxu0 %v1604
      %1655 = vmatprep.subr.mxu0 0.0
      %1656 = vmatpush2.msra.mxu0 0.0
      %1657 = vmatprep.subr.mxu0 0.0
      %1658 = vmatpush2.msra.mxu0 0.0
      %1659 = vmatprep.subr.mxu0 0.0
      %1660 = vmatpush2.msra.mxu0 0.0
      %1661 = vmatprep.subr.mxu0 0.0
      %1662 = vmatpush2.msra.mxu0 0.0
      %1663 = vmatprep.subr.mxu0 0.0
      %1664 = vmatpush2.msra.mxu0 0.0
      %1665 = vmatprep.subr.mxu0 0.0
      %1666 = vmatpush2.msra.mxu0 0.0
      %1667 = vmatprep.subr.mxu0 0.0
      %1668 = vmatpush2.msra.mxu0 0.0
      %1669 = vmatprep.subr.mxu0 0.0
      %1670 = vmatpush2.msra.mxu0 0.0
      %1671 = vmatprep.subr.mxu0 0.0
      %1672 = vmatpush2.msra.mxu0 0.0
      %1673 = vmatprep.subr.mxu0 0.0
      %1674 = vmatpush2.msra.mxu0 0.0
      %1675 = vmatprep.subr.mxu0 0.0
      %1676 = vmatpush2.msra.mxu0 0.0
      %1677 = vmatprep.subr.mxu0 0.0
      %1678 = vmatpush2.msra.mxu0 0.0
      %1679 = vmatprep.subr.mxu0 0.0
      %1680 = vmatpush2.msra.mxu0 0.0
      %1681 = vmatprep.subr.mxu0 0.0
      %1682 = vmatpush2.msra.mxu0 0.0
      %1683 = vmatprep.subr.mxu0 0.0
      %1684 = vmatpush2.msra.mxu0 0.0
      %1685 = vmatprep.subr.mxu0 0.0
      %1686 = vmatpush2.msra.mxu0 0.0
      %1687 = vmatprep.mubr.f32.mxu0 0.0
      %1688 = vmatmul.mubr.f32.gmra.mxu0 %v1612
      %v1689 = vpop.f32.mrf.mxu0
      %v1690 = vadd.f32 0.0, %v1689
      %v1691 = vpop.f32.mrf.mxu0
      %1692 = vmatprep.mubr.f32.mxu0 0.0
      %1693 = vmatmul.mubr.f32.gmra.mxu0 %v1615
      %v1694 = vpop.f32.mrf.mxu0
      %v1695 = vadd.f32 0.0, %v1694
      %v1696 = vpop.f32.mrf.mxu0
      %1697 = vmatprep.mubr.f32.mxu0 0.0
      %1698 = vmatmul.mubr.f32.gmra.mxu0 %v1618
      %v1699 = vpop.f32.mrf.mxu0
      %v1700 = vadd.f32 0.0, %v1699
      %v1701 = vpop.f32.mrf.mxu0
      %1702 = vmatprep.mubr.f32.mxu0 0.0
      %1703 = vmatmul.mubr.f32.gmra.mxu0 %v1621
      %v1704 = vpop.f32.mrf.mxu0
      %v1705 = vadd.f32 0.0, %v1704
      %v1706 = vpop.f32.mrf.mxu0
      %1707 = vdwg.mxu0
      %v1708 = vadd.f32 %v1412, %v1690
      %v1709 = vadd.f32 %v1413, %v1695
      %v1710 = vadd.f32 %v1414, %v1700
      %v1711 = vadd.f32 %v1415, %v1705
      %s1712 = sadd.s32 %s191, 1
      %s1713 = scalar_lea.vmem %s182, %s1712
      %v1714 = vld [vmem:[%s1713] sm:$0x3]
      %v1715 = vld [vmem:[%s1713 + $0x4] sm:$0x3]
      %v1716 = vld [vmem:[%s1713 + $0x8] sm:$0x3]
      %v1717 = vld [vmem:[%s1713 + $0xc] sm:$0x3]
      %v1718 = vld [vmem:[%s1713 + $0x10] sm:$0x3]
      %v1719 = vld [vmem:[%s1713 + $0x14] sm:$0x3]
      %v1720 = vld [vmem:[%s1713 + $0x18] sm:$0x3]
      %v1721 = vld [vmem:[%s1713 + $0x1c] sm:$0x3]
      %v1722 = vld [vmem:[%s1713 + $0x20] sm:$0x3]
      %v1723 = vld [vmem:[%s1713 + $0x24] sm:$0x3]
      %v1724 = vld [vmem:[%s1713 + $0x28] sm:$0x3]
      %v1725 = vld [vmem:[%s1713 + $0x2c] sm:$0x3]
      %v1726 = vld [vmem:[%s1713 + $0x30] sm:$0x3]
      %v1727 = vld [vmem:[%s1713 + $0x34] sm:$0x3]
      %v1728 = vld [vmem:[%s1713 + $0x38] sm:$0x3]
      %v1729 = vld [vmem:[%s1713 + $0x3c] sm:$0x3]
      %v1730 = vcombine.low %v1714, %v1716
      %v1732 = vunpack.c.l.s4 1983009808
      %v1733 = vunpack.c.0.s8 %v1732
      %v1734 = vlaneseq
      %v1735 = vshrl.u32 %v1734, 7
      %v1736 = vsub.s32 %v1733, %v1735
      %v1737 = vrot.slane %v1730, %v1736
      %v1738 = vcombine.low %v1715, %v1717
      %v1740 = vunpack.c.l.s4 1983009808
      %v1741 = vunpack.c.0.s8 %v1740
      %v1742 = vlaneseq
      %v1743 = vshrl.u32 %v1742, 7
      %v1744 = vsub.s32 %v1741, %v1743
      %v1745 = vrot.slane %v1738, %v1744
      %v1746 = vcombine.low %v1718, %v1720
      %v1748 = vunpack.c.l.s4 1983009808
      %v1749 = vunpack.c.0.s8 %v1748
      %v1750 = vlaneseq
      %v1751 = vshrl.u32 %v1750, 7
      %v1752 = vsub.s32 %v1749, %v1751
      %v1753 = vrot.slane %v1746, %v1752
      %v1754 = vcombine.low %v1719, %v1721
      %v1756 = vunpack.c.l.s4 1983009808
      %v1757 = vunpack.c.0.s8 %v1756
      %v1758 = vlaneseq
      %v1759 = vshrl.u32 %v1758, 7
      %v1760 = vsub.s32 %v1757, %v1759
      %v1761 = vrot.slane %v1754, %v1760
      %v1762 = vcombine.low %v1737, %v1745
      %v1764 = vunpack.c.l.s4 1934713408
      %v1765 = vunpack.c.0.s8 %v1764
      %v1766 = vlaneseq
      %v1767 = vshrl.u32 %v1766, 7
      %v1768 = vsub.s32 %v1765, %v1767
      %v1769 = vrot.slane %v1762, %v1768
      %v1770 = vcombine.low %v1753, %v1761
      %v1772 = vunpack.c.l.s4 1934713408
      %v1773 = vunpack.c.0.s8 %v1772
      %v1774 = vlaneseq
      %v1775 = vshrl.u32 %v1774, 7
      %v1776 = vsub.s32 %v1773, %v1775
      %v1777 = vrot.slane %v1770, %v1776
      %v1778 = vcombine.low %v1769, %v1777
      %v1779 = vcombine.high %v1769, %v1777
      %v1780 = vcombine.low %v1722, %v1724
      %v1782 = vunpack.c.l.s4 1983009808
      %v1783 = vunpack.c.0.s8 %v1782
      %v1784 = vlaneseq
      %v1785 = vshrl.u32 %v1784, 7
      %v1786 = vsub.s32 %v1783, %v1785
      %v1787 = vrot.slane %v1780, %v1786
      %v1788 = vcombine.low %v1723, %v1725
      %v1790 = vunpack.c.l.s4 1983009808
      %v1791 = vunpack.c.0.s8 %v1790
      %v1792 = vlaneseq
      %v1793 = vshrl.u32 %v1792, 7
      %v1794 = vsub.s32 %v1791, %v1793
      %v1795 = vrot.slane %v1788, %v1794
      %v1796 = vcombine.low %v1726, %v1728
      %v1798 = vunpack.c.l.s4 1983009808
      %v1799 = vunpack.c.0.s8 %v1798
      %v1800 = vlaneseq
      %v1801 = vshrl.u32 %v1800, 7
      %v1802 = vsub.s32 %v1799, %v1801
      %v1803 = vrot.slane %v1796, %v1802
      %v1804 = vcombine.low %v1727, %v1729
      %v1806 = vunpack.c.l.s4 1983009808
      %v1807 = vunpack.c.0.s8 %v1806
      %v1808 = vlaneseq
      %v1809 = vshrl.u32 %v1808, 7
      %v1810 = vsub.s32 %v1807, %v1809
      %v1811 = vrot.slane %v1804, %v1810
      %v1812 = vcombine.low %v1787, %v1795
      %v1814 = vunpack.c.l.s4 1934713408
      %v1815 = vunpack.c.0.s8 %v1814
      %v1816 = vlaneseq
      %v1817 = vshrl.u32 %v1816, 7
      %v1818 = vsub.s32 %v1815, %v1817
      %v1819 = vrot.slane %v1812, %v1818
      %v1820 = vcombine.low %v1803, %v1811
      %v1822 = vunpack.c.l.s4 1934713408
      %v1823 = vunpack.c.0.s8 %v1822
      %v1824 = vlaneseq
      %v1825 = vshrl.u32 %v1824, 7
      %v1826 = vsub.s32 %v1823, %v1825
      %v1827 = vrot.slane %v1820, %v1826
      %v1828 = vcombine.low %v1819, %v1827
      %v1829 = vcombine.high %v1819, %v1827
      %1832 = vrot.lane.b32.xlu0 %v1779, 2
      %v1833 = vpop.permute.xlu0 %1832
      %1834 = vrot.lane.b32.xlu0 %v1829, 2
      %v1835 = vpop.permute.xlu0 %1834
      %v1838 = vsel %vm317, %v1778, %v1833
      %v1839 = vsel %vm317, %v1828, %v1835
      %s1840 = scalar_lea.vmem %s1, 192
      %v1841 = vld [vmem:[%s1840] sm:$0xff]
      %v1842 = vld [vmem:[%s1840 + $0x8] sm:$0xff]
      %v1843 = vld [vmem:[%s1840 + $0x10] sm:$0xff]
      %v1844 = vld [vmem:[%s1840 + $0x18] sm:$0xff]
      %v1846 = vsel %vm457, %v1841, 0
      %v1849 = vsel %vm457, %v1842, 0
      %v1852 = vsel %vm457, %v1843, 0
      %v1855 = vsel %vm457, %v1844, 0
      %1857 = vmatprep.subr.mxu0 0.0
      %1858 = vmatpush1.msra.mxu0 0.0
      %1859 = vmatprep.subr.mxu0 0.0
      %1860 = vmatpush1.msra.mxu0 0.0
      %1861 = vmatprep.subr.mxu0 0.0
      %1862 = vmatpush1.msra.mxu0 0.0
      %1863 = vmatprep.subr.mxu0 0.0
      %1864 = vmatpush1.msra.mxu0 0.0
      %1865 = vmatprep.subr.mxu0 0.0
      %1866 = vmatpush1.msra.mxu0 0.0
      %1867 = vmatprep.subr.mxu0 0.0
      %1868 = vmatpush1.msra.mxu0 0.0
      %1869 = vmatprep.subr.mxu0 0.0
      %1870 = vmatpush1.msra.mxu0 0.0
      %1871 = vmatprep.subr.mxu0 0.0
      %1872 = vmatpush1.msra.mxu0 0.0
      %1873 = vmatprep.subr.mxu0 0.0
      %1874 = vmatpush1.msra.mxu0 0.0
      %1875 = vmatprep.subr.mxu0 0.0
      %1876 = vmatpush1.msra.mxu0 0.0
      %1877 = vmatprep.subr.mxu0 0.0
      %1878 = vmatpush1.msra.mxu0 0.0
      %1879 = vmatprep.subr.mxu0 0.0
      %1880 = vmatpush1.msra.mxu0 0.0
      %1881 = vmatprep.subr.mxu0 0.0
      %1882 = vmatpush1.msra.mxu0 0.0
      %1883 = vmatprep.subr.mxu0 0.0
      %1884 = vmatpush1.msra.mxu0 0.0
      %1885 = vmatprep.subr.mxu0 0.0
      %1886 = vmatpush1.msra.mxu0 %v1839
      %1887 = vmatprep.subr.mxu0 0.0
      %1888 = vmatpush1.msra.mxu0 %v1838
      %1889 = vmatprep.subr.mxu0 0.0
      %1890 = vmatpush2.msra.mxu0 0.0
      %1891 = vmatprep.subr.mxu0 0.0
      %1892 = vmatpush2.msra.mxu0 0.0
      %1893 = vmatprep.subr.mxu0 0.0
      %1894 = vmatpush2.msra.mxu0 0.0
      %1895 = vmatprep.subr.mxu0 0.0
      %1896 = vmatpush2.msra.mxu0 0.0
      %1897 = vmatprep.subr.mxu0 0.0
      %1898 = vmatpush2.msra.mxu0 0.0
      %1899 = vmatprep.subr.mxu0 0.0
      %1900 = vmatpush2.msra.mxu0 0.0
      %1901 = vmatprep.subr.mxu0 0.0
      %1902 = vmatpush2.msra.mxu0 0.0
      %1903 = vmatprep.subr.mxu0 0.0
      %1904 = vmatpush2.msra.mxu0 0.0
      %1905 = vmatprep.subr.mxu0 0.0
      %1906 = vmatpush2.msra.mxu0 0.0
      %1907 = vmatprep.subr.mxu0 0.0
      %1908 = vmatpush2.msra.mxu0 0.0
      %1909 = vmatprep.subr.mxu0 0.0
      %1910 = vmatpush2.msra.mxu0 0.0
      %1911 = vmatprep.subr.mxu0 0.0
      %1912 = vmatpush2.msra.mxu0 0.0
      %1913 = vmatprep.subr.mxu0 0.0
      %1914 = vmatpush2.msra.mxu0 0.0
      %1915 = vmatprep.subr.mxu0 0.0
      %1916 = vmatpush2.msra.mxu0 0.0
      %1917 = vmatprep.subr.mxu0 0.0
      %1918 = vmatpush2.msra.mxu0 0.0
      %1919 = vmatprep.subr.mxu0 0.0
      %1920 = vmatpush2.msra.mxu0 0.0
      %1921 = vmatprep.mubr.f32.mxu0 0.0
      %1922 = vmatmul.mubr.f32.gmra.mxu0 %v1846
      %v1923 = vpop.f32.mrf.mxu0
      %v1924 = vadd.f32 0.0, %v1923
      %v1925 = vpop.f32.mrf.mxu0
      %1926 = vmatprep.mubr.f32.mxu0 0.0
      %1927 = vmatmul.mubr.f32.gmra.mxu0 %v1849
      %v1928 = vpop.f32.mrf.mxu0
      %v1929 = vadd.f32 0.0, %v1928
      %v1930 = vpop.f32.mrf.mxu0
      %1931 = vmatprep.mubr.f32.mxu0 0.0
      %1932 = vmatmul.mubr.f32.gmra.mxu0 %v1852
      %v1933 = vpop.f32.mrf.mxu0
      %v1934 = vadd.f32 0.0, %v1933
      %v1935 = vpop.f32.mrf.mxu0
      %1936 = vmatprep.mubr.f32.mxu0 0.0
      %1937 = vmatmul.mubr.f32.gmra.mxu0 %v1855
      %v1938 = vpop.f32.mrf.mxu0
      %v1939 = vadd.f32 0.0, %v1938
      %v1940 = vpop.f32.mrf.mxu0
      %1941 = vdwg.mxu0
      %v1942 = vadd.f32 %v1708, %v1924
      %v1943 = vadd.f32 %v1709, %v1929
      %v1944 = vadd.f32 %v1710, %v1934
      %v1945 = vadd.f32 %v1711, %v1939
      %s1946 = sadd.s32 %s1712, 64
      %s1947 = scalar_lea.vmem %s182, %s1946
      %v1948 = vld [vmem:[%s1947] sm:$0x3]
      %v1949 = vld [vmem:[%s1947 + $0x4] sm:$0x3]
      %v1950 = vld [vmem:[%s1947 + $0x8] sm:$0x3]
      %v1951 = vld [vmem:[%s1947 + $0xc] sm:$0x3]
      %v1952 = vld [vmem:[%s1947 + $0x10] sm:$0x3]
      %v1953 = vld [vmem:[%s1947 + $0x14] sm:$0x3]
      %v1954 = vld [vmem:[%s1947 + $0x18] sm:$0x3]
      %v1955 = vld [vmem:[%s1947 + $0x1c] sm:$0x3]
      %v1956 = vld [vmem:[%s1947 + $0x20] sm:$0x3]
      %v1957 = vld [vmem:[%s1947 + $0x24] sm:$0x3]
      %v1958 = vld [vmem:[%s1947 + $0x28] sm:$0x3]
      %v1959 = vld [vmem:[%s1947 + $0x2c] sm:$0x3]
      %v1960 = vld [vmem:[%s1947 + $0x30] sm:$0x3]
      %v1961 = vld [vmem:[%s1947 + $0x34] sm:$0x3]
      %v1962 = vld [vmem:[%s1947 + $0x38] sm:$0x3]
      %v1963 = vld [vmem:[%s1947 + $0x3c] sm:$0x3]
      %v1964 = vcombine.low %v1948, %v1950
      %v1966 = vunpack.c.l.s4 1983009808
      %v1967 = vunpack.c.0.s8 %v1966
      %v1968 = vlaneseq
      %v1969 = vshrl.u32 %v1968, 7
      %v1970 = vsub.s32 %v1967, %v1969
      %v1971 = vrot.slane %v1964, %v1970
      %v1972 = vcombine.low %v1949, %v1951
      %v1974 = vunpack.c.l.s4 1983009808
      %v1975 = vunpack.c.0.s8 %v1974
      %v1976 = vlaneseq
      %v1977 = vshrl.u32 %v1976, 7
      %v1978 = vsub.s32 %v1975, %v1977
      %v1979 = vrot.slane %v1972, %v1978
      %v1980 = vcombine.low %v1952, %v1954
      %v1982 = vunpack.c.l.s4 1983009808
      %v1983 = vunpack.c.0.s8 %v1982
      %v1984 = vlaneseq
      %v1985 = vshrl.u32 %v1984, 7
      %v1986 = vsub.s32 %v1983, %v1985
      %v1987 = vrot.slane %v1980, %v1986
      %v1988 = vcombine.low %v1953, %v1955
      %v1990 = vunpack.c.l.s4 1983009808
      %v1991 = vunpack.c.0.s8 %v1990
      %v1992 = vlaneseq
      %v1993 = vshrl.u32 %v1992, 7
      %v1994 = vsub.s32 %v1991, %v1993
      %v1995 = vrot.slane %v1988, %v1994
      %v1996 = vcombine.low %v1971, %v1979
      %v1998 = vunpack.c.l.s4 1934713408
      %v1999 = vunpack.c.0.s8 %v1998
      %v2000 = vlaneseq
      %v2001 = vshrl.u32 %v2000, 7
      %v2002 = vsub.s32 %v1999, %v2001
      %v2003 = vrot.slane %v1996, %v2002
      %v2004 = vcombine.low %v1987, %v1995
      %v2006 = vunpack.c.l.s4 1934713408
      %v2007 = vunpack.c.0.s8 %v2006
      %v2008 = vlaneseq
      %v2009 = vshrl.u32 %v2008, 7
      %v2010 = vsub.s32 %v2007, %v2009
      %v2011 = vrot.slane %v2004, %v2010
      %v2012 = vcombine.low %v2003, %v2011
      %v2013 = vcombine.high %v2003, %v2011
      %v2014 = vcombine.low %v1956, %v1958
      %v2016 = vunpack.c.l.s4 1983009808
      %v2017 = vunpack.c.0.s8 %v2016
      %v2018 = vlaneseq
      %v2019 = vshrl.u32 %v2018, 7
      %v2020 = vsub.s32 %v2017, %v2019
      %v2021 = vrot.slane %v2014, %v2020
      %v2022 = vcombine.low %v1957, %v1959
      %v2024 = vunpack.c.l.s4 1983009808
      %v2025 = vunpack.c.0.s8 %v2024
      %v2026 = vlaneseq
      %v2027 = vshrl.u32 %v2026, 7
      %v2028 = vsub.s32 %v2025, %v2027
      %v2029 = vrot.slane %v2022, %v2028
      %v2030 = vcombine.low %v1960, %v1962
      %v2032 = vunpack.c.l.s4 1983009808
      %v2033 = vunpack.c.0.s8 %v2032
      %v2034 = vlaneseq
      %v2035 = vshrl.u32 %v2034, 7
      %v2036 = vsub.s32 %v2033, %v2035
      %v2037 = vrot.slane %v2030, %v2036
      %v2038 = vcombine.low %v1961, %v1963
      %v2040 = vunpack.c.l.s4 1983009808
      %v2041 = vunpack.c.0.s8 %v2040
      %v2042 = vlaneseq
      %v2043 = vshrl.u32 %v2042, 7
      %v2044 = vsub.s32 %v2041, %v2043
      %v2045 = vrot.slane %v2038, %v2044
      %v2046 = vcombine.low %v2021, %v2029
      %v2048 = vunpack.c.l.s4 1934713408
      %v2049 = vunpack.c.0.s8 %v2048
      %v2050 = vlaneseq
      %v2051 = vshrl.u32 %v2050, 7
      %v2052 = vsub.s32 %v2049, %v2051
      %v2053 = vrot.slane %v2046, %v2052
      %v2054 = vcombine.low %v2037, %v2045
      %v2056 = vunpack.c.l.s4 1934713408
      %v2057 = vunpack.c.0.s8 %v2056
      %v2058 = vlaneseq
      %v2059 = vshrl.u32 %v2058, 7
      %v2060 = vsub.s32 %v2057, %v2059
      %v2061 = vrot.slane %v2054, %v2060
      %v2062 = vcombine.low %v2053, %v2061
      %v2063 = vcombine.high %v2053, %v2061
      %2066 = vrot.lane.b32.xlu0 %v2013, 2
      %v2067 = vpop.permute.xlu0 %2066
      %2068 = vrot.lane.b32.xlu0 %v2063, 2
      %v2069 = vpop.permute.xlu0 %2068
      %v2072 = vsel %vm317, %v2012, %v2067
      %v2073 = vsel %vm317, %v2062, %v2069
      %s2074 = scalar_lea.vmem %s1, 224
      %v2075 = vld [vmem:[%s2074] sm:$0xff]
      %v2076 = vld [vmem:[%s2074 + $0x8] sm:$0xff]
      %v2077 = vld [vmem:[%s2074 + $0x10] sm:$0xff]
      %v2078 = vld [vmem:[%s2074 + $0x18] sm:$0xff]
      %v2080 = vsel %vm457, %v2075, 0
      %v2083 = vsel %vm457, %v2076, 0
      %v2086 = vsel %vm457, %v2077, 0
      %v2089 = vsel %vm457, %v2078, 0
      %2091 = vmatprep.subr.mxu0 0.0
      %2092 = vmatpush1.msra.mxu0 0.0
      %2093 = vmatprep.subr.mxu0 0.0
      %2094 = vmatpush1.msra.mxu0 0.0
      %2095 = vmatprep.subr.mxu0 0.0
      %2096 = vmatpush1.msra.mxu0 0.0
      %2097 = vmatprep.subr.mxu0 0.0
      %2098 = vmatpush1.msra.mxu0 0.0
      %2099 = vmatprep.subr.mxu0 0.0
      %2100 = vmatpush1.msra.mxu0 0.0
      %2101 = vmatprep.subr.mxu0 0.0
      %2102 = vmatpush1.msra.mxu0 0.0
      %2103 = vmatprep.subr.mxu0 0.0
      %2104 = vmatpush1.msra.mxu0 0.0
      %2105 = vmatprep.subr.mxu0 0.0
      %2106 = vmatpush1.msra.mxu0 0.0
      %2107 = vmatprep.subr.mxu0 0.0
      %2108 = vmatpush1.msra.mxu0 0.0
      %2109 = vmatprep.subr.mxu0 0.0
      %2110 = vmatpush1.msra.mxu0 0.0
      %2111 = vmatprep.subr.mxu0 0.0
      %2112 = vmatpush1.msra.mxu0 0.0
      %2113 = vmatprep.subr.mxu0 0.0
      %2114 = vmatpush1.msra.mxu0 0.0
      %2115 = vmatprep.subr.mxu0 0.0
      %2116 = vmatpush1.msra.mxu0 0.0
      %2117 = vmatprep.subr.mxu0 0.0
      %2118 = vmatpush1.msra.mxu0 0.0
      %2119 = vmatprep.subr.mxu0 0.0
      %2120 = vmatpush1.msra.mxu0 %v2073
      %2121 = vmatprep.subr.mxu0 0.0
      %2122 = vmatpush1.msra.mxu0 %v2072
      %2123 = vmatprep.subr.mxu0 0.0
      %2124 = vmatpush2.msra.mxu0 0.0
      %2125 = vmatprep.subr.mxu0 0.0
      %2126 = vmatpush2.msra.mxu0 0.0
      %2127 = vmatprep.subr.mxu0 0.0
      %2128 = vmatpush2.msra.mxu0 0.0
      %2129 = vmatprep.subr.mxu0 0.0
      %2130 = vmatpush2.msra.mxu0 0.0
      %2131 = vmatprep.subr.mxu0 0.0
      %2132 = vmatpush2.msra.mxu0 0.0
      %2133 = vmatprep.subr.mxu0 0.0
      %2134 = vmatpush2.msra.mxu0 0.0
      %2135 = vmatprep.subr.mxu0 0.0
      %2136 = vmatpush2.msra.mxu0 0.0
      %2137 = vmatprep.subr.mxu0 0.0
      %2138 = vmatpush2.msra.mxu0 0.0
      %2139 = vmatprep.subr.mxu0 0.0
      %2140 = vmatpush2.msra.mxu0 0.0
      %2141 = vmatprep.subr.mxu0 0.0
      %2142 = vmatpush2.msra.mxu0 0.0
      %2143 = vmatprep.subr.mxu0 0.0
      %2144 = vmatpush2.msra.mxu0 0.0
      %2145 = vmatprep.subr.mxu0 0.0
      %2146 = vmatpush2.msra.mxu0 0.0
      %2147 = vmatprep.subr.mxu0 0.0
      %2148 = vmatpush2.msra.mxu0 0.0
      %2149 = vmatprep.subr.mxu0 0.0
      %2150 = vmatpush2.msra.mxu0 0.0
      %2151 = vmatprep.subr.mxu0 0.0
      %2152 = vmatpush2.msra.mxu0 0.0
      %2153 = vmatprep.subr.mxu0 0.0
      %2154 = vmatpush2.msra.mxu0 0.0
      %2155 = vmatprep.mubr.f32.mxu0 0.0
      %2156 = vmatmul.mubr.f32.gmra.mxu0 %v2080
      %v2157 = vpop.f32.mrf.mxu0
      %v2158 = vadd.f32 0.0, %v2157
      %v2159 = vpop.f32.mrf.mxu0
      %2160 = vmatprep.mubr.f32.mxu0 0.0
      %2161 = vmatmul.mubr.f32.gmra.mxu0 %v2083
      %v2162 = vpop.f32.mrf.mxu0
      %v2163 = vadd.f32 0.0, %v2162
      %v2164 = vpop.f32.mrf.mxu0
      %2165 = vmatprep.mubr.f32.mxu0 0.0
      %2166 = vmatmul.mubr.f32.gmra.mxu0 %v2086
      %v2167 = vpop.f32.mrf.mxu0
      %v2168 = vadd.f32 0.0, %v2167
      %v2169 = vpop.f32.mrf.mxu0
      %2170 = vmatprep.mubr.f32.mxu0 0.0
      %2171 = vmatmul.mubr.f32.gmra.mxu0 %v2089
      %v2172 = vpop.f32.mrf.mxu0
      %v2173 = vadd.f32 0.0, %v2172
      %v2174 = vpop.f32.mrf.mxu0
      %2175 = vdwg.mxu0
      %v2176 = vadd.f32 %v1942, %v2158
      %v2177 = vadd.f32 %v1943, %v2163
      %v2178 = vadd.f32 %v1944, %v2168
      %v2179 = vadd.f32 %v1945, %v2173
      %v2180 = vld [vmem:[%s1713] sm:$0x3]
      %v2181 = vld [vmem:[%s1713 + $0x4] sm:$0x3]
      %v2182 = vld [vmem:[%s1713 + $0x8] sm:$0x3]
      %v2183 = vld [vmem:[%s1713 + $0xc] sm:$0x3]
      %v2184 = vld [vmem:[%s1713 + $0x10] sm:$0x3]
      %v2185 = vld [vmem:[%s1713 + $0x14] sm:$0x3]
      %v2186 = vld [vmem:[%s1713 + $0x18] sm:$0x3]
      %v2187 = vld [vmem:[%s1713 + $0x1c] sm:$0x3]
      %v2188 = vld [vmem:[%s1713 + $0x20] sm:$0x3]
      %v2189 = vld [vmem:[%s1713 + $0x24] sm:$0x3]
      %v2190 = vld [vmem:[%s1713 + $0x28] sm:$0x3]
      %v2191 = vld [vmem:[%s1713 + $0x2c] sm:$0x3]
      %v2192 = vld [vmem:[%s1713 + $0x30] sm:$0x3]
      %v2193 = vld [vmem:[%s1713 + $0x34] sm:$0x3]
      %v2194 = vld [vmem:[%s1713 + $0x38] sm:$0x3]
      %v2195 = vld [vmem:[%s1713 + $0x3c] sm:$0x3]
      %2212 = vrot.lane.b32.xlu0 %v2180, 127
      %v2213 = vpop.permute.xlu0 %2212
      %2214 = vrot.lane.b32.xlu0 %v2181, 127
      %v2215 = vpop.permute.xlu0 %2214
      %2216 = vrot.lane.b32.xlu0 %v2182, 127
      %v2217 = vpop.permute.xlu0 %2216
      %2218 = vrot.lane.b32.xlu0 %v2183, 127
      %v2219 = vpop.permute.xlu0 %2218
      %2220 = vrot.lane.b32.xlu0 %v2184, 127
      %v2221 = vpop.permute.xlu0 %2220
      %2222 = vrot.lane.b32.xlu0 %v2185, 127
      %v2223 = vpop.permute.xlu0 %2222
      %2224 = vrot.lane.b32.xlu0 %v2186, 127
      %v2225 = vpop.permute.xlu0 %2224
      %2226 = vrot.lane.b32.xlu0 %v2187, 127
      %v2227 = vpop.permute.xlu0 %2226
      %2228 = vrot.lane.b32.xlu0 %v2188, 127
      %v2229 = vpop.permute.xlu0 %2228
      %2230 = vrot.lane.b32.xlu0 %v2189, 127
      %v2231 = vpop.permute.xlu0 %2230
      %2232 = vrot.lane.b32.xlu0 %v2190, 127
      %v2233 = vpop.permute.xlu0 %2232
      %2234 = vrot.lane.b32.xlu0 %v2191, 127
      %v2235 = vpop.permute.xlu0 %2234
      %2236 = vrot.lane.b32.xlu0 %v2192, 127
      %v2237 = vpop.permute.xlu0 %2236
      %2238 = vrot.lane.b32.xlu0 %v2193, 127
      %v2239 = vpop.permute.xlu0 %2238
      %2240 = vrot.lane.b32.xlu0 %v2194, 127
      %v2241 = vpop.permute.xlu0 %2240
      %2242 = vrot.lane.b32.xlu0 %v2195, 127
      %v2243 = vpop.permute.xlu0 %2242
      %v2260 = vcombine.low %v2213, %v2217
      %v2262 = vunpack.c.l.s4 1983009808
      %v2263 = vunpack.c.0.s8 %v2262
      %v2264 = vlaneseq
      %v2265 = vshrl.u32 %v2264, 7
      %v2266 = vsub.s32 %v2263, %v2265
      %v2267 = vrot.slane %v2260, %v2266
      %v2268 = vcombine.low %v2215, %v2219
      %v2270 = vunpack.c.l.s4 1983009808
      %v2271 = vunpack.c.0.s8 %v2270
      %v2272 = vlaneseq
      %v2273 = vshrl.u32 %v2272, 7
      %v2274 = vsub.s32 %v2271, %v2273
      %v2275 = vrot.slane %v2268, %v2274
      %v2276 = vcombine.low %v2221, %v2225
      %v2278 = vunpack.c.l.s4 1983009808
      %v2279 = vunpack.c.0.s8 %v2278
      %v2280 = vlaneseq
      %v2281 = vshrl.u32 %v2280, 7
      %v2282 = vsub.s32 %v2279, %v2281
      %v2283 = vrot.slane %v2276, %v2282
      %v2284 = vcombine.low %v2223, %v2227
      %v2286 = vunpack.c.l.s4 1983009808
      %v2287 = vunpack.c.0.s8 %v2286
      %v2288 = vlaneseq
      %v2289 = vshrl.u32 %v2288, 7
      %v2290 = vsub.s32 %v2287, %v2289
      %v2291 = vrot.slane %v2284, %v2290
      %v2292 = vcombine.low %v2267, %v2275
      %v2294 = vunpack.c.l.s4 1934713408
      %v2295 = vunpack.c.0.s8 %v2294
      %v2296 = vlaneseq
      %v2297 = vshrl.u32 %v2296, 7
      %v2298 = vsub.s32 %v2295, %v2297
      %v2299 = vrot.slane %v2292, %v2298
      %v2300 = vcombine.low %v2283, %v2291
      %v2302 = vunpack.c.l.s4 1934713408
      %v2303 = vunpack.c.0.s8 %v2302
      %v2304 = vlaneseq
      %v2305 = vshrl.u32 %v2304, 7
      %v2306 = vsub.s32 %v2303, %v2305
      %v2307 = vrot.slane %v2300, %v2306
      %v2308 = vcombine.low %v2299, %v2307
      %v2309 = vcombine.high %v2299, %v2307
      %v2310 = vcombine.low %v2229, %v2233
      %v2312 = vunpack.c.l.s4 1983009808
      %v2313 = vunpack.c.0.s8 %v2312
      %v2314 = vlaneseq
      %v2315 = vshrl.u32 %v2314, 7
      %v2316 = vsub.s32 %v2313, %v2315
      %v2317 = vrot.slane %v2310, %v2316
      %v2318 = vcombine.low %v2231, %v2235
      %v2320 = vunpack.c.l.s4 1983009808
      %v2321 = vunpack.c.0.s8 %v2320
      %v2322 = vlaneseq
      %v2323 = vshrl.u32 %v2322, 7
      %v2324 = vsub.s32 %v2321, %v2323
      %v2325 = vrot.slane %v2318, %v2324
      %v2326 = vcombine.low %v2237, %v2241
      %v2328 = vunpack.c.l.s4 1983009808
      %v2329 = vunpack.c.0.s8 %v2328
      %v2330 = vlaneseq
      %v2331 = vshrl.u32 %v2330, 7
      %v2332 = vsub.s32 %v2329, %v2331
      %v2333 = vrot.slane %v2326, %v2332
      %v2334 = vcombine.low %v2239, %v2243
      %v2336 = vunpack.c.l.s4 1983009808
      %v2337 = vunpack.c.0.s8 %v2336
      %v2338 = vlaneseq
      %v2339 = vshrl.u32 %v2338, 7
      %v2340 = vsub.s32 %v2337, %v2339
      %v2341 = vrot.slane %v2334, %v2340
      %v2342 = vcombine.low %v2317, %v2325
      %v2344 = vunpack.c.l.s4 1934713408
      %v2345 = vunpack.c.0.s8 %v2344
      %v2346 = vlaneseq
      %v2347 = vshrl.u32 %v2346, 7
      %v2348 = vsub.s32 %v2345, %v2347
      %v2349 = vrot.slane %v2342, %v2348
      %v2350 = vcombine.low %v2333, %v2341
      %v2352 = vunpack.c.l.s4 1934713408
      %v2353 = vunpack.c.0.s8 %v2352
      %v2354 = vlaneseq
      %v2355 = vshrl.u32 %v2354, 7
      %v2356 = vsub.s32 %v2353, %v2355
      %v2357 = vrot.slane %v2350, %v2356
      %v2358 = vcombine.low %v2349, %v2357
      %v2359 = vcombine.high %v2349, %v2357
      %2362 = vrot.lane.b32.xlu0 %v2309, 2
      %v2363 = vpop.permute.xlu0 %2362
      %2364 = vrot.lane.b32.xlu0 %v2359, 2
      %v2365 = vpop.permute.xlu0 %2364
      %v2368 = vsel %vm317, %v2308, %v2363
      %v2369 = vsel %vm317, %v2358, %v2365
      %s2370 = scalar_lea.vmem %s1, 256
      %v2371 = vld [vmem:[%s2370] sm:$0xff]
      %v2372 = vld [vmem:[%s2370 + $0x8] sm:$0xff]
      %v2373 = vld [vmem:[%s2370 + $0x10] sm:$0xff]
      %v2374 = vld [vmem:[%s2370 + $0x18] sm:$0xff]
      %v2376 = vsel %vm457, %v2371, 0
      %v2379 = vsel %vm457, %v2372, 0
      %v2382 = vsel %vm457, %v2373, 0
      %v2385 = vsel %vm457, %v2374, 0
      %2387 = vmatprep.subr.mxu0 0.0
      %2388 = vmatpush1.msra.mxu0 0.0
      %2389 = vmatprep.subr.mxu0 0.0
      %2390 = vmatpush1.msra.mxu0 0.0
      %2391 = vmatprep.subr.mxu0 0.0
      %2392 = vmatpush1.msra.mxu0 0.0
      %2393 = vmatprep.subr.mxu0 0.0
      %2394 = vmatpush1.msra.mxu0 0.0
      %2395 = vmatprep.subr.mxu0 0.0
      %2396 = vmatpush1.msra.mxu0 0.0
      %2397 = vmatprep.subr.mxu0 0.0
      %2398 = vmatpush1.msra.mxu0 0.0
      %2399 = vmatprep.subr.mxu0 0.0
      %2400 = vmatpush1.msra.mxu0 0.0
      %2401 = vmatprep.subr.mxu0 0.0
      %2402 = vmatpush1.msra.mxu0 0.0
      %2403 = vmatprep.subr.mxu0 0.0
      %2404 = vmatpush1.msra.mxu0 0.0
      %2405 = vmatprep.subr.mxu0 0.0
      %2406 = vmatpush1.msra.mxu0 0.0
      %2407 = vmatprep.subr.mxu0 0.0
      %2408 = vmatpush1.msra.mxu0 0.0
      %2409 = vmatprep.subr.mxu0 0.0
      %2410 = vmatpush1.msra.mxu0 0.0
      %2411 = vmatprep.subr.mxu0 0.0
      %2412 = vmatpush1.msra.mxu0 0.0
      %2413 = vmatprep.subr.mxu0 0.0
      %2414 = vmatpush1.msra.mxu0 0.0
      %2415 = vmatprep.subr.mxu0 0.0
      %2416 = vmatpush1.msra.mxu0 %v2369
      %2417 = vmatprep.subr.mxu0 0.0
      %2418 = vmatpush1.msra.mxu0 %v2368
      %2419 = vmatprep.subr.mxu0 0.0
      %2420 = vmatpush2.msra.mxu0 0.0
      %2421 = vmatprep.subr.mxu0 0.0
      %2422 = vmatpush2.msra.mxu0 0.0
      %2423 = vmatprep.subr.mxu0 0.0
      %2424 = vmatpush2.msra.mxu0 0.0
      %2425 = vmatprep.subr.mxu0 0.0
      %2426 = vmatpush2.msra.mxu0 0.0
      %2427 = vmatprep.subr.mxu0 0.0
      %2428 = vmatpush2.msra.mxu0 0.0
      %2429 = vmatprep.subr.mxu0 0.0
      %2430 = vmatpush2.msra.mxu0 0.0
      %2431 = vmatprep.subr.mxu0 0.0
      %2432 = vmatpush2.msra.mxu0 0.0
      %2433 = vmatprep.subr.mxu0 0.0
      %2434 = vmatpush2.msra.mxu0 0.0
      %2435 = vmatprep.subr.mxu0 0.0
      %2436 = vmatpush2.msra.mxu0 0.0
      %2437 = vmatprep.subr.mxu0 0.0
      %2438 = vmatpush2.msra.mxu0 0.0
      %2439 = vmatprep.subr.mxu0 0.0
      %2440 = vmatpush2.msra.mxu0 0.0
      %2441 = vmatprep.subr.mxu0 0.0
      %2442 = vmatpush2.msra.mxu0 0.0
      %2443 = vmatprep.subr.mxu0 0.0
      %2444 = vmatpush2.msra.mxu0 0.0
      %2445 = vmatprep.subr.mxu0 0.0
      %2446 = vmatpush2.msra.mxu0 0.0
      %2447 = vmatprep.subr.mxu0 0.0
      %2448 = vmatpush2.msra.mxu0 0.0
      %2449 = vmatprep.subr.mxu0 0.0
      %2450 = vmatpush2.msra.mxu0 0.0
      %2451 = vmatprep.mubr.f32.mxu0 0.0
      %2452 = vmatmul.mubr.f32.gmra.mxu0 %v2376
      %v2453 = vpop.f32.mrf.mxu0
      %v2454 = vadd.f32 0.0, %v2453
      %v2455 = vpop.f32.mrf.mxu0
      %2456 = vmatprep.mubr.f32.mxu0 0.0
      %2457 = vmatmul.mubr.f32.gmra.mxu0 %v2379
      %v2458 = vpop.f32.mrf.mxu0
      %v2459 = vadd.f32 0.0, %v2458
      %v2460 = vpop.f32.mrf.mxu0
      %2461 = vmatprep.mubr.f32.mxu0 0.0
      %2462 = vmatmul.mubr.f32.gmra.mxu0 %v2382
      %v2463 = vpop.f32.mrf.mxu0
      %v2464 = vadd.f32 0.0, %v2463
      %v2465 = vpop.f32.mrf.mxu0
      %2466 = vmatprep.mubr.f32.mxu0 0.0
      %2467 = vmatmul.mubr.f32.gmra.mxu0 %v2385
      %v2468 = vpop.f32.mrf.mxu0
      %v2469 = vadd.f32 0.0, %v2468
      %v2470 = vpop.f32.mrf.mxu0
      %2471 = vdwg.mxu0
      %v2472 = vadd.f32 %v2176, %v2454
      %v2473 = vadd.f32 %v2177, %v2459
      %v2474 = vadd.f32 %v2178, %v2464
      %v2475 = vadd.f32 %v2179, %v2469
      %v2476 = vld [vmem:[%s2] sm:$0xff]
      %v2477 = vld [vmem:[%s2 + $0x8] sm:$0xff]
      %v2478 = vld [vmem:[%s2 + $0x10] sm:$0xff]
      %v2479 = vld [vmem:[%s2 + $0x18] sm:$0xff]
      %2481 = vset.pattern.permute.xlu0 0
      %2482 = vperm.xlu0 %2481, %v2476
      %v2483 = vpop.permute.xlu0 %2482
      %2486 = vset.pattern.permute.xlu0 0
      %2487 = vperm.xlu0 %2486, %v2477
      %v2488 = vpop.permute.xlu0 %2487
      %2491 = vset.pattern.permute.xlu0 0
      %2492 = vperm.xlu0 %2491, %v2478
      %v2493 = vpop.permute.xlu0 %2492
      %2496 = vset.pattern.permute.xlu0 0
      %2497 = vperm.xlu0 %2496, %v2479
      %v2498 = vpop.permute.xlu0 %2497
      %v2500 = vadd.f32 %v2472, %v2483
      %v2501 = vadd.f32 %v2473, %v2488
      %v2502 = vadd.f32 %v2474, %v2493
      %v2503 = vadd.f32 %v2475, %v2498
      %vm2504 = vcmp.gt.f32.partialorder %v2500, 0.0
      %vm2505 = vcmp.gt.f32.partialorder %v2501, 0.0
      %vm2506 = vcmp.gt.f32.partialorder %v2502, 0.0
      %vm2507 = vcmp.gt.f32.partialorder %v2503, 0.0
      %v2508 = vmul.f32 %v2500, 0.2
      %v2509 = vmul.f32 %v2501, 0.2
      %v2510 = vmul.f32 %v2502, 0.2
      %v2511 = vmul.f32 %v2503, 0.2
      %v2512 = vsel %vm2504, %v2500, %v2508
      %v2513 = vsel %vm2505, %v2501, %v2509
      %v2514 = vsel %vm2506, %v2502, %v2510
      %v2515 = vsel %vm2507, %v2503, %v2511
      %vm2516 = vcmask 31744
      %2517 = vst.msk [vmem:[%s190] sm:$0xff] %vm2516, %v2512
      %2518 = vst.msk [vmem:[%s190 + $0x8] sm:$0xff] %vm2516, %v2513
      %2519 = vst.msk [vmem:[%s190 + $0x10] sm:$0xff] %vm2516, %v2514
      %2520 = vst.msk [vmem:[%s190 + $0x18] sm:$0xff] %vm2516, %v2515
      %p2521 = scmp.lt.s32.totalorder %s18, 1
      %s2522 = scalar_select %p2521, %s18, 1
      %p2523 = scmp.lt.s32.totalorder %s19, 0
      %s2524 = scalar_select %p2523, %s19, 0
      %s2525 = smul.addr %s2522, 4
      %s2526 = sadd.s32 %s2524, %s2525
      %s2527 = smul.addr %s2526, 8
      %s2528 = scalar_lea.vmem %s3, %s2527
      // Predicated region
      $region33: #{fwd.7} parent=31 // pred_check
        %p2529 = pneg %p114
      $region34: #{fwd.7} parent=31 // pred_check_branch
        %2531 = sbr.rel (%p2529) target = $region36
      $region35: #{fwd.7} parent=31 // pred_region
        _
      $region36: #{fwd.7} parent=31 // pred_fallthru
        _
    $region32: #{fwd.7} parent=5 // pred_fallthru
      _
    %p2532 = scmp.le.s32.totalorder 2, %s9
    // Predicated region
    $region37: #{fwd.7} parent=5 // pred_check
      %p2533 = pneg %p2532
    $region38: #{fwd.7} parent=5 // pred_check_branch
      %2535 = sbr.rel (%p2533) target = $region40
    $region39: #{fwd.7} parent=5 // pred_region
      %s2536 = ssub.s32 %s9, 2
      // Predicated region
      $region41: #{fwd.7} parent=39 // pred_check
        %p2537 = pneg %p120
      $region42: #{fwd.7} parent=39 // pred_check_branch
        %2539 = sbr.rel (%p2537) target = $region44
      $region43: #{fwd.7} parent=39 // pred_region
        %p2540 = scmp.lt.s32.totalorder %s20, 1
        %s2541 = scalar_select %p2540, %s20, 1
        %p2542 = scmp.lt.s32.totalorder %s21, 0
        %s2543 = scalar_select %p2542, %s21, 0
        %s2544 = smul.addr %s2541, 4
        %s2545 = sadd.s32 %s2543, %s2544
        %s2546 = smul.addr %s2545, 8
        %s2547 = scalar_lea.vmem %s3, %s2546
      $region44: #{fwd.7} parent=39 // pred_fallthru
        _
    $region40: #{fwd.7} parent=5 // pred_fallthru
      _
  $region6: #{fwd.7} parent=0 // loop_footer
    %s13 = sadd.s32 1, %s9
  $region7: #{fwd.7} parent=0 // loop_footer_branch
    %8 = sbr.rel target = $region3
  $region8: #{fwd.7} parent=0 // loop_exit
    _

// kernel: fwd.8
$region0: #{fwd.8}
  #allocation0 [shape = 'u32[]', space=smem, size = 0x4, offset = 0x4, fixed_abs, tag = 'smem constant byte address 0x4 - core index']
  #allocation1 [shape = 'u32[144,128]{1,0:T(1,128)}', space=vmem, size = 0x12000, scoped, tag = 'internal scratch']
  %s0 = inlined_call_operand.vmem [shape: f32[2,4,32,2,2], index: 0, kind: input, shape index: {}]
  %s1 = inlined_call_operand.vmem [shape: f32[9,64,32], index: 1, kind: input, shape index: {}]
  %s2 = inlined_call_operand.vmem [shape: f32[64,1], index: 2, kind: input, shape index: {}]
  %s3 = inlined_call_operand.vmem [shape: f32[2,64,1], index: 3, kind: output, shape index: {}]
  %s4 = sld [smem:[#allocation0]]
  $region45: #{fwd.8} parent=0
    _
  %s6 = ssub.s32 1, %s4
  %s7 = scalar_select 0, %s6, %s4
  loop: start=0, step=1, limit=4
  $region2: #{fwd.8} parent=0 // loop_pre_header
    _
  $region3: #{fwd.8} parent=0 // loop_header
    %s9 = sphi 0, %s13
    %p10 = scmp.ge.s32.totalorder %s9, 4
    %s16 = sphi 0, %s28
    %s17 = sphi 0, %s24
    %s18 = sphi 0, %s16
    %s19 = sphi 0, %s17
    %s20 = sphi 0, %s18
    %s21 = sphi 0, %s19
    %s31 = sphi 0, %s33
    %s34 = sphi 0, %s31
    %s35 = sphi 0, %s34
    %s51 = sphi 0, %s35
    %s55 = sphi 0, %s55
    %s57 = sphi 0, %s55
    %s58 = sphi 0, %s57
    %s72 = sphi 0, %s58
    %s76 = sphi 0, %s76
    %s78 = sphi 0, %s76
    %s79 = sphi 0, %s78
    %s93 = sphi 0, %s79
    %s101 = sphi 0, %s103
    %s104 = sphi 0, %s101
    %s105 = sphi 0, %s104
    %s121 = sphi 0, %s105
  $region4: #{fwd.8} parent=0 // loop_header_branch
    %12 = sbr.rel (%p10) target = $region8
  $region5: #{fwd.8} parent=0 // loop_body
    %s14 = ssub.s32 %s9, 1
    %s15 = ssub.s32 %s9, 2
    %s22 = sadd.s32 1, %s17
    %p23 = scmp.ge.s32.totalorder %s22, 1
    %s24 = scalar_select %p23, 0, %s22
    %s25 = sadd.s32 1, %s16
    %s26 = scalar_select %p23, %s25, %s16
    %p27 = scmp.ge.s32.totalorder %s26, 2
    %s28 = scalar_select %p27, 0, %s26
    %s29 = ssub.s32 %s16, %s28
    %p30 = scmp.eq.s32.totalorder %s29, 0
    %s32 = sadd.s32 %s31, 1
    %s33 = scalar_select %p30, %s31, %s32
    %p36 = pneg %p30
    %p37 = scmp.eq.s32.totalorder %s9, 1
    %p38 = por %p36, %p37
    %p39 = scmp.ne.s32.totalorder %s31, %s34
    %p40 = scmp.eq.s32.totalorder %s9, 0
    %p41 = por %p39, %p40
    %p42 = scmp.ne.s32.totalorder %s31, %s34
    %p43 = scmp.eq.s32.totalorder %s14, 1
    %p44 = por %p42, %p43
    %p45 = scmp.ne.s32.totalorder %s34, %s35
    %p46 = scmp.eq.s32.totalorder %s14, 0
    %p47 = por %p45, %p46
    %p48 = scmp.ne.s32.totalorder %s34, %s35
    %p49 = scmp.eq.s32.totalorder %s15, 1
    %p50 = por %p48, %p49
    %p52 = scmp.ne.s32.totalorder %s35, %s51
    %p53 = scmp.eq.s32.totalorder %s15, 0
    %p54 = por %p52, %p53
    %s56 = sadd.s32 %s55, 1
    %p59 = scmp.eq.s32.totalorder %s9, 1
    %p60 = scmp.ne.s32.totalorder %s55, %s57
    %p61 = scmp.eq.s32.totalorder %s9, 0
    %p62 = por %p60, %p61
    %p63 = scmp.ne.s32.totalorder %s55, %s57
    %p64 = scmp.eq.s32.totalorder %s14, 1
    %p65 = por %p63, %p64
    %p66 = scmp.ne.s32.totalorder %s57, %s58
    %p67 = scmp.eq.s32.totalorder %s14, 0
    %p68 = por %p66, %p67
    %p69 = scmp.ne.s32.totalorder %s57, %s58
    %p70 = scmp.eq.s32.totalorder %s15, 1
    %p71 = por %p69, %p70
    %p73 = scmp.ne.s32.totalorder %s58, %s72
    %p74 = scmp.eq.s32.totalorder %s15, 0
    %p75 = por %p73, %p74
    %s77 = sadd.s32 %s76, 1
    %p80 = scmp.eq.s32.totalorder %s9, 1
    %p81 = scmp.ne.s32.totalorder %s76, %s78
    %p82 = scmp.eq.s32.totalorder %s9, 0
    %p83 = por %p81, %p82
    %p84 = scmp.ne.s32.totalorder %s76, %s78
    %p85 = scmp.eq.s32.totalorder %s14, 1
    %p86 = por %p84, %p85
    %p87 = scmp.ne.s32.totalorder %s78, %s79
    %p88 = scmp.eq.s32.totalorder %s14, 0
    %p89 = por %p87, %p88
    %p90 = scmp.ne.s32.totalorder %s78, %s79
    %p91 = scmp.eq.s32.totalorder %s15, 1
    %p92 = por %p90, %p91
    %p94 = scmp.ne.s32.totalorder %s79, %s93
    %p95 = scmp.eq.s32.totalorder %s15, 0
    %p96 = por %p94, %p95
    %s97 = ssub.s32 %s16, %s28
    %s98 = ssub.s32 %s17, %s24
    %s99 = sor.u32 %s97, %s98
    %p100 = scmp.eq.s32.totalorder %s99, 0
    %s102 = sadd.s32 %s101, 1
    %s103 = scalar_select %p100, %s101, %s102
    %p106 = pneg %p100
    %p107 = scmp.eq.s32.totalorder %s9, 1
    %p108 = por %p106, %p107
    %p109 = scmp.ne.s32.totalorder %s101, %s104
    %p110 = scmp.eq.s32.totalorder %s9, 0
    %p111 = por %p109, %p110
    %p112 = scmp.ne.s32.totalorder %s101, %s104
    %p113 = scmp.eq.s32.totalorder %s14, 1
    %p114 = por %p112, %p113
    %p115 = scmp.ne.s32.totalorder %s104, %s105
    %p116 = scmp.eq.s32.totalorder %s14, 0
    %p117 = por %p115, %p116
    %p118 = scmp.ne.s32.totalorder %s104, %s105
    %p119 = scmp.eq.s32.totalorder %s15, 1
    %p120 = por %p118, %p119
    %p122 = scmp.ne.s32.totalorder %s105, %s121
    %p123 = scmp.eq.s32.totalorder %s15, 0
    %p124 = por %p122, %p123
    %p125 = scmp.le.s32.totalorder 1, %s9
    %p126 = scmp.lt.s32.totalorder %s9, 3
    %p127 = pnand %p125, %p126
    %p128 = pneg %p127
    // Predicated region
    $region9: #{fwd.8} parent=5 // pred_check
      _
    $region10: #{fwd.8} parent=5 // pred_check_branch
      %130 = sbr.rel (%p127) target = $region12
    $region11: #{fwd.8} parent=5 // pred_region
      %s131 = ssub.s32 %s9, 1
      // Predicated region
      $region13: #{fwd.8} parent=11 // pred_check
        %p132 = pneg %p68
      $region14: #{fwd.8} parent=11 // pred_check_branch
        %134 = sbr.rel (%p132) target = $region16
      $region15: #{fwd.8} parent=11 // pred_region
        _
      $region16: #{fwd.8} parent=11 // pred_fallthru
        _
      // Predicated region
      $region17: #{fwd.8} parent=11 // pred_check
        %p135 = pneg %p89
      $region18: #{fwd.8} parent=11 // pred_check_branch
        %137 = sbr.rel (%p135) target = $region20
      $region19: #{fwd.8} parent=11 // pred_region
        _
      $region20: #{fwd.8} parent=11 // pred_fallthru
        _
    $region12: #{fwd.8} parent=5 // pred_fallthru
      _
    %p138 = scmp.lt.s32.totalorder %s9, 2
    // Predicated region
    $region21: #{fwd.8} parent=5 // pred_check
      %p139 = pneg %p138
    $region22: #{fwd.8} parent=5 // pred_check_branch
      %141 = sbr.rel (%p139) target = $region24
    $region23: #{fwd.8} parent=5 // pred_region
      // Predicated region
      $region25: #{fwd.8} parent=23 // pred_check
        %p142 = pneg %p41
      $region26: #{fwd.8} parent=23 // pred_check_branch
        %144 = sbr.rel (%p142) target = $region28
      $region27: #{fwd.8} parent=23 // pred_region
        %p145 = scmp.lt.s32.totalorder %s16, 1
        %s146 = scalar_select %p145, %s16, 1
        %s147 = smul.addr %s146, 128
        %s148 = smul.addr %s147, 2
        %s149 = scalar_lea.vmem %s0, %s148
      $region28: #{fwd.8} parent=23 // pred_fallthru
        _
    $region24: #{fwd.8} parent=5 // pred_fallthru
      _
    %p150 = scmp.le.s32.totalorder 1, %s9
    %p151 = scmp.lt.s32.totalorder %s9, 3
    %p152 = pnand %p150, %p151
    %p153 = pneg %p152
    // Predicated region
    $region29: #{fwd.8} parent=5 // pred_check
      _
    $region30: #{fwd.8} parent=5 // pred_check_branch
      %155 = sbr.rel (%p152) target = $region32
    $region31: #{fwd.8} parent=5 // pred_region
      %s156 = ssub.s32 %s9, 1
      %p157 = scmp.lt.s32.totalorder %s18, 1
      %s158 = scalar_select %p157, %s18, 1
      %s159 = smul.addr %s158, 128
      %s160 = smul.addr %s159, 2
      %s161 = scalar_lea.vmem %s0, %s160
      %p162 = pneg %p47
      %p163 = pneg %p44
      %p164 = pneg %p68
      %p165 = pneg %p65
      %p166 = pneg %p89
      %p167 = pneg %p86
      %p168 = pneg %p117
      %p169 = pneg %p114
      %p170 = scmp.lt.s32.totalorder %s18, 1
      %s171 = scalar_select %p170, %s18, 1
      %p172 = scmp.lt.s32.totalorder %s19, 0
      %s173 = scalar_select %p172, %s19, 0
      %s174 = smul.addr %s171, 8
      %s175 = sadd.s32 %s173, %s174
      %s176 = smul.addr %s175, 8
      %s177 = scalar_lea.vmem %s3, %s176
      %p178 = scmp.lt.s32.totalorder %s18, 1
      %s179 = scalar_select %p178, %s18, 1
      %s180 = smul.addr %s179, 128
      %s181 = smul.addr %s180, 2
      %s182 = scalar_lea.vmem %s0, %s181
      %p183 = scmp.lt.s32.totalorder %s18, 1
      %s184 = scalar_select %p183, %s18, 1
      %p185 = scmp.lt.s32.totalorder %s19, 0
      %s186 = scalar_select %p185, %s19, 0
      %s187 = smul.addr %s184, 8
      %s188 = sadd.s32 %s186, %s187
      %s189 = smul.addr %s188, 8
      %s190 = scalar_lea.vmem %s3, %s189
      %s191 = scalar_lea.vmem %s182, %s19
      %v192 = vld [vmem:[%s191] sm:$0x1]
      %v193 = vld [vmem:[%s191 + $0x2] sm:$0x1]
      %v194 = vld [vmem:[%s191 + $0x4] sm:$0x1]
      %v195 = vld [vmem:[%s191 + $0x6] sm:$0x1]
      %v196 = vld [vmem:[%s191 + $0x8] sm:$0x1]
      %v197 = vld [vmem:[%s191 + $0xa] sm:$0x1]
      %v198 = vld [vmem:[%s191 + $0xc] sm:$0x1]
      %v199 = vld [vmem:[%s191 + $0xe] sm:$0x1]
      %v200 = vld [vmem:[%s191 + $0x10] sm:$0x1]
      %v201 = vld [vmem:[%s191 + $0x12] sm:$0x1]
      %v202 = vld [vmem:[%s191 + $0x14] sm:$0x1]
      %v203 = vld [vmem:[%s191 + $0x16] sm:$0x1]
      %v204 = vld [vmem:[%s191 + $0x18] sm:$0x1]
      %v205 = vld [vmem:[%s191 + $0x1a] sm:$0x1]
      %v206 = vld [vmem:[%s191 + $0x1c] sm:$0x1]
      %v207 = vld [vmem:[%s191 + $0x1e] sm:$0x1]
      %v208 = vld [vmem:[%s191 + $0x20] sm:$0x1]
      %v209 = vld [vmem:[%s191 + $0x22] sm:$0x1]
      %v210 = vld [vmem:[%s191 + $0x24] sm:$0x1]
      %v211 = vld [vmem:[%s191 + $0x26] sm:$0x1]
      %v212 = vld [vmem:[%s191 + $0x28] sm:$0x1]
      %v213 = vld [vmem:[%s191 + $0x2a] sm:$0x1]
      %v214 = vld [vmem:[%s191 + $0x2c] sm:$0x1]
      %v215 = vld [vmem:[%s191 + $0x2e] sm:$0x1]
      %v216 = vld [vmem:[%s191 + $0x30] sm:$0x1]
      %v217 = vld [vmem:[%s191 + $0x32] sm:$0x1]
      %v218 = vld [vmem:[%s191 + $0x34] sm:$0x1]
      %v219 = vld [vmem:[%s191 + $0x36] sm:$0x1]
      %v220 = vld [vmem:[%s191 + $0x38] sm:$0x1]
      %v221 = vld [vmem:[%s191 + $0x3a] sm:$0x1]
      %v222 = vld [vmem:[%s191 + $0x3c] sm:$0x1]
      %v223 = vld [vmem:[%s191 + $0x3e] sm:$0x1]
      %v224 = vld [vmem:[%s1] sm:$0xff]
      %v225 = vld [vmem:[%s1 + $0x8] sm:$0xff]
      %v226 = vld [vmem:[%s1 + $0x10] sm:$0xff]
      %v227 = vld [vmem:[%s1 + $0x18] sm:$0xff]
      %v228 = vld [vmem:[%s1 + $0x20] sm:$0xff]
      %v229 = vld [vmem:[%s1 + $0x28] sm:$0xff]
      %v230 = vld [vmem:[%s1 + $0x30] sm:$0xff]
      %v231 = vld [vmem:[%s1 + $0x38] sm:$0xff]
      %s232 = sadd.s32 %s19, 64
      %s233 = scalar_lea.vmem %s182, %s232
      %v234 = vld [vmem:[%s233] sm:$0x1]
      %v235 = vld [vmem:[%s233 + $0x2] sm:$0x1]
      %v236 = vld [vmem:[%s233 + $0x4] sm:$0x1]
      %v237 = vld [vmem:[%s233 + $0x6] sm:$0x1]
      %v238 = vld [vmem:[%s233 + $0x8] sm:$0x1]
      %v239 = vld [vmem:[%s233 + $0xa] sm:$0x1]
      %v240 = vld [vmem:[%s233 + $0xc] sm:$0x1]
      %v241 = vld [vmem:[%s233 + $0xe] sm:$0x1]
      %v242 = vld [vmem:[%s233 + $0x10] sm:$0x1]
      %v243 = vld [vmem:[%s233 + $0x12] sm:$0x1]
      %v244 = vld [vmem:[%s233 + $0x14] sm:$0x1]
      %v245 = vld [vmem:[%s233 + $0x16] sm:$0x1]
      %v246 = vld [vmem:[%s233 + $0x18] sm:$0x1]
      %v247 = vld [vmem:[%s233 + $0x1a] sm:$0x1]
      %v248 = vld [vmem:[%s233 + $0x1c] sm:$0x1]
      %v249 = vld [vmem:[%s233 + $0x1e] sm:$0x1]
      %v250 = vld [vmem:[%s233 + $0x20] sm:$0x1]
      %v251 = vld [vmem:[%s233 + $0x22] sm:$0x1]
      %v252 = vld [vmem:[%s233 + $0x24] sm:$0x1]
      %v253 = vld [vmem:[%s233 + $0x26] sm:$0x1]
      %v254 = vld [vmem:[%s233 + $0x28] sm:$0x1]
      %v255 = vld [vmem:[%s233 + $0x2a] sm:$0x1]
      %v256 = vld [vmem:[%s233 + $0x2c] sm:$0x1]
      %v257 = vld [vmem:[%s233 + $0x2e] sm:$0x1]
      %v258 = vld [vmem:[%s233 + $0x30] sm:$0x1]
      %v259 = vld [vmem:[%s233 + $0x32] sm:$0x1]
      %v260 = vld [vmem:[%s233 + $0x34] sm:$0x1]
      %v261 = vld [vmem:[%s233 + $0x36] sm:$0x1]
      %v262 = vld [vmem:[%s233 + $0x38] sm:$0x1]
      %v263 = vld [vmem:[%s233 + $0x3a] sm:$0x1]
      %v264 = vld [vmem:[%s233 + $0x3c] sm:$0x1]
      %v265 = vld [vmem:[%s233 + $0x3e] sm:$0x1]
      %s266 = scalar_lea.vmem %s1, 64
      %v267 = vld [vmem:[%s266] sm:$0xff]
      %v268 = vld [vmem:[%s266 + $0x8] sm:$0xff]
      %v269 = vld [vmem:[%s266 + $0x10] sm:$0xff]
      %v270 = vld [vmem:[%s266 + $0x18] sm:$0xff]
      %v271 = vld [vmem:[%s266 + $0x20] sm:$0xff]
      %v272 = vld [vmem:[%s266 + $0x28] sm:$0xff]
      %v273 = vld [vmem:[%s266 + $0x30] sm:$0xff]
      %v274 = vld [vmem:[%s266 + $0x38] sm:$0xff]
      %v307 = vrot.slane %v235, 7
      %vm308 = vcmask 1041409
      %v309 = vsel %vm308, %v307, %v234
      %v310 = vrot.slane %v236, 6
      %vm311 = vcmask 1042434
      %v312 = vsel %vm311, %v310, %v309
      %v313 = vrot.slane %v237, 5
      %vm314 = vcmask 1043459
      %v315 = vsel %vm314, %v313, %v312
      %v316 = vrot.slane %v238, 4
      %vm317 = vcmask 1044484
      %v318 = vsel %vm317, %v316, %v315
      %v319 = vrot.slane %v239, 3
      %vm320 = vcmask 1045509
      %v321 = vsel %vm320, %v319, %v318
      %v322 = vrot.slane %v240, 2
      %vm323 = vcmask 1046534
      %v324 = vsel %vm323, %v322, %v321
      %v325 = vrot.slane %v241, 1
      %vm326 = vcmask 1047559
      %v327 = vsel %vm326, %v325, %v324
      %v328 = vrot.slane %v243, 7
      %v329 = vsel %vm308, %v328, %v242
      %v330 = vrot.slane %v244, 6
      %v331 = vsel %vm311, %v330, %v329
      %v332 = vrot.slane %v245, 5
      %v333 = vsel %vm314, %v332, %v331
      %v334 = vrot.slane %v246, 4
      %v335 = vsel %vm317, %v334, %v333
      %v336 = vrot.slane %v247, 3
      %v337 = vsel %vm320, %v336, %v335
      %v338 = vrot.slane %v248, 2
      %v339 = vsel %vm323, %v338, %v337
      %v340 = vrot.slane %v249, 1
      %v341 = vsel %vm326, %v340, %v339
      %v342 = vrot.slane %v251, 7
      %v343 = vsel %vm308, %v342, %v250
      %v344 = vrot.slane %v252, 6
      %v345 = vsel %vm311, %v344, %v343
      %v346 = vrot.slane %v253, 5
      %v347 = vsel %vm314, %v346, %v345
      %v348 = vrot.slane %v254, 4
      %v349 = vsel %vm317, %v348, %v347
      %v350 = vrot.slane %v255, 3
      %v351 = vsel %vm320, %v350, %v349
      %v352 = vrot.slane %v256, 2
      %v353 = vsel %vm323, %v352, %v351
      %v354 = vrot.slane %v257, 1
      %v355 = vsel %vm326, %v354, %v353
      %v356 = vrot.slane %v259, 7
      %v357 = vsel %vm308, %v356, %v258
      %v358 = vrot.slane %v260, 6
      %v359 = vsel %vm311, %v358, %v357
      %v360 = vrot.slane %v261, 5
      %v361 = vsel %vm314, %v360, %v359
      %v362 = vrot.slane %v262, 4
      %v363 = vsel %vm317, %v362, %v361
      %v364 = vrot.slane %v263, 3
      %v365 = vsel %vm320, %v364, %v363
      %v366 = vrot.slane %v264, 2
      %v367 = vsel %vm323, %v366, %v365
      %v368 = vrot.slane %v265, 1
      %v369 = vsel %vm326, %v368, %v367
      %vm374 = vcmask 261120
      %v376 = vsel %vm374, %v267, 0
      %v379 = vsel %vm374, %v268, 0
      %v382 = vsel %vm374, %v269, 0
      %v385 = vsel %vm374, %v270, 0
      %v388 = vsel %vm374, %v271, 0
      %v391 = vsel %vm374, %v272, 0
      %v394 = vsel %vm374, %v273, 0
      %v397 = vsel %vm374, %v274, 0
      %399 = vmatprep.subr.mxu0 0.0
      %400 = vmatpush1.msra.mxu0 0.0
      %401 = vmatprep.subr.mxu0 0.0
      %402 = vmatpush1.msra.mxu0 0.0
      %403 = vmatprep.subr.mxu0 0.0
      %404 = vmatpush1.msra.mxu0 0.0
      %405 = vmatprep.subr.mxu0 0.0
      %406 = vmatpush1.msra.mxu0 0.0
      %407 = vmatprep.subr.mxu0 0.0
      %408 = vmatpush1.msra.mxu0 0.0
      %409 = vmatprep.subr.mxu0 0.0
      %410 = vmatpush1.msra.mxu0 0.0
      %411 = vmatprep.subr.mxu0 0.0
      %412 = vmatpush1.msra.mxu0 0.0
      %413 = vmatprep.subr.mxu0 0.0
      %414 = vmatpush1.msra.mxu0 0.0
      %415 = vmatprep.subr.mxu0 0.0
      %416 = vmatpush1.msra.mxu0 0.0
      %417 = vmatprep.subr.mxu0 0.0
      %418 = vmatpush1.msra.mxu0 0.0
      %419 = vmatprep.subr.mxu0 0.0
      %420 = vmatpush1.msra.mxu0 0.0
      %421 = vmatprep.subr.mxu0 0.0
      %422 = vmatpush1.msra.mxu0 0.0
      %423 = vmatprep.subr.mxu0 0.0
      %424 = vmatpush1.msra.mxu0 %v369
      %425 = vmatprep.subr.mxu0 0.0
      %426 = vmatpush1.msra.mxu0 %v355
      %427 = vmatprep.subr.mxu0 0.0
      %428 = vmatpush1.msra.mxu0 %v341
      %429 = vmatprep.subr.mxu0 0.0
      %430 = vmatpush1.msra.mxu0 %v327
      %431 = vmatprep.subr.mxu0 0.0
      %432 = vmatpush2.msra.mxu0 0.0
      %433 = vmatprep.subr.mxu0 0.0
      %434 = vmatpush2.msra.mxu0 0.0
      %435 = vmatprep.subr.mxu0 0.0
      %436 = vmatpush2.msra.mxu0 0.0
      %437 = vmatprep.subr.mxu0 0.0
      %438 = vmatpush2.msra.mxu0 0.0
      %439 = vmatprep.subr.mxu0 0.0
      %440 = vmatpush2.msra.mxu0 0.0
      %441 = vmatprep.subr.mxu0 0.0
      %442 = vmatpush2.msra.mxu0 0.0
      %443 = vmatprep.subr.mxu0 0.0
      %444 = vmatpush2.msra.mxu0 0.0
      %445 = vmatprep.subr.mxu0 0.0
      %446 = vmatpush2.msra.mxu0 0.0
      %447 = vmatprep.subr.mxu0 0.0
      %448 = vmatpush2.msra.mxu0 0.0
      %449 = vmatprep.subr.mxu0 0.0
      %450 = vmatpush2.msra.mxu0 0.0
      %451 = vmatprep.subr.mxu0 0.0
      %452 = vmatpush2.msra.mxu0 0.0
      %453 = vmatprep.subr.mxu0 0.0
      %454 = vmatpush2.msra.mxu0 0.0
      %455 = vmatprep.subr.mxu0 0.0
      %456 = vmatpush2.msra.mxu0 0.0
      %457 = vmatprep.subr.mxu0 0.0
      %458 = vmatpush2.msra.mxu0 0.0
      %459 = vmatprep.subr.mxu0 0.0
      %460 = vmatpush2.msra.mxu0 0.0
      %461 = vmatprep.subr.mxu0 0.0
      %462 = vmatpush2.msra.mxu0 0.0
      %463 = vmatprep.mubr.f32.mxu0 0.0
      %464 = vmatmul.mubr.f32.gmra.mxu0 %v376
      %v465 = vpop.f32.mrf.mxu0
      %v466 = vadd.f32 0.0, %v465
      %v467 = vpop.f32.mrf.mxu0
      %468 = vmatprep.mubr.f32.mxu0 0.0
      %469 = vmatmul.mubr.f32.gmra.mxu0 %v379
      %v470 = vpop.f32.mrf.mxu0
      %v471 = vadd.f32 0.0, %v470
      %v472 = vpop.f32.mrf.mxu0
      %473 = vmatprep.mubr.f32.mxu0 0.0
      %474 = vmatmul.mubr.f32.gmra.mxu0 %v382
      %v475 = vpop.f32.mrf.mxu0
      %v476 = vadd.f32 0.0, %v475
      %v477 = vpop.f32.mrf.mxu0
      %478 = vmatprep.mubr.f32.mxu0 0.0
      %479 = vmatmul.mubr.f32.gmra.mxu0 %v385
      %v480 = vpop.f32.mrf.mxu0
      %v481 = vadd.f32 0.0, %v480
      %v482 = vpop.f32.mrf.mxu0
      %483 = vmatprep.mubr.f32.mxu0 0.0
      %484 = vmatmul.mubr.f32.gmra.mxu0 %v388
      %v485 = vpop.f32.mrf.mxu0
      %v486 = vadd.f32 0.0, %v485
      %v487 = vpop.f32.mrf.mxu0
      %488 = vmatprep.mubr.f32.mxu0 0.0
      %489 = vmatmul.mubr.f32.gmra.mxu0 %v391
      %v490 = vpop.f32.mrf.mxu0
      %v491 = vadd.f32 0.0, %v490
      %v492 = vpop.f32.mrf.mxu0
      %493 = vmatprep.mubr.f32.mxu0 0.0
      %494 = vmatmul.mubr.f32.gmra.mxu0 %v394
      %v495 = vpop.f32.mrf.mxu0
      %v496 = vadd.f32 0.0, %v495
      %v497 = vpop.f32.mrf.mxu0
      %498 = vmatprep.mubr.f32.mxu0 0.0
      %499 = vmatmul.mubr.f32.gmra.mxu0 %v397
      %v500 = vpop.f32.mrf.mxu0
      %v501 = vadd.f32 0.0, %v500
      %v502 = vpop.f32.mrf.mxu0
      %503 = vdwg.mxu0
      %v536 = vrot.slane %v193, 7
      %v537 = vsel %vm308, %v536, %v192
      %v538 = vrot.slane %v194, 6
      %v539 = vsel %vm311, %v538, %v537
      %v540 = vrot.slane %v195, 5
      %v541 = vsel %vm314, %v540, %v539
      %v542 = vrot.slane %v196, 4
      %v543 = vsel %vm317, %v542, %v541
      %v544 = vrot.slane %v197, 3
      %v545 = vsel %vm320, %v544, %v543
      %v546 = vrot.slane %v198, 2
      %v547 = vsel %vm323, %v546, %v545
      %v548 = vrot.slane %v199, 1
      %v549 = vsel %vm326, %v548, %v547
      %v550 = vrot.slane %v201, 7
      %v551 = vsel %vm308, %v550, %v200
      %v552 = vrot.slane %v202, 6
      %v553 = vsel %vm311, %v552, %v551
      %v554 = vrot.slane %v203, 5
      %v555 = vsel %vm314, %v554, %v553
      %v556 = vrot.slane %v204, 4
      %v557 = vsel %vm317, %v556, %v555
      %v558 = vrot.slane %v205, 3
      %v559 = vsel %vm320, %v558, %v557
      %v560 = vrot.slane %v206, 2
      %v561 = vsel %vm323, %v560, %v559
      %v562 = vrot.slane %v207, 1
      %v563 = vsel %vm326, %v562, %v561
      %v564 = vrot.slane %v209, 7
      %v565 = vsel %vm308, %v564, %v208
      %v566 = vrot.slane %v210, 6
      %v567 = vsel %vm311, %v566, %v565
      %v568 = vrot.slane %v211, 5
      %v569 = vsel %vm314, %v568, %v567
      %v570 = vrot.slane %v212, 4
      %v571 = vsel %vm317, %v570, %v569
      %v572 = vrot.slane %v213, 3
      %v573 = vsel %vm320, %v572, %v571
      %v574 = vrot.slane %v214, 2
      %v575 = vsel %vm323, %v574, %v573
      %v576 = vrot.slane %v215, 1
      %v577 = vsel %vm326, %v576, %v575
      %v578 = vrot.slane %v217, 7
      %v579 = vsel %vm308, %v578, %v216
      %v580 = vrot.slane %v218, 6
      %v581 = vsel %vm311, %v580, %v579
      %v582 = vrot.slane %v219, 5
      %v583 = vsel %vm314, %v582, %v581
      %v584 = vrot.slane %v220, 4
      %v585 = vsel %vm317, %v584, %v583
      %v586 = vrot.slane %v221, 3
      %v587 = vsel %vm320, %v586, %v585
      %v588 = vrot.slane %v222, 2
      %v589 = vsel %vm323, %v588, %v587
      %v590 = vrot.slane %v223, 1
      %v591 = vsel %vm326, %v590, %v589
      %v597 = vsel %vm374, %v224, 0
      %v600 = vsel %vm374, %v225, 0
      %v603 = vsel %vm374, %v226, 0
      %v606 = vsel %vm374, %v227, 0
      %v609 = vsel %vm374, %v228, 0
      %v612 = vsel %vm374, %v229, 0
      %v615 = vsel %vm374, %v230, 0
      %v618 = vsel %vm374, %v231, 0
      %620 = vmatprep.subr.mxu0 0.0
      %621 = vmatpush1.msra.mxu0 0.0
      %622 = vmatprep.subr.mxu0 0.0
      %623 = vmatpush1.msra.mxu0 0.0
      %624 = vmatprep.subr.mxu0 0.0
      %625 = vmatpush1.msra.mxu0 0.0
      %626 = vmatprep.subr.mxu0 0.0
      %627 = vmatpush1.msra.mxu0 0.0
      %628 = vmatprep.subr.mxu0 0.0
      %629 = vmatpush1.msra.mxu0 0.0
      %630 = vmatprep.subr.mxu0 0.0
      %631 = vmatpush1.msra.mxu0 0.0
      %632 = vmatprep.subr.mxu0 0.0
      %633 = vmatpush1.msra.mxu0 0.0
      %634 = vmatprep.subr.mxu0 0.0
      %635 = vmatpush1.msra.mxu0 0.0
      %636 = vmatprep.subr.mxu0 0.0
      %637 = vmatpush1.msra.mxu0 0.0
      %638 = vmatprep.subr.mxu0 0.0
      %639 = vmatpush1.msra.mxu0 0.0
      %640 = vmatprep.subr.mxu0 0.0
      %641 = vmatpush1.msra.mxu0 0.0
      %642 = vmatprep.subr.mxu0 0.0
      %643 = vmatpush1.msra.mxu0 0.0
      %644 = vmatprep.subr.mxu0 0.0
      %645 = vmatpush1.msra.mxu0 %v591
      %646 = vmatprep.subr.mxu0 0.0
      %647 = vmatpush1.msra.mxu0 %v577
      %648 = vmatprep.subr.mxu0 0.0
      %649 = vmatpush1.msra.mxu0 %v563
      %650 = vmatprep.subr.mxu0 0.0
      %651 = vmatpush1.msra.mxu0 %v549
      %652 = vmatprep.subr.mxu0 0.0
      %653 = vmatpush2.msra.mxu0 0.0
      %654 = vmatprep.subr.mxu0 0.0
      %655 = vmatpush2.msra.mxu0 0.0
      %656 = vmatprep.subr.mxu0 0.0
      %657 = vmatpush2.msra.mxu0 0.0
      %658 = vmatprep.subr.mxu0 0.0
      %659 = vmatpush2.msra.mxu0 0.0
      %660 = vmatprep.subr.mxu0 0.0
      %661 = vmatpush2.msra.mxu0 0.0
      %662 = vmatprep.subr.mxu0 0.0
      %663 = vmatpush2.msra.mxu0 0.0
      %664 = vmatprep.subr.mxu0 0.0
      %665 = vmatpush2.msra.mxu0 0.0
      %666 = vmatprep.subr.mxu0 0.0
      %667 = vmatpush2.msra.mxu0 0.0
      %668 = vmatprep.subr.mxu0 0.0
      %669 = vmatpush2.msra.mxu0 0.0
      %670 = vmatprep.subr.mxu0 0.0
      %671 = vmatpush2.msra.mxu0 0.0
      %672 = vmatprep.subr.mxu0 0.0
      %673 = vmatpush2.msra.mxu0 0.0
      %674 = vmatprep.subr.mxu0 0.0
      %675 = vmatpush2.msra.mxu0 0.0
      %676 = vmatprep.subr.mxu0 0.0
      %677 = vmatpush2.msra.mxu0 0.0
      %678 = vmatprep.subr.mxu0 0.0
      %679 = vmatpush2.msra.mxu0 0.0
      %680 = vmatprep.subr.mxu0 0.0
      %681 = vmatpush2.msra.mxu0 0.0
      %682 = vmatprep.subr.mxu0 0.0
      %683 = vmatpush2.msra.mxu0 0.0
      %684 = vmatprep.mubr.f32.mxu0 0.0
      %685 = vmatmul.mubr.f32.gmra.mxu0 %v597
      %v686 = vpop.f32.mrf.mxu0
      %v687 = vadd.f32 %v466, %v686
      %v688 = vpop.f32.mrf.mxu0
      %689 = vmatprep.mubr.f32.mxu0 0.0
      %690 = vmatmul.mubr.f32.gmra.mxu0 %v600
      %v691 = vpop.f32.mrf.mxu0
      %v692 = vadd.f32 %v471, %v691
      %v693 = vpop.f32.mrf.mxu0
      %694 = vmatprep.mubr.f32.mxu0 0.0
      %695 = vmatmul.mubr.f32.gmra.mxu0 %v603
      %v696 = vpop.f32.mrf.mxu0
      %v697 = vadd.f32 %v476, %v696
      %v698 = vpop.f32.mrf.mxu0
      %699 = vmatprep.mubr.f32.mxu0 0.0
      %700 = vmatmul.mubr.f32.gmra.mxu0 %v606
      %v701 = vpop.f32.mrf.mxu0
      %v702 = vadd.f32 %v481, %v701
      %v703 = vpop.f32.mrf.mxu0
      %704 = vmatprep.mubr.f32.mxu0 0.0
      %705 = vmatmul.mubr.f32.gmra.mxu0 %v609
      %v706 = vpop.f32.mrf.mxu0
      %v707 = vadd.f32 %v486, %v706
      %v708 = vpop.f32.mrf.mxu0
      %709 = vmatprep.mubr.f32.mxu0 0.0
      %710 = vmatmul.mubr.f32.gmra.mxu0 %v612
      %v711 = vpop.f32.mrf.mxu0
      %v712 = vadd.f32 %v491, %v711
      %v713 = vpop.f32.mrf.mxu0
      %714 = vmatprep.mubr.f32.mxu0 0.0
      %715 = vmatmul.mubr.f32.gmra.mxu0 %v615
      %v716 = vpop.f32.mrf.mxu0
      %v717 = vadd.f32 %v496, %v716
      %v718 = vpop.f32.mrf.mxu0
      %719 = vmatprep.mubr.f32.mxu0 0.0
      %720 = vmatmul.mubr.f32.gmra.mxu0 %v618
      %v721 = vpop.f32.mrf.mxu0
      %v722 = vadd.f32 %v501, %v721
      %v723 = vpop.f32.mrf.mxu0
      %724 = vdwg.mxu0
      %s725 = scalar_lea.vmem %s1, 128
      %v726 = vld [vmem:[%s725] sm:$0xff]
      %v727 = vld [vmem:[%s725 + $0x8] sm:$0xff]
      %v728 = vld [vmem:[%s725 + $0x10] sm:$0xff]
      %v729 = vld [vmem:[%s725 + $0x18] sm:$0xff]
      %v730 = vld [vmem:[%s725 + $0x20] sm:$0xff]
      %v731 = vld [vmem:[%s725 + $0x28] sm:$0xff]
      %v732 = vld [vmem:[%s725 + $0x30] sm:$0xff]
      %v733 = vld [vmem:[%s725 + $0x38] sm:$0xff]
      %734 = vrot.lane.b32.xlu0 %v549, 127
      %v735 = vpop.permute.xlu0 %734
      %736 = vrot.lane.b32.xlu0 %v563, 127
      %v737 = vpop.permute.xlu0 %736
      %738 = vrot.lane.b32.xlu0 %v577, 127
      %v739 = vpop.permute.xlu0 %738
      %740 = vrot.lane.b32.xlu0 %v591, 127
      %v741 = vpop.permute.xlu0 %740
      %v747 = vsel %vm374, %v726, 0
      %v750 = vsel %vm374, %v727, 0
      %v753 = vsel %vm374, %v728, 0
      %v756 = vsel %vm374, %v729, 0
      %v759 = vsel %vm374, %v730, 0
      %v762 = vsel %vm374, %v731, 0
      %v765 = vsel %vm374, %v732, 0
      %v768 = vsel %vm374, %v733, 0
      %770 = vmatprep.subr.mxu0 0.0
      %771 = vmatpush1.msra.mxu0 0.0
      %772 = vmatprep.subr.mxu0 0.0
      %773 = vmatpush1.msra.mxu0 0.0
      %774 = vmatprep.subr.mxu0 0.0
      %775 = vmatpush1.msra.mxu0 0.0
      %776 = vmatprep.subr.mxu0 0.0
      %777 = vmatpush1.msra.mxu0 0.0
      %778 = vmatprep.subr.mxu0 0.0
      %779 = vmatpush1.msra.mxu0 0.0
      %780 = vmatprep.subr.mxu0 0.0
      %781 = vmatpush1.msra.mxu0 0.0
      %782 = vmatprep.subr.mxu0 0.0
      %783 = vmatpush1.msra.mxu0 0.0
      %784 = vmatprep.subr.mxu0 0.0
      %785 = vmatpush1.msra.mxu0 0.0
      %786 = vmatprep.subr.mxu0 0.0
      %787 = vmatpush1.msra.mxu0 0.0
      %788 = vmatprep.subr.mxu0 0.0
      %789 = vmatpush1.msra.mxu0 0.0
      %790 = vmatprep.subr.mxu0 0.0
      %791 = vmatpush1.msra.mxu0 0.0
      %792 = vmatprep.subr.mxu0 0.0
      %793 = vmatpush1.msra.mxu0 0.0
      %794 = vmatprep.subr.mxu0 0.0
      %795 = vmatpush1.msra.mxu0 %v741
      %796 = vmatprep.subr.mxu0 0.0
      %797 = vmatpush1.msra.mxu0 %v739
      %798 = vmatprep.subr.mxu0 0.0
      %799 = vmatpush1.msra.mxu0 %v737
      %800 = vmatprep.subr.mxu0 0.0
      %801 = vmatpush1.msra.mxu0 %v735
      %802 = vmatprep.subr.mxu0 0.0
      %803 = vmatpush2.msra.mxu0 0.0
      %804 = vmatprep.subr.mxu0 0.0
      %805 = vmatpush2.msra.mxu0 0.0
      %806 = vmatprep.subr.mxu0 0.0
      %807 = vmatpush2.msra.mxu0 0.0
      %808 = vmatprep.subr.mxu0 0.0
      %809 = vmatpush2.msra.mxu0 0.0
      %810 = vmatprep.subr.mxu0 0.0
      %811 = vmatpush2.msra.mxu0 0.0
      %812 = vmatprep.subr.mxu0 0.0
      %813 = vmatpush2.msra.mxu0 0.0
      %814 = vmatprep.subr.mxu0 0.0
      %815 = vmatpush2.msra.mxu0 0.0
      %816 = vmatprep.subr.mxu0 0.0
      %817 = vmatpush2.msra.mxu0 0.0
      %818 = vmatprep.subr.mxu0 0.0
      %819 = vmatpush2.msra.mxu0 0.0
      %820 = vmatprep.subr.mxu0 0.0
      %821 = vmatpush2.msra.mxu0 0.0
      %822 = vmatprep.subr.mxu0 0.0
      %823 = vmatpush2.msra.mxu0 0.0
      %824 = vmatprep.subr.mxu0 0.0
      %825 = vmatpush2.msra.mxu0 0.0
      %826 = vmatprep.subr.mxu0 0.0
      %827 = vmatpush2.msra.mxu0 0.0
      %828 = vmatprep.subr.mxu0 0.0
      %829 = vmatpush2.msra.mxu0 0.0
      %830 = vmatprep.subr.mxu0 0.0
      %831 = vmatpush2.msra.mxu0 0.0
      %832 = vmatprep.subr.mxu0 0.0
      %833 = vmatpush2.msra.mxu0 0.0
      %834 = vmatprep.mubr.f32.mxu0 0.0
      %835 = vmatmul.mubr.f32.gmra.mxu0 %v747
      %v836 = vpop.f32.mrf.mxu0
      %v837 = vadd.f32 0.0, %v836
      %v838 = vpop.f32.mrf.mxu0
      %839 = vmatprep.mubr.f32.mxu0 0.0
      %840 = vmatmul.mubr.f32.gmra.mxu0 %v750
      %v841 = vpop.f32.mrf.mxu0
      %v842 = vadd.f32 0.0, %v841
      %v843 = vpop.f32.mrf.mxu0
      %844 = vmatprep.mubr.f32.mxu0 0.0
      %845 = vmatmul.mubr.f32.gmra.mxu0 %v753
      %v846 = vpop.f32.mrf.mxu0
      %v847 = vadd.f32 0.0, %v846
      %v848 = vpop.f32.mrf.mxu0
      %849 = vmatprep.mubr.f32.mxu0 0.0
      %850 = vmatmul.mubr.f32.gmra.mxu0 %v756
      %v851 = vpop.f32.mrf.mxu0
      %v852 = vadd.f32 0.0, %v851
      %v853 = vpop.f32.mrf.mxu0
      %854 = vmatprep.mubr.f32.mxu0 0.0
      %855 = vmatmul.mubr.f32.gmra.mxu0 %v759
      %v856 = vpop.f32.mrf.mxu0
      %v857 = vadd.f32 0.0, %v856
      %v858 = vpop.f32.mrf.mxu0
      %859 = vmatprep.mubr.f32.mxu0 0.0
      %860 = vmatmul.mubr.f32.gmra.mxu0 %v762
      %v861 = vpop.f32.mrf.mxu0
      %v862 = vadd.f32 0.0, %v861
      %v863 = vpop.f32.mrf.mxu0
      %864 = vmatprep.mubr.f32.mxu0 0.0
      %865 = vmatmul.mubr.f32.gmra.mxu0 %v765
      %v866 = vpop.f32.mrf.mxu0
      %v867 = vadd.f32 0.0, %v866
      %v868 = vpop.f32.mrf.mxu0
      %869 = vmatprep.mubr.f32.mxu0 0.0
      %870 = vmatmul.mubr.f32.gmra.mxu0 %v768
      %v871 = vpop.f32.mrf.mxu0
      %v872 = vadd.f32 0.0, %v871
      %v873 = vpop.f32.mrf.mxu0
      %874 = vdwg.mxu0
      %v875 = vadd.f32 %v687, %v837
      %v876 = vadd.f32 %v692, %v842
      %v877 = vadd.f32 %v697, %v847
      %v878 = vadd.f32 %v702, %v852
      %v879 = vadd.f32 %v707, %v857
      %v880 = vadd.f32 %v712, %v862
      %v881 = vadd.f32 %v717, %v867
      %v882 = vadd.f32 %v722, %v872
      %s883 = sadd.s32 %s19, 128
      %s884 = scalar_lea.vmem %s182, %s883
      %v885 = vld [vmem:[%s884] sm:$0x1]
      %v886 = vld [vmem:[%s884 + $0x2] sm:$0x1]
      %v887 = vld [vmem:[%s884 + $0x4] sm:$0x1]
      %v888 = vld [vmem:[%s884 + $0x6] sm:$0x1]
      %v889 = vld [vmem:[%s884 + $0x8] sm:$0x1]
      %v890 = vld [vmem:[%s884 + $0xa] sm:$0x1]
      %v891 = vld [vmem:[%s884 + $0xc] sm:$0x1]
      %v892 = vld [vmem:[%s884 + $0xe] sm:$0x1]
      %v893 = vld [vmem:[%s884 + $0x10] sm:$0x1]
      %v894 = vld [vmem:[%s884 + $0x12] sm:$0x1]
      %v895 = vld [vmem:[%s884 + $0x14] sm:$0x1]
      %v896 = vld [vmem:[%s884 + $0x16] sm:$0x1]
      %v897 = vld [vmem:[%s884 + $0x18] sm:$0x1]
      %v898 = vld [vmem:[%s884 + $0x1a] sm:$0x1]
      %v899 = vld [vmem:[%s884 + $0x1c] sm:$0x1]
      %v900 = vld [vmem:[%s884 + $0x1e] sm:$0x1]
      %v901 = vld [vmem:[%s884 + $0x20] sm:$0x1]
      %v902 = vld [vmem:[%s884 + $0x22] sm:$0x1]
      %v903 = vld [vmem:[%s884 + $0x24] sm:$0x1]
      %v904 = vld [vmem:[%s884 + $0x26] sm:$0x1]
      %v905 = vld [vmem:[%s884 + $0x28] sm:$0x1]
      %v906 = vld [vmem:[%s884 + $0x2a] sm:$0x1]
      %v907 = vld [vmem:[%s884 + $0x2c] sm:$0x1]
      %v908 = vld [vmem:[%s884 + $0x2e] sm:$0x1]
      %v909 = vld [vmem:[%s884 + $0x30] sm:$0x1]
      %v910 = vld [vmem:[%s884 + $0x32] sm:$0x1]
      %v911 = vld [vmem:[%s884 + $0x34] sm:$0x1]
      %v912 = vld [vmem:[%s884 + $0x36] sm:$0x1]
      %v913 = vld [vmem:[%s884 + $0x38] sm:$0x1]
      %v914 = vld [vmem:[%s884 + $0x3a] sm:$0x1]
      %v915 = vld [vmem:[%s884 + $0x3c] sm:$0x1]
      %v916 = vld [vmem:[%s884 + $0x3e] sm:$0x1]
      %s917 = scalar_lea.vmem %s1, 192
      %v918 = vld [vmem:[%s917] sm:$0xff]
      %v919 = vld [vmem:[%s917 + $0x8] sm:$0xff]
      %v920 = vld [vmem:[%s917 + $0x10] sm:$0xff]
      %v921 = vld [vmem:[%s917 + $0x18] sm:$0xff]
      %v922 = vld [vmem:[%s917 + $0x20] sm:$0xff]
      %v923 = vld [vmem:[%s917 + $0x28] sm:$0xff]
      %v924 = vld [vmem:[%s917 + $0x30] sm:$0xff]
      %v925 = vld [vmem:[%s917 + $0x38] sm:$0xff]
      %v958 = vrot.slane %v886, 7
      %v959 = vsel %vm308, %v958, %v885
      %v960 = vrot.slane %v887, 6
      %v961 = vsel %vm311, %v960, %v959
      %v962 = vrot.slane %v888, 5
      %v963 = vsel %vm314, %v962, %v961
      %v964 = vrot.slane %v889, 4
      %v965 = vsel %vm317, %v964, %v963
      %v966 = vrot.slane %v890, 3
      %v967 = vsel %vm320, %v966, %v965
      %v968 = vrot.slane %v891, 2
      %v969 = vsel %vm323, %v968, %v967
      %v970 = vrot.slane %v892, 1
      %v971 = vsel %vm326, %v970, %v969
      %v972 = vrot.slane %v894, 7
      %v973 = vsel %vm308, %v972, %v893
      %v974 = vrot.slane %v895, 6
      %v975 = vsel %vm311, %v974, %v973
      %v976 = vrot.slane %v896, 5
      %v977 = vsel %vm314, %v976, %v975
      %v978 = vrot.slane %v897, 4
      %v979 = vsel %vm317, %v978, %v977
      %v980 = vrot.slane %v898, 3
      %v981 = vsel %vm320, %v980, %v979
      %v982 = vrot.slane %v899, 2
      %v983 = vsel %vm323, %v982, %v981
      %v984 = vrot.slane %v900, 1
      %v985 = vsel %vm326, %v984, %v983
      %v986 = vrot.slane %v902, 7
      %v987 = vsel %vm308, %v986, %v901
      %v988 = vrot.slane %v903, 6
      %v989 = vsel %vm311, %v988, %v987
      %v990 = vrot.slane %v904, 5
      %v991 = vsel %vm314, %v990, %v989
      %v992 = vrot.slane %v905, 4
      %v993 = vsel %vm317, %v992, %v991
      %v994 = vrot.slane %v906, 3
      %v995 = vsel %vm320, %v994, %v993
      %v996 = vrot.slane %v907, 2
      %v997 = vsel %vm323, %v996, %v995
      %v998 = vrot.slane %v908, 1
      %v999 = vsel %vm326, %v998, %v997
      %v1000 = vrot.slane %v910, 7
      %v1001 = vsel %vm308, %v1000, %v909
      %v1002 = vrot.slane %v911, 6
      %v1003 = vsel %vm311, %v1002, %v1001
      %v1004 = vrot.slane %v912, 5
      %v1005 = vsel %vm314, %v1004, %v1003
      %v1006 = vrot.slane %v913, 4
      %v1007 = vsel %vm317, %v1006, %v1005
      %v1008 = vrot.slane %v914, 3
      %v1009 = vsel %vm320, %v1008, %v1007
      %v1010 = vrot.slane %v915, 2
      %v1011 = vsel %vm323, %v1010, %v1009
      %v1012 = vrot.slane %v916, 1
      %v1013 = vsel %vm326, %v1012, %v1011
      %v1019 = vsel %vm374, %v918, 0
      %v1022 = vsel %vm374, %v919, 0
      %v1025 = vsel %vm374, %v920, 0
      %v1028 = vsel %vm374, %v921, 0
      %v1031 = vsel %vm374, %v922, 0
      %v1034 = vsel %vm374, %v923, 0
      %v1037 = vsel %vm374, %v924, 0
      %v1040 = vsel %vm374, %v925, 0
      %1042 = vmatprep.subr.mxu0 0.0
      %1043 = vmatpush1.msra.mxu0 0.0
      %1044 = vmatprep.subr.mxu0 0.0
      %1045 = vmatpush1.msra.mxu0 0.0
      %1046 = vmatprep.subr.mxu0 0.0
      %1047 = vmatpush1.msra.mxu0 0.0
      %1048 = vmatprep.subr.mxu0 0.0
      %1049 = vmatpush1.msra.mxu0 0.0
      %1050 = vmatprep.subr.mxu0 0.0
      %1051 = vmatpush1.msra.mxu0 0.0
      %1052 = vmatprep.subr.mxu0 0.0
      %1053 = vmatpush1.msra.mxu0 0.0
      %1054 = vmatprep.subr.mxu0 0.0
      %1055 = vmatpush1.msra.mxu0 0.0
      %1056 = vmatprep.subr.mxu0 0.0
      %1057 = vmatpush1.msra.mxu0 0.0
      %1058 = vmatprep.subr.mxu0 0.0
      %1059 = vmatpush1.msra.mxu0 0.0
      %1060 = vmatprep.subr.mxu0 0.0
      %1061 = vmatpush1.msra.mxu0 0.0
      %1062 = vmatprep.subr.mxu0 0.0
      %1063 = vmatpush1.msra.mxu0 0.0
      %1064 = vmatprep.subr.mxu0 0.0
      %1065 = vmatpush1.msra.mxu0 0.0
      %1066 = vmatprep.subr.mxu0 0.0
      %1067 = vmatpush1.msra.mxu0 %v1013
      %1068 = vmatprep.subr.mxu0 0.0
      %1069 = vmatpush1.msra.mxu0 %v999
      %1070 = vmatprep.subr.mxu0 0.0
      %1071 = vmatpush1.msra.mxu0 %v985
      %1072 = vmatprep.subr.mxu0 0.0
      %1073 = vmatpush1.msra.mxu0 %v971
      %1074 = vmatprep.subr.mxu0 0.0
      %1075 = vmatpush2.msra.mxu0 0.0
      %1076 = vmatprep.subr.mxu0 0.0
      %1077 = vmatpush2.msra.mxu0 0.0
      %1078 = vmatprep.subr.mxu0 0.0
      %1079 = vmatpush2.msra.mxu0 0.0
      %1080 = vmatprep.subr.mxu0 0.0
      %1081 = vmatpush2.msra.mxu0 0.0
      %1082 = vmatprep.subr.mxu0 0.0
      %1083 = vmatpush2.msra.mxu0 0.0
      %1084 = vmatprep.subr.mxu0 0.0
      %1085 = vmatpush2.msra.mxu0 0.0
      %1086 = vmatprep.subr.mxu0 0.0
      %1087 = vmatpush2.msra.mxu0 0.0
      %1088 = vmatprep.subr.mxu0 0.0
      %1089 = vmatpush2.msra.mxu0 0.0
      %1090 = vmatprep.subr.mxu0 0.0
      %1091 = vmatpush2.msra.mxu0 0.0
      %1092 = vmatprep.subr.mxu0 0.0
      %1093 = vmatpush2.msra.mxu0 0.0
      %1094 = vmatprep.subr.mxu0 0.0
      %1095 = vmatpush2.msra.mxu0 0.0
      %1096 = vmatprep.subr.mxu0 0.0
      %1097 = vmatpush2.msra.mxu0 0.0
      %1098 = vmatprep.subr.mxu0 0.0
      %1099 = vmatpush2.msra.mxu0 0.0
      %1100 = vmatprep.subr.mxu0 0.0
      %1101 = vmatpush2.msra.mxu0 0.0
      %1102 = vmatprep.subr.mxu0 0.0
      %1103 = vmatpush2.msra.mxu0 0.0
      %1104 = vmatprep.subr.mxu0 0.0
      %1105 = vmatpush2.msra.mxu0 0.0
      %1106 = vmatprep.mubr.f32.mxu0 0.0
      %1107 = vmatmul.mubr.f32.gmra.mxu0 %v1019
      %v1108 = vpop.f32.mrf.mxu0
      %v1109 = vadd.f32 0.0, %v1108
      %v1110 = vpop.f32.mrf.mxu0
      %1111 = vmatprep.mubr.f32.mxu0 0.0
      %1112 = vmatmul.mubr.f32.gmra.mxu0 %v1022
      %v1113 = vpop.f32.mrf.mxu0
      %v1114 = vadd.f32 0.0, %v1113
      %v1115 = vpop.f32.mrf.mxu0
      %1116 = vmatprep.mubr.f32.mxu0 0.0
      %1117 = vmatmul.mubr.f32.gmra.mxu0 %v1025
      %v1118 = vpop.f32.mrf.mxu0
      %v1119 = vadd.f32 0.0, %v1118
      %v1120 = vpop.f32.mrf.mxu0
      %1121 = vmatprep.mubr.f32.mxu0 0.0
      %1122 = vmatmul.mubr.f32.gmra.mxu0 %v1028
      %v1123 = vpop.f32.mrf.mxu0
      %v1124 = vadd.f32 0.0, %v1123
      %v1125 = vpop.f32.mrf.mxu0
      %1126 = vmatprep.mubr.f32.mxu0 0.0
      %1127 = vmatmul.mubr.f32.gmra.mxu0 %v1031
      %v1128 = vpop.f32.mrf.mxu0
      %v1129 = vadd.f32 0.0, %v1128
      %v1130 = vpop.f32.mrf.mxu0
      %1131 = vmatprep.mubr.f32.mxu0 0.0
      %1132 = vmatmul.mubr.f32.gmra.mxu0 %v1034
      %v1133 = vpop.f32.mrf.mxu0
      %v1134 = vadd.f32 0.0, %v1133
      %v1135 = vpop.f32.mrf.mxu0
      %1136 = vmatprep.mubr.f32.mxu0 0.0
      %1137 = vmatmul.mubr.f32.gmra.mxu0 %v1037
      %v1138 = vpop.f32.mrf.mxu0
      %v1139 = vadd.f32 0.0, %v1138
      %v1140 = vpop.f32.mrf.mxu0
      %1141 = vmatprep.mubr.f32.mxu0 0.0
      %1142 = vmatmul.mubr.f32.gmra.mxu0 %v1040
      %v1143 = vpop.f32.mrf.mxu0
      %v1144 = vadd.f32 0.0, %v1143
      %v1145 = vpop.f32.mrf.mxu0
      %1146 = vdwg.mxu0
      %v1147 = vadd.f32 %v875, %v1109
      %v1148 = vadd.f32 %v876, %v1114
      %v1149 = vadd.f32 %v877, %v1119
      %v1150 = vadd.f32 %v878, %v1124
      %v1151 = vadd.f32 %v879, %v1129
      %v1152 = vadd.f32 %v880, %v1134
      %v1153 = vadd.f32 %v881, %v1139
      %v1154 = vadd.f32 %v882, %v1144
      %s1155 = sadd.s32 %s19, 192
      %s1156 = scalar_lea.vmem %s182, %s1155
      %v1157 = vld [vmem:[%s1156] sm:$0x1]
      %v1158 = vld [vmem:[%s1156 + $0x2] sm:$0x1]
      %v1159 = vld [vmem:[%s1156 + $0x4] sm:$0x1]
      %v1160 = vld [vmem:[%s1156 + $0x6] sm:$0x1]
      %v1161 = vld [vmem:[%s1156 + $0x8] sm:$0x1]
      %v1162 = vld [vmem:[%s1156 + $0xa] sm:$0x1]
      %v1163 = vld [vmem:[%s1156 + $0xc] sm:$0x1]
      %v1164 = vld [vmem:[%s1156 + $0xe] sm:$0x1]
      %v1165 = vld [vmem:[%s1156 + $0x10] sm:$0x1]
      %v1166 = vld [vmem:[%s1156 + $0x12] sm:$0x1]
      %v1167 = vld [vmem:[%s1156 + $0x14] sm:$0x1]
      %v1168 = vld [vmem:[%s1156 + $0x16] sm:$0x1]
      %v1169 = vld [vmem:[%s1156 + $0x18] sm:$0x1]
      %v1170 = vld [vmem:[%s1156 + $0x1a] sm:$0x1]
      %v1171 = vld [vmem:[%s1156 + $0x1c] sm:$0x1]
      %v1172 = vld [vmem:[%s1156 + $0x1e] sm:$0x1]
      %v1173 = vld [vmem:[%s1156 + $0x20] sm:$0x1]
      %v1174 = vld [vmem:[%s1156 + $0x22] sm:$0x1]
      %v1175 = vld [vmem:[%s1156 + $0x24] sm:$0x1]
      %v1176 = vld [vmem:[%s1156 + $0x26] sm:$0x1]
      %v1177 = vld [vmem:[%s1156 + $0x28] sm:$0x1]
      %v1178 = vld [vmem:[%s1156 + $0x2a] sm:$0x1]
      %v1179 = vld [vmem:[%s1156 + $0x2c] sm:$0x1]
      %v1180 = vld [vmem:[%s1156 + $0x2e] sm:$0x1]
      %v1181 = vld [vmem:[%s1156 + $0x30] sm:$0x1]
      %v1182 = vld [vmem:[%s1156 + $0x32] sm:$0x1]
      %v1183 = vld [vmem:[%s1156 + $0x34] sm:$0x1]
      %v1184 = vld [vmem:[%s1156 + $0x36] sm:$0x1]
      %v1185 = vld [vmem:[%s1156 + $0x38] sm:$0x1]
      %v1186 = vld [vmem:[%s1156 + $0x3a] sm:$0x1]
      %v1187 = vld [vmem:[%s1156 + $0x3c] sm:$0x1]
      %v1188 = vld [vmem:[%s1156 + $0x3e] sm:$0x1]
      %s1189 = scalar_lea.vmem %s1, 256
      %v1190 = vld [vmem:[%s1189] sm:$0xff]
      %v1191 = vld [vmem:[%s1189 + $0x8] sm:$0xff]
      %v1192 = vld [vmem:[%s1189 + $0x10] sm:$0xff]
      %v1193 = vld [vmem:[%s1189 + $0x18] sm:$0xff]
      %v1194 = vld [vmem:[%s1189 + $0x20] sm:$0xff]
      %v1195 = vld [vmem:[%s1189 + $0x28] sm:$0xff]
      %v1196 = vld [vmem:[%s1189 + $0x30] sm:$0xff]
      %v1197 = vld [vmem:[%s1189 + $0x38] sm:$0xff]
      %v1230 = vrot.slane %v1158, 7
      %v1231 = vsel %vm308, %v1230, %v1157
      %v1232 = vrot.slane %v1159, 6
      %v1233 = vsel %vm311, %v1232, %v1231
      %v1234 = vrot.slane %v1160, 5
      %v1235 = vsel %vm314, %v1234, %v1233
      %v1236 = vrot.slane %v1161, 4
      %v1237 = vsel %vm317, %v1236, %v1235
      %v1238 = vrot.slane %v1162, 3
      %v1239 = vsel %vm320, %v1238, %v1237
      %v1240 = vrot.slane %v1163, 2
      %v1241 = vsel %vm323, %v1240, %v1239
      %v1242 = vrot.slane %v1164, 1
      %v1243 = vsel %vm326, %v1242, %v1241
      %v1244 = vrot.slane %v1166, 7
      %v1245 = vsel %vm308, %v1244, %v1165
      %v1246 = vrot.slane %v1167, 6
      %v1247 = vsel %vm311, %v1246, %v1245
      %v1248 = vrot.slane %v1168, 5
      %v1249 = vsel %vm314, %v1248, %v1247
      %v1250 = vrot.slane %v1169, 4
      %v1251 = vsel %vm317, %v1250, %v1249
      %v1252 = vrot.slane %v1170, 3
      %v1253 = vsel %vm320, %v1252, %v1251
      %v1254 = vrot.slane %v1171, 2
      %v1255 = vsel %vm323, %v1254, %v1253
      %v1256 = vrot.slane %v1172, 1
      %v1257 = vsel %vm326, %v1256, %v1255
      %v1258 = vrot.slane %v1174, 7
      %v1259 = vsel %vm308, %v1258, %v1173
      %v1260 = vrot.slane %v1175, 6
      %v1261 = vsel %vm311, %v1260, %v1259
      %v1262 = vrot.slane %v1176, 5
      %v1263 = vsel %vm314, %v1262, %v1261
      %v1264 = vrot.slane %v1177, 4
      %v1265 = vsel %vm317, %v1264, %v1263
      %v1266 = vrot.slane %v1178, 3
      %v1267 = vsel %vm320, %v1266, %v1265
      %v1268 = vrot.slane %v1179, 2
      %v1269 = vsel %vm323, %v1268, %v1267
      %v1270 = vrot.slane %v1180, 1
      %v1271 = vsel %vm326, %v1270, %v1269
      %v1272 = vrot.slane %v1182, 7
      %v1273 = vsel %vm308, %v1272, %v1181
      %v1274 = vrot.slane %v1183, 6
      %v1275 = vsel %vm311, %v1274, %v1273
      %v1276 = vrot.slane %v1184, 5
      %v1277 = vsel %vm314, %v1276, %v1275
      %v1278 = vrot.slane %v1185, 4
      %v1279 = vsel %vm317, %v1278, %v1277
      %v1280 = vrot.slane %v1186, 3
      %v1281 = vsel %vm320, %v1280, %v1279
      %v1282 = vrot.slane %v1187, 2
      %v1283 = vsel %vm323, %v1282, %v1281
      %v1284 = vrot.slane %v1188, 1
      %v1285 = vsel %vm326, %v1284, %v1283
      %v1291 = vsel %vm374, %v1190, 0
      %v1294 = vsel %vm374, %v1191, 0
      %v1297 = vsel %vm374, %v1192, 0
      %v1300 = vsel %vm374, %v1193, 0
      %v1303 = vsel %vm374, %v1194, 0
      %v1306 = vsel %vm374, %v1195, 0
      %v1309 = vsel %vm374, %v1196, 0
      %v1312 = vsel %vm374, %v1197, 0
      %1314 = vmatprep.subr.mxu0 0.0
      %1315 = vmatpush1.msra.mxu0 0.0
      %1316 = vmatprep.subr.mxu0 0.0
      %1317 = vmatpush1.msra.mxu0 0.0
      %1318 = vmatprep.subr.mxu0 0.0
      %1319 = vmatpush1.msra.mxu0 0.0
      %1320 = vmatprep.subr.mxu0 0.0
      %1321 = vmatpush1.msra.mxu0 0.0
      %1322 = vmatprep.subr.mxu0 0.0
      %1323 = vmatpush1.msra.mxu0 0.0
      %1324 = vmatprep.subr.mxu0 0.0
      %1325 = vmatpush1.msra.mxu0 0.0
      %1326 = vmatprep.subr.mxu0 0.0
      %1327 = vmatpush1.msra.mxu0 0.0
      %1328 = vmatprep.subr.mxu0 0.0
      %1329 = vmatpush1.msra.mxu0 0.0
      %1330 = vmatprep.subr.mxu0 0.0
      %1331 = vmatpush1.msra.mxu0 0.0
      %1332 = vmatprep.subr.mxu0 0.0
      %1333 = vmatpush1.msra.mxu0 0.0
      %1334 = vmatprep.subr.mxu0 0.0
      %1335 = vmatpush1.msra.mxu0 0.0
      %1336 = vmatprep.subr.mxu0 0.0
      %1337 = vmatpush1.msra.mxu0 0.0
      %1338 = vmatprep.subr.mxu0 0.0
      %1339 = vmatpush1.msra.mxu0 %v1285
      %1340 = vmatprep.subr.mxu0 0.0
      %1341 = vmatpush1.msra.mxu0 %v1271
      %1342 = vmatprep.subr.mxu0 0.0
      %1343 = vmatpush1.msra.mxu0 %v1257
      %1344 = vmatprep.subr.mxu0 0.0
      %1345 = vmatpush1.msra.mxu0 %v1243
      %1346 = vmatprep.subr.mxu0 0.0
      %1347 = vmatpush2.msra.mxu0 0.0
      %1348 = vmatprep.subr.mxu0 0.0
      %1349 = vmatpush2.msra.mxu0 0.0
      %1350 = vmatprep.subr.mxu0 0.0
      %1351 = vmatpush2.msra.mxu0 0.0
      %1352 = vmatprep.subr.mxu0 0.0
      %1353 = vmatpush2.msra.mxu0 0.0
      %1354 = vmatprep.subr.mxu0 0.0
      %1355 = vmatpush2.msra.mxu0 0.0
      %1356 = vmatprep.subr.mxu0 0.0
      %1357 = vmatpush2.msra.mxu0 0.0
      %1358 = vmatprep.subr.mxu0 0.0
      %1359 = vmatpush2.msra.mxu0 0.0
      %1360 = vmatprep.subr.mxu0 0.0
      %1361 = vmatpush2.msra.mxu0 0.0
      %1362 = vmatprep.subr.mxu0 0.0
      %1363 = vmatpush2.msra.mxu0 0.0
      %1364 = vmatprep.subr.mxu0 0.0
      %1365 = vmatpush2.msra.mxu0 0.0
      %1366 = vmatprep.subr.mxu0 0.0
      %1367 = vmatpush2.msra.mxu0 0.0
      %1368 = vmatprep.subr.mxu0 0.0
      %1369 = vmatpush2.msra.mxu0 0.0
      %1370 = vmatprep.subr.mxu0 0.0
      %1371 = vmatpush2.msra.mxu0 0.0
      %1372 = vmatprep.subr.mxu0 0.0
      %1373 = vmatpush2.msra.mxu0 0.0
      %1374 = vmatprep.subr.mxu0 0.0
      %1375 = vmatpush2.msra.mxu0 0.0
      %1376 = vmatprep.subr.mxu0 0.0
      %1377 = vmatpush2.msra.mxu0 0.0
      %1378 = vmatprep.mubr.f32.mxu0 0.0
      %1379 = vmatmul.mubr.f32.gmra.mxu0 %v1291
      %v1380 = vpop.f32.mrf.mxu0
      %v1381 = vadd.f32 0.0, %v1380
      %v1382 = vpop.f32.mrf.mxu0
      %1383 = vmatprep.mubr.f32.mxu0 0.0
      %1384 = vmatmul.mubr.f32.gmra.mxu0 %v1294
      %v1385 = vpop.f32.mrf.mxu0
      %v1386 = vadd.f32 0.0, %v1385
      %v1387 = vpop.f32.mrf.mxu0
      %1388 = vmatprep.mubr.f32.mxu0 0.0
      %1389 = vmatmul.mubr.f32.gmra.mxu0 %v1297
      %v1390 = vpop.f32.mrf.mxu0
      %v1391 = vadd.f32 0.0, %v1390
      %v1392 = vpop.f32.mrf.mxu0
      %1393 = vmatprep.mubr.f32.mxu0 0.0
      %1394 = vmatmul.mubr.f32.gmra.mxu0 %v1300
      %v1395 = vpop.f32.mrf.mxu0
      %v1396 = vadd.f32 0.0, %v1395
      %v1397 = vpop.f32.mrf.mxu0
      %1398 = vmatprep.mubr.f32.mxu0 0.0
      %1399 = vmatmul.mubr.f32.gmra.mxu0 %v1303
      %v1400 = vpop.f32.mrf.mxu0
      %v1401 = vadd.f32 0.0, %v1400
      %v1402 = vpop.f32.mrf.mxu0
      %1403 = vmatprep.mubr.f32.mxu0 0.0
      %1404 = vmatmul.mubr.f32.gmra.mxu0 %v1306
      %v1405 = vpop.f32.mrf.mxu0
      %v1406 = vadd.f32 0.0, %v1405
      %v1407 = vpop.f32.mrf.mxu0
      %1408 = vmatprep.mubr.f32.mxu0 0.0
      %1409 = vmatmul.mubr.f32.gmra.mxu0 %v1309
      %v1410 = vpop.f32.mrf.mxu0
      %v1411 = vadd.f32 0.0, %v1410
      %v1412 = vpop.f32.mrf.mxu0
      %1413 = vmatprep.mubr.f32.mxu0 0.0
      %1414 = vmatmul.mubr.f32.gmra.mxu0 %v1312
      %v1415 = vpop.f32.mrf.mxu0
      %v1416 = vadd.f32 0.0, %v1415
      %v1417 = vpop.f32.mrf.mxu0
      %1418 = vdwg.mxu0
      %v1419 = vadd.f32 %v1147, %v1381
      %v1420 = vadd.f32 %v1148, %v1386
      %v1421 = vadd.f32 %v1149, %v1391
      %v1422 = vadd.f32 %v1150, %v1396
      %v1423 = vadd.f32 %v1151, %v1401
      %v1424 = vadd.f32 %v1152, %v1406
      %v1425 = vadd.f32 %v1153, %v1411
      %v1426 = vadd.f32 %v1154, %v1416
      %s1427 = scalar_lea.vmem %s1, 320
      %v1428 = vld [vmem:[%s1427] sm:$0xff]
      %v1429 = vld [vmem:[%s1427 + $0x8] sm:$0xff]
      %v1430 = vld [vmem:[%s1427 + $0x10] sm:$0xff]
      %v1431 = vld [vmem:[%s1427 + $0x18] sm:$0xff]
      %v1432 = vld [vmem:[%s1427 + $0x20] sm:$0xff]
      %v1433 = vld [vmem:[%s1427 + $0x28] sm:$0xff]
      %v1434 = vld [vmem:[%s1427 + $0x30] sm:$0xff]
      %v1435 = vld [vmem:[%s1427 + $0x38] sm:$0xff]
      %1436 = vrot.lane.b32.xlu0 %v971, 127
      %v1437 = vpop.permute.xlu0 %1436
      %1438 = vrot.lane.b32.xlu0 %v985, 127
      %v1439 = vpop.permute.xlu0 %1438
      %1440 = vrot.lane.b32.xlu0 %v999, 127
      %v1441 = vpop.permute.xlu0 %1440
      %1442 = vrot.lane.b32.xlu0 %v1013, 127
      %v1443 = vpop.permute.xlu0 %1442
      %v1449 = vsel %vm374, %v1428, 0
      %v1452 = vsel %vm374, %v1429, 0
      %v1455 = vsel %vm374, %v1430, 0
      %v1458 = vsel %vm374, %v1431, 0
      %v1461 = vsel %vm374, %v1432, 0
      %v1464 = vsel %vm374, %v1433, 0
      %v1467 = vsel %vm374, %v1434, 0
      %v1470 = vsel %vm374, %v1435, 0
      %1472 = vmatprep.subr.mxu0 0.0
      %1473 = vmatpush1.msra.mxu0 0.0
      %1474 = vmatprep.subr.mxu0 0.0
      %1475 = vmatpush1.msra.mxu0 0.0
      %1476 = vmatprep.subr.mxu0 0.0
      %1477 = vmatpush1.msra.mxu0 0.0
      %1478 = vmatprep.subr.mxu0 0.0
      %1479 = vmatpush1.msra.mxu0 0.0
      %1480 = vmatprep.subr.mxu0 0.0
      %1481 = vmatpush1.msra.mxu0 0.0
      %1482 = vmatprep.subr.mxu0 0.0
      %1483 = vmatpush1.msra.mxu0 0.0
      %1484 = vmatprep.subr.mxu0 0.0
      %1485 = vmatpush1.msra.mxu0 0.0
      %1486 = vmatprep.subr.mxu0 0.0
      %1487 = vmatpush1.msra.mxu0 0.0
      %1488 = vmatprep.subr.mxu0 0.0
      %1489 = vmatpush1.msra.mxu0 0.0
      %1490 = vmatprep.subr.mxu0 0.0
      %1491 = vmatpush1.msra.mxu0 0.0
      %1492 = vmatprep.subr.mxu0 0.0
      %1493 = vmatpush1.msra.mxu0 0.0
      %1494 = vmatprep.subr.mxu0 0.0
      %1495 = vmatpush1.msra.mxu0 0.0
      %1496 = vmatprep.subr.mxu0 0.0
      %1497 = vmatpush1.msra.mxu0 %v1443
      %1498 = vmatprep.subr.mxu0 0.0
      %1499 = vmatpush1.msra.mxu0 %v1441
      %1500 = vmatprep.subr.mxu0 0.0
      %1501 = vmatpush1.msra.mxu0 %v1439
      %1502 = vmatprep.subr.mxu0 0.0
      %1503 = vmatpush1.msra.mxu0 %v1437
      %1504 = vmatprep.subr.mxu0 0.0
      %1505 = vmatpush2.msra.mxu0 0.0
      %1506 = vmatprep.subr.mxu0 0.0
      %1507 = vmatpush2.msra.mxu0 0.0
      %1508 = vmatprep.subr.mxu0 0.0
      %1509 = vmatpush2.msra.mxu0 0.0
      %1510 = vmatprep.subr.mxu0 0.0
      %1511 = vmatpush2.msra.mxu0 0.0
      %1512 = vmatprep.subr.mxu0 0.0
      %1513 = vmatpush2.msra.mxu0 0.0
      %1514 = vmatprep.subr.mxu0 0.0
      %1515 = vmatpush2.msra.mxu0 0.0
      %1516 = vmatprep.subr.mxu0 0.0
      %1517 = vmatpush2.msra.mxu0 0.0
      %1518 = vmatprep.subr.mxu0 0.0
      %1519 = vmatpush2.msra.mxu0 0.0
      %1520 = vmatprep.subr.mxu0 0.0
      %1521 = vmatpush2.msra.mxu0 0.0
      %1522 = vmatprep.subr.mxu0 0.0
      %1523 = vmatpush2.msra.mxu0 0.0
      %1524 = vmatprep.subr.mxu0 0.0
      %1525 = vmatpush2.msra.mxu0 0.0
      %1526 = vmatprep.subr.mxu0 0.0
      %1527 = vmatpush2.msra.mxu0 0.0
      %1528 = vmatprep.subr.mxu0 0.0
      %1529 = vmatpush2.msra.mxu0 0.0
      %1530 = vmatprep.subr.mxu0 0.0
      %1531 = vmatpush2.msra.mxu0 0.0
      %1532 = vmatprep.subr.mxu0 0.0
      %1533 = vmatpush2.msra.mxu0 0.0
      %1534 = vmatprep.subr.mxu0 0.0
      %1535 = vmatpush2.msra.mxu0 0.0
      %1536 = vmatprep.mubr.f32.mxu0 0.0
      %1537 = vmatmul.mubr.f32.gmra.mxu0 %v1449
      %v1538 = vpop.f32.mrf.mxu0
      %v1539 = vadd.f32 0.0, %v1538
      %v1540 = vpop.f32.mrf.mxu0
      %1541 = vmatprep.mubr.f32.mxu0 0.0
      %1542 = vmatmul.mubr.f32.gmra.mxu0 %v1452
      %v1543 = vpop.f32.mrf.mxu0
      %v1544 = vadd.f32 0.0, %v1543
      %v1545 = vpop.f32.mrf.mxu0
      %1546 = vmatprep.mubr.f32.mxu0 0.0
      %1547 = vmatmul.mubr.f32.gmra.mxu0 %v1455
      %v1548 = vpop.f32.mrf.mxu0
      %v1549 = vadd.f32 0.0, %v1548
      %v1550 = vpop.f32.mrf.mxu0
      %1551 = vmatprep.mubr.f32.mxu0 0.0
      %1552 = vmatmul.mubr.f32.gmra.mxu0 %v1458
      %v1553 = vpop.f32.mrf.mxu0
      %v1554 = vadd.f32 0.0, %v1553
      %v1555 = vpop.f32.mrf.mxu0
      %1556 = vmatprep.mubr.f32.mxu0 0.0
      %1557 = vmatmul.mubr.f32.gmra.mxu0 %v1461
      %v1558 = vpop.f32.mrf.mxu0
      %v1559 = vadd.f32 0.0, %v1558
      %v1560 = vpop.f32.mrf.mxu0
      %1561 = vmatprep.mubr.f32.mxu0 0.0
      %1562 = vmatmul.mubr.f32.gmra.mxu0 %v1464
      %v1563 = vpop.f32.mrf.mxu0
      %v1564 = vadd.f32 0.0, %v1563
      %v1565 = vpop.f32.mrf.mxu0
      %1566 = vmatprep.mubr.f32.mxu0 0.0
      %1567 = vmatmul.mubr.f32.gmra.mxu0 %v1467
      %v1568 = vpop.f32.mrf.mxu0
      %v1569 = vadd.f32 0.0, %v1568
      %v1570 = vpop.f32.mrf.mxu0
      %1571 = vmatprep.mubr.f32.mxu0 0.0
      %1572 = vmatmul.mubr.f32.gmra.mxu0 %v1470
      %v1573 = vpop.f32.mrf.mxu0
      %v1574 = vadd.f32 0.0, %v1573
      %v1575 = vpop.f32.mrf.mxu0
      %1576 = vdwg.mxu0
      %v1577 = vadd.f32 %v1419, %v1539
      %v1578 = vadd.f32 %v1420, %v1544
      %v1579 = vadd.f32 %v1421, %v1549
      %v1580 = vadd.f32 %v1422, %v1554
      %v1581 = vadd.f32 %v1423, %v1559
      %v1582 = vadd.f32 %v1424, %v1564
      %v1583 = vadd.f32 %v1425, %v1569
      %v1584 = vadd.f32 %v1426, %v1574
      %s1585 = sadd.s32 %s19, 1
      %s1586 = scalar_lea.vmem %s182, %s1585
      %v1587 = vld [vmem:[%s1586] sm:$0x1]
      %v1588 = vld [vmem:[%s1586 + $0x2] sm:$0x1]
      %v1589 = vld [vmem:[%s1586 + $0x4] sm:$0x1]
      %v1590 = vld [vmem:[%s1586 + $0x6] sm:$0x1]
      %v1591 = vld [vmem:[%s1586 + $0x8] sm:$0x1]
      %v1592 = vld [vmem:[%s1586 + $0xa] sm:$0x1]
      %v1593 = vld [vmem:[%s1586 + $0xc] sm:$0x1]
      %v1594 = vld [vmem:[%s1586 + $0xe] sm:$0x1]
      %v1595 = vld [vmem:[%s1586 + $0x10] sm:$0x1]
      %v1596 = vld [vmem:[%s1586 + $0x12] sm:$0x1]
      %v1597 = vld [vmem:[%s1586 + $0x14] sm:$0x1]
      %v1598 = vld [vmem:[%s1586 + $0x16] sm:$0x1]
      %v1599 = vld [vmem:[%s1586 + $0x18] sm:$0x1]
      %v1600 = vld [vmem:[%s1586 + $0x1a] sm:$0x1]
      %v1601 = vld [vmem:[%s1586 + $0x1c] sm:$0x1]
      %v1602 = vld [vmem:[%s1586 + $0x1e] sm:$0x1]
      %v1603 = vld [vmem:[%s1586 + $0x20] sm:$0x1]
      %v1604 = vld [vmem:[%s1586 + $0x22] sm:$0x1]
      %v1605 = vld [vmem:[%s1586 + $0x24] sm:$0x1]
      %v1606 = vld [vmem:[%s1586 + $0x26] sm:$0x1]
      %v1607 = vld [vmem:[%s1586 + $0x28] sm:$0x1]
      %v1608 = vld [vmem:[%s1586 + $0x2a] sm:$0x1]
      %v1609 = vld [vmem:[%s1586 + $0x2c] sm:$0x1]
      %v1610 = vld [vmem:[%s1586 + $0x2e] sm:$0x1]
      %v1611 = vld [vmem:[%s1586 + $0x30] sm:$0x1]
      %v1612 = vld [vmem:[%s1586 + $0x32] sm:$0x1]
      %v1613 = vld [vmem:[%s1586 + $0x34] sm:$0x1]
      %v1614 = vld [vmem:[%s1586 + $0x36] sm:$0x1]
      %v1615 = vld [vmem:[%s1586 + $0x38] sm:$0x1]
      %v1616 = vld [vmem:[%s1586 + $0x3a] sm:$0x1]
      %v1617 = vld [vmem:[%s1586 + $0x3c] sm:$0x1]
      %v1618 = vld [vmem:[%s1586 + $0x3e] sm:$0x1]
      %s1619 = scalar_lea.vmem %s1, 384
      %v1620 = vld [vmem:[%s1619] sm:$0xff]
      %v1621 = vld [vmem:[%s1619 + $0x8] sm:$0xff]
      %v1622 = vld [vmem:[%s1619 + $0x10] sm:$0xff]
      %v1623 = vld [vmem:[%s1619 + $0x18] sm:$0xff]
      %v1624 = vld [vmem:[%s1619 + $0x20] sm:$0xff]
      %v1625 = vld [vmem:[%s1619 + $0x28] sm:$0xff]
      %v1626 = vld [vmem:[%s1619 + $0x30] sm:$0xff]
      %v1627 = vld [vmem:[%s1619 + $0x38] sm:$0xff]
      %v1660 = vrot.slane %v1588, 7
      %v1661 = vsel %vm308, %v1660, %v1587
      %v1662 = vrot.slane %v1589, 6
      %v1663 = vsel %vm311, %v1662, %v1661
      %v1664 = vrot.slane %v1590, 5
      %v1665 = vsel %vm314, %v1664, %v1663
      %v1666 = vrot.slane %v1591, 4
      %v1667 = vsel %vm317, %v1666, %v1665
      %v1668 = vrot.slane %v1592, 3
      %v1669 = vsel %vm320, %v1668, %v1667
      %v1670 = vrot.slane %v1593, 2
      %v1671 = vsel %vm323, %v1670, %v1669
      %v1672 = vrot.slane %v1594, 1
      %v1673 = vsel %vm326, %v1672, %v1671
      %v1674 = vrot.slane %v1596, 7
      %v1675 = vsel %vm308, %v1674, %v1595
      %v1676 = vrot.slane %v1597, 6
      %v1677 = vsel %vm311, %v1676, %v1675
      %v1678 = vrot.slane %v1598, 5
      %v1679 = vsel %vm314, %v1678, %v1677
      %v1680 = vrot.slane %v1599, 4
      %v1681 = vsel %vm317, %v1680, %v1679
      %v1682 = vrot.slane %v1600, 3
      %v1683 = vsel %vm320, %v1682, %v1681
      %v1684 = vrot.slane %v1601, 2
      %v1685 = vsel %vm323, %v1684, %v1683
      %v1686 = vrot.slane %v1602, 1
      %v1687 = vsel %vm326, %v1686, %v1685
      %v1688 = vrot.slane %v1604, 7
      %v1689 = vsel %vm308, %v1688, %v1603
      %v1690 = vrot.slane %v1605, 6
      %v1691 = vsel %vm311, %v1690, %v1689
      %v1692 = vrot.slane %v1606, 5
      %v1693 = vsel %vm314, %v1692, %v1691
      %v1694 = vrot.slane %v1607, 4
      %v1695 = vsel %vm317, %v1694, %v1693
      %v1696 = vrot.slane %v1608, 3
      %v1697 = vsel %vm320, %v1696, %v1695
      %v1698 = vrot.slane %v1609, 2
      %v1699 = vsel %vm323, %v1698, %v1697
      %v1700 = vrot.slane %v1610, 1
      %v1701 = vsel %vm326, %v1700, %v1699
      %v1702 = vrot.slane %v1612, 7
      %v1703 = vsel %vm308, %v1702, %v1611
      %v1704 = vrot.slane %v1613, 6
      %v1705 = vsel %vm311, %v1704, %v1703
      %v1706 = vrot.slane %v1614, 5
      %v1707 = vsel %vm314, %v1706, %v1705
      %v1708 = vrot.slane %v1615, 4
      %v1709 = vsel %vm317, %v1708, %v1707
      %v1710 = vrot.slane %v1616, 3
      %v1711 = vsel %vm320, %v1710, %v1709
      %v1712 = vrot.slane %v1617, 2
      %v1713 = vsel %vm323, %v1712, %v1711
      %v1714 = vrot.slane %v1618, 1
      %v1715 = vsel %vm326, %v1714, %v1713
      %v1721 = vsel %vm374, %v1620, 0
      %v1724 = vsel %vm374, %v1621, 0
      %v1727 = vsel %vm374, %v1622, 0
      %v1730 = vsel %vm374, %v1623, 0
      %v1733 = vsel %vm374, %v1624, 0
      %v1736 = vsel %vm374, %v1625, 0
      %v1739 = vsel %vm374, %v1626, 0
      %v1742 = vsel %vm374, %v1627, 0
      %1744 = vmatprep.subr.mxu0 0.0
      %1745 = vmatpush1.msra.mxu0 0.0
      %1746 = vmatprep.subr.mxu0 0.0
      %1747 = vmatpush1.msra.mxu0 0.0
      %1748 = vmatprep.subr.mxu0 0.0
      %1749 = vmatpush1.msra.mxu0 0.0
      %1750 = vmatprep.subr.mxu0 0.0
      %1751 = vmatpush1.msra.mxu0 0.0
      %1752 = vmatprep.subr.mxu0 0.0
      %1753 = vmatpush1.msra.mxu0 0.0
      %1754 = vmatprep.subr.mxu0 0.0
      %1755 = vmatpush1.msra.mxu0 0.0
      %1756 = vmatprep.subr.mxu0 0.0
      %1757 = vmatpush1.msra.mxu0 0.0
      %1758 = vmatprep.subr.mxu0 0.0
      %1759 = vmatpush1.msra.mxu0 0.0
      %1760 = vmatprep.subr.mxu0 0.0
      %1761 = vmatpush1.msra.mxu0 0.0
      %1762 = vmatprep.subr.mxu0 0.0
      %1763 = vmatpush1.msra.mxu0 0.0
      %1764 = vmatprep.subr.mxu0 0.0
      %1765 = vmatpush1.msra.mxu0 0.0
      %1766 = vmatprep.subr.mxu0 0.0
      %1767 = vmatpush1.msra.mxu0 0.0
      %1768 = vmatprep.subr.mxu0 0.0
      %1769 = vmatpush1.msra.mxu0 %v1715
      %1770 = vmatprep.subr.mxu0 0.0
      %1771 = vmatpush1.msra.mxu0 %v1701
      %1772 = vmatprep.subr.mxu0 0.0
      %1773 = vmatpush1.msra.mxu0 %v1687
      %1774 = vmatprep.subr.mxu0 0.0
      %1775 = vmatpush1.msra.mxu0 %v1673
      %1776 = vmatprep.subr.mxu0 0.0
      %1777 = vmatpush2.msra.mxu0 0.0
      %1778 = vmatprep.subr.mxu0 0.0
      %1779 = vmatpush2.msra.mxu0 0.0
      %1780 = vmatprep.subr.mxu0 0.0
      %1781 = vmatpush2.msra.mxu0 0.0
      %1782 = vmatprep.subr.mxu0 0.0
      %1783 = vmatpush2.msra.mxu0 0.0
      %1784 = vmatprep.subr.mxu0 0.0
      %1785 = vmatpush2.msra.mxu0 0.0
      %1786 = vmatprep.subr.mxu0 0.0
      %1787 = vmatpush2.msra.mxu0 0.0
      %1788 = vmatprep.subr.mxu0 0.0
      %1789 = vmatpush2.msra.mxu0 0.0
      %1790 = vmatprep.subr.mxu0 0.0
      %1791 = vmatpush2.msra.mxu0 0.0
      %1792 = vmatprep.subr.mxu0 0.0
      %1793 = vmatpush2.msra.mxu0 0.0
      %1794 = vmatprep.subr.mxu0 0.0
      %1795 = vmatpush2.msra.mxu0 0.0
      %1796 = vmatprep.subr.mxu0 0.0
      %1797 = vmatpush2.msra.mxu0 0.0
      %1798 = vmatprep.subr.mxu0 0.0
      %1799 = vmatpush2.msra.mxu0 0.0
      %1800 = vmatprep.subr.mxu0 0.0
      %1801 = vmatpush2.msra.mxu0 0.0
      %1802 = vmatprep.subr.mxu0 0.0
      %1803 = vmatpush2.msra.mxu0 0.0
      %1804 = vmatprep.subr.mxu0 0.0
      %1805 = vmatpush2.msra.mxu0 0.0
      %1806 = vmatprep.subr.mxu0 0.0
      %1807 = vmatpush2.msra.mxu0 0.0
      %1808 = vmatprep.mubr.f32.mxu0 0.0
      %1809 = vmatmul.mubr.f32.gmra.mxu0 %v1721
      %v1810 = vpop.f32.mrf.mxu0
      %v1811 = vadd.f32 0.0, %v1810
      %v1812 = vpop.f32.mrf.mxu0
      %1813 = vmatprep.mubr.f32.mxu0 0.0
      %1814 = vmatmul.mubr.f32.gmra.mxu0 %v1724
      %v1815 = vpop.f32.mrf.mxu0
      %v1816 = vadd.f32 0.0, %v1815
      %v1817 = vpop.f32.mrf.mxu0
      %1818 = vmatprep.mubr.f32.mxu0 0.0
      %1819 = vmatmul.mubr.f32.gmra.mxu0 %v1727
      %v1820 = vpop.f32.mrf.mxu0
      %v1821 = vadd.f32 0.0, %v1820
      %v1822 = vpop.f32.mrf.mxu0
      %1823 = vmatprep.mubr.f32.mxu0 0.0
      %1824 = vmatmul.mubr.f32.gmra.mxu0 %v1730
      %v1825 = vpop.f32.mrf.mxu0
      %v1826 = vadd.f32 0.0, %v1825
      %v1827 = vpop.f32.mrf.mxu0
      %1828 = vmatprep.mubr.f32.mxu0 0.0
      %1829 = vmatmul.mubr.f32.gmra.mxu0 %v1733
      %v1830 = vpop.f32.mrf.mxu0
      %v1831 = vadd.f32 0.0, %v1830
      %v1832 = vpop.f32.mrf.mxu0
      %1833 = vmatprep.mubr.f32.mxu0 0.0
      %1834 = vmatmul.mubr.f32.gmra.mxu0 %v1736
      %v1835 = vpop.f32.mrf.mxu0
      %v1836 = vadd.f32 0.0, %v1835
      %v1837 = vpop.f32.mrf.mxu0
      %1838 = vmatprep.mubr.f32.mxu0 0.0
      %1839 = vmatmul.mubr.f32.gmra.mxu0 %v1739
      %v1840 = vpop.f32.mrf.mxu0
      %v1841 = vadd.f32 0.0, %v1840
      %v1842 = vpop.f32.mrf.mxu0
      %1843 = vmatprep.mubr.f32.mxu0 0.0
      %1844 = vmatmul.mubr.f32.gmra.mxu0 %v1742
      %v1845 = vpop.f32.mrf.mxu0
      %v1846 = vadd.f32 0.0, %v1845
      %v1847 = vpop.f32.mrf.mxu0
      %1848 = vdwg.mxu0
      %v1849 = vadd.f32 %v1577, %v1811
      %v1850 = vadd.f32 %v1578, %v1816
      %v1851 = vadd.f32 %v1579, %v1821
      %v1852 = vadd.f32 %v1580, %v1826
      %v1853 = vadd.f32 %v1581, %v1831
      %v1854 = vadd.f32 %v1582, %v1836
      %v1855 = vadd.f32 %v1583, %v1841
      %v1856 = vadd.f32 %v1584, %v1846
      %s1857 = sadd.s32 %s1585, 64
      %s1858 = scalar_lea.vmem %s182, %s1857
      %v1859 = vld [vmem:[%s1858] sm:$0x1]
      %v1860 = vld [vmem:[%s1858 + $0x2] sm:$0x1]
      %v1861 = vld [vmem:[%s1858 + $0x4] sm:$0x1]
      %v1862 = vld [vmem:[%s1858 + $0x6] sm:$0x1]
      %v1863 = vld [vmem:[%s1858 + $0x8] sm:$0x1]
      %v1864 = vld [vmem:[%s1858 + $0xa] sm:$0x1]
      %v1865 = vld [vmem:[%s1858 + $0xc] sm:$0x1]
      %v1866 = vld [vmem:[%s1858 + $0xe] sm:$0x1]
      %v1867 = vld [vmem:[%s1858 + $0x10] sm:$0x1]
      %v1868 = vld [vmem:[%s1858 + $0x12] sm:$0x1]
      %v1869 = vld [vmem:[%s1858 + $0x14] sm:$0x1]
      %v1870 = vld [vmem:[%s1858 + $0x16] sm:$0x1]
      %v1871 = vld [vmem:[%s1858 + $0x18] sm:$0x1]
      %v1872 = vld [vmem:[%s1858 + $0x1a] sm:$0x1]
      %v1873 = vld [vmem:[%s1858 + $0x1c] sm:$0x1]
      %v1874 = vld [vmem:[%s1858 + $0x1e] sm:$0x1]
      %v1875 = vld [vmem:[%s1858 + $0x20] sm:$0x1]
      %v1876 = vld [vmem:[%s1858 + $0x22] sm:$0x1]
      %v1877 = vld [vmem:[%s1858 + $0x24] sm:$0x1]
      %v1878 = vld [vmem:[%s1858 + $0x26] sm:$0x1]
      %v1879 = vld [vmem:[%s1858 + $0x28] sm:$0x1]
      %v1880 = vld [vmem:[%s1858 + $0x2a] sm:$0x1]
      %v1881 = vld [vmem:[%s1858 + $0x2c] sm:$0x1]
      %v1882 = vld [vmem:[%s1858 + $0x2e] sm:$0x1]
      %v1883 = vld [vmem:[%s1858 + $0x30] sm:$0x1]
      %v1884 = vld [vmem:[%s1858 + $0x32] sm:$0x1]
      %v1885 = vld [vmem:[%s1858 + $0x34] sm:$0x1]
      %v1886 = vld [vmem:[%s1858 + $0x36] sm:$0x1]
      %v1887 = vld [vmem:[%s1858 + $0x38] sm:$0x1]
      %v1888 = vld [vmem:[%s1858 + $0x3a] sm:$0x1]
      %v1889 = vld [vmem:[%s1858 + $0x3c] sm:$0x1]
      %v1890 = vld [vmem:[%s1858 + $0x3e] sm:$0x1]
      %s1891 = scalar_lea.vmem %s1, 448
      %v1892 = vld [vmem:[%s1891] sm:$0xff]
      %v1893 = vld [vmem:[%s1891 + $0x8] sm:$0xff]
      %v1894 = vld [vmem:[%s1891 + $0x10] sm:$0xff]
      %v1895 = vld [vmem:[%s1891 + $0x18] sm:$0xff]
      %v1896 = vld [vmem:[%s1891 + $0x20] sm:$0xff]
      %v1897 = vld [vmem:[%s1891 + $0x28] sm:$0xff]
      %v1898 = vld [vmem:[%s1891 + $0x30] sm:$0xff]
      %v1899 = vld [vmem:[%s1891 + $0x38] sm:$0xff]
      %v1932 = vrot.slane %v1860, 7
      %v1933 = vsel %vm308, %v1932, %v1859
      %v1934 = vrot.slane %v1861, 6
      %v1935 = vsel %vm311, %v1934, %v1933
      %v1936 = vrot.slane %v1862, 5
      %v1937 = vsel %vm314, %v1936, %v1935
      %v1938 = vrot.slane %v1863, 4
      %v1939 = vsel %vm317, %v1938, %v1937
      %v1940 = vrot.slane %v1864, 3
      %v1941 = vsel %vm320, %v1940, %v1939
      %v1942 = vrot.slane %v1865, 2
      %v1943 = vsel %vm323, %v1942, %v1941
      %v1944 = vrot.slane %v1866, 1
      %v1945 = vsel %vm326, %v1944, %v1943
      %v1946 = vrot.slane %v1868, 7
      %v1947 = vsel %vm308, %v1946, %v1867
      %v1948 = vrot.slane %v1869, 6
      %v1949 = vsel %vm311, %v1948, %v1947
      %v1950 = vrot.slane %v1870, 5
      %v1951 = vsel %vm314, %v1950, %v1949
      %v1952 = vrot.slane %v1871, 4
      %v1953 = vsel %vm317, %v1952, %v1951
      %v1954 = vrot.slane %v1872, 3
      %v1955 = vsel %vm320, %v1954, %v1953
      %v1956 = vrot.slane %v1873, 2
      %v1957 = vsel %vm323, %v1956, %v1955
      %v1958 = vrot.slane %v1874, 1
      %v1959 = vsel %vm326, %v1958, %v1957
      %v1960 = vrot.slane %v1876, 7
      %v1961 = vsel %vm308, %v1960, %v1875
      %v1962 = vrot.slane %v1877, 6
      %v1963 = vsel %vm311, %v1962, %v1961
      %v1964 = vrot.slane %v1878, 5
      %v1965 = vsel %vm314, %v1964, %v1963
      %v1966 = vrot.slane %v1879, 4
      %v1967 = vsel %vm317, %v1966, %v1965
      %v1968 = vrot.slane %v1880, 3
      %v1969 = vsel %vm320, %v1968, %v1967
      %v1970 = vrot.slane %v1881, 2
      %v1971 = vsel %vm323, %v1970, %v1969
      %v1972 = vrot.slane %v1882, 1
      %v1973 = vsel %vm326, %v1972, %v1971
      %v1974 = vrot.slane %v1884, 7
      %v1975 = vsel %vm308, %v1974, %v1883
      %v1976 = vrot.slane %v1885, 6
      %v1977 = vsel %vm311, %v1976, %v1975
      %v1978 = vrot.slane %v1886, 5
      %v1979 = vsel %vm314, %v1978, %v1977
      %v1980 = vrot.slane %v1887, 4
      %v1981 = vsel %vm317, %v1980, %v1979
      %v1982 = vrot.slane %v1888, 3
      %v1983 = vsel %vm320, %v1982, %v1981
      %v1984 = vrot.slane %v1889, 2
      %v1985 = vsel %vm323, %v1984, %v1983
      %v1986 = vrot.slane %v1890, 1
      %v1987 = vsel %vm326, %v1986, %v1985
      %v1993 = vsel %vm374, %v1892, 0
      %v1996 = vsel %vm374, %v1893, 0
      %v1999 = vsel %vm374, %v1894, 0
      %v2002 = vsel %vm374, %v1895, 0
      %v2005 = vsel %vm374, %v1896, 0
      %v2008 = vsel %vm374, %v1897, 0
      %v2011 = vsel %vm374, %v1898, 0
      %v2014 = vsel %vm374, %v1899, 0
      %2016 = vmatprep.subr.mxu0 0.0
      %2017 = vmatpush1.msra.mxu0 0.0
      %2018 = vmatprep.subr.mxu0 0.0
      %2019 = vmatpush1.msra.mxu0 0.0
      %2020 = vmatprep.subr.mxu0 0.0
      %2021 = vmatpush1.msra.mxu0 0.0
      %2022 = vmatprep.subr.mxu0 0.0
      %2023 = vmatpush1.msra.mxu0 0.0
      %2024 = vmatprep.subr.mxu0 0.0
      %2025 = vmatpush1.msra.mxu0 0.0
      %2026 = vmatprep.subr.mxu0 0.0
      %2027 = vmatpush1.msra.mxu0 0.0
      %2028 = vmatprep.subr.mxu0 0.0
      %2029 = vmatpush1.msra.mxu0 0.0
      %2030 = vmatprep.subr.mxu0 0.0
      %2031 = vmatpush1.msra.mxu0 0.0
      %2032 = vmatprep.subr.mxu0 0.0
      %2033 = vmatpush1.msra.mxu0 0.0
      %2034 = vmatprep.subr.mxu0 0.0
      %2035 = vmatpush1.msra.mxu0 0.0
      %2036 = vmatprep.subr.mxu0 0.0
      %2037 = vmatpush1.msra.mxu0 0.0
      %2038 = vmatprep.subr.mxu0 0.0
      %2039 = vmatpush1.msra.mxu0 0.0
      %2040 = vmatprep.subr.mxu0 0.0
      %2041 = vmatpush1.msra.mxu0 %v1987
      %2042 = vmatprep.subr.mxu0 0.0
      %2043 = vmatpush1.msra.mxu0 %v1973
      %2044 = vmatprep.subr.mxu0 0.0
      %2045 = vmatpush1.msra.mxu0 %v1959
      %2046 = vmatprep.subr.mxu0 0.0
      %2047 = vmatpush1.msra.mxu0 %v1945
      %2048 = vmatprep.subr.mxu0 0.0
      %2049 = vmatpush2.msra.mxu0 0.0
      %2050 = vmatprep.subr.mxu0 0.0
      %2051 = vmatpush2.msra.mxu0 0.0
      %2052 = vmatprep.subr.mxu0 0.0
      %2053 = vmatpush2.msra.mxu0 0.0
      %2054 = vmatprep.subr.mxu0 0.0
      %2055 = vmatpush2.msra.mxu0 0.0
      %2056 = vmatprep.subr.mxu0 0.0
      %2057 = vmatpush2.msra.mxu0 0.0
      %2058 = vmatprep.subr.mxu0 0.0
      %2059 = vmatpush2.msra.mxu0 0.0
      %2060 = vmatprep.subr.mxu0 0.0
      %2061 = vmatpush2.msra.mxu0 0.0
      %2062 = vmatprep.subr.mxu0 0.0
      %2063 = vmatpush2.msra.mxu0 0.0
      %2064 = vmatprep.subr.mxu0 0.0
      %2065 = vmatpush2.msra.mxu0 0.0
      %2066 = vmatprep.subr.mxu0 0.0
      %2067 = vmatpush2.msra.mxu0 0.0
      %2068 = vmatprep.subr.mxu0 0.0
      %2069 = vmatpush2.msra.mxu0 0.0
      %2070 = vmatprep.subr.mxu0 0.0
      %2071 = vmatpush2.msra.mxu0 0.0
      %2072 = vmatprep.subr.mxu0 0.0
      %2073 = vmatpush2.msra.mxu0 0.0
      %2074 = vmatprep.subr.mxu0 0.0
      %2075 = vmatpush2.msra.mxu0 0.0
      %2076 = vmatprep.subr.mxu0 0.0
      %2077 = vmatpush2.msra.mxu0 0.0
      %2078 = vmatprep.subr.mxu0 0.0
      %2079 = vmatpush2.msra.mxu0 0.0
      %2080 = vmatprep.mubr.f32.mxu0 0.0
      %2081 = vmatmul.mubr.f32.gmra.mxu0 %v1993
      %v2082 = vpop.f32.mrf.mxu0
      %v2083 = vadd.f32 0.0, %v2082
      %v2084 = vpop.f32.mrf.mxu0
      %2085 = vmatprep.mubr.f32.mxu0 0.0
      %2086 = vmatmul.mubr.f32.gmra.mxu0 %v1996
      %v2087 = vpop.f32.mrf.mxu0
      %v2088 = vadd.f32 0.0, %v2087
      %v2089 = vpop.f32.mrf.mxu0
      %2090 = vmatprep.mubr.f32.mxu0 0.0
      %2091 = vmatmul.mubr.f32.gmra.mxu0 %v1999
      %v2092 = vpop.f32.mrf.mxu0
      %v2093 = vadd.f32 0.0, %v2092
      %v2094 = vpop.f32.mrf.mxu0
      %2095 = vmatprep.mubr.f32.mxu0 0.0
      %2096 = vmatmul.mubr.f32.gmra.mxu0 %v2002
      %v2097 = vpop.f32.mrf.mxu0
      %v2098 = vadd.f32 0.0, %v2097
      %v2099 = vpop.f32.mrf.mxu0
      %2100 = vmatprep.mubr.f32.mxu0 0.0
      %2101 = vmatmul.mubr.f32.gmra.mxu0 %v2005
      %v2102 = vpop.f32.mrf.mxu0
      %v2103 = vadd.f32 0.0, %v2102
      %v2104 = vpop.f32.mrf.mxu0
      %2105 = vmatprep.mubr.f32.mxu0 0.0
      %2106 = vmatmul.mubr.f32.gmra.mxu0 %v2008
      %v2107 = vpop.f32.mrf.mxu0
      %v2108 = vadd.f32 0.0, %v2107
      %v2109 = vpop.f32.mrf.mxu0
      %2110 = vmatprep.mubr.f32.mxu0 0.0
      %2111 = vmatmul.mubr.f32.gmra.mxu0 %v2011
      %v2112 = vpop.f32.mrf.mxu0
      %v2113 = vadd.f32 0.0, %v2112
      %v2114 = vpop.f32.mrf.mxu0
      %2115 = vmatprep.mubr.f32.mxu0 0.0
      %2116 = vmatmul.mubr.f32.gmra.mxu0 %v2014
      %v2117 = vpop.f32.mrf.mxu0
      %v2118 = vadd.f32 0.0, %v2117
      %v2119 = vpop.f32.mrf.mxu0
      %2120 = vdwg.mxu0
      %v2121 = vadd.f32 %v1849, %v2083
      %v2122 = vadd.f32 %v1850, %v2088
      %v2123 = vadd.f32 %v1851, %v2093
      %v2124 = vadd.f32 %v1852, %v2098
      %v2125 = vadd.f32 %v1853, %v2103
      %v2126 = vadd.f32 %v1854, %v2108
      %v2127 = vadd.f32 %v1855, %v2113
      %v2128 = vadd.f32 %v1856, %v2118
      %s2129 = scalar_lea.vmem %s1, 512
      %v2130 = vld [vmem:[%s2129] sm:$0xff]
      %v2131 = vld [vmem:[%s2129 + $0x8] sm:$0xff]
      %v2132 = vld [vmem:[%s2129 + $0x10] sm:$0xff]
      %v2133 = vld [vmem:[%s2129 + $0x18] sm:$0xff]
      %v2134 = vld [vmem:[%s2129 + $0x20] sm:$0xff]
      %v2135 = vld [vmem:[%s2129 + $0x28] sm:$0xff]
      %v2136 = vld [vmem:[%s2129 + $0x30] sm:$0xff]
      %v2137 = vld [vmem:[%s2129 + $0x38] sm:$0xff]
      %2138 = vrot.lane.b32.xlu0 %v1673, 127
      %v2139 = vpop.permute.xlu0 %2138
      %2140 = vrot.lane.b32.xlu0 %v1687, 127
      %v2141 = vpop.permute.xlu0 %2140
      %2142 = vrot.lane.b32.xlu0 %v1701, 127
      %v2143 = vpop.permute.xlu0 %2142
      %2144 = vrot.lane.b32.xlu0 %v1715, 127
      %v2145 = vpop.permute.xlu0 %2144
      %v2151 = vsel %vm374, %v2130, 0
      %v2154 = vsel %vm374, %v2131, 0
      %v2157 = vsel %vm374, %v2132, 0
      %v2160 = vsel %vm374, %v2133, 0
      %v2163 = vsel %vm374, %v2134, 0
      %v2166 = vsel %vm374, %v2135, 0
      %v2169 = vsel %vm374, %v2136, 0
      %v2172 = vsel %vm374, %v2137, 0
      %2174 = vmatprep.subr.mxu0 0.0
      %2175 = vmatpush1.msra.mxu0 0.0
      %2176 = vmatprep.subr.mxu0 0.0
      %2177 = vmatpush1.msra.mxu0 0.0
      %2178 = vmatprep.subr.mxu0 0.0
      %2179 = vmatpush1.msra.mxu0 0.0
      %2180 = vmatprep.subr.mxu0 0.0
      %2181 = vmatpush1.msra.mxu0 0.0
      %2182 = vmatprep.subr.mxu0 0.0
      %2183 = vmatpush1.msra.mxu0 0.0
      %2184 = vmatprep.subr.mxu0 0.0
      %2185 = vmatpush1.msra.mxu0 0.0
      %2186 = vmatprep.subr.mxu0 0.0
      %2187 = vmatpush1.msra.mxu0 0.0
      %2188 = vmatprep.subr.mxu0 0.0
      %2189 = vmatpush1.msra.mxu0 0.0
      %2190 = vmatprep.subr.mxu0 0.0
      %2191 = vmatpush1.msra.mxu0 0.0
      %2192 = vmatprep.subr.mxu0 0.0
      %2193 = vmatpush1.msra.mxu0 0.0
      %2194 = vmatprep.subr.mxu0 0.0
      %2195 = vmatpush1.msra.mxu0 0.0
      %2196 = vmatprep.subr.mxu0 0.0
      %2197 = vmatpush1.msra.mxu0 0.0
      %2198 = vmatprep.subr.mxu0 0.0
      %2199 = vmatpush1.msra.mxu0 %v2145
      %2200 = vmatprep.subr.mxu0 0.0
      %2201 = vmatpush1.msra.mxu0 %v2143
      %2202 = vmatprep.subr.mxu0 0.0
      %2203 = vmatpush1.msra.mxu0 %v2141
      %2204 = vmatprep.subr.mxu0 0.0
      %2205 = vmatpush1.msra.mxu0 %v2139
      %2206 = vmatprep.subr.mxu0 0.0
      %2207 = vmatpush2.msra.mxu0 0.0
      %2208 = vmatprep.subr.mxu0 0.0
      %2209 = vmatpush2.msra.mxu0 0.0
      %2210 = vmatprep.subr.mxu0 0.0
      %2211 = vmatpush2.msra.mxu0 0.0
      %2212 = vmatprep.subr.mxu0 0.0
      %2213 = vmatpush2.msra.mxu0 0.0
      %2214 = vmatprep.subr.mxu0 0.0
      %2215 = vmatpush2.msra.mxu0 0.0
      %2216 = vmatprep.subr.mxu0 0.0
      %2217 = vmatpush2.msra.mxu0 0.0
      %2218 = vmatprep.subr.mxu0 0.0
      %2219 = vmatpush2.msra.mxu0 0.0
      %2220 = vmatprep.subr.mxu0 0.0
      %2221 = vmatpush2.msra.mxu0 0.0
      %2222 = vmatprep.subr.mxu0 0.0
      %2223 = vmatpush2.msra.mxu0 0.0
      %2224 = vmatprep.subr.mxu0 0.0
      %2225 = vmatpush2.msra.mxu0 0.0
      %2226 = vmatprep.subr.mxu0 0.0
      %2227 = vmatpush2.msra.mxu0 0.0
      %2228 = vmatprep.subr.mxu0 0.0
      %2229 = vmatpush2.msra.mxu0 0.0
      %2230 = vmatprep.subr.mxu0 0.0
      %2231 = vmatpush2.msra.mxu0 0.0
      %2232 = vmatprep.subr.mxu0 0.0
      %2233 = vmatpush2.msra.mxu0 0.0
      %2234 = vmatprep.subr.mxu0 0.0
      %2235 = vmatpush2.msra.mxu0 0.0
      %2236 = vmatprep.subr.mxu0 0.0
      %2237 = vmatpush2.msra.mxu0 0.0
      %2238 = vmatprep.mubr.f32.mxu0 0.0
      %2239 = vmatmul.mubr.f32.gmra.mxu0 %v2151
      %v2240 = vpop.f32.mrf.mxu0
      %v2241 = vadd.f32 0.0, %v2240
      %v2242 = vpop.f32.mrf.mxu0
      %2243 = vmatprep.mubr.f32.mxu0 0.0
      %2244 = vmatmul.mubr.f32.gmra.mxu0 %v2154
      %v2245 = vpop.f32.mrf.mxu0
      %v2246 = vadd.f32 0.0, %v2245
      %v2247 = vpop.f32.mrf.mxu0
      %2248 = vmatprep.mubr.f32.mxu0 0.0
      %2249 = vmatmul.mubr.f32.gmra.mxu0 %v2157
      %v2250 = vpop.f32.mrf.mxu0
      %v2251 = vadd.f32 0.0, %v2250
      %v2252 = vpop.f32.mrf.mxu0
      %2253 = vmatprep.mubr.f32.mxu0 0.0
      %2254 = vmatmul.mubr.f32.gmra.mxu0 %v2160
      %v2255 = vpop.f32.mrf.mxu0
      %v2256 = vadd.f32 0.0, %v2255
      %v2257 = vpop.f32.mrf.mxu0
      %2258 = vmatprep.mubr.f32.mxu0 0.0
      %2259 = vmatmul.mubr.f32.gmra.mxu0 %v2163
      %v2260 = vpop.f32.mrf.mxu0
      %v2261 = vadd.f32 0.0, %v2260
      %v2262 = vpop.f32.mrf.mxu0
      %2263 = vmatprep.mubr.f32.mxu0 0.0
      %2264 = vmatmul.mubr.f32.gmra.mxu0 %v2166
      %v2265 = vpop.f32.mrf.mxu0
      %v2266 = vadd.f32 0.0, %v2265
      %v2267 = vpop.f32.mrf.mxu0
      %2268 = vmatprep.mubr.f32.mxu0 0.0
      %2269 = vmatmul.mubr.f32.gmra.mxu0 %v2169
      %v2270 = vpop.f32.mrf.mxu0
      %v2271 = vadd.f32 0.0, %v2270
      %v2272 = vpop.f32.mrf.mxu0
      %2273 = vmatprep.mubr.f32.mxu0 0.0
      %2274 = vmatmul.mubr.f32.gmra.mxu0 %v2172
      %v2275 = vpop.f32.mrf.mxu0
      %v2276 = vadd.f32 0.0, %v2275
      %v2277 = vpop.f32.mrf.mxu0
      %2278 = vdwg.mxu0
      %v2279 = vadd.f32 %v2121, %v2241
      %v2280 = vadd.f32 %v2122, %v2246
      %v2281 = vadd.f32 %v2123, %v2251
      %v2282 = vadd.f32 %v2124, %v2256
      %v2283 = vadd.f32 %v2125, %v2261
      %v2284 = vadd.f32 %v2126, %v2266
      %v2285 = vadd.f32 %v2127, %v2271
      %v2286 = vadd.f32 %v2128, %v2276
      %v2287 = vld [vmem:[%s2] sm:$0xff]
      %v2288 = vld [vmem:[%s2 + $0x8] sm:$0xff]
      %v2289 = vld [vmem:[%s2 + $0x10] sm:$0xff]
      %v2290 = vld [vmem:[%s2 + $0x18] sm:$0xff]
      %v2291 = vld [vmem:[%s2 + $0x20] sm:$0xff]
      %v2292 = vld [vmem:[%s2 + $0x28] sm:$0xff]
      %v2293 = vld [vmem:[%s2 + $0x30] sm:$0xff]
      %v2294 = vld [vmem:[%s2 + $0x38] sm:$0xff]
      %v2295 = vadd.f32 %v2279, %v2287
      %v2296 = vadd.f32 %v2280, %v2288
      %v2297 = vadd.f32 %v2281, %v2289
      %v2298 = vadd.f32 %v2282, %v2290
      %v2299 = vadd.f32 %v2283, %v2291
      %v2300 = vadd.f32 %v2284, %v2292
      %v2301 = vadd.f32 %v2285, %v2293
      %v2302 = vadd.f32 %v2286, %v2294
      %vm2303 = vcmp.gt.f32.partialorder %v2295, 0.0
      %vm2304 = vcmp.gt.f32.partialorder %v2296, 0.0
      %vm2305 = vcmp.gt.f32.partialorder %v2297, 0.0
      %vm2306 = vcmp.gt.f32.partialorder %v2298, 0.0
      %vm2307 = vcmp.gt.f32.partialorder %v2299, 0.0
      %vm2308 = vcmp.gt.f32.partialorder %v2300, 0.0
      %vm2309 = vcmp.gt.f32.partialorder %v2301, 0.0
      %vm2310 = vcmp.gt.f32.partialorder %v2302, 0.0
      %v2311 = vmul.f32 %v2295, 0.2
      %v2312 = vmul.f32 %v2296, 0.2
      %v2313 = vmul.f32 %v2297, 0.2
      %v2314 = vmul.f32 %v2298, 0.2
      %v2315 = vmul.f32 %v2299, 0.2
      %v2316 = vmul.f32 %v2300, 0.2
      %v2317 = vmul.f32 %v2301, 0.2
      %v2318 = vmul.f32 %v2302, 0.2
      %v2319 = vsel %vm2303, %v2295, %v2311
      %v2320 = vsel %vm2304, %v2296, %v2312
      %v2321 = vsel %vm2305, %v2297, %v2313
      %v2322 = vsel %vm2306, %v2298, %v2314
      %v2323 = vsel %vm2307, %v2299, %v2315
      %v2324 = vsel %vm2308, %v2300, %v2316
      %v2325 = vsel %vm2309, %v2301, %v2317
      %v2326 = vsel %vm2310, %v2302, %v2318
      %vm2327 = vcmask 7168
      %2328 = vst.msk [vmem:[%s190] sm:$0xff] %vm2327, %v2319
      %2329 = vst.msk [vmem:[%s190 + $0x8] sm:$0xff] %vm2327, %v2320
      %2330 = vst.msk [vmem:[%s190 + $0x10] sm:$0xff] %vm2327, %v2321
      %2331 = vst.msk [vmem:[%s190 + $0x18] sm:$0xff] %vm2327, %v2322
      %2332 = vst.msk [vmem:[%s190 + $0x20] sm:$0xff] %vm2327, %v2323
      %2333 = vst.msk [vmem:[%s190 + $0x28] sm:$0xff] %vm2327, %v2324
      %2334 = vst.msk [vmem:[%s190 + $0x30] sm:$0xff] %vm2327, %v2325
      %2335 = vst.msk [vmem:[%s190 + $0x38] sm:$0xff] %vm2327, %v2326
      %p2336 = scmp.lt.s32.totalorder %s18, 1
      %s2337 = scalar_select %p2336, %s18, 1
      %p2338 = scmp.lt.s32.totalorder %s19, 0
      %s2339 = scalar_select %p2338, %s19, 0
      %s2340 = smul.addr %s2337, 8
      %s2341 = sadd.s32 %s2339, %s2340
      %s2342 = smul.addr %s2341, 8
      %s2343 = scalar_lea.vmem %s3, %s2342
      // Predicated region
      $region33: #{fwd.8} parent=31 // pred_check
        %p2344 = pneg %p114
      $region34: #{fwd.8} parent=31 // pred_check_branch
        %2346 = sbr.rel (%p2344) target = $region36
      $region35: #{fwd.8} parent=31 // pred_region
        _
      $region36: #{fwd.8} parent=31 // pred_fallthru
        _
    $region32: #{fwd.8} parent=5 // pred_fallthru
      _
    %p2347 = scmp.le.s32.totalorder 2, %s9
    // Predicated region
    $region37: #{fwd.8} parent=5 // pred_check
      %p2348 = pneg %p2347
    $region38: #{fwd.8} parent=5 // pred_check_branch
      %2350 = sbr.rel (%p2348) target = $region40
    $region39: #{fwd.8} parent=5 // pred_region
      %s2351 = ssub.s32 %s9, 2
      // Predicated region
      $region41: #{fwd.8} parent=39 // pred_check
        %p2352 = pneg %p120
      $region42: #{fwd.8} parent=39 // pred_check_branch
        %2354 = sbr.rel (%p2352) target = $region44
      $region43: #{fwd.8} parent=39 // pred_region
        %p2355 = scmp.lt.s32.totalorder %s20, 1
        %s2356 = scalar_select %p2355, %s20, 1
        %p2357 = scmp.lt.s32.totalorder %s21, 0
        %s2358 = scalar_select %p2357, %s21, 0
        %s2359 = smul.addr %s2356, 8
        %s2360 = sadd.s32 %s2358, %s2359
        %s2361 = smul.addr %s2360, 8
        %s2362 = scalar_lea.vmem %s3, %s2361
      $region44: #{fwd.8} parent=39 // pred_fallthru
        _
    $region40: #{fwd.8} parent=5 // pred_fallthru
      _
  $region6: #{fwd.8} parent=0 // loop_footer
    %s13 = sadd.s32 1, %s9
  $region7: #{fwd.8} parent=0 // loop_footer_branch
    %8 = sbr.rel target = $region3
  $region8: #{fwd.8} parent=0 // loop_exit
    _

// kernel: fwd.9
$region0: #{fwd.9}
  #allocation0 [shape = 'u32[]', space=smem, size = 0x4, offset = 0x4, fixed_abs, tag = 'smem constant byte address 0x4 - core index']
  #allocation1 [shape = 'u32[144,128]{1,0:T(1,128)}', space=vmem, size = 0x12000, scoped, tag = 'internal scratch']
  #allocation2 [shape = 'f32[1,1]{1,0:T(1,128)S(1)}', space=vmem, size = 0x200, scoped, tag = 'scoped memory for fwd.9']
  %s0 = inlined_call_operand.vmem [shape: f32[2,1,64,3,3], index: 0, kind: input, shape index: {}]
  %s1 = inlined_call_operand.vmem [shape: f32[9,1,64], index: 1, kind: input, shape index: {}]
  %s2 = inlined_call_operand.<no memory space> [shape: f32[1,1], index: 2, kind: input, shape index: {}]
  %s3 = inlined_call_operand.vmem [shape: f32[2,1,1], index: 3, kind: output, shape index: {}]
  %s4 = sld [smem:[#allocation0]]
  $region45: #{fwd.9} parent=0
    _
  %s6 = ssub.s32 1, %s4
  %s7 = scalar_select 0, %s6, %s4
  %v8 = vstv %s2
  %9 = vst [vmem:[#allocation2] sm:$0x1] %v8
  loop: start=0, step=1, limit=4
  $region2: #{fwd.9} parent=0 // loop_pre_header
    _
  $region3: #{fwd.9} parent=0 // loop_header
    %s11 = sphi 0, %s15
    %p12 = scmp.ge.s32.totalorder %s11, 4
    %s18 = sphi 0, %s30
    %s19 = sphi 0, %s26
    %s20 = sphi 0, %s18
    %s21 = sphi 0, %s19
    %s22 = sphi 0, %s20
    %s23 = sphi 0, %s21
    %s33 = sphi 0, %s35
    %s36 = sphi 0, %s33
    %s37 = sphi 0, %s36
    %s53 = sphi 0, %s37
    %s57 = sphi 0, %s57
    %s59 = sphi 0, %s57
    %s60 = sphi 0, %s59
    %s74 = sphi 0, %s60
    %s78 = sphi 0, %s78
    %s80 = sphi 0, %s78
    %s81 = sphi 0, %s80
    %s95 = sphi 0, %s81
    %s103 = sphi 0, %s105
    %s106 = sphi 0, %s103
    %s107 = sphi 0, %s106
    %s123 = sphi 0, %s107
  $region4: #{fwd.9} parent=0 // loop_header_branch
    %14 = sbr.rel (%p12) target = $region8
  $region5: #{fwd.9} parent=0 // loop_body
    %s16 = ssub.s32 %s11, 1
    %s17 = ssub.s32 %s11, 2
    %s24 = sadd.s32 1, %s19
    %p25 = scmp.ge.s32.totalorder %s24, 1
    %s26 = scalar_select %p25, 0, %s24
    %s27 = sadd.s32 1, %s18
    %s28 = scalar_select %p25, %s27, %s18
    %p29 = scmp.ge.s32.totalorder %s28, 2
    %s30 = scalar_select %p29, 0, %s28
    %s31 = ssub.s32 %s18, %s30
    %p32 = scmp.eq.s32.totalorder %s31, 0
    %s34 = sadd.s32 %s33, 1
    %s35 = scalar_select %p32, %s33, %s34
    %p38 = pneg %p32
    %p39 = scmp.eq.s32.totalorder %s11, 1
    %p40 = por %p38, %p39
    %p41 = scmp.ne.s32.totalorder %s33, %s36
    %p42 = scmp.eq.s32.totalorder %s11, 0
    %p43 = por %p41, %p42
    %p44 = scmp.ne.s32.totalorder %s33, %s36
    %p45 = scmp.eq.s32.totalorder %s16, 1
    %p46 = por %p44, %p45
    %p47 = scmp.ne.s32.totalorder %s36, %s37
    %p48 = scmp.eq.s32.totalorder %s16, 0
    %p49 = por %p47, %p48
    %p50 = scmp.ne.s32.totalorder %s36, %s37
    %p51 = scmp.eq.s32.totalorder %s17, 1
    %p52 = por %p50, %p51
    %p54 = scmp.ne.s32.totalorder %s37, %s53
    %p55 = scmp.eq.s32.totalorder %s17, 0
    %p56 = por %p54, %p55
    %s58 = sadd.s32 %s57, 1
    %p61 = scmp.eq.s32.totalorder %s11, 1
    %p62 = scmp.ne.s32.totalorder %s57, %s59
    %p63 = scmp.eq.s32.totalorder %s11, 0
    %p64 = por %p62, %p63
    %p65 = scmp.ne.s32.totalorder %s57, %s59
    %p66 = scmp.eq.s32.totalorder %s16, 1
    %p67 = por %p65, %p66
    %p68 = scmp.ne.s32.totalorder %s59, %s60
    %p69 = scmp.eq.s32.totalorder %s16, 0
    %p70 = por %p68, %p69
    %p71 = scmp.ne.s32.totalorder %s59, %s60
    %p72 = scmp.eq.s32.totalorder %s17, 1
    %p73 = por %p71, %p72
    %p75 = scmp.ne.s32.totalorder %s60, %s74
    %p76 = scmp.eq.s32.totalorder %s17, 0
    %p77 = por %p75, %p76
    %s79 = sadd.s32 %s78, 1
    %p82 = scmp.eq.s32.totalorder %s11, 1
    %p83 = scmp.ne.s32.totalorder %s78, %s80
    %p84 = scmp.eq.s32.totalorder %s11, 0
    %p85 = por %p83, %p84
    %p86 = scmp.ne.s32.totalorder %s78, %s80
    %p87 = scmp.eq.s32.totalorder %s16, 1
    %p88 = por %p86, %p87
    %p89 = scmp.ne.s32.totalorder %s80, %s81
    %p90 = scmp.eq.s32.totalorder %s16, 0
    %p91 = por %p89, %p90
    %p92 = scmp.ne.s32.totalorder %s80, %s81
    %p93 = scmp.eq.s32.totalorder %s17, 1
    %p94 = por %p92, %p93
    %p96 = scmp.ne.s32.totalorder %s81, %s95
    %p97 = scmp.eq.s32.totalorder %s17, 0
    %p98 = por %p96, %p97
    %s99 = ssub.s32 %s18, %s30
    %s100 = ssub.s32 %s19, %s26
    %s101 = sor.u32 %s99, %s100
    %p102 = scmp.eq.s32.totalorder %s101, 0
    %s104 = sadd.s32 %s103, 1
    %s105 = scalar_select %p102, %s103, %s104
    %p108 = pneg %p102
    %p109 = scmp.eq.s32.totalorder %s11, 1
    %p110 = por %p108, %p109
    %p111 = scmp.ne.s32.totalorder %s103, %s106
    %p112 = scmp.eq.s32.totalorder %s11, 0
    %p113 = por %p111, %p112
    %p114 = scmp.ne.s32.totalorder %s103, %s106
    %p115 = scmp.eq.s32.totalorder %s16, 1
    %p116 = por %p114, %p115
    %p117 = scmp.ne.s32.totalorder %s106, %s107
    %p118 = scmp.eq.s32.totalorder %s16, 0
    %p119 = por %p117, %p118
    %p120 = scmp.ne.s32.totalorder %s106, %s107
    %p121 = scmp.eq.s32.totalorder %s17, 1
    %p122 = por %p120, %p121
    %p124 = scmp.ne.s32.totalorder %s107, %s123
    %p125 = scmp.eq.s32.totalorder %s17, 0
    %p126 = por %p124, %p125
    %p127 = scmp.le.s32.totalorder 1, %s11
    %p128 = scmp.lt.s32.totalorder %s11, 3
    %p129 = pnand %p127, %p128
    %p130 = pneg %p129
    // Predicated region
    $region9: #{fwd.9} parent=5 // pred_check
      _
    $region10: #{fwd.9} parent=5 // pred_check_branch
      %132 = sbr.rel (%p129) target = $region12
    $region11: #{fwd.9} parent=5 // pred_region
      %s133 = ssub.s32 %s11, 1
      // Predicated region
      $region13: #{fwd.9} parent=11 // pred_check
        %p134 = pneg %p70
      $region14: #{fwd.9} parent=11 // pred_check_branch
        %136 = sbr.rel (%p134) target = $region16
      $region15: #{fwd.9} parent=11 // pred_region
        _
      $region16: #{fwd.9} parent=11 // pred_fallthru
        _
      // Predicated region
      $region17: #{fwd.9} parent=11 // pred_check
        %p137 = pneg %p91
      $region18: #{fwd.9} parent=11 // pred_check_branch
        %139 = sbr.rel (%p137) target = $region20
      $region19: #{fwd.9} parent=11 // pred_region
        _
      $region20: #{fwd.9} parent=11 // pred_fallthru
        _
    $region12: #{fwd.9} parent=5 // pred_fallthru
      _
    %p140 = scmp.lt.s32.totalorder %s11, 2
    // Predicated region
    $region21: #{fwd.9} parent=5 // pred_check
      %p141 = pneg %p140
    $region22: #{fwd.9} parent=5 // pred_check_branch
      %143 = sbr.rel (%p141) target = $region24
    $region23: #{fwd.9} parent=5 // pred_region
      // Predicated region
      $region25: #{fwd.9} parent=23 // pred_check
        %p144 = pneg %p43
      $region26: #{fwd.9} parent=23 // pred_check_branch
        %146 = sbr.rel (%p144) target = $region28
      $region27: #{fwd.9} parent=23 // pred_region
        %p147 = scmp.lt.s32.totalorder %s18, 1
        %s148 = scalar_select %p147, %s18, 1
        %s149 = smul.addr %s148, 64
        %s150 = smul.addr %s149, 4
        %s151 = scalar_lea.vmem %s0, %s150
      $region28: #{fwd.9} parent=23 // pred_fallthru
        _
    $region24: #{fwd.9} parent=5 // pred_fallthru
      _
    %p152 = scmp.le.s32.totalorder 1, %s11
    %p153 = scmp.lt.s32.totalorder %s11, 3
    %p154 = pnand %p152, %p153
    %p155 = pneg %p154
    // Predicated region
    $region29: #{fwd.9} parent=5 // pred_check
      _
    $region30: #{fwd.9} parent=5 // pred_check_branch
      %157 = sbr.rel (%p154) target = $region32
    $region31: #{fwd.9} parent=5 // pred_region
      %s158 = ssub.s32 %s11, 1
      %p159 = scmp.lt.s32.totalorder %s20, 1
      %s160 = scalar_select %p159, %s20, 1
      %s161 = smul.addr %s160, 64
      %s162 = smul.addr %s161, 4
      %s163 = scalar_lea.vmem %s0, %s162
      %p164 = pneg %p49
      %p165 = pneg %p46
      %p166 = pneg %p70
      %p167 = pneg %p67
      %p168 = pneg %p91
      %p169 = pneg %p88
      %p170 = pneg %p119
      %p171 = pneg %p116
      %p172 = scmp.lt.s32.totalorder %s20, 1
      %s173 = scalar_select %p172, %s20, 1
      %p174 = scmp.lt.s32.totalorder %s21, 0
      %s175 = scalar_select %p174, %s21, 0
      %s176 = sadd.s32 %s175, %s173
      %s177 = scalar_lea.vmem %s3, %s176
      %p178 = scmp.lt.s32.totalorder %s20, 1
      %s179 = scalar_select %p178, %s20, 1
      %s180 = smul.addr %s179, 64
      %s181 = smul.addr %s180, 4
      %s182 = scalar_lea.vmem %s0, %s181
      %p183 = scmp.lt.s32.totalorder %s20, 1
      %s184 = scalar_select %p183, %s20, 1
      %p185 = scmp.lt.s32.totalorder %s21, 0
      %s186 = scalar_select %p185, %s21, 0
      %s187 = sadd.s32 %s186, %s184
      %s188 = scalar_lea.vmem %s3, %s187
      %s189 = scalar_lea.vmem %s182, %s21
      %v190 = vld [vmem:[%s189] sm:$0x1]
      %v191 = vld [vmem:[%s189 + $0x4] sm:$0x1]
      %v192 = vld [vmem:[%s189 + $0x8] sm:$0x1]
      %v193 = vld [vmem:[%s189 + $0xc] sm:$0x1]
      %v194 = vld [vmem:[%s189 + $0x10] sm:$0x1]
      %v195 = vld [vmem:[%s189 + $0x14] sm:$0x1]
      %v196 = vld [vmem:[%s189 + $0x18] sm:$0x1]
      %v197 = vld [vmem:[%s189 + $0x1c] sm:$0x1]
      %v198 = vld [vmem:[%s189 + $0x20] sm:$0x1]
      %v199 = vld [vmem:[%s189 + $0x24] sm:$0x1]
      %v200 = vld [vmem:[%s189 + $0x28] sm:$0x1]
      %v201 = vld [vmem:[%s189 + $0x2c] sm:$0x1]
      %v202 = vld [vmem:[%s189 + $0x30] sm:$0x1]
      %v203 = vld [vmem:[%s189 + $0x34] sm:$0x1]
      %v204 = vld [vmem:[%s189 + $0x38] sm:$0x1]
      %v205 = vld [vmem:[%s189 + $0x3c] sm:$0x1]
      %v206 = vld [vmem:[%s189 + $0x40] sm:$0x1]
      %v207 = vld [vmem:[%s189 + $0x44] sm:$0x1]
      %v208 = vld [vmem:[%s189 + $0x48] sm:$0x1]
      %v209 = vld [vmem:[%s189 + $0x4c] sm:$0x1]
      %v210 = vld [vmem:[%s189 + $0x50] sm:$0x1]
      %v211 = vld [vmem:[%s189 + $0x54] sm:$0x1]
      %v212 = vld [vmem:[%s189 + $0x58] sm:$0x1]
      %v213 = vld [vmem:[%s189 + $0x5c] sm:$0x1]
      %v214 = vld [vmem:[%s189 + $0x60] sm:$0x1]
      %v215 = vld [vmem:[%s189 + $0x64] sm:$0x1]
      %v216 = vld [vmem:[%s189 + $0x68] sm:$0x1]
      %v217 = vld [vmem:[%s189 + $0x6c] sm:$0x1]
      %v218 = vld [vmem:[%s189 + $0x70] sm:$0x1]
      %v219 = vld [vmem:[%s189 + $0x74] sm:$0x1]
      %v220 = vld [vmem:[%s189 + $0x78] sm:$0x1]
      %v221 = vld [vmem:[%s189 + $0x7c] sm:$0x1]
      %v222 = vld [vmem:[%s189 + $0x80] sm:$0x1]
      %v223 = vld [vmem:[%s189 + $0x84] sm:$0x1]
      %v224 = vld [vmem:[%s189 + $0x88] sm:$0x1]
      %v225 = vld [vmem:[%s189 + $0x8c] sm:$0x1]
      %v226 = vld [vmem:[%s189 + $0x90] sm:$0x1]
      %v227 = vld [vmem:[%s189 + $0x94] sm:$0x1]
      %v228 = vld [vmem:[%s189 + $0x98] sm:$0x1]
      %v229 = vld [vmem:[%s189 + $0x9c] sm:$0x1]
      %v230 = vld [vmem:[%s189 + $0xa0] sm:$0x1]
      %v231 = vld [vmem:[%s189 + $0xa4] sm:$0x1]
      %v232 = vld [vmem:[%s189 + $0xa8] sm:$0x1]
      %v233 = vld [vmem:[%s189 + $0xac] sm:$0x1]
      %v234 = vld [vmem:[%s189 + $0xb0] sm:$0x1]
      %v235 = vld [vmem:[%s189 + $0xb4] sm:$0x1]
      %v236 = vld [vmem:[%s189 + $0xb8] sm:$0x1]
      %v237 = vld [vmem:[%s189 + $0xbc] sm:$0x1]
      %v238 = vld [vmem:[%s189 + $0xc0] sm:$0x1]
      %v239 = vld [vmem:[%s189 + $0xc4] sm:$0x1]
      %v240 = vld [vmem:[%s189 + $0xc8] sm:$0x1]
      %v241 = vld [vmem:[%s189 + $0xcc] sm:$0x1]
      %v242 = vld [vmem:[%s189 + $0xd0] sm:$0x1]
      %v243 = vld [vmem:[%s189 + $0xd4] sm:$0x1]
      %v244 = vld [vmem:[%s189 + $0xd8] sm:$0x1]
      %v245 = vld [vmem:[%s189 + $0xdc] sm:$0x1]
      %v246 = vld [vmem:[%s189 + $0xe0] sm:$0x1]
      %v247 = vld [vmem:[%s189 + $0xe4] sm:$0x1]
      %v248 = vld [vmem:[%s189 + $0xe8] sm:$0x1]
      %v249 = vld [vmem:[%s189 + $0xec] sm:$0x1]
      %v250 = vld [vmem:[%s189 + $0xf0] sm:$0x1]
      %v251 = vld [vmem:[%s189 + $0xf4] sm:$0x1]
      %v252 = vld [vmem:[%s189 + $0xf8] sm:$0x1]
      %v253 = vld [vmem:[%s189 + $0xfc] sm:$0x1]
      %v254 = vld [vmem:[%s1] sm:$0x1]
      %s255 = scalar_lea.vmem %s1, 1
      %v256 = vld [vmem:[%s255] sm:$0x1]
      %v321 = vrot.slane %v191, 7
      %vm322 = vcmask 1041409
      %v323 = vsel %vm322, %v321, %v190
      %v324 = vrot.slane %v192, 6
      %vm325 = vcmask 1042434
      %v326 = vsel %vm325, %v324, %v323
      %v327 = vrot.slane %v193, 5
      %vm328 = vcmask 1043459
      %v329 = vsel %vm328, %v327, %v326
      %v330 = vrot.slane %v194, 4
      %vm331 = vcmask 1044484
      %v332 = vsel %vm331, %v330, %v329
      %v333 = vrot.slane %v195, 3
      %vm334 = vcmask 1045509
      %v335 = vsel %vm334, %v333, %v332
      %v336 = vrot.slane %v196, 2
      %vm337 = vcmask 1046534
      %v338 = vsel %vm337, %v336, %v335
      %v339 = vrot.slane %v197, 1
      %vm340 = vcmask 1047559
      %v341 = vsel %vm340, %v339, %v338
      %v342 = vrot.slane %v199, 7
      %v343 = vsel %vm322, %v342, %v198
      %v344 = vrot.slane %v200, 6
      %v345 = vsel %vm325, %v344, %v343
      %v346 = vrot.slane %v201, 5
      %v347 = vsel %vm328, %v346, %v345
      %v348 = vrot.slane %v202, 4
      %v349 = vsel %vm331, %v348, %v347
      %v350 = vrot.slane %v203, 3
      %v351 = vsel %vm334, %v350, %v349
      %v352 = vrot.slane %v204, 2
      %v353 = vsel %vm337, %v352, %v351
      %v354 = vrot.slane %v205, 1
      %v355 = vsel %vm340, %v354, %v353
      %v356 = vrot.slane %v207, 7
      %v357 = vsel %vm322, %v356, %v206
      %v358 = vrot.slane %v208, 6
      %v359 = vsel %vm325, %v358, %v357
      %v360 = vrot.slane %v209, 5
      %v361 = vsel %vm328, %v360, %v359
      %v362 = vrot.slane %v210, 4
      %v363 = vsel %vm331, %v362, %v361
      %v364 = vrot.slane %v211, 3
      %v365 = vsel %vm334, %v364, %v363
      %v366 = vrot.slane %v212, 2
      %v367 = vsel %vm337, %v366, %v365
      %v368 = vrot.slane %v213, 1
      %v369 = vsel %vm340, %v368, %v367
      %v370 = vrot.slane %v215, 7
      %v371 = vsel %vm322, %v370, %v214
      %v372 = vrot.slane %v216, 6
      %v373 = vsel %vm325, %v372, %v371
      %v374 = vrot.slane %v217, 5
      %v375 = vsel %vm328, %v374, %v373
      %v376 = vrot.slane %v218, 4
      %v377 = vsel %vm331, %v376, %v375
      %v378 = vrot.slane %v219, 3
      %v379 = vsel %vm334, %v378, %v377
      %v380 = vrot.slane %v220, 2
      %v381 = vsel %vm337, %v380, %v379
      %v382 = vrot.slane %v221, 1
      %v383 = vsel %vm340, %v382, %v381
      %v384 = vrot.slane %v223, 7
      %v385 = vsel %vm322, %v384, %v222
      %v386 = vrot.slane %v224, 6
      %v387 = vsel %vm325, %v386, %v385
      %v388 = vrot.slane %v225, 5
      %v389 = vsel %vm328, %v388, %v387
      %v390 = vrot.slane %v226, 4
      %v391 = vsel %vm331, %v390, %v389
      %v392 = vrot.slane %v227, 3
      %v393 = vsel %vm334, %v392, %v391
      %v394 = vrot.slane %v228, 2
      %v395 = vsel %vm337, %v394, %v393
      %v396 = vrot.slane %v229, 1
      %v397 = vsel %vm340, %v396, %v395
      %v398 = vrot.slane %v231, 7
      %v399 = vsel %vm322, %v398, %v230
      %v400 = vrot.slane %v232, 6
      %v401 = vsel %vm325, %v400, %v399
      %v402 = vrot.slane %v233, 5
      %v403 = vsel %vm328, %v402, %v401
      %v404 = vrot.slane %v234, 4
      %v405 = vsel %vm331, %v404, %v403
      %v406 = vrot.slane %v235, 3
      %v407 = vsel %vm334, %v406, %v405
      %v408 = vrot.slane %v236, 2
      %v409 = vsel %vm337, %v408, %v407
      %v410 = vrot.slane %v237, 1
      %v411 = vsel %vm340, %v410, %v409
      %v412 = vrot.slane %v239, 7
      %v413 = vsel %vm322, %v412, %v238
      %v414 = vrot.slane %v240, 6
      %v415 = vsel %vm325, %v414, %v413
      %v416 = vrot.slane %v241, 5
      %v417 = vsel %vm328, %v416, %v415
      %v418 = vrot.slane %v242, 4
      %v419 = vsel %vm331, %v418, %v417
      %v420 = vrot.slane %v243, 3
      %v421 = vsel %vm334, %v420, %v419
      %v422 = vrot.slane %v244, 2
      %v423 = vsel %vm337, %v422, %v421
      %v424 = vrot.slane %v245, 1
      %v425 = vsel %vm340, %v424, %v423
      %v426 = vrot.slane %v247, 7
      %v427 = vsel %vm322, %v426, %v246
      %v428 = vrot.slane %v248, 6
      %v429 = vsel %vm325, %v428, %v427
      %v430 = vrot.slane %v249, 5
      %v431 = vsel %vm328, %v430, %v429
      %v432 = vrot.slane %v250, 4
      %v433 = vsel %vm331, %v432, %v431
      %v434 = vrot.slane %v251, 3
      %v435 = vsel %vm334, %v434, %v433
      %v436 = vrot.slane %v252, 2
      %v437 = vsel %vm337, %v436, %v435
      %v438 = vrot.slane %v253, 1
      %v439 = vsel %vm340, %v438, %v437
      %440 = vrot.lane.b32.xlu0 %v341, 127
      %v441 = vpop.permute.xlu0 %440
      %442 = vrot.lane.b32.xlu0 %v355, 127
      %v443 = vpop.permute.xlu0 %442
      %444 = vrot.lane.b32.xlu0 %v369, 127
      %v445 = vpop.permute.xlu0 %444
      %446 = vrot.lane.b32.xlu0 %v383, 127
      %v447 = vpop.permute.xlu0 %446
      %448 = vrot.lane.b32.xlu0 %v397, 127
      %v449 = vpop.permute.xlu0 %448
      %450 = vrot.lane.b32.xlu0 %v411, 127
      %v451 = vpop.permute.xlu0 %450
      %452 = vrot.lane.b32.xlu0 %v425, 127
      %v453 = vpop.permute.xlu0 %452
      %454 = vrot.lane.b32.xlu0 %v439, 127
      %v455 = vpop.permute.xlu0 %454
      %vm464 = vcmask 523264
      %v466 = vsel %vm464, %v256, 0
      %468 = vmatprep.subr.mxu0 0.0
      %469 = vmatpush1.msra.mxu0 0.0
      %470 = vmatprep.subr.mxu0 0.0
      %471 = vmatpush1.msra.mxu0 0.0
      %472 = vmatprep.subr.mxu0 0.0
      %473 = vmatpush1.msra.mxu0 0.0
      %474 = vmatprep.subr.mxu0 0.0
      %475 = vmatpush1.msra.mxu0 0.0
      %476 = vmatprep.subr.mxu0 0.0
      %477 = vmatpush1.msra.mxu0 0.0
      %478 = vmatprep.subr.mxu0 0.0
      %479 = vmatpush1.msra.mxu0 0.0
      %480 = vmatprep.subr.mxu0 0.0
      %481 = vmatpush1.msra.mxu0 0.0
      %482 = vmatprep.subr.mxu0 0.0
      %483 = vmatpush1.msra.mxu0 0.0
      %484 = vmatprep.subr.mxu0 0.0
      %485 = vmatpush1.msra.mxu0 %v455
      %486 = vmatprep.subr.mxu0 0.0
      %487 = vmatpush1.msra.mxu0 %v453
      %488 = vmatprep.subr.mxu0 0.0
      %489 = vmatpush1.msra.mxu0 %v451
      %490 = vmatprep.subr.mxu0 0.0
      %491 = vmatpush1.msra.mxu0 %v449
      %492 = vmatprep.subr.mxu0 0.0
      %493 = vmatpush1.msra.mxu0 %v447
      %494 = vmatprep.subr.mxu0 0.0
      %495 = vmatpush1.msra.mxu0 %v445
      %496 = vmatprep.subr.mxu0 0.0
      %497 = vmatpush1.msra.mxu0 %v443
      %498 = vmatprep.subr.mxu0 0.0
      %499 = vmatpush1.msra.mxu0 %v441
      %500 = vmatprep.subr.mxu0 0.0
      %501 = vmatpush2.msra.mxu0 0.0
      %502 = vmatprep.subr.mxu0 0.0
      %503 = vmatpush2.msra.mxu0 0.0
      %504 = vmatprep.subr.mxu0 0.0
      %505 = vmatpush2.msra.mxu0 0.0
      %506 = vmatprep.subr.mxu0 0.0
      %507 = vmatpush2.msra.mxu0 0.0
      %508 = vmatprep.subr.mxu0 0.0
      %509 = vmatpush2.msra.mxu0 0.0
      %510 = vmatprep.subr.mxu0 0.0
      %511 = vmatpush2.msra.mxu0 0.0
      %512 = vmatprep.subr.mxu0 0.0
      %513 = vmatpush2.msra.mxu0 0.0
      %514 = vmatprep.subr.mxu0 0.0
      %515 = vmatpush2.msra.mxu0 0.0
      %516 = vmatprep.subr.mxu0 0.0
      %517 = vmatpush2.msra.mxu0 0.0
      %518 = vmatprep.subr.mxu0 0.0
      %519 = vmatpush2.msra.mxu0 0.0
      %520 = vmatprep.subr.mxu0 0.0
      %521 = vmatpush2.msra.mxu0 0.0
      %522 = vmatprep.subr.mxu0 0.0
      %523 = vmatpush2.msra.mxu0 0.0
      %524 = vmatprep.subr.mxu0 0.0
      %525 = vmatpush2.msra.mxu0 0.0
      %526 = vmatprep.subr.mxu0 0.0
      %527 = vmatpush2.msra.mxu0 0.0
      %528 = vmatprep.subr.mxu0 0.0
      %529 = vmatpush2.msra.mxu0 0.0
      %530 = vmatprep.subr.mxu0 0.0
      %531 = vmatpush2.msra.mxu0 0.0
      %532 = vmatprep.mubr.f32.mxu0 0.0
      %533 = vmatmul.mubr.f32.gmra.mxu0 %v466
      %v534 = vpop.f32.mrf.mxu0
      %v535 = vadd.f32 0.0, %v534
      %v536 = vpop.f32.mrf.mxu0
      %537 = vdwg.mxu0
      %v547 = vsel %vm464, %v254, 0
      %549 = vmatprep.subr.mxu0 0.0
      %550 = vmatpush1.msra.mxu0 0.0
      %551 = vmatprep.subr.mxu0 0.0
      %552 = vmatpush1.msra.mxu0 0.0
      %553 = vmatprep.subr.mxu0 0.0
      %554 = vmatpush1.msra.mxu0 0.0
      %555 = vmatprep.subr.mxu0 0.0
      %556 = vmatpush1.msra.mxu0 0.0
      %557 = vmatprep.subr.mxu0 0.0
      %558 = vmatpush1.msra.mxu0 0.0
      %559 = vmatprep.subr.mxu0 0.0
      %560 = vmatpush1.msra.mxu0 0.0
      %561 = vmatprep.subr.mxu0 0.0
      %562 = vmatpush1.msra.mxu0 0.0
      %563 = vmatprep.subr.mxu0 0.0
      %564 = vmatpush1.msra.mxu0 0.0
      %565 = vmatprep.subr.mxu0 0.0
      %566 = vmatpush1.msra.mxu0 %v439
      %567 = vmatprep.subr.mxu0 0.0
      %568 = vmatpush1.msra.mxu0 %v425
      %569 = vmatprep.subr.mxu0 0.0
      %570 = vmatpush1.msra.mxu0 %v411
      %571 = vmatprep.subr.mxu0 0.0
      %572 = vmatpush1.msra.mxu0 %v397
      %573 = vmatprep.subr.mxu0 0.0
      %574 = vmatpush1.msra.mxu0 %v383
      %575 = vmatprep.subr.mxu0 0.0
      %576 = vmatpush1.msra.mxu0 %v369
      %577 = vmatprep.subr.mxu0 0.0
      %578 = vmatpush1.msra.mxu0 %v355
      %579 = vmatprep.subr.mxu0 0.0
      %580 = vmatpush1.msra.mxu0 %v341
      %581 = vmatprep.subr.mxu0 0.0
      %582 = vmatpush2.msra.mxu0 0.0
      %583 = vmatprep.subr.mxu0 0.0
      %584 = vmatpush2.msra.mxu0 0.0
      %585 = vmatprep.subr.mxu0 0.0
      %586 = vmatpush2.msra.mxu0 0.0
      %587 = vmatprep.subr.mxu0 0.0
      %588 = vmatpush2.msra.mxu0 0.0
      %589 = vmatprep.subr.mxu0 0.0
      %590 = vmatpush2.msra.mxu0 0.0
      %591 = vmatprep.subr.mxu0 0.0
      %592 = vmatpush2.msra.mxu0 0.0
      %593 = vmatprep.subr.mxu0 0.0
      %594 = vmatpush2.msra.mxu0 0.0
      %595 = vmatprep.subr.mxu0 0.0
      %596 = vmatpush2.msra.mxu0 0.0
      %597 = vmatprep.subr.mxu0 0.0
      %598 = vmatpush2.msra.mxu0 0.0
      %599 = vmatprep.subr.mxu0 0.0
      %600 = vmatpush2.msra.mxu0 0.0
      %601 = vmatprep.subr.mxu0 0.0
      %602 = vmatpush2.msra.mxu0 0.0
      %603 = vmatprep.subr.mxu0 0.0
      %604 = vmatpush2.msra.mxu0 0.0
      %605 = vmatprep.subr.mxu0 0.0
      %606 = vmatpush2.msra.mxu0 0.0
      %607 = vmatprep.subr.mxu0 0.0
      %608 = vmatpush2.msra.mxu0 0.0
      %609 = vmatprep.subr.mxu0 0.0
      %610 = vmatpush2.msra.mxu0 0.0
      %611 = vmatprep.subr.mxu0 0.0
      %612 = vmatpush2.msra.mxu0 0.0
      %613 = vmatprep.mubr.f32.mxu0 0.0
      %614 = vmatmul.mubr.f32.gmra.mxu0 %v547
      %v615 = vpop.f32.mrf.mxu0
      %v616 = vadd.f32 %v535, %v615
      %v617 = vpop.f32.mrf.mxu0
      %618 = vdwg.mxu0
      %s619 = scalar_lea.vmem %s1, 2
      %v620 = vld [vmem:[%s619] sm:$0x1]
      %621 = vrot.lane.b32.xlu0 %v341, 126
      %v622 = vpop.permute.xlu0 %621
      %623 = vrot.lane.b32.xlu0 %v355, 126
      %v624 = vpop.permute.xlu0 %623
      %625 = vrot.lane.b32.xlu0 %v369, 126
      %v626 = vpop.permute.xlu0 %625
      %627 = vrot.lane.b32.xlu0 %v383, 126
      %v628 = vpop.permute.xlu0 %627
      %629 = vrot.lane.b32.xlu0 %v397, 126
      %v630 = vpop.permute.xlu0 %629
      %631 = vrot.lane.b32.xlu0 %v411, 126
      %v632 = vpop.permute.xlu0 %631
      %633 = vrot.lane.b32.xlu0 %v425, 126
      %v634 = vpop.permute.xlu0 %633
      %635 = vrot.lane.b32.xlu0 %v439, 126
      %v636 = vpop.permute.xlu0 %635
      %v646 = vsel %vm464, %v620, 0
      %648 = vmatprep.subr.mxu0 0.0
      %649 = vmatpush1.msra.mxu0 0.0
      %650 = vmatprep.subr.mxu0 0.0
      %651 = vmatpush1.msra.mxu0 0.0
      %652 = vmatprep.subr.mxu0 0.0
      %653 = vmatpush1.msra.mxu0 0.0
      %654 = vmatprep.subr.mxu0 0.0
      %655 = vmatpush1.msra.mxu0 0.0
      %656 = vmatprep.subr.mxu0 0.0
      %657 = vmatpush1.msra.mxu0 0.0
      %658 = vmatprep.subr.mxu0 0.0
      %659 = vmatpush1.msra.mxu0 0.0
      %660 = vmatprep.subr.mxu0 0.0
      %661 = vmatpush1.msra.mxu0 0.0
      %662 = vmatprep.subr.mxu0 0.0
      %663 = vmatpush1.msra.mxu0 0.0
      %664 = vmatprep.subr.mxu0 0.0
      %665 = vmatpush1.msra.mxu0 %v636
      %666 = vmatprep.subr.mxu0 0.0
      %667 = vmatpush1.msra.mxu0 %v634
      %668 = vmatprep.subr.mxu0 0.0
      %669 = vmatpush1.msra.mxu0 %v632
      %670 = vmatprep.subr.mxu0 0.0
      %671 = vmatpush1.msra.mxu0 %v630
      %672 = vmatprep.subr.mxu0 0.0
      %673 = vmatpush1.msra.mxu0 %v628
      %674 = vmatprep.subr.mxu0 0.0
      %675 = vmatpush1.msra.mxu0 %v626
      %676 = vmatprep.subr.mxu0 0.0
      %677 = vmatpush1.msra.mxu0 %v624
      %678 = vmatprep.subr.mxu0 0.0
      %679 = vmatpush1.msra.mxu0 %v622
      %680 = vmatprep.subr.mxu0 0.0
      %681 = vmatpush2.msra.mxu0 0.0
      %682 = vmatprep.subr.mxu0 0.0
      %683 = vmatpush2.msra.mxu0 0.0
      %684 = vmatprep.subr.mxu0 0.0
      %685 = vmatpush2.msra.mxu0 0.0
      %686 = vmatprep.subr.mxu0 0.0
      %687 = vmatpush2.msra.mxu0 0.0
      %688 = vmatprep.subr.mxu0 0.0
      %689 = vmatpush2.msra.mxu0 0.0
      %690 = vmatprep.subr.mxu0 0.0
      %691 = vmatpush2.msra.mxu0 0.0
      %692 = vmatprep.subr.mxu0 0.0
      %693 = vmatpush2.msra.mxu0 0.0
      %694 = vmatprep.subr.mxu0 0.0
      %695 = vmatpush2.msra.mxu0 0.0
      %696 = vmatprep.subr.mxu0 0.0
      %697 = vmatpush2.msra.mxu0 0.0
      %698 = vmatprep.subr.mxu0 0.0
      %699 = vmatpush2.msra.mxu0 0.0
      %700 = vmatprep.subr.mxu0 0.0
      %701 = vmatpush2.msra.mxu0 0.0
      %702 = vmatprep.subr.mxu0 0.0
      %703 = vmatpush2.msra.mxu0 0.0
      %704 = vmatprep.subr.mxu0 0.0
      %705 = vmatpush2.msra.mxu0 0.0
      %706 = vmatprep.subr.mxu0 0.0
      %707 = vmatpush2.msra.mxu0 0.0
      %708 = vmatprep.subr.mxu0 0.0
      %709 = vmatpush2.msra.mxu0 0.0
      %710 = vmatprep.subr.mxu0 0.0
      %711 = vmatpush2.msra.mxu0 0.0
      %712 = vmatprep.mubr.f32.mxu0 0.0
      %713 = vmatmul.mubr.f32.gmra.mxu0 %v646
      %v714 = vpop.f32.mrf.mxu0
      %v715 = vadd.f32 0.0, %v714
      %v716 = vpop.f32.mrf.mxu0
      %717 = vdwg.mxu0
      %v718 = vadd.f32 %v616, %v715
      %s719 = sadd.s32 %s21, 1
      %s720 = scalar_lea.vmem %s182, %s719
      %v721 = vld [vmem:[%s720] sm:$0x1]
      %v722 = vld [vmem:[%s720 + $0x4] sm:$0x1]
      %v723 = vld [vmem:[%s720 + $0x8] sm:$0x1]
      %v724 = vld [vmem:[%s720 + $0xc] sm:$0x1]
      %v725 = vld [vmem:[%s720 + $0x10] sm:$0x1]
      %v726 = vld [vmem:[%s720 + $0x14] sm:$0x1]
      %v727 = vld [vmem:[%s720 + $0x18] sm:$0x1]
      %v728 = vld [vmem:[%s720 + $0x1c] sm:$0x1]
      %v729 = vld [vmem:[%s720 + $0x20] sm:$0x1]
      %v730 = vld [vmem:[%s720 + $0x24] sm:$0x1]
      %v731 = vld [vmem:[%s720 + $0x28] sm:$0x1]
      %v732 = vld [vmem:[%s720 + $0x2c] sm:$0x1]
      %v733 = vld [vmem:[%s720 + $0x30] sm:$0x1]
      %v734 = vld [vmem:[%s720 + $0x34] sm:$0x1]
      %v735 = vld [vmem:[%s720 + $0x38] sm:$0x1]
      %v736 = vld [vmem:[%s720 + $0x3c] sm:$0x1]
      %v737 = vld [vmem:[%s720 + $0x40] sm:$0x1]
      %v738 = vld [vmem:[%s720 + $0x44] sm:$0x1]
      %v739 = vld [vmem:[%s720 + $0x48] sm:$0x1]
      %v740 = vld [vmem:[%s720 + $0x4c] sm:$0x1]
      %v741 = vld [vmem:[%s720 + $0x50] sm:$0x1]
      %v742 = vld [vmem:[%s720 + $0x54] sm:$0x1]
      %v743 = vld [vmem:[%s720 + $0x58] sm:$0x1]
      %v744 = vld [vmem:[%s720 + $0x5c] sm:$0x1]
      %v745 = vld [vmem:[%s720 + $0x60] sm:$0x1]
      %v746 = vld [vmem:[%s720 + $0x64] sm:$0x1]
      %v747 = vld [vmem:[%s720 + $0x68] sm:$0x1]
      %v748 = vld [vmem:[%s720 + $0x6c] sm:$0x1]
      %v749 = vld [vmem:[%s720 + $0x70] sm:$0x1]
      %v750 = vld [vmem:[%s720 + $0x74] sm:$0x1]
      %v751 = vld [vmem:[%s720 + $0x78] sm:$0x1]
      %v752 = vld [vmem:[%s720 + $0x7c] sm:$0x1]
      %v753 = vld [vmem:[%s720 + $0x80] sm:$0x1]
      %v754 = vld [vmem:[%s720 + $0x84] sm:$0x1]
      %v755 = vld [vmem:[%s720 + $0x88] sm:$0x1]
      %v756 = vld [vmem:[%s720 + $0x8c] sm:$0x1]
      %v757 = vld [vmem:[%s720 + $0x90] sm:$0x1]
      %v758 = vld [vmem:[%s720 + $0x94] sm:$0x1]
      %v759 = vld [vmem:[%s720 + $0x98] sm:$0x1]
      %v760 = vld [vmem:[%s720 + $0x9c] sm:$0x1]
      %v761 = vld [vmem:[%s720 + $0xa0] sm:$0x1]
      %v762 = vld [vmem:[%s720 + $0xa4] sm:$0x1]
      %v763 = vld [vmem:[%s720 + $0xa8] sm:$0x1]
      %v764 = vld [vmem:[%s720 + $0xac] sm:$0x1]
      %v765 = vld [vmem:[%s720 + $0xb0] sm:$0x1]
      %v766 = vld [vmem:[%s720 + $0xb4] sm:$0x1]
      %v767 = vld [vmem:[%s720 + $0xb8] sm:$0x1]
      %v768 = vld [vmem:[%s720 + $0xbc] sm:$0x1]
      %v769 = vld [vmem:[%s720 + $0xc0] sm:$0x1]
      %v770 = vld [vmem:[%s720 + $0xc4] sm:$0x1]
      %v771 = vld [vmem:[%s720 + $0xc8] sm:$0x1]
      %v772 = vld [vmem:[%s720 + $0xcc] sm:$0x1]
      %v773 = vld [vmem:[%s720 + $0xd0] sm:$0x1]
      %v774 = vld [vmem:[%s720 + $0xd4] sm:$0x1]
      %v775 = vld [vmem:[%s720 + $0xd8] sm:$0x1]
      %v776 = vld [vmem:[%s720 + $0xdc] sm:$0x1]
      %v777 = vld [vmem:[%s720 + $0xe0] sm:$0x1]
      %v778 = vld [vmem:[%s720 + $0xe4] sm:$0x1]
      %v779 = vld [vmem:[%s720 + $0xe8] sm:$0x1]
      %v780 = vld [vmem:[%s720 + $0xec] sm:$0x1]
      %v781 = vld [vmem:[%s720 + $0xf0] sm:$0x1]
      %v782 = vld [vmem:[%s720 + $0xf4] sm:$0x1]
      %v783 = vld [vmem:[%s720 + $0xf8] sm:$0x1]
      %v784 = vld [vmem:[%s720 + $0xfc] sm:$0x1]
      %s785 = scalar_lea.vmem %s1, 3
      %v786 = vld [vmem:[%s785] sm:$0x1]
      %v851 = vrot.slane %v722, 7
      %v852 = vsel %vm322, %v851, %v721
      %v853 = vrot.slane %v723, 6
      %v854 = vsel %vm325, %v853, %v852
      %v855 = vrot.slane %v724, 5
      %v856 = vsel %vm328, %v855, %v854
      %v857 = vrot.slane %v725, 4
      %v858 = vsel %vm331, %v857, %v856
      %v859 = vrot.slane %v726, 3
      %v860 = vsel %vm334, %v859, %v858
      %v861 = vrot.slane %v727, 2
      %v862 = vsel %vm337, %v861, %v860
      %v863 = vrot.slane %v728, 1
      %v864 = vsel %vm340, %v863, %v862
      %v865 = vrot.slane %v730, 7
      %v866 = vsel %vm322, %v865, %v729
      %v867 = vrot.slane %v731, 6
      %v868 = vsel %vm325, %v867, %v866
      %v869 = vrot.slane %v732, 5
      %v870 = vsel %vm328, %v869, %v868
      %v871 = vrot.slane %v733, 4
      %v872 = vsel %vm331, %v871, %v870
      %v873 = vrot.slane %v734, 3
      %v874 = vsel %vm334, %v873, %v872
      %v875 = vrot.slane %v735, 2
      %v876 = vsel %vm337, %v875, %v874
      %v877 = vrot.slane %v736, 1
      %v878 = vsel %vm340, %v877, %v876
      %v879 = vrot.slane %v738, 7
      %v880 = vsel %vm322, %v879, %v737
      %v881 = vrot.slane %v739, 6
      %v882 = vsel %vm325, %v881, %v880
      %v883 = vrot.slane %v740, 5
      %v884 = vsel %vm328, %v883, %v882
      %v885 = vrot.slane %v741, 4
      %v886 = vsel %vm331, %v885, %v884
      %v887 = vrot.slane %v742, 3
      %v888 = vsel %vm334, %v887, %v886
      %v889 = vrot.slane %v743, 2
      %v890 = vsel %vm337, %v889, %v888
      %v891 = vrot.slane %v744, 1
      %v892 = vsel %vm340, %v891, %v890
      %v893 = vrot.slane %v746, 7
      %v894 = vsel %vm322, %v893, %v745
      %v895 = vrot.slane %v747, 6
      %v896 = vsel %vm325, %v895, %v894
      %v897 = vrot.slane %v748, 5
      %v898 = vsel %vm328, %v897, %v896
      %v899 = vrot.slane %v749, 4
      %v900 = vsel %vm331, %v899, %v898
      %v901 = vrot.slane %v750, 3
      %v902 = vsel %vm334, %v901, %v900
      %v903 = vrot.slane %v751, 2
      %v904 = vsel %vm337, %v903, %v902
      %v905 = vrot.slane %v752, 1
      %v906 = vsel %vm340, %v905, %v904
      %v907 = vrot.slane %v754, 7
      %v908 = vsel %vm322, %v907, %v753
      %v909 = vrot.slane %v755, 6
      %v910 = vsel %vm325, %v909, %v908
      %v911 = vrot.slane %v756, 5
      %v912 = vsel %vm328, %v911, %v910
      %v913 = vrot.slane %v757, 4
      %v914 = vsel %vm331, %v913, %v912
      %v915 = vrot.slane %v758, 3
      %v916 = vsel %vm334, %v915, %v914
      %v917 = vrot.slane %v759, 2
      %v918 = vsel %vm337, %v917, %v916
      %v919 = vrot.slane %v760, 1
      %v920 = vsel %vm340, %v919, %v918
      %v921 = vrot.slane %v762, 7
      %v922 = vsel %vm322, %v921, %v761
      %v923 = vrot.slane %v763, 6
      %v924 = vsel %vm325, %v923, %v922
      %v925 = vrot.slane %v764, 5
      %v926 = vsel %vm328, %v925, %v924
      %v927 = vrot.slane %v765, 4
      %v928 = vsel %vm331, %v927, %v926
      %v929 = vrot.slane %v766, 3
      %v930 = vsel %vm334, %v929, %v928
      %v931 = vrot.slane %v767, 2
      %v932 = vsel %vm337, %v931, %v930
      %v933 = vrot.slane %v768, 1
      %v934 = vsel %vm340, %v933, %v932
      %v935 = vrot.slane %v770, 7
      %v936 = vsel %vm322, %v935, %v769
      %v937 = vrot.slane %v771, 6
      %v938 = vsel %vm325, %v937, %v936
      %v939 = vrot.slane %v772, 5
      %v940 = vsel %vm328, %v939, %v938
      %v941 = vrot.slane %v773, 4
      %v942 = vsel %vm331, %v941, %v940
      %v943 = vrot.slane %v774, 3
      %v944 = vsel %vm334, %v943, %v942
      %v945 = vrot.slane %v775, 2
      %v946 = vsel %vm337, %v945, %v944
      %v947 = vrot.slane %v776, 1
      %v948 = vsel %vm340, %v947, %v946
      %v949 = vrot.slane %v778, 7
      %v950 = vsel %vm322, %v949, %v777
      %v951 = vrot.slane %v779, 6
      %v952 = vsel %vm325, %v951, %v950
      %v953 = vrot.slane %v780, 5
      %v954 = vsel %vm328, %v953, %v952
      %v955 = vrot.slane %v781, 4
      %v956 = vsel %vm331, %v955, %v954
      %v957 = vrot.slane %v782, 3
      %v958 = vsel %vm334, %v957, %v956
      %v959 = vrot.slane %v783, 2
      %v960 = vsel %vm337, %v959, %v958
      %v961 = vrot.slane %v784, 1
      %v962 = vsel %vm340, %v961, %v960
      %v972 = vsel %vm464, %v786, 0
      %974 = vmatprep.subr.mxu0 0.0
      %975 = vmatpush1.msra.mxu0 0.0
      %976 = vmatprep.subr.mxu0 0.0
      %977 = vmatpush1.msra.mxu0 0.0
      %978 = vmatprep.subr.mxu0 0.0
      %979 = vmatpush1.msra.mxu0 0.0
      %980 = vmatprep.subr.mxu0 0.0
      %981 = vmatpush1.msra.mxu0 0.0
      %982 = vmatprep.subr.mxu0 0.0
      %983 = vmatpush1.msra.mxu0 0.0
      %984 = vmatprep.subr.mxu0 0.0
      %985 = vmatpush1.msra.mxu0 0.0
      %986 = vmatprep.subr.mxu0 0.0
      %987 = vmatpush1.msra.mxu0 0.0
      %988 = vmatprep.subr.mxu0 0.0
      %989 = vmatpush1.msra.mxu0 0.0
      %990 = vmatprep.subr.mxu0 0.0
      %991 = vmatpush1.msra.mxu0 %v962
      %992 = vmatprep.subr.mxu0 0.0
      %993 = vmatpush1.msra.mxu0 %v948
      %994 = vmatprep.subr.mxu0 0.0
      %995 = vmatpush1.msra.mxu0 %v934
      %996 = vmatprep.subr.mxu0 0.0
      %997 = vmatpush1.msra.mxu0 %v920
      %998 = vmatprep.subr.mxu0 0.0
      %999 = vmatpush1.msra.mxu0 %v906
      %1000 = vmatprep.subr.mxu0 0.0
      %1001 = vmatpush1.msra.mxu0 %v892
      %1002 = vmatprep.subr.mxu0 0.0
      %1003 = vmatpush1.msra.mxu0 %v878
      %1004 = vmatprep.subr.mxu0 0.0
      %1005 = vmatpush1.msra.mxu0 %v864
      %1006 = vmatprep.subr.mxu0 0.0
      %1007 = vmatpush2.msra.mxu0 0.0
      %1008 = vmatprep.subr.mxu0 0.0
      %1009 = vmatpush2.msra.mxu0 0.0
      %1010 = vmatprep.subr.mxu0 0.0
      %1011 = vmatpush2.msra.mxu0 0.0
      %1012 = vmatprep.subr.mxu0 0.0
      %1013 = vmatpush2.msra.mxu0 0.0
      %1014 = vmatprep.subr.mxu0 0.0
      %1015 = vmatpush2.msra.mxu0 0.0
      %1016 = vmatprep.subr.mxu0 0.0
      %1017 = vmatpush2.msra.mxu0 0.0
      %1018 = vmatprep.subr.mxu0 0.0
      %1019 = vmatpush2.msra.mxu0 0.0
      %1020 = vmatprep.subr.mxu0 0.0
      %1021 = vmatpush2.msra.mxu0 0.0
      %1022 = vmatprep.subr.mxu0 0.0
      %1023 = vmatpush2.msra.mxu0 0.0
      %1024 = vmatprep.subr.mxu0 0.0
      %1025 = vmatpush2.msra.mxu0 0.0
      %1026 = vmatprep.subr.mxu0 0.0
      %1027 = vmatpush2.msra.mxu0 0.0
      %1028 = vmatprep.subr.mxu0 0.0
      %1029 = vmatpush2.msra.mxu0 0.0
      %1030 = vmatprep.subr.mxu0 0.0
      %1031 = vmatpush2.msra.mxu0 0.0
      %1032 = vmatprep.subr.mxu0 0.0
      %1033 = vmatpush2.msra.mxu0 0.0
      %1034 = vmatprep.subr.mxu0 0.0
      %1035 = vmatpush2.msra.mxu0 0.0
      %1036 = vmatprep.subr.mxu0 0.0
      %1037 = vmatpush2.msra.mxu0 0.0
      %1038 = vmatprep.mubr.f32.mxu0 0.0
      %1039 = vmatmul.mubr.f32.gmra.mxu0 %v972
      %v1040 = vpop.f32.mrf.mxu0
      %v1041 = vadd.f32 0.0, %v1040
      %v1042 = vpop.f32.mrf.mxu0
      %1043 = vdwg.mxu0
      %v1044 = vadd.f32 %v718, %v1041
      %s1045 = scalar_lea.vmem %s1, 4
      %v1046 = vld [vmem:[%s1045] sm:$0x1]
      %1047 = vrot.lane.b32.xlu0 %v864, 127
      %v1048 = vpop.permute.xlu0 %1047
      %1049 = vrot.lane.b32.xlu0 %v878, 127
      %v1050 = vpop.permute.xlu0 %1049
      %1051 = vrot.lane.b32.xlu0 %v892, 127
      %v1052 = vpop.permute.xlu0 %1051
      %1053 = vrot.lane.b32.xlu0 %v906, 127
      %v1054 = vpop.permute.xlu0 %1053
      %1055 = vrot.lane.b32.xlu0 %v920, 127
      %v1056 = vpop.permute.xlu0 %1055
      %1057 = vrot.lane.b32.xlu0 %v934, 127
      %v1058 = vpop.permute.xlu0 %1057
      %1059 = vrot.lane.b32.xlu0 %v948, 127
      %v1060 = vpop.permute.xlu0 %1059
      %1061 = vrot.lane.b32.xlu0 %v962, 127
      %v1062 = vpop.permute.xlu0 %1061
      %v1072 = vsel %vm464, %v1046, 0
      %1074 = vmatprep.subr.mxu0 0.0
      %1075 = vmatpush1.msra.mxu0 0.0
      %1076 = vmatprep.subr.mxu0 0.0
      %1077 = vmatpush1.msra.mxu0 0.0
      %1078 = vmatprep.subr.mxu0 0.0
      %1079 = vmatpush1.msra.mxu0 0.0
      %1080 = vmatprep.subr.mxu0 0.0
      %1081 = vmatpush1.msra.mxu0 0.0
      %1082 = vmatprep.subr.mxu0 0.0
      %1083 = vmatpush1.msra.mxu0 0.0
      %1084 = vmatprep.subr.mxu0 0.0
      %1085 = vmatpush1.msra.mxu0 0.0
      %1086 = vmatprep.subr.mxu0 0.0
      %1087 = vmatpush1.msra.mxu0 0.0
      %1088 = vmatprep.subr.mxu0 0.0
      %1089 = vmatpush1.msra.mxu0 0.0
      %1090 = vmatprep.subr.mxu0 0.0
      %1091 = vmatpush1.msra.mxu0 %v1062
      %1092 = vmatprep.subr.mxu0 0.0
      %1093 = vmatpush1.msra.mxu0 %v1060
      %1094 = vmatprep.subr.mxu0 0.0
      %1095 = vmatpush1.msra.mxu0 %v1058
      %1096 = vmatprep.subr.mxu0 0.0
      %1097 = vmatpush1.msra.mxu0 %v1056
      %1098 = vmatprep.subr.mxu0 0.0
      %1099 = vmatpush1.msra.mxu0 %v1054
      %1100 = vmatprep.subr.mxu0 0.0
      %1101 = vmatpush1.msra.mxu0 %v1052
      %1102 = vmatprep.subr.mxu0 0.0
      %1103 = vmatpush1.msra.mxu0 %v1050
      %1104 = vmatprep.subr.mxu0 0.0
      %1105 = vmatpush1.msra.mxu0 %v1048
      %1106 = vmatprep.subr.mxu0 0.0
      %1107 = vmatpush2.msra.mxu0 0.0
      %1108 = vmatprep.subr.mxu0 0.0
      %1109 = vmatpush2.msra.mxu0 0.0
      %1110 = vmatprep.subr.mxu0 0.0
      %1111 = vmatpush2.msra.mxu0 0.0
      %1112 = vmatprep.subr.mxu0 0.0
      %1113 = vmatpush2.msra.mxu0 0.0
      %1114 = vmatprep.subr.mxu0 0.0
      %1115 = vmatpush2.msra.mxu0 0.0
      %1116 = vmatprep.subr.mxu0 0.0
      %1117 = vmatpush2.msra.mxu0 0.0
      %1118 = vmatprep.subr.mxu0 0.0
      %1119 = vmatpush2.msra.mxu0 0.0
      %1120 = vmatprep.subr.mxu0 0.0
      %1121 = vmatpush2.msra.mxu0 0.0
      %1122 = vmatprep.subr.mxu0 0.0
      %1123 = vmatpush2.msra.mxu0 0.0
      %1124 = vmatprep.subr.mxu0 0.0
      %1125 = vmatpush2.msra.mxu0 0.0
      %1126 = vmatprep.subr.mxu0 0.0
      %1127 = vmatpush2.msra.mxu0 0.0
      %1128 = vmatprep.subr.mxu0 0.0
      %1129 = vmatpush2.msra.mxu0 0.0
      %1130 = vmatprep.subr.mxu0 0.0
      %1131 = vmatpush2.msra.mxu0 0.0
      %1132 = vmatprep.subr.mxu0 0.0
      %1133 = vmatpush2.msra.mxu0 0.0
      %1134 = vmatprep.subr.mxu0 0.0
      %1135 = vmatpush2.msra.mxu0 0.0
      %1136 = vmatprep.subr.mxu0 0.0
      %1137 = vmatpush2.msra.mxu0 0.0
      %1138 = vmatprep.mubr.f32.mxu0 0.0
      %1139 = vmatmul.mubr.f32.gmra.mxu0 %v1072
      %v1140 = vpop.f32.mrf.mxu0
      %v1141 = vadd.f32 0.0, %v1140
      %v1142 = vpop.f32.mrf.mxu0
      %1143 = vdwg.mxu0
      %v1144 = vadd.f32 %v1044, %v1141
      %s1145 = scalar_lea.vmem %s1, 5
      %v1146 = vld [vmem:[%s1145] sm:$0x1]
      %1147 = vrot.lane.b32.xlu0 %v864, 126
      %v1148 = vpop.permute.xlu0 %1147
      %1149 = vrot.lane.b32.xlu0 %v878, 126
      %v1150 = vpop.permute.xlu0 %1149
      %1151 = vrot.lane.b32.xlu0 %v892, 126
      %v1152 = vpop.permute.xlu0 %1151
      %1153 = vrot.lane.b32.xlu0 %v906, 126
      %v1154 = vpop.permute.xlu0 %1153
      %1155 = vrot.lane.b32.xlu0 %v920, 126
      %v1156 = vpop.permute.xlu0 %1155
      %1157 = vrot.lane.b32.xlu0 %v934, 126
      %v1158 = vpop.permute.xlu0 %1157
      %1159 = vrot.lane.b32.xlu0 %v948, 126
      %v1160 = vpop.permute.xlu0 %1159
      %1161 = vrot.lane.b32.xlu0 %v962, 126
      %v1162 = vpop.permute.xlu0 %1161
      %v1172 = vsel %vm464, %v1146, 0
      %1174 = vmatprep.subr.mxu0 0.0
      %1175 = vmatpush1.msra.mxu0 0.0
      %1176 = vmatprep.subr.mxu0 0.0
      %1177 = vmatpush1.msra.mxu0 0.0
      %1178 = vmatprep.subr.mxu0 0.0
      %1179 = vmatpush1.msra.mxu0 0.0
      %1180 = vmatprep.subr.mxu0 0.0
      %1181 = vmatpush1.msra.mxu0 0.0
      %1182 = vmatprep.subr.mxu0 0.0
      %1183 = vmatpush1.msra.mxu0 0.0
      %1184 = vmatprep.subr.mxu0 0.0
      %1185 = vmatpush1.msra.mxu0 0.0
      %1186 = vmatprep.subr.mxu0 0.0
      %1187 = vmatpush1.msra.mxu0 0.0
      %1188 = vmatprep.subr.mxu0 0.0
      %1189 = vmatpush1.msra.mxu0 0.0
      %1190 = vmatprep.subr.mxu0 0.0
      %1191 = vmatpush1.msra.mxu0 %v1162
      %1192 = vmatprep.subr.mxu0 0.0
      %1193 = vmatpush1.msra.mxu0 %v1160
      %1194 = vmatprep.subr.mxu0 0.0
      %1195 = vmatpush1.msra.mxu0 %v1158
      %1196 = vmatprep.subr.mxu0 0.0
      %1197 = vmatpush1.msra.mxu0 %v1156
      %1198 = vmatprep.subr.mxu0 0.0
      %1199 = vmatpush1.msra.mxu0 %v1154
      %1200 = vmatprep.subr.mxu0 0.0
      %1201 = vmatpush1.msra.mxu0 %v1152
      %1202 = vmatprep.subr.mxu0 0.0
      %1203 = vmatpush1.msra.mxu0 %v1150
      %1204 = vmatprep.subr.mxu0 0.0
      %1205 = vmatpush1.msra.mxu0 %v1148
      %1206 = vmatprep.subr.mxu0 0.0
      %1207 = vmatpush2.msra.mxu0 0.0
      %1208 = vmatprep.subr.mxu0 0.0
      %1209 = vmatpush2.msra.mxu0 0.0
      %1210 = vmatprep.subr.mxu0 0.0
      %1211 = vmatpush2.msra.mxu0 0.0
      %1212 = vmatprep.subr.mxu0 0.0
      %1213 = vmatpush2.msra.mxu0 0.0
      %1214 = vmatprep.subr.mxu0 0.0
      %1215 = vmatpush2.msra.mxu0 0.0
      %1216 = vmatprep.subr.mxu0 0.0
      %1217 = vmatpush2.msra.mxu0 0.0
      %1218 = vmatprep.subr.mxu0 0.0
      %1219 = vmatpush2.msra.mxu0 0.0
      %1220 = vmatprep.subr.mxu0 0.0
      %1221 = vmatpush2.msra.mxu0 0.0
      %1222 = vmatprep.subr.mxu0 0.0
      %1223 = vmatpush2.msra.mxu0 0.0
      %1224 = vmatprep.subr.mxu0 0.0
      %1225 = vmatpush2.msra.mxu0 0.0
      %1226 = vmatprep.subr.mxu0 0.0
      %1227 = vmatpush2.msra.mxu0 0.0
      %1228 = vmatprep.subr.mxu0 0.0
      %1229 = vmatpush2.msra.mxu0 0.0
      %1230 = vmatprep.subr.mxu0 0.0
      %1231 = vmatpush2.msra.mxu0 0.0
      %1232 = vmatprep.subr.mxu0 0.0
      %1233 = vmatpush2.msra.mxu0 0.0
      %1234 = vmatprep.subr.mxu0 0.0
      %1235 = vmatpush2.msra.mxu0 0.0
      %1236 = vmatprep.subr.mxu0 0.0
      %1237 = vmatpush2.msra.mxu0 0.0
      %1238 = vmatprep.mubr.f32.mxu0 0.0
      %1239 = vmatmul.mubr.f32.gmra.mxu0 %v1172
      %v1240 = vpop.f32.mrf.mxu0
      %v1241 = vadd.f32 0.0, %v1240
      %v1242 = vpop.f32.mrf.mxu0
      %1243 = vdwg.mxu0
      %v1244 = vadd.f32 %v1144, %v1241
      %s1245 = sadd.s32 %s21, 2
      %s1246 = scalar_lea.vmem %s182, %s1245
      %v1247 = vld [vmem:[%s1246] sm:$0x1]
      %v1248 = vld [vmem:[%s1246 + $0x4] sm:$0x1]
      %v1249 = vld [vmem:[%s1246 + $0x8] sm:$0x1]
      %v1250 = vld [vmem:[%s1246 + $0xc] sm:$0x1]
      %v1251 = vld [vmem:[%s1246 + $0x10] sm:$0x1]
      %v1252 = vld [vmem:[%s1246 + $0x14] sm:$0x1]
      %v1253 = vld [vmem:[%s1246 + $0x18] sm:$0x1]
      %v1254 = vld [vmem:[%s1246 + $0x1c] sm:$0x1]
      %v1255 = vld [vmem:[%s1246 + $0x20] sm:$0x1]
      %v1256 = vld [vmem:[%s1246 + $0x24] sm:$0x1]
      %v1257 = vld [vmem:[%s1246 + $0x28] sm:$0x1]
      %v1258 = vld [vmem:[%s1246 + $0x2c] sm:$0x1]
      %v1259 = vld [vmem:[%s1246 + $0x30] sm:$0x1]
      %v1260 = vld [vmem:[%s1246 + $0x34] sm:$0x1]
      %v1261 = vld [vmem:[%s1246 + $0x38] sm:$0x1]
      %v1262 = vld [vmem:[%s1246 + $0x3c] sm:$0x1]
      %v1263 = vld [vmem:[%s1246 + $0x40] sm:$0x1]
      %v1264 = vld [vmem:[%s1246 + $0x44] sm:$0x1]
      %v1265 = vld [vmem:[%s1246 + $0x48] sm:$0x1]
      %v1266 = vld [vmem:[%s1246 + $0x4c] sm:$0x1]
      %v1267 = vld [vmem:[%s1246 + $0x50] sm:$0x1]
      %v1268 = vld [vmem:[%s1246 + $0x54] sm:$0x1]
      %v1269 = vld [vmem:[%s1246 + $0x58] sm:$0x1]
      %v1270 = vld [vmem:[%s1246 + $0x5c] sm:$0x1]
      %v1271 = vld [vmem:[%s1246 + $0x60] sm:$0x1]
      %v1272 = vld [vmem:[%s1246 + $0x64] sm:$0x1]
      %v1273 = vld [vmem:[%s1246 + $0x68] sm:$0x1]
      %v1274 = vld [vmem:[%s1246 + $0x6c] sm:$0x1]
      %v1275 = vld [vmem:[%s1246 + $0x70] sm:$0x1]
      %v1276 = vld [vmem:[%s1246 + $0x74] sm:$0x1]
      %v1277 = vld [vmem:[%s1246 + $0x78] sm:$0x1]
      %v1278 = vld [vmem:[%s1246 + $0x7c] sm:$0x1]
      %v1279 = vld [vmem:[%s1246 + $0x80] sm:$0x1]
      %v1280 = vld [vmem:[%s1246 + $0x84] sm:$0x1]
      %v1281 = vld [vmem:[%s1246 + $0x88] sm:$0x1]
      %v1282 = vld [vmem:[%s1246 + $0x8c] sm:$0x1]
      %v1283 = vld [vmem:[%s1246 + $0x90] sm:$0x1]
      %v1284 = vld [vmem:[%s1246 + $0x94] sm:$0x1]
      %v1285 = vld [vmem:[%s1246 + $0x98] sm:$0x1]
      %v1286 = vld [vmem:[%s1246 + $0x9c] sm:$0x1]
      %v1287 = vld [vmem:[%s1246 + $0xa0] sm:$0x1]
      %v1288 = vld [vmem:[%s1246 + $0xa4] sm:$0x1]
      %v1289 = vld [vmem:[%s1246 + $0xa8] sm:$0x1]
      %v1290 = vld [vmem:[%s1246 + $0xac] sm:$0x1]
      %v1291 = vld [vmem:[%s1246 + $0xb0] sm:$0x1]
      %v1292 = vld [vmem:[%s1246 + $0xb4] sm:$0x1]
      %v1293 = vld [vmem:[%s1246 + $0xb8] sm:$0x1]
      %v1294 = vld [vmem:[%s1246 + $0xbc] sm:$0x1]
      %v1295 = vld [vmem:[%s1246 + $0xc0] sm:$0x1]
      %v1296 = vld [vmem:[%s1246 + $0xc4] sm:$0x1]
      %v1297 = vld [vmem:[%s1246 + $0xc8] sm:$0x1]
      %v1298 = vld [vmem:[%s1246 + $0xcc] sm:$0x1]
      %v1299 = vld [vmem:[%s1246 + $0xd0] sm:$0x1]
      %v1300 = vld [vmem:[%s1246 + $0xd4] sm:$0x1]
      %v1301 = vld [vmem:[%s1246 + $0xd8] sm:$0x1]
      %v1302 = vld [vmem:[%s1246 + $0xdc] sm:$0x1]
      %v1303 = vld [vmem:[%s1246 + $0xe0] sm:$0x1]
      %v1304 = vld [vmem:[%s1246 + $0xe4] sm:$0x1]
      %v1305 = vld [vmem:[%s1246 + $0xe8] sm:$0x1]
      %v1306 = vld [vmem:[%s1246 + $0xec] sm:$0x1]
      %v1307 = vld [vmem:[%s1246 + $0xf0] sm:$0x1]
      %v1308 = vld [vmem:[%s1246 + $0xf4] sm:$0x1]
      %v1309 = vld [vmem:[%s1246 + $0xf8] sm:$0x1]
      %v1310 = vld [vmem:[%s1246 + $0xfc] sm:$0x1]
      %s1311 = scalar_lea.vmem %s1, 6
      %v1312 = vld [vmem:[%s1311] sm:$0x1]
      %v1377 = vrot.slane %v1248, 7
      %v1378 = vsel %vm322, %v1377, %v1247
      %v1379 = vrot.slane %v1249, 6
      %v1380 = vsel %vm325, %v1379, %v1378
      %v1381 = vrot.slane %v1250, 5
      %v1382 = vsel %vm328, %v1381, %v1380
      %v1383 = vrot.slane %v1251, 4
      %v1384 = vsel %vm331, %v1383, %v1382
      %v1385 = vrot.slane %v1252, 3
      %v1386 = vsel %vm334, %v1385, %v1384
      %v1387 = vrot.slane %v1253, 2
      %v1388 = vsel %vm337, %v1387, %v1386
      %v1389 = vrot.slane %v1254, 1
      %v1390 = vsel %vm340, %v1389, %v1388
      %v1391 = vrot.slane %v1256, 7
      %v1392 = vsel %vm322, %v1391, %v1255
      %v1393 = vrot.slane %v1257, 6
      %v1394 = vsel %vm325, %v1393, %v1392
      %v1395 = vrot.slane %v1258, 5
      %v1396 = vsel %vm328, %v1395, %v1394
      %v1397 = vrot.slane %v1259, 4
      %v1398 = vsel %vm331, %v1397, %v1396
      %v1399 = vrot.slane %v1260, 3
      %v1400 = vsel %vm334, %v1399, %v1398
      %v1401 = vrot.slane %v1261, 2
      %v1402 = vsel %vm337, %v1401, %v1400
      %v1403 = vrot.slane %v1262, 1
      %v1404 = vsel %vm340, %v1403, %v1402
      %v1405 = vrot.slane %v1264, 7
      %v1406 = vsel %vm322, %v1405, %v1263
      %v1407 = vrot.slane %v1265, 6
      %v1408 = vsel %vm325, %v1407, %v1406
      %v1409 = vrot.slane %v1266, 5
      %v1410 = vsel %vm328, %v1409, %v1408
      %v1411 = vrot.slane %v1267, 4
      %v1412 = vsel %vm331, %v1411, %v1410
      %v1413 = vrot.slane %v1268, 3
      %v1414 = vsel %vm334, %v1413, %v1412
      %v1415 = vrot.slane %v1269, 2
      %v1416 = vsel %vm337, %v1415, %v1414
      %v1417 = vrot.slane %v1270, 1
      %v1418 = vsel %vm340, %v1417, %v1416
      %v1419 = vrot.slane %v1272, 7
      %v1420 = vsel %vm322, %v1419, %v1271
      %v1421 = vrot.slane %v1273, 6
      %v1422 = vsel %vm325, %v1421, %v1420
      %v1423 = vrot.slane %v1274, 5
      %v1424 = vsel %vm328, %v1423, %v1422
      %v1425 = vrot.slane %v1275, 4
      %v1426 = vsel %vm331, %v1425, %v1424
      %v1427 = vrot.slane %v1276, 3
      %v1428 = vsel %vm334, %v1427, %v1426
      %v1429 = vrot.slane %v1277, 2
      %v1430 = vsel %vm337, %v1429, %v1428
      %v1431 = vrot.slane %v1278, 1
      %v1432 = vsel %vm340, %v1431, %v1430
      %v1433 = vrot.slane %v1280, 7
      %v1434 = vsel %vm322, %v1433, %v1279
      %v1435 = vrot.slane %v1281, 6
      %v1436 = vsel %vm325, %v1435, %v1434
      %v1437 = vrot.slane %v1282, 5
      %v1438 = vsel %vm328, %v1437, %v1436
      %v1439 = vrot.slane %v1283, 4
      %v1440 = vsel %vm331, %v1439, %v1438
      %v1441 = vrot.slane %v1284, 3
      %v1442 = vsel %vm334, %v1441, %v1440
      %v1443 = vrot.slane %v1285, 2
      %v1444 = vsel %vm337, %v1443, %v1442
      %v1445 = vrot.slane %v1286, 1
      %v1446 = vsel %vm340, %v1445, %v1444
      %v1447 = vrot.slane %v1288, 7
      %v1448 = vsel %vm322, %v1447, %v1287
      %v1449 = vrot.slane %v1289, 6
      %v1450 = vsel %vm325, %v1449, %v1448
      %v1451 = vrot.slane %v1290, 5
      %v1452 = vsel %vm328, %v1451, %v1450
      %v1453 = vrot.slane %v1291, 4
      %v1454 = vsel %vm331, %v1453, %v1452
      %v1455 = vrot.slane %v1292, 3
      %v1456 = vsel %vm334, %v1455, %v1454
      %v1457 = vrot.slane %v1293, 2
      %v1458 = vsel %vm337, %v1457, %v1456
      %v1459 = vrot.slane %v1294, 1
      %v1460 = vsel %vm340, %v1459, %v1458
      %v1461 = vrot.slane %v1296, 7
      %v1462 = vsel %vm322, %v1461, %v1295
      %v1463 = vrot.slane %v1297, 6
      %v1464 = vsel %vm325, %v1463, %v1462
      %v1465 = vrot.slane %v1298, 5
      %v1466 = vsel %vm328, %v1465, %v1464
      %v1467 = vrot.slane %v1299, 4
      %v1468 = vsel %vm331, %v1467, %v1466
      %v1469 = vrot.slane %v1300, 3
      %v1470 = vsel %vm334, %v1469, %v1468
      %v1471 = vrot.slane %v1301, 2
      %v1472 = vsel %vm337, %v1471, %v1470
      %v1473 = vrot.slane %v1302, 1
      %v1474 = vsel %vm340, %v1473, %v1472
      %v1475 = vrot.slane %v1304, 7
      %v1476 = vsel %vm322, %v1475, %v1303
      %v1477 = vrot.slane %v1305, 6
      %v1478 = vsel %vm325, %v1477, %v1476
      %v1479 = vrot.slane %v1306, 5
      %v1480 = vsel %vm328, %v1479, %v1478
      %v1481 = vrot.slane %v1307, 4
      %v1482 = vsel %vm331, %v1481, %v1480
      %v1483 = vrot.slane %v1308, 3
      %v1484 = vsel %vm334, %v1483, %v1482
      %v1485 = vrot.slane %v1309, 2
      %v1486 = vsel %vm337, %v1485, %v1484
      %v1487 = vrot.slane %v1310, 1
      %v1488 = vsel %vm340, %v1487, %v1486
      %v1498 = vsel %vm464, %v1312, 0
      %1500 = vmatprep.subr.mxu0 0.0
      %1501 = vmatpush1.msra.mxu0 0.0
      %1502 = vmatprep.subr.mxu0 0.0
      %1503 = vmatpush1.msra.mxu0 0.0
      %1504 = vmatprep.subr.mxu0 0.0
      %1505 = vmatpush1.msra.mxu0 0.0
      %1506 = vmatprep.subr.mxu0 0.0
      %1507 = vmatpush1.msra.mxu0 0.0
      %1508 = vmatprep.subr.mxu0 0.0
      %1509 = vmatpush1.msra.mxu0 0.0
      %1510 = vmatprep.subr.mxu0 0.0
      %1511 = vmatpush1.msra.mxu0 0.0
      %1512 = vmatprep.subr.mxu0 0.0
      %1513 = vmatpush1.msra.mxu0 0.0
      %1514 = vmatprep.subr.mxu0 0.0
      %1515 = vmatpush1.msra.mxu0 0.0
      %1516 = vmatprep.subr.mxu0 0.0
      %1517 = vmatpush1.msra.mxu0 %v1488
      %1518 = vmatprep.subr.mxu0 0.0
      %1519 = vmatpush1.msra.mxu0 %v1474
      %1520 = vmatprep.subr.mxu0 0.0
      %1521 = vmatpush1.msra.mxu0 %v1460
      %1522 = vmatprep.subr.mxu0 0.0
      %1523 = vmatpush1.msra.mxu0 %v1446
      %1524 = vmatprep.subr.mxu0 0.0
      %1525 = vmatpush1.msra.mxu0 %v1432
      %1526 = vmatprep.subr.mxu0 0.0
      %1527 = vmatpush1.msra.mxu0 %v1418
      %1528 = vmatprep.subr.mxu0 0.0
      %1529 = vmatpush1.msra.mxu0 %v1404
      %1530 = vmatprep.subr.mxu0 0.0
      %1531 = vmatpush1.msra.mxu0 %v1390
      %1532 = vmatprep.subr.mxu0 0.0
      %1533 = vmatpush2.msra.mxu0 0.0
      %1534 = vmatprep.subr.mxu0 0.0
      %1535 = vmatpush2.msra.mxu0 0.0
      %1536 = vmatprep.subr.mxu0 0.0
      %1537 = vmatpush2.msra.mxu0 0.0
      %1538 = vmatprep.subr.mxu0 0.0
      %1539 = vmatpush2.msra.mxu0 0.0
      %1540 = vmatprep.subr.mxu0 0.0
      %1541 = vmatpush2.msra.mxu0 0.0
      %1542 = vmatprep.subr.mxu0 0.0
      %1543 = vmatpush2.msra.mxu0 0.0
      %1544 = vmatprep.subr.mxu0 0.0
      %1545 = vmatpush2.msra.mxu0 0.0
      %1546 = vmatprep.subr.mxu0 0.0
      %1547 = vmatpush2.msra.mxu0 0.0
      %1548 = vmatprep.subr.mxu0 0.0
      %1549 = vmatpush2.msra.mxu0 0.0
      %1550 = vmatprep.subr.mxu0 0.0
      %1551 = vmatpush2.msra.mxu0 0.0
      %1552 = vmatprep.subr.mxu0 0.0
      %1553 = vmatpush2.msra.mxu0 0.0
      %1554 = vmatprep.subr.mxu0 0.0
      %1555 = vmatpush2.msra.mxu0 0.0
      %1556 = vmatprep.subr.mxu0 0.0
      %1557 = vmatpush2.msra.mxu0 0.0
      %1558 = vmatprep.subr.mxu0 0.0
      %1559 = vmatpush2.msra.mxu0 0.0
      %1560 = vmatprep.subr.mxu0 0.0
      %1561 = vmatpush2.msra.mxu0 0.0
      %1562 = vmatprep.subr.mxu0 0.0
      %1563 = vmatpush2.msra.mxu0 0.0
      %1564 = vmatprep.mubr.f32.mxu0 0.0
      %1565 = vmatmul.mubr.f32.gmra.mxu0 %v1498
      %v1566 = vpop.f32.mrf.mxu0
      %v1567 = vadd.f32 0.0, %v1566
      %v1568 = vpop.f32.mrf.mxu0
      %1569 = vdwg.mxu0
      %v1570 = vadd.f32 %v1244, %v1567
      %s1571 = scalar_lea.vmem %s1, 7
      %v1572 = vld [vmem:[%s1571] sm:$0x1]
      %1573 = vrot.lane.b32.xlu0 %v1390, 127
      %v1574 = vpop.permute.xlu0 %1573
      %1575 = vrot.lane.b32.xlu0 %v1404, 127
      %v1576 = vpop.permute.xlu0 %1575
      %1577 = vrot.lane.b32.xlu0 %v1418, 127
      %v1578 = vpop.permute.xlu0 %1577
      %1579 = vrot.lane.b32.xlu0 %v1432, 127
      %v1580 = vpop.permute.xlu0 %1579
      %1581 = vrot.lane.b32.xlu0 %v1446, 127
      %v1582 = vpop.permute.xlu0 %1581
      %1583 = vrot.lane.b32.xlu0 %v1460, 127
      %v1584 = vpop.permute.xlu0 %1583
      %1585 = vrot.lane.b32.xlu0 %v1474, 127
      %v1586 = vpop.permute.xlu0 %1585
      %1587 = vrot.lane.b32.xlu0 %v1488, 127
      %v1588 = vpop.permute.xlu0 %1587
      %v1598 = vsel %vm464, %v1572, 0
      %1600 = vmatprep.subr.mxu0 0.0
      %1601 = vmatpush1.msra.mxu0 0.0
      %1602 = vmatprep.subr.mxu0 0.0
      %1603 = vmatpush1.msra.mxu0 0.0
      %1604 = vmatprep.subr.mxu0 0.0
      %1605 = vmatpush1.msra.mxu0 0.0
      %1606 = vmatprep.subr.mxu0 0.0
      %1607 = vmatpush1.msra.mxu0 0.0
      %1608 = vmatprep.subr.mxu0 0.0
      %1609 = vmatpush1.msra.mxu0 0.0
      %1610 = vmatprep.subr.mxu0 0.0
      %1611 = vmatpush1.msra.mxu0 0.0
      %1612 = vmatprep.subr.mxu0 0.0
      %1613 = vmatpush1.msra.mxu0 0.0
      %1614 = vmatprep.subr.mxu0 0.0
      %1615 = vmatpush1.msra.mxu0 0.0
      %1616 = vmatprep.subr.mxu0 0.0
      %1617 = vmatpush1.msra.mxu0 %v1588
      %1618 = vmatprep.subr.mxu0 0.0
      %1619 = vmatpush1.msra.mxu0 %v1586
      %1620 = vmatprep.subr.mxu0 0.0
      %1621 = vmatpush1.msra.mxu0 %v1584
      %1622 = vmatprep.subr.mxu0 0.0
      %1623 = vmatpush1.msra.mxu0 %v1582
      %1624 = vmatprep.subr.mxu0 0.0
      %1625 = vmatpush1.msra.mxu0 %v1580
      %1626 = vmatprep.subr.mxu0 0.0
      %1627 = vmatpush1.msra.mxu0 %v1578
      %1628 = vmatprep.subr.mxu0 0.0
      %1629 = vmatpush1.msra.mxu0 %v1576
      %1630 = vmatprep.subr.mxu0 0.0
      %1631 = vmatpush1.msra.mxu0 %v1574
      %1632 = vmatprep.subr.mxu0 0.0
      %1633 = vmatpush2.msra.mxu0 0.0
      %1634 = vmatprep.subr.mxu0 0.0
      %1635 = vmatpush2.msra.mxu0 0.0
      %1636 = vmatprep.subr.mxu0 0.0
      %1637 = vmatpush2.msra.mxu0 0.0
      %1638 = vmatprep.subr.mxu0 0.0
      %1639 = vmatpush2.msra.mxu0 0.0
      %1640 = vmatprep.subr.mxu0 0.0
      %1641 = vmatpush2.msra.mxu0 0.0
      %1642 = vmatprep.subr.mxu0 0.0
      %1643 = vmatpush2.msra.mxu0 0.0
      %1644 = vmatprep.subr.mxu0 0.0
      %1645 = vmatpush2.msra.mxu0 0.0
      %1646 = vmatprep.subr.mxu0 0.0
      %1647 = vmatpush2.msra.mxu0 0.0
      %1648 = vmatprep.subr.mxu0 0.0
      %1649 = vmatpush2.msra.mxu0 0.0
      %1650 = vmatprep.subr.mxu0 0.0
      %1651 = vmatpush2.msra.mxu0 0.0
      %1652 = vmatprep.subr.mxu0 0.0
      %1653 = vmatpush2.msra.mxu0 0.0
      %1654 = vmatprep.subr.mxu0 0.0
      %1655 = vmatpush2.msra.mxu0 0.0
      %1656 = vmatprep.subr.mxu0 0.0
      %1657 = vmatpush2.msra.mxu0 0.0
      %1658 = vmatprep.subr.mxu0 0.0
      %1659 = vmatpush2.msra.mxu0 0.0
      %1660 = vmatprep.subr.mxu0 0.0
      %1661 = vmatpush2.msra.mxu0 0.0
      %1662 = vmatprep.subr.mxu0 0.0
      %1663 = vmatpush2.msra.mxu0 0.0
      %1664 = vmatprep.mubr.f32.mxu0 0.0
      %1665 = vmatmul.mubr.f32.gmra.mxu0 %v1598
      %v1666 = vpop.f32.mrf.mxu0
      %v1667 = vadd.f32 0.0, %v1666
      %v1668 = vpop.f32.mrf.mxu0
      %1669 = vdwg.mxu0
      %v1670 = vadd.f32 %v1570, %v1667
      %s1671 = scalar_lea.vmem %s1, 8
      %v1672 = vld [vmem:[%s1671] sm:$0x1]
      %1673 = vrot.lane.b32.xlu0 %v1390, 126
      %v1674 = vpop.permute.xlu0 %1673
      %1675 = vrot.lane.b32.xlu0 %v1404, 126
      %v1676 = vpop.permute.xlu0 %1675
      %1677 = vrot.lane.b32.xlu0 %v1418, 126
      %v1678 = vpop.permute.xlu0 %1677
      %1679 = vrot.lane.b32.xlu0 %v1432, 126
      %v1680 = vpop.permute.xlu0 %1679
      %1681 = vrot.lane.b32.xlu0 %v1446, 126
      %v1682 = vpop.permute.xlu0 %1681
      %1683 = vrot.lane.b32.xlu0 %v1460, 126
      %v1684 = vpop.permute.xlu0 %1683
      %1685 = vrot.lane.b32.xlu0 %v1474, 126
      %v1686 = vpop.permute.xlu0 %1685
      %1687 = vrot.lane.b32.xlu0 %v1488, 126
      %v1688 = vpop.permute.xlu0 %1687
      %v1698 = vsel %vm464, %v1672, 0
      %1700 = vmatprep.subr.mxu0 0.0
      %1701 = vmatpush1.msra.mxu0 0.0
      %1702 = vmatprep.subr.mxu0 0.0
      %1703 = vmatpush1.msra.mxu0 0.0
      %1704 = vmatprep.subr.mxu0 0.0
      %1705 = vmatpush1.msra.mxu0 0.0
      %1706 = vmatprep.subr.mxu0 0.0
      %1707 = vmatpush1.msra.mxu0 0.0
      %1708 = vmatprep.subr.mxu0 0.0
      %1709 = vmatpush1.msra.mxu0 0.0
      %1710 = vmatprep.subr.mxu0 0.0
      %1711 = vmatpush1.msra.mxu0 0.0
      %1712 = vmatprep.subr.mxu0 0.0
      %1713 = vmatpush1.msra.mxu0 0.0
      %1714 = vmatprep.subr.mxu0 0.0
      %1715 = vmatpush1.msra.mxu0 0.0
      %1716 = vmatprep.subr.mxu0 0.0
      %1717 = vmatpush1.msra.mxu0 %v1688
      %1718 = vmatprep.subr.mxu0 0.0
      %1719 = vmatpush1.msra.mxu0 %v1686
      %1720 = vmatprep.subr.mxu0 0.0
      %1721 = vmatpush1.msra.mxu0 %v1684
      %1722 = vmatprep.subr.mxu0 0.0
      %1723 = vmatpush1.msra.mxu0 %v1682
      %1724 = vmatprep.subr.mxu0 0.0
      %1725 = vmatpush1.msra.mxu0 %v1680
      %1726 = vmatprep.subr.mxu0 0.0
      %1727 = vmatpush1.msra.mxu0 %v1678
      %1728 = vmatprep.subr.mxu0 0.0
      %1729 = vmatpush1.msra.mxu0 %v1676
      %1730 = vmatprep.subr.mxu0 0.0
      %1731 = vmatpush1.msra.mxu0 %v1674
      %1732 = vmatprep.subr.mxu0 0.0
      %1733 = vmatpush2.msra.mxu0 0.0
      %1734 = vmatprep.subr.mxu0 0.0
      %1735 = vmatpush2.msra.mxu0 0.0
      %1736 = vmatprep.subr.mxu0 0.0
      %1737 = vmatpush2.msra.mxu0 0.0
      %1738 = vmatprep.subr.mxu0 0.0
      %1739 = vmatpush2.msra.mxu0 0.0
      %1740 = vmatprep.subr.mxu0 0.0
      %1741 = vmatpush2.msra.mxu0 0.0
      %1742 = vmatprep.subr.mxu0 0.0
      %1743 = vmatpush2.msra.mxu0 0.0
      %1744 = vmatprep.subr.mxu0 0.0
      %1745 = vmatpush2.msra.mxu0 0.0
      %1746 = vmatprep.subr.mxu0 0.0
      %1747 = vmatpush2.msra.mxu0 0.0
      %1748 = vmatprep.subr.mxu0 0.0
      %1749 = vmatpush2.msra.mxu0 0.0
      %1750 = vmatprep.subr.mxu0 0.0
      %1751 = vmatpush2.msra.mxu0 0.0
      %1752 = vmatprep.subr.mxu0 0.0
      %1753 = vmatpush2.msra.mxu0 0.0
      %1754 = vmatprep.subr.mxu0 0.0
      %1755 = vmatpush2.msra.mxu0 0.0
      %1756 = vmatprep.subr.mxu0 0.0
      %1757 = vmatpush2.msra.mxu0 0.0
      %1758 = vmatprep.subr.mxu0 0.0
      %1759 = vmatpush2.msra.mxu0 0.0
      %1760 = vmatprep.subr.mxu0 0.0
      %1761 = vmatpush2.msra.mxu0 0.0
      %1762 = vmatprep.subr.mxu0 0.0
      %1763 = vmatpush2.msra.mxu0 0.0
      %1764 = vmatprep.mubr.f32.mxu0 0.0
      %1765 = vmatmul.mubr.f32.gmra.mxu0 %v1698
      %v1766 = vpop.f32.mrf.mxu0
      %v1767 = vadd.f32 0.0, %v1766
      %v1768 = vpop.f32.mrf.mxu0
      %1769 = vdwg.mxu0
      %v1770 = vadd.f32 %v1670, %v1767
      %v1771 = vld [vmem:[#allocation2] sm:$0x1]
      %v1772 = vadd.f32 %v1770, %v1771
      %vm1773 = vcmask 0
      %1774 = vst.msk [vmem:[%s188] sm:$0x1] %vm1773, %v1772
      %p1775 = scmp.lt.s32.totalorder %s20, 1
      %s1776 = scalar_select %p1775, %s20, 1
      %p1777 = scmp.lt.s32.totalorder %s21, 0
      %s1778 = scalar_select %p1777, %s21, 0
      %s1779 = sadd.s32 %s1778, %s1776
      %s1780 = scalar_lea.vmem %s3, %s1779
      // Predicated region
      $region33: #{fwd.9} parent=31 // pred_check
        %p1781 = pneg %p116
      $region34: #{fwd.9} parent=31 // pred_check_branch
        %1783 = sbr.rel (%p1781) target = $region36
      $region35: #{fwd.9} parent=31 // pred_region
        _
      $region36: #{fwd.9} parent=31 // pred_fallthru
        _
    $region32: #{fwd.9} parent=5 // pred_fallthru
      _
    %p1784 = scmp.le.s32.totalorder 2, %s11
    // Predicated region
    $region37: #{fwd.9} parent=5 // pred_check
      %p1785 = pneg %p1784
    $region38: #{fwd.9} parent=5 // pred_check_branch
      %1787 = sbr.rel (%p1785) target = $region40
    $region39: #{fwd.9} parent=5 // pred_region
      %s1788 = ssub.s32 %s11, 2
      // Predicated region
      $region41: #{fwd.9} parent=39 // pred_check
        %p1789 = pneg %p122
      $region42: #{fwd.9} parent=39 // pred_check_branch
        %1791 = sbr.rel (%p1789) target = $region44
      $region43: #{fwd.9} parent=39 // pred_region
        %p1792 = scmp.lt.s32.totalorder %s22, 1
        %s1793 = scalar_select %p1792, %s22, 1
        %p1794 = scmp.lt.s32.totalorder %s23, 0
        %s1795 = scalar_select %p1794, %s23, 0
        %s1796 = sadd.s32 %s1795, %s1793
        %s1797 = scalar_lea.vmem %s3, %s1796
      $region44: #{fwd.9} parent=39 // pred_fallthru
        _
    $region40: #{fwd.9} parent=5 // pred_fallthru
      _
  $region6: #{fwd.9} parent=0 // loop_footer
    %s15 = sadd.s32 1, %s11
  $region7: #{fwd.9} parent=0 // loop_footer_branch
    %10 = sbr.rel target = $region3
  $region8: #{fwd.9} parent=0 // loop_exit
    _

</llo_original>
